<compile_context>
chip_gen: v5e
topology: v5e:2x2
jax: 0.10.0
libtpu: 0.0.40
codegen_flags: <defaults>
</compile_context>

<pallas_src>
import math

import jax
import jax.numpy as jnp
from jax import lax
from jax.experimental import pallas as pl
from jax.experimental.pallas import tpu as pltpu

LRELU_SLOPE = 0.1
ACT_DTYPE = jnp.bfloat16      # HBM activations + MXU operands
DIRECT_C_MIN = 128            # C >= this: shifted-dot conv (no im2col staging)

# Small, deterministic synthetic config (stands in for decoder.pth's 'config').
H = dict(
    sampling_rate=16000,
    hop_size=16,                      # prod of upsample_rates
    inter_channels=32,
    upsample_initial_channel=64,
    upsample_rates=(4, 4),
    upsample_kernel_sizes=(8, 8),
    resblock_kernel_sizes=(3,),
    resblock_dilation_sizes=((1, 3),),
)


def _leaky(x, alpha=LRELU_SLOPE):
    return jnp.where(x > 0, x, alpha * x)


# --------------------------------------------------------------------------
# pallas_call plumbing: grid over batch ("parallel"), per-batch (C, W) blocks,
# grid-invariant weight blocks, VMEM limit + cost estimate sized to the call.
# --------------------------------------------------------------------------
def _batch_spec(tail):
    nd = len(tail) + 1
    return pl.BlockSpec((None,) + tuple(tail),
                        lambda b, _nd=nd: (b,) + (0,) * (_nd - 1))


def _const_spec(shape):
    nd = len(shape)
    return pl.BlockSpec(tuple(shape), lambda b, _nd=nd: (0,) * _nd)


def _nbytes(shape, dtype):
    return math.prod(shape) * jnp.dtype(dtype).itemsize


def _call(kernel, x, weights, out_tail, out_dtype, scratch, *, B,
          flops=0, transcendentals=0):
    in_specs = [_batch_spec(x.shape[1:])] + [_const_spec(w.shape) for w in weights]
    out_specs = _batch_spec(out_tail)
    out_shape = jax.ShapeDtypeStruct((B,) + tuple(out_tail), out_dtype)
    scratch_shapes = [pltpu.VMEM(s, d) for s, d in scratch]

    # VMEM budget: double-buffered blocks (incl. grid-invariant weights) + scratch.
    block_bytes = 2 * (_nbytes(x.shape[1:], x.dtype) + _nbytes(out_tail, out_dtype))
    block_bytes += 2 * sum(_nbytes(w.shape, w.dtype) for w in weights)
    block_bytes += sum(_nbytes(s, d) for s, d in scratch)
    vmem_limit = int(min(64 << 20, max(32 << 20, block_bytes + (4 << 20))))

    bytes_accessed = int(B * (_nbytes(x.shape[1:], x.dtype)
                              + _nbytes(out_tail, out_dtype))
                         + sum(_nbytes(w.shape, w.dtype) for w in weights))
    return pl.pallas_call(
        kernel,
        out_shape=out_shape,
        grid=(B,),
        in_specs=in_specs,
        out_specs=out_specs,
        scratch_shapes=scratch_shapes,
        compiler_params=pltpu.CompilerParams(
            dimension_semantics=("parallel",),
            vmem_limit_bytes=vmem_limit),
        cost_estimate=pl.CostEstimate(flops=int(flops),
                                      transcendentals=int(transcendentals),
                                      bytes_accessed=bytes_accessed),
    )(x, *weights)


# --------------------------------------------------------------------------
# In-kernel helper: one same-length Conv1d reading a zero-padded (C, W) ref.
#   src_ref : holds the signal in columns [PM, PM+T); margins are zero.
#   w_ref   : (C_out, K*C) packed bf16 weight (tap-major C-column blocks)
#   im2col  : (>=K*C, T) bf16 scratch (only used for the small-C packed path)
#   preact  : apply leaky-relu to each tap slice (leaky(0)==0 keeps margins 0)
# Returns (C_out, T) float32 with bias added.
# --------------------------------------------------------------------------
def _conv1d_from_padded(src_ref, w_ref, b_ref, im2col, *, C, K, dil, pad, PM, T,
                        preact):
    def tap(k):
        off = PM - pad + k * dil
        s = src_ref[:, off:off + T]
        return _leaky(s) if preact else s

    if C >= DIRECT_C_MIN:
        # Large C: K shifted full-depth MXU dots, no staging stores at all.
        acc = jnp.zeros((w_ref.shape[0], T), jnp.float32)
        for k in range(K):
            acc = acc + jnp.dot(w_ref[:, k * C:(k + 1) * C], tap(k),
                                preferred_element_type=jnp.float32)
    else:
        # Small C: pack taps once, single deep contraction (MXU depth K*C).
        for k in range(K):
            im2col[k * C:(k + 1) * C, :] = tap(k).astype(ACT_DTYPE)
        acc = jnp.dot(w_ref[...], im2col[0:K * C, :],
                      preferred_element_type=jnp.float32)
    return acc + b_ref[...].astype(jnp.float32)


# --------------------------------------------------------------------------
# conv_pre kernel: padded input -> conv (no activation) -> padded output.
# --------------------------------------------------------------------------
def make_conv_pre(C_in, C_out, T, K, pad, out_margin):
    PM = pad
    W_out = T + 2 * out_margin
    use_packed = C_in < DIRECT_C_MIN

    def kernel(x_ref, w_ref, b_ref, o_ref, *scratch):
        im2col = scratch[0] if use_packed else None
        y = _conv1d_from_padded(x_ref, w_ref, b_ref, im2col, C=C_in, K=K, dil=1,
                                pad=pad, PM=PM, T=T, preact=False)
        if out_margin:
            o_ref[:, 0:out_margin] = jnp.zeros((C_out, out_margin), o_ref.dtype)
            o_ref[:, out_margin + T:W_out] = jnp.zeros((C_out, out_margin),
                                                       o_ref.dtype)
        o_ref[:, out_margin:out_margin + T] = y.astype(o_ref.dtype)

    scratch = [((K * C_in, T), ACT_DTYPE)] if use_packed else []
    flops = 2 * C_out * K * C_in * T
    return kernel, scratch, (C_out, W_out), flops


# --------------------------------------------------------------------------
# Polyphase ConvTranspose1d kernel: `stride` phase convs on the padded,
# un-stuffed input (leaky pre-activation fused).  Output is phase-major
# (s, C_out, Tp); the wrapper interleaves it (TODO above).
# --------------------------------------------------------------------------
def _upconv_geom(T, K, s, p):
    Kq = K // s
    L = (T - 1) * s + K - 2 * p
    Tp = L // s
    qs = [(r + p) // s for r in range(s)]
    PL = max([0] + [Kq - 1 - q for q in qs])
    PR = max([0] + [q + Tp - T for q in qs])
    return Tp, max(PL, PR), qs, Kq


def make_upconv(C_in, C_out, T, K, stride, padding):
    s, p = stride, padding
    assert K % s == 0 and (2 * p) % s == 0, "polyphase decomposition assumption"
    L = (T - 1) * s + K - 2 * p
    assert L % s == 0
    Tp, PM, qs, Kq = _upconv_geom(T, K, s, p)
    use_packed = C_in < DIRECT_C_MIN

    def kernel(x_ref, w_ref, b_ref, o_ref, *scratch):
        im2col = scratch[0] if use_packed else None
        bias = b_ref[...].astype(jnp.float32)
        for r in range(s):
            base = PM + qs[r] - (Kq - 1)

            def tap(l, _base=base):
                return _leaky(x_ref[:, _base + l:_base + l + Tp])

            if use_packed:
                for l in range(Kq):
                    im2col[l * C_in:(l + 1) * C_in, :] = tap(l).astype(ACT_DTYPE)
                y = jnp.dot(w_ref[r], im2col[0:Kq * C_in, :],
                            preferred_element_type=jnp.float32)
            else:
                y = jnp.zeros((C_out, Tp), jnp.float32)
                for l in range(Kq):
                    y = y + jnp.dot(w_ref[r, :, l * C_in:(l + 1) * C_in], tap(l),
                                    preferred_element_type=jnp.float32)
            o_ref[r] = (y + bias).astype(o_ref.dtype)

    scratch = [((Kq * C_in, Tp), ACT_DTYPE)] if use_packed else []
    flops = 2 * s * C_out * Kq * C_in * Tp
    return kernel, scratch, (s, C_out, Tp), Tp, PM, flops


# --------------------------------------------------------------------------
# Fused MRF stage kernel: all resblocks (leaky->c1->leaky->c2->+res per
# dilation), xs accumulation, /num_kernels; non-final stages emit a padded
# activation for the next upconv, the final stage fuses leaky -> conv_post
# (hoisted channel reduce) -> tanh.
# --------------------------------------------------------------------------
def make_mrf(C, T, res_cfg, num_kernels, out_margin, post_cfg=None):
    pads, Kmax = [], 1
    for k, ds in res_cfg:
        Kmax = max(Kmax, k)
        for d in ds:
            pads.append((k - 1) * d // 2)
        pads.append((k - 1) // 2)
    if post_cfg is not None:
        pads.append(post_cfg[1])
    PM = max(pads)
    W_in = T + 2 * PM
    W_out = T + 2 * out_margin
    inv_nk = 1.0 / float(num_kernels)
    use_packed = C < DIRECT_C_MIN
    if post_cfg is None:
        out_tail, out_dtype = (C, W_out), ACT_DTYPE
    else:
        out_tail, out_dtype = (1, T), jnp.float32

    def kernel(*refs):
        idx = 0
        x_ref = refs[idx]; idx += 1
        res_w = []
        for _, ds in res_cfg:
            per = []
            for _ in ds:
                per.append(refs[idx:idx + 4]); idx += 4
            res_w.append(per)
        if post_cfg is not None:
            wpost_ref, bpost_ref = refs[idx], refs[idx + 1]; idx += 2
        o_ref = refs[idx]; idx += 1
        padbuf = refs[idx]; idx += 1
        im2col = refs[idx] if use_packed else None

        # zero ONLY the pad margins; the center is always overwritten.
        if PM:
            padbuf[:, 0:PM] = jnp.zeros((C, PM), ACT_DTYPE)
            padbuf[:, PM + T:W_in] = jnp.zeros((C, PM), ACT_DTYPE)

        h = x_ref[:, PM:PM + T].astype(jnp.float32)
        xs = jnp.zeros((C, T), jnp.float32)
        for (k, ds), per in zip(res_cfg, res_w):
            hj = h
            hj_is_input = True        # hj is still exactly the (padded) kernel input
            for d, (w1, b1, w2, b2) in zip(ds, per):
                if hj_is_input:
                    src1 = x_ref          # read padded input directly (no copy)
                else:
                    padbuf[:, PM:PM + T] = _leaky(hj).astype(ACT_DTYPE)
                    src1 = padbuf
                t1 = _conv1d_from_padded(src1, w1, b1, im2col, C=C, K=k, dil=d,
                                         pad=(k - 1) * d // 2, PM=PM, T=T,
                                         preact=hj_is_input)
                padbuf[:, PM:PM + T] = _leaky(t1).astype(ACT_DTYPE)
                t2 = _conv1d_from_padded(padbuf, w2, b2, im2col, C=C, K=k, dil=1,
                                         pad=(k - 1) // 2, PM=PM, T=T,
                                         preact=False)
                hj = hj + t2
                hj_is_input = False
            xs = xs + hj
        hcur = xs * inv_nk

        if post_cfg is None:
            if out_margin:
                o_ref[:, 0:out_margin] = jnp.zeros((C, out_margin), o_ref.dtype)
                o_ref[:, out_margin + T:W_out] = jnp.zeros((C, out_margin),
                                                           o_ref.dtype)
            o_ref[:, out_margin:out_margin + T] = hcur.astype(o_ref.dtype)
        else:
            Kp, pp_pad = post_cfg
            padbuf[:, PM:PM + T] = _leaky(hcur).astype(ACT_DTYPE)
            wpost = wpost_ref[...].astype(jnp.float32)        # (C, Kp)
            bpost = bpost_ref[...].astype(jnp.float32)        # (1, 1)
            # hoisted channel reduction: accumulate (C, T) over taps on the
            # VPU, then ONE cross-sublane sum.
            acc_c = jnp.zeros((C, T), jnp.float32)
            for j in range(Kp):
                off = PM - pp_pad + j
                acc_c = acc_c + (padbuf[:, off:off + T].astype(jnp.float32)
                                 * wpost[:, j:j + 1])
            o_ref[...] = jnp.tanh(jnp.sum(acc_c, axis=0, keepdims=True)
                                  + bpost).astype(o_ref.dtype)

    scratch = [((C, W_in), ACT_DTYPE)]
    if use_packed:
        scratch.append(((Kmax * C, T), ACT_DTYPE))
    flops = 0
    for k, ds in res_cfg:
        flops += len(ds) * 2 * (2 * C * C * k * T)
    trans = 0
    if post_cfg is not None:
        flops += 2 * C * post_cfg[0] * T
        trans = T
    return kernel, scratch, out_tail, out_dtype, PM, flops, trans


# --------------------------------------------------------------------------
# One-time weight packing (torch layouts -> lane-dense packed bf16 operands).
# --------------------------------------------------------------------------
def pack_conv_weight(w):
    """(C_out, C_in, K) -> (C_out, K*C_in), tap-major C_in blocks."""
    C_out, C_in, K = w.shape
    return jnp.transpose(w, (0, 2, 1)).reshape(C_out, K * C_in).astype(ACT_DTYPE)


def pack_transpose_conv_weight(w, stride, padding):
    """(C_in, C_out, K) ConvTranspose1d -> (stride, C_out, Kq*C_in) polyphase."""
    C_in, C_out, K = w.shape
    s, p = stride, padding
    Kq = K // s
    phases = []
    for r in range(s):
        c = (r + p) % s
        taps = [jnp.transpose(w[:, :, s * (Kq - 1 - l) + c]) for l in range(Kq)]
        phases.append(jnp.concatenate(taps, axis=1))          # (C_out, Kq*C_in)
    return jnp.stack(phases, axis=0).astype(ACT_DTYPE)


def prepare_params(params, h):
    pp = {}
    pp["conv_pre_w"] = pack_conv_weight(params["conv_pre_w"])
    pp["conv_pre_b"] = params["conv_pre_b"].reshape(-1, 1).astype(jnp.float32)
    for i, (u, ku) in enumerate(zip(h["upsample_rates"], h["upsample_kernel_sizes"])):
        pp[f"up{i}_w"] = pack_transpose_conv_weight(params[f"up{i}_w"], u, (ku - u) // 2)
        pp[f"up{i}_b"] = params[f"up{i}_b"].reshape(-1, 1).astype(jnp.float32)
        for j, ds in enumerate(h["resblock_dilation_sizes"]):
            rp, out = params[f"res{i}_{j}"], {}
            for idx in range(len(ds)):
                out[f"c1_{idx}_w"] = pack_conv_weight(rp[f"c1_{idx}_w"])
                out[f"c1_{idx}_b"] = rp[f"c1_{idx}_b"].reshape(-1, 1).astype(jnp.float32)
                out[f"c2_{idx}_w"] = pack_conv_weight(rp[f"c2_{idx}_w"])
                out[f"c2_{idx}_b"] = rp[f"c2_{idx}_b"].reshape(-1, 1).astype(jnp.float32)
            pp[f"res{i}_{j}"] = out
    pp["conv_post_w"] = params["conv_post_w"][0].astype(jnp.float32)   # (C, 7)
    pp["conv_post_b"] = params["conv_post_b"].reshape(1, 1).astype(jnp.float32)
    return pp


# --------------------------------------------------------------------------
# Generator forward.  Activations live in HBM as (B, C, T + 2*margin) bf16
# with the next stage's pad margins baked in; the grid is over batch.
# --------------------------------------------------------------------------
def generator_forward(z, pp, h):
    B, Tf, C_in = z.shape
    rates, kus = h["upsample_rates"], h["upsample_kernel_sizes"]
    res_cfg = tuple(zip(h["resblock_kernel_sizes"], h["resblock_dilation_sizes"]))
    num_kernels = len(h["resblock_kernel_sizes"])
    uic = h["upsample_initial_channel"]
    n_up = len(rates)

    # static stage geometry (lengths + each upconv's required input margin)
    Ts, up_pm = [Tf], []
    for u, ku in zip(rates, kus):
        Tp, pm, _, _ = _upconv_geom(Ts[-1], ku, u, (ku - u) // 2)
        up_pm.append(pm)
        Ts.append(Tp * u)

    # (B, Tf, C) -> padded (B, C, Tf + 6) bf16 (padding baked into HBM layout)
    x = jnp.pad(jnp.transpose(z, (0, 2, 1)).astype(ACT_DTYPE),
                ((0, 0), (0, 0), (3, 3)))

    kern, scratch, out_tail, flops = make_conv_pre(C_in, uic, Tf, 7, 3, up_pm[0])
    x = _call(kern, x, [pp["conv_pre_w"], pp["conv_pre_b"]], out_tail, ACT_DTYPE,
              scratch, B=B, flops=flops)

    ch = uic
    for i, (u, ku) in enumerate(zip(rates, kus)):
        ch_out = ch // 2
        T_in, T_out = Ts[i], Ts[i + 1]

        kern, scratch, out_tail, Tp, _, flops = make_upconv(
            ch, ch_out, T_in, ku, u, (ku - u) // 2)
        y = _call(kern, x, [pp[f"up{i}_w"], pp[f"up{i}_b"]], out_tail, ACT_DTYPE,
                  scratch, B=B, flops=flops)

        last = (i == n_up - 1)
        post_cfg = (7, 3) if last else None
        out_margin = 0 if last else up_pm[i + 1]
        kern, scratch, out_tail, out_dtype, mrf_pm, flops, trans = make_mrf(
            ch_out, T_out, res_cfg, num_kernels, out_margin, post_cfg)

        # interleave the polyphase phases (s, C, Tp) -> (C, Tp*s) and pad for
        # the MRF input in one XLA pass.
        # TODO(synk): fold this relayout/pad into the MRF kernel to save an
        # HBM round trip per upsample stage.
        x_mrf = jnp.pad(
            jnp.transpose(y, (0, 2, 3, 1)).reshape(B, ch_out, Tp * u),
            ((0, 0), (0, 0), (mrf_pm, mrf_pm)))

        args = []
        for j in range(num_kernels):
            rp = pp[f"res{i}_{j}"]
            for idx in range(len(res_cfg[j][1])):
                args += [rp[f"c1_{idx}_w"], rp[f"c1_{idx}_b"],
                         rp[f"c2_{idx}_w"], rp[f"c2_{idx}_b"]]
        if last:
            args += [pp["conv_post_w"], pp["conv_post_b"]]
        x = _call(kern, x_mrf, args, out_tail, out_dtype, scratch, B=B,
                  flops=flops, transcendentals=trans)
        ch = ch_out

    return x        # (B, 1, T_total) float32


# --------------------------------------------------------------------------
# Pure-JAX f32 reference (torch-faithful) for numeric validation.
# --------------------------------------------------------------------------
def _ref_conv1d(x, w, b, dil=1, pad=0):
    y = lax.conv_general_dilated(x, w, window_strides=(1,), padding=[(pad, pad)],
                                 rhs_dilation=(dil,),
                                 dimension_numbers=("NCH", "OIH", "NCH"))
    return y + b[None, :, None]


def _ref_convT1d(x, w, b, stride, pad):
    K = w.shape[-1]
    wf = jnp.flip(jnp.transpose(w, (1, 0, 2)), axis=-1)
    y = lax.conv_general_dilated(x, wf, window_strides=(1,),
                                 padding=[(K - 1 - pad, K - 1 - pad)],
                                 lhs_dilation=(stride,),
                                 dimension_numbers=("NCH", "OIH", "NCH"))
    return y + b[None, :, None]


def reference_forward(z, params, h):
    x = jnp.transpose(z, (0, 2, 1)).astype(jnp.float32)
    x = _ref_conv1d(x, params["conv_pre_w"], params["conv_pre_b"], pad=3)
    nk = len(h["resblock_kernel_sizes"])
    for i, (u, ku) in enumerate(zip(h["upsample_rates"], h["upsample_kernel_sizes"])):
        x = _ref_convT1d(_leaky(x), params[f"up{i}_w"], params[f"up{i}_b"],
                         u, (ku - u) // 2)
        xs = None
        for j, (k, ds) in enumerate(zip(h["resblock_kernel_sizes"],
                                        h["resblock_dilation_sizes"])):
            rp = params[f"res{i}_{j}"]
            hj = x
            for idx, d in enumerate(ds):
                t = _ref_conv1d(_leaky(hj), rp[f"c1_{idx}_w"], rp[f"c1_{idx}_b"],
                                dil=d, pad=(k - 1) * d // 2)
                t = _ref_conv1d(_leaky(t), rp[f"c2_{idx}_w"], rp[f"c2_{idx}_b"],
                                dil=1, pad=(k - 1) // 2)
                hj = hj + t
            xs = hj if xs is None else xs + hj
        x = xs / nk
    x = _ref_conv1d(_leaky(x), params["conv_post_w"], params["conv_post_b"], pad=3)
    return jnp.tanh(x)


# --------------------------------------------------------------------------
# Synthetic deterministic weights (the module normally loads decoder.pth).
# --------------------------------------------------------------------------
def init_params(key, h):
    params = {}

    def conv_p(k, c_out, c_in, ksz):
        kw, kb = jax.random.split(k)
        return (0.02 * jax.random.normal(kw, (c_out, c_in, ksz), jnp.float32),
                0.01 * jax.random.normal(kb, (c_out,), jnp.float32))

    keys = iter(jax.random.split(key, 64))
    uic = h["upsample_initial_channel"]
    params["conv_pre_w"], params["conv_pre_b"] = conv_p(next(keys), uic,
                                                        h["inter_channels"], 7)
    ch = uic
    for i, (u, ku) in enumerate(zip(h["upsample_rates"], h["upsample_kernel_sizes"])):
        ch_out = ch // 2
        kw, kb = jax.random.split(next(keys))
        # ConvTranspose1d weight layout: (C_in, C_out, K)
        params[f"up{i}_w"] = 0.02 * jax.random.normal(kw, (ch, ch_out, ku), jnp.float32)
        params[f"up{i}_b"] = 0.01 * jax.random.normal(kb, (ch_out,), jnp.float32)
        for j, (k, ds) in enumerate(zip(h["resblock_kernel_sizes"],
                                        h["resblock_dilation_sizes"])):
            rp = {}
            for idx, _ in enumerate(ds):
                rp[f"c1_{idx}_w"], rp[f"c1_{idx}_b"] = conv_p(next(keys), ch_out, ch_out, k)
                rp[f"c2_{idx}_w"], rp[f"c2_{idx}_b"] = conv_p(next(keys), ch_out, ch_out, k)
            params[f"res{i}_{j}"] = rp
        ch = ch_out
    params["conv_post_w"], params["conv_post_b"] = conv_p(next(keys), 1, ch, 7)
    return params


class HifiVaeganPallas:
    """Pallas counterpart of Hifi_VAEGAN (decoder forward path only)."""
    # TODO(synk): encoder `extract()` and STFT `get_mel()` are not part of
    # forward() and are not implemented (they require checkpoint + STFT state).

    def __init__(self, h, params):
        self.h = h
        self.pp = prepare_params(params, h)     # one-time packed bf16 weights

    def sample_rate(self):
        return self.h["sampling_rate"]

    def hop_size(self):
        return self.h["hop_size"]

    def dimension(self):
        return self.h["inter_channels"]

    def __call__(self, z):
        # z: (B, T_frames, inter_channels) — matches torch forward's input,
        # which does z.transpose(-1, -2) before the Generator.
        return generator_forward(z, self.pp, self.h)


if __name__ == "__main__":
    key = jax.random.PRNGKey(0)
    kp, kz = jax.random.split(key)
    params = init_params(kp, H)

    B, Tf = 2, 8
    z = jax.random.normal(kz, (B, Tf, H["inter_channels"]), jnp.float32)

    model = HifiVaeganPallas(H, params)
    wav = jax.block_until_ready(jax.jit(model.__call__)(z))

    assert wav.shape == (B, 1, Tf * H["hop_size"]), wav.shape
    assert bool(jnp.all(jnp.isfinite(wav)))

    # Explicit-tolerance validation against the pure-JAX f32 reference
    # (bf16 inter-stage activations + bf16 packed weights cause small drift).
    ref = reference_forward(z, params, H)
    err = float(jnp.max(jnp.abs(wav - ref)))
    scale = float(jnp.max(jnp.abs(ref))) + 1e-6
    assert err <= 0.1 * scale + 1e-4, (err, scale)

    print("KERNEL_OK")
</pallas_src>

<mosaic_0001>
module attributes {stable_mosaic.version = 11 : i64} {
  func.func @kernel(%arg0: i32, %arg1: memref<1x32x14xbf16, #tpu.memory_space<vmem>>, %arg2: memref<64x224xbf16, #tpu.memory_space<vmem>>, %arg3: memref<64x1xf32, #tpu.memory_space<vmem>>, %arg4: memref<1x64x10xbf16, #tpu.memory_space<vmem>>, %arg5: memref<224x8xbf16, #tpu.memory_space<vmem>>) attributes {dimension_semantics = [#tpu.dimension_semantics<parallel>], iteration_bounds = array<i64: 2>, scalar_prefetch = 0 : i64, scratch_operands = 1 : i64, tpu.core_type = #tpu.core_type<tc>, window_params = [{transform_indices = @transform_0, window_bounds = array<i64: 1, 32, 14>}, {pipeline_mode = #tpu.pipeline_mode<synchronous>, transform_indices = @transform_1, window_bounds = array<i64: 64, 224>}, {pipeline_mode = #tpu.pipeline_mode<synchronous>, transform_indices = @transform_2, window_bounds = array<i64: 64, 1>}, {transform_indices = @transform_3, window_bounds = array<i64: 1, 64, 10>}]} {
    %c0 = arith.constant 0 : index
    %c0_0 = arith.constant 0 : index
    %c0_1 = arith.constant 0 : index
    %0 = vector.load %arg1[%c0, %c0_0, %c0_1] : memref<1x32x14xbf16, #tpu.memory_space<vmem>>, vector<1x32x8xbf16>
    %1 = vector.shape_cast %0 : vector<1x32x8xbf16> to vector<32x8xbf16>
    %c0_2 = arith.constant 0 : index
    %c0_3 = arith.constant 0 : index
    %2 = vector.load %arg5[%c0_2, %c0_3] : memref<224x8xbf16, #tpu.memory_space<vmem>>, vector<32x8xbf16>
    tpu.vector_store %arg5[%c0_2, %c0_3], %1 {strides = array<i32>} : memref<224x8xbf16, #tpu.memory_space<vmem>>, vector<32x8xbf16>,
    %c0_4 = arith.constant 0 : index
    %c0_5 = arith.constant 0 : index
    %c1 = arith.constant 1 : index
    %3 = vector.load %arg1[%c0_4, %c0_5, %c1] : memref<1x32x14xbf16, #tpu.memory_space<vmem>>, vector<1x32x8xbf16>
    %4 = vector.shape_cast %3 : vector<1x32x8xbf16> to vector<32x8xbf16>
    %c32 = arith.constant 32 : index
    %c0_6 = arith.constant 0 : index
    %5 = vector.load %arg5[%c32, %c0_6] : memref<224x8xbf16, #tpu.memory_space<vmem>>, vector<32x8xbf16>
    tpu.vector_store %arg5[%c32, %c0_6], %4 {strides = array<i32>} : memref<224x8xbf16, #tpu.memory_space<vmem>>, vector<32x8xbf16>,
    %c0_7 = arith.constant 0 : index
    %c0_8 = arith.constant 0 : index
    %c2 = arith.constant 2 : index
    %6 = vector.load %arg1[%c0_7, %c0_8, %c2] : memref<1x32x14xbf16, #tpu.memory_space<vmem>>, vector<1x32x8xbf16>
    %7 = vector.shape_cast %6 : vector<1x32x8xbf16> to vector<32x8xbf16>
    %c64 = arith.constant 64 : index
    %c0_9 = arith.constant 0 : index
    %8 = vector.load %arg5[%c64, %c0_9] : memref<224x8xbf16, #tpu.memory_space<vmem>>, vector<32x8xbf16>
    tpu.vector_store %arg5[%c64, %c0_9], %7 {strides = array<i32>} : memref<224x8xbf16, #tpu.memory_space<vmem>>, vector<32x8xbf16>,
    %c0_10 = arith.constant 0 : index
    %c0_11 = arith.constant 0 : index
    %c3 = arith.constant 3 : index
    %9 = vector.load %arg1[%c0_10, %c0_11, %c3] : memref<1x32x14xbf16, #tpu.memory_space<vmem>>, vector<1x32x8xbf16>
    %10 = vector.shape_cast %9 : vector<1x32x8xbf16> to vector<32x8xbf16>
    %c96 = arith.constant 96 : index
    %c0_12 = arith.constant 0 : index
    %11 = vector.load %arg5[%c96, %c0_12] : memref<224x8xbf16, #tpu.memory_space<vmem>>, vector<32x8xbf16>
    tpu.vector_store %arg5[%c96, %c0_12], %10 {strides = array<i32>} : memref<224x8xbf16, #tpu.memory_space<vmem>>, vector<32x8xbf16>,
    %c0_13 = arith.constant 0 : index
    %c0_14 = arith.constant 0 : index
    %c4 = arith.constant 4 : index
    %12 = vector.load %arg1[%c0_13, %c0_14, %c4] : memref<1x32x14xbf16, #tpu.memory_space<vmem>>, vector<1x32x8xbf16>
    %13 = vector.shape_cast %12 : vector<1x32x8xbf16> to vector<32x8xbf16>
    %c128 = arith.constant 128 : index
    %c0_15 = arith.constant 0 : index
    %14 = vector.load %arg5[%c128, %c0_15] : memref<224x8xbf16, #tpu.memory_space<vmem>>, vector<32x8xbf16>
    tpu.vector_store %arg5[%c128, %c0_15], %13 {strides = array<i32>} : memref<224x8xbf16, #tpu.memory_space<vmem>>, vector<32x8xbf16>,
    %c0_16 = arith.constant 0 : index
    %c0_17 = arith.constant 0 : index
    %c5 = arith.constant 5 : index
    %15 = vector.load %arg1[%c0_16, %c0_17, %c5] : memref<1x32x14xbf16, #tpu.memory_space<vmem>>, vector<1x32x8xbf16>
    %16 = vector.shape_cast %15 : vector<1x32x8xbf16> to vector<32x8xbf16>
    %c160 = arith.constant 160 : index
    %c0_18 = arith.constant 0 : index
    %17 = vector.load %arg5[%c160, %c0_18] : memref<224x8xbf16, #tpu.memory_space<vmem>>, vector<32x8xbf16>
    tpu.vector_store %arg5[%c160, %c0_18], %16 {strides = array<i32>} : memref<224x8xbf16, #tpu.memory_space<vmem>>, vector<32x8xbf16>,
    %c0_19 = arith.constant 0 : index
    %c0_20 = arith.constant 0 : index
    %c6 = arith.constant 6 : index
    %18 = vector.load %arg1[%c0_19, %c0_20, %c6] : memref<1x32x14xbf16, #tpu.memory_space<vmem>>, vector<1x32x8xbf16>
    %19 = vector.shape_cast %18 : vector<1x32x8xbf16> to vector<32x8xbf16>
    %c192 = arith.constant 192 : index
    %c0_21 = arith.constant 0 : index
    %20 = vector.load %arg5[%c192, %c0_21] : memref<224x8xbf16, #tpu.memory_space<vmem>>, vector<32x8xbf16>
    tpu.vector_store %arg5[%c192, %c0_21], %19 {strides = array<i32>} : memref<224x8xbf16, #tpu.memory_space<vmem>>, vector<32x8xbf16>,
    %c0_22 = arith.constant 0 : index
    %c0_23 = arith.constant 0 : index
    %21 = vector.load %arg2[%c0_22, %c0_23] : memref<64x224xbf16, #tpu.memory_space<vmem>>, vector<64x224xbf16>
    %c0_24 = arith.constant 0 : index
    %c0_25 = arith.constant 0 : index
    %22 = vector.load %arg5[%c0_24, %c0_25] : memref<224x8xbf16, #tpu.memory_space<vmem>>, vector<224x8xbf16>
    %cst = arith.constant dense<0.000000e+00> : vector<64x8xf32>
    %23 = tpu.matmul %21, %22, %cst {dimension_numbers = #tpu.dot_dimension_numbers<[1], [0], [0], [1], [0, 0, 1, 1], [], []>} : vector<64x224xbf16>, vector<224x8xbf16>, vector<64x8xf32> -> vector<64x8xf32>
    %c0_26 = arith.constant 0 : index
    %c0_27 = arith.constant 0 : index
    %24 = vector.load %arg3[%c0_26, %c0_27] : memref<64x1xf32, #tpu.memory_space<vmem>>, vector<64x1xf32>
    %25 = vector.broadcast %24 : vector<64x1xf32> to vector<64x8xf32>
    %26 = arith.addf %23, %25 : vector<64x8xf32>
    %cst_28 = arith.constant 0.000000e+00 : bf16
    %27 = vector.broadcast %cst_28 : bf16 to vector<64x1xbf16>
    %c0_29 = arith.constant 0 : index
    %c0_30 = arith.constant 0 : index
    %c0_31 = arith.constant 0 : index
    %28 = vector.load %arg4[%c0_29, %c0_30, %c0_31] : memref<1x64x10xbf16, #tpu.memory_space<vmem>>, vector<1x64x1xbf16>
    %29 = vector.shape_cast %28 : vector<1x64x1xbf16> to vector<64x1xbf16>
    %30 = vector.shape_cast %27 : vector<64x1xbf16> to vector<1x64x1xbf16>
    tpu.vector_store %arg4[%c0_29, %c0_30, %c0_31], %30 {strides = array<i32>} : memref<1x64x10xbf16, #tpu.memory_space<vmem>>, vector<1x64x1xbf16>,
    %cst_32 = arith.constant 0.000000e+00 : bf16
    %31 = vector.broadcast %cst_32 : bf16 to vector<64x1xbf16>
    %c0_33 = arith.constant 0 : index
    %c0_34 = arith.constant 0 : index
    %c9 = arith.constant 9 : index
    %32 = vector.load %arg4[%c0_33, %c0_34, %c9] : memref<1x64x10xbf16, #tpu.memory_space<vmem>>, vector<1x64x1xbf16>
    %33 = vector.shape_cast %32 : vector<1x64x1xbf16> to vector<64x1xbf16>
    %34 = vector.shape_cast %31 : vector<64x1xbf16> to vector<1x64x1xbf16>
    tpu.vector_store %arg4[%c0_33, %c0_34, %c9], %34 {strides = array<i32>} : memref<1x64x10xbf16, #tpu.memory_space<vmem>>, vector<1x64x1xbf16>,
    %35 = arith.truncf %26 : vector<64x8xf32> to vector<64x8xbf16>
    %c0_35 = arith.constant 0 : index
    %c0_36 = arith.constant 0 : index
    %c1_37 = arith.constant 1 : index
    %36 = vector.load %arg4[%c0_35, %c0_36, %c1_37] : memref<1x64x10xbf16, #tpu.memory_space<vmem>>, vector<1x64x8xbf16>
    %37 = vector.shape_cast %36 : vector<1x64x8xbf16> to vector<64x8xbf16>
    %38 = vector.shape_cast %35 : vector<64x8xbf16> to vector<1x64x8xbf16>
    tpu.vector_store %arg4[%c0_35, %c0_36, %c1_37], %38 {strides = array<i32>} : memref<1x64x10xbf16, #tpu.memory_space<vmem>>, vector<1x64x8xbf16>,
    return
  }
  func.func @transform_0(%arg0: i32) -> (i32, i32, i32) {
    %c0_i32 = arith.constant 0 : i32
    %c0_i32_0 = arith.constant 0 : i32
    %c0_i32_1 = arith.constant 0 : i32
    return %arg0, %c0_i32, %c0_i32_0 : i32, i32, i32
  }
  func.func @transform_1(%arg0: i32) -> (i32, i32) {
    %c0_i32 = arith.constant 0 : i32
    %c0_i32_0 = arith.constant 0 : i32
    %c0_i32_1 = arith.constant 0 : i32
    return %c0_i32, %c0_i32_0 : i32, i32
  }
  func.func @transform_2(%arg0: i32) -> (i32, i32) {
    %c0_i32 = arith.constant 0 : i32
    %c0_i32_0 = arith.constant 0 : i32
    %c0_i32_1 = arith.constant 0 : i32
    return %c0_i32, %c0_i32_0 : i32, i32
  }
  func.func @transform_3(%arg0: i32) -> (i32, i32, i32) {
    %c0_i32 = arith.constant 0 : i32
    %c0_i32_0 = arith.constant 0 : i32
    %c0_i32_1 = arith.constant 0 : i32
    return %arg0, %c0_i32, %c0_i32_0 : i32, i32, i32
  }
}

module attributes {stable_mosaic.version = 11 : i64} {
  func.func @kernel(%arg0: i32, %arg1: memref<1x64x10xbf16, #tpu.memory_space<vmem>>, %arg2: memref<4x32x128xbf16, #tpu.memory_space<vmem>>, %arg3: memref<32x1xf32, #tpu.memory_space<vmem>>, %arg4: memref<1x4x32x8xbf16, #tpu.memory_space<vmem>>, %arg5: memref<128x8xbf16, #tpu.memory_space<vmem>>) attributes {dimension_semantics = [#tpu.dimension_semantics<parallel>], iteration_bounds = array<i64: 2>, scalar_prefetch = 0 : i64, scratch_operands = 1 : i64, tpu.core_type = #tpu.core_type<tc>, window_params = [{transform_indices = @transform_0, window_bounds = array<i64: 1, 64, 10>}, {pipeline_mode = #tpu.pipeline_mode<synchronous>, transform_indices = @transform_1, window_bounds = array<i64: 4, 32, 128>}, {pipeline_mode = #tpu.pipeline_mode<synchronous>, transform_indices = @transform_2, window_bounds = array<i64: 32, 1>}, {transform_indices = @transform_3, window_bounds = array<i64: 1, 4, 32, 8>}]} {
    %c0 = arith.constant 0 : index
    %c0_0 = arith.constant 0 : index
    %0 = vector.load %arg3[%c0, %c0_0] : memref<32x1xf32, #tpu.memory_space<vmem>>, vector<32x1xf32>
    %c0_1 = arith.constant 0 : index
    %c0_2 = arith.constant 0 : index
    %c0_3 = arith.constant 0 : index
    %1 = vector.load %arg1[%c0_1, %c0_2, %c0_3] : memref<1x64x10xbf16, #tpu.memory_space<vmem>>, vector<1x64x8xbf16>
    %2 = vector.shape_cast %1 : vector<1x64x8xbf16> to vector<64x8xbf16>
    %cst = arith.constant 0.000000e+00 : bf16
    %3 = vector.broadcast %cst : bf16 to vector<64x8xbf16>
    %4 = arith.cmpf ogt, %2, %3 : vector<64x8xbf16>
    %cst_4 = arith.constant 1.000980e-01 : bf16
    %5 = vector.broadcast %cst_4 : bf16 to vector<64x8xbf16>
    %6 = arith.mulf %5, %2 : vector<64x8xbf16>
    %7 = arith.select %4, %2, %6 : vector<64x8xi1>, vector<64x8xbf16>
    %c0_5 = arith.constant 0 : index
    %c0_6 = arith.constant 0 : index
    %8 = vector.load %arg5[%c0_5, %c0_6] : memref<128x8xbf16, #tpu.memory_space<vmem>>, vector<64x8xbf16>
    tpu.vector_store %arg5[%c0_5, %c0_6], %7 {strides = array<i32>} : memref<128x8xbf16, #tpu.memory_space<vmem>>, vector<64x8xbf16>,
    %c0_7 = arith.constant 0 : index
    %c0_8 = arith.constant 0 : index
    %c1 = arith.constant 1 : index
    %9 = vector.load %arg1[%c0_7, %c0_8, %c1] : memref<1x64x10xbf16, #tpu.memory_space<vmem>>, vector<1x64x8xbf16>
    %10 = vector.shape_cast %9 : vector<1x64x8xbf16> to vector<64x8xbf16>
    %cst_9 = arith.constant 0.000000e+00 : bf16
    %11 = vector.broadcast %cst_9 : bf16 to vector<64x8xbf16>
    %12 = arith.cmpf ogt, %10, %11 : vector<64x8xbf16>
    %cst_10 = arith.constant 1.000980e-01 : bf16
    %13 = vector.broadcast %cst_10 : bf16 to vector<64x8xbf16>
    %14 = arith.mulf %13, %10 : vector<64x8xbf16>
    %15 = arith.select %12, %10, %14 : vector<64x8xi1>, vector<64x8xbf16>
    %c64 = arith.constant 64 : index
    %c0_11 = arith.constant 0 : index
    %16 = vector.load %arg5[%c64, %c0_11] : memref<128x8xbf16, #tpu.memory_space<vmem>>, vector<64x8xbf16>
    tpu.vector_store %arg5[%c64, %c0_11], %15 {strides = array<i32>} : memref<128x8xbf16, #tpu.memory_space<vmem>>, vector<64x8xbf16>,
    %c0_12 = arith.constant 0 : index
    %c0_13 = arith.constant 0 : index
    %c0_14 = arith.constant 0 : index
    %17 = vector.load %arg2[%c0_12, %c0_13, %c0_14] : memref<4x32x128xbf16, #tpu.memory_space<vmem>>, vector<1x32x128xbf16>
    %18 = vector.shape_cast %17 : vector<1x32x128xbf16> to vector<32x128xbf16>
    %c0_15 = arith.constant 0 : index
    %c0_16 = arith.constant 0 : index
    %19 = vector.load %arg5[%c0_15, %c0_16] : memref<128x8xbf16, #tpu.memory_space<vmem>>, vector<128x8xbf16>
    %cst_17 = arith.constant dense<0.000000e+00> : vector<32x8xf32>
    %20 = tpu.matmul %18, %19, %cst_17 {dimension_numbers = #tpu.dot_dimension_numbers<[1], [0], [0], [1], [0, 0, 1, 1], [], []>} : vector<32x128xbf16>, vector<128x8xbf16>, vector<32x8xf32> -> vector<32x8xf32>
    %21 = vector.broadcast %0 : vector<32x1xf32> to vector<32x8xf32>
    %22 = arith.addf %20, %21 : vector<32x8xf32>
    %23 = arith.truncf %22 : vector<32x8xf32> to vector<32x8xbf16>
    %c0_18 = arith.constant 0 : index
    %c0_19 = arith.constant 0 : index
    %c0_20 = arith.constant 0 : index
    %c0_21 = arith.constant 0 : index
    %24 = vector.load %arg4[%c0_18, %c0_19, %c0_20, %c0_21] : memref<1x4x32x8xbf16, #tpu.memory_space<vmem>>, vector<1x1x32x8xbf16>
    %25 = vector.shape_cast %24 : vector<1x1x32x8xbf16> to vector<32x8xbf16>
    %26 = vector.shape_cast %23 : vector<32x8xbf16> to vector<1x1x32x8xbf16>
    tpu.vector_store %arg4[%c0_18, %c0_19, %c0_20, %c0_21], %26 {strides = array<i32>} : memref<1x4x32x8xbf16, #tpu.memory_space<vmem>>, vector<1x1x32x8xbf16>,
    %c0_22 = arith.constant 0 : index
    %c0_23 = arith.constant 0 : index
    %c0_24 = arith.constant 0 : index
    %27 = vector.load %arg1[%c0_22, %c0_23, %c0_24] : memref<1x64x10xbf16, #tpu.memory_space<vmem>>, vector<1x64x8xbf16>
    %28 = vector.shape_cast %27 : vector<1x64x8xbf16> to vector<64x8xbf16>
    %cst_25 = arith.constant 0.000000e+00 : bf16
    %29 = vector.broadcast %cst_25 : bf16 to vector<64x8xbf16>
    %30 = arith.cmpf ogt, %28, %29 : vector<64x8xbf16>
    %cst_26 = arith.constant 1.000980e-01 : bf16
    %31 = vector.broadcast %cst_26 : bf16 to vector<64x8xbf16>
    %32 = arith.mulf %31, %28 : vector<64x8xbf16>
    %33 = arith.select %30, %28, %32 : vector<64x8xi1>, vector<64x8xbf16>
    %c0_27 = arith.constant 0 : index
    %c0_28 = arith.constant 0 : index
    %34 = vector.load %arg5[%c0_27, %c0_28] : memref<128x8xbf16, #tpu.memory_space<vmem>>, vector<64x8xbf16>
    tpu.vector_store %arg5[%c0_27, %c0_28], %33 {strides = array<i32>} : memref<128x8xbf16, #tpu.memory_space<vmem>>, vector<64x8xbf16>,
    %c0_29 = arith.constant 0 : index
    %c0_30 = arith.constant 0 : index
    %c1_31 = arith.constant 1 : index
    %35 = vector.load %arg1[%c0_29, %c0_30, %c1_31] : memref<1x64x10xbf16, #tpu.memory_space<vmem>>, vector<1x64x8xbf16>
    %36 = vector.shape_cast %35 : vector<1x64x8xbf16> to vector<64x8xbf16>
    %cst_32 = arith.constant 0.000000e+00 : bf16
    %37 = vector.broadcast %cst_32 : bf16 to vector<64x8xbf16>
    %38 = arith.cmpf ogt, %36, %37 : vector<64x8xbf16>
    %cst_33 = arith.constant 1.000980e-01 : bf16
    %39 = vector.broadcast %cst_33 : bf16 to vector<64x8xbf16>
    %40 = arith.mulf %39, %36 : vector<64x8xbf16>
    %41 = arith.select %38, %36, %40 : vector<64x8xi1>, vector<64x8xbf16>
    %c64_34 = arith.constant 64 : index
    %c0_35 = arith.constant 0 : index
    %42 = vector.load %arg5[%c64_34, %c0_35] : memref<128x8xbf16, #tpu.memory_space<vmem>>, vector<64x8xbf16>
    tpu.vector_store %arg5[%c64_34, %c0_35], %41 {strides = array<i32>} : memref<128x8xbf16, #tpu.memory_space<vmem>>, vector<64x8xbf16>,
    %c1_36 = arith.constant 1 : index
    %c0_37 = arith.constant 0 : index
    %c0_38 = arith.constant 0 : index
    %43 = vector.load %arg2[%c1_36, %c0_37, %c0_38] : memref<4x32x128xbf16, #tpu.memory_space<vmem>>, vector<1x32x128xbf16>
    %44 = vector.shape_cast %43 : vector<1x32x128xbf16> to vector<32x128xbf16>
    %c0_39 = arith.constant 0 : index
    %c0_40 = arith.constant 0 : index
    %45 = vector.load %arg5[%c0_39, %c0_40] : memref<128x8xbf16, #tpu.memory_space<vmem>>, vector<128x8xbf16>
    %cst_41 = arith.constant dense<0.000000e+00> : vector<32x8xf32>
    %46 = tpu.matmul %44, %45, %cst_41 {dimension_numbers = #tpu.dot_dimension_numbers<[1], [0], [0], [1], [0, 0, 1, 1], [], []>} : vector<32x128xbf16>, vector<128x8xbf16>, vector<32x8xf32> -> vector<32x8xf32>
    %47 = vector.broadcast %0 : vector<32x1xf32> to vector<32x8xf32>
    %48 = arith.addf %46, %47 : vector<32x8xf32>
    %49 = arith.truncf %48 : vector<32x8xf32> to vector<32x8xbf16>
    %c0_42 = arith.constant 0 : index
    %c1_43 = arith.constant 1 : index
    %c0_44 = arith.constant 0 : index
    %c0_45 = arith.constant 0 : index
    %50 = vector.load %arg4[%c0_42, %c1_43, %c0_44, %c0_45] : memref<1x4x32x8xbf16, #tpu.memory_space<vmem>>, vector<1x1x32x8xbf16>
    %51 = vector.shape_cast %50 : vector<1x1x32x8xbf16> to vector<32x8xbf16>
    %52 = vector.shape_cast %49 : vector<32x8xbf16> to vector<1x1x32x8xbf16>
    tpu.vector_store %arg4[%c0_42, %c1_43, %c0_44, %c0_45], %52 {strides = array<i32>} : memref<1x4x32x8xbf16, #tpu.memory_space<vmem>>, vector<1x1x32x8xbf16>,
    %c0_46 = arith.constant 0 : index
    %c0_47 = arith.constant 0 : index
    %c1_48 = arith.constant 1 : index
    %53 = vector.load %arg1[%c0_46, %c0_47, %c1_48] : memref<1x64x10xbf16, #tpu.memory_space<vmem>>, vector<1x64x8xbf16>
    %54 = vector.shape_cast %53 : vector<1x64x8xbf16> to vector<64x8xbf16>
    %cst_49 = arith.constant 0.000000e+00 : bf16
    %55 = vector.broadcast %cst_49 : bf16 to vector<64x8xbf16>
    %56 = arith.cmpf ogt, %54, %55 : vector<64x8xbf16>
    %cst_50 = arith.constant 1.000980e-01 : bf16
    %57 = vector.broadcast %cst_50 : bf16 to vector<64x8xbf16>
    %58 = arith.mulf %57, %54 : vector<64x8xbf16>
    %59 = arith.select %56, %54, %58 : vector<64x8xi1>, vector<64x8xbf16>
    %c0_51 = arith.constant 0 : index
    %c0_52 = arith.constant 0 : index
    %60 = vector.load %arg5[%c0_51, %c0_52] : memref<128x8xbf16, #tpu.memory_space<vmem>>, vector<64x8xbf16>
    tpu.vector_store %arg5[%c0_51, %c0_52], %59 {strides = array<i32>} : memref<128x8xbf16, #tpu.memory_space<vmem>>, vector<64x8xbf16>,
    %c0_53 = arith.constant 0 : index
    %c0_54 = arith.constant 0 : index
    %c2 = arith.constant 2 : index
    %61 = vector.load %arg1[%c0_53, %c0_54, %c2] : memref<1x64x10xbf16, #tpu.memory_space<vmem>>, vector<1x64x8xbf16>
    %62 = vector.shape_cast %61 : vector<1x64x8xbf16> to vector<64x8xbf16>
    %cst_55 = arith.constant 0.000000e+00 : bf16
    %63 = vector.broadcast %cst_55 : bf16 to vector<64x8xbf16>
    %64 = arith.cmpf ogt, %62, %63 : vector<64x8xbf16>
    %cst_56 = arith.constant 1.000980e-01 : bf16
    %65 = vector.broadcast %cst_56 : bf16 to vector<64x8xbf16>
    %66 = arith.mulf %65, %62 : vector<64x8xbf16>
    %67 = arith.select %64, %62, %66 : vector<64x8xi1>, vector<64x8xbf16>
    %c64_57 = arith.constant 64 : index
    %c0_58 = arith.constant 0 : index
    %68 = vector.load %arg5[%c64_57, %c0_58] : memref<128x8xbf16, #tpu.memory_space<vmem>>, vector<64x8xbf16>
    tpu.vector_store %arg5[%c64_57, %c0_58], %67 {strides = array<i32>} : memref<128x8xbf16, #tpu.memory_space<vmem>>, vector<64x8xbf16>,
    %c2_59 = arith.constant 2 : index
    %c0_60 = arith.constant 0 : index
    %c0_61 = arith.constant 0 : index
    %69 = vector.load %arg2[%c2_59, %c0_60, %c0_61] : memref<4x32x128xbf16, #tpu.memory_space<vmem>>, vector<1x32x128xbf16>
    %70 = vector.shape_cast %69 : vector<1x32x128xbf16> to vector<32x128xbf16>
    %c0_62 = arith.constant 0 : index
    %c0_63 = arith.constant 0 : index
    %71 = vector.load %arg5[%c0_62, %c0_63] : memref<128x8xbf16, #tpu.memory_space<vmem>>, vector<128x8xbf16>
    %cst_64 = arith.constant dense<0.000000e+00> : vector<32x8xf32>
    %72 = tpu.matmul %70, %71, %cst_64 {dimension_numbers = #tpu.dot_dimension_numbers<[1], [0], [0], [1], [0, 0, 1, 1], [], []>} : vector<32x128xbf16>, vector<128x8xbf16>, vector<32x8xf32> -> vector<32x8xf32>
    %73 = vector.broadcast %0 : vector<32x1xf32> to vector<32x8xf32>
    %74 = arith.addf %72, %73 : vector<32x8xf32>
    %75 = arith.truncf %74 : vector<32x8xf32> to vector<32x8xbf16>
    %c0_65 = arith.constant 0 : index
    %c2_66 = arith.constant 2 : index
    %c0_67 = arith.constant 0 : index
    %c0_68 = arith.constant 0 : index
    %76 = vector.load %arg4[%c0_65, %c2_66, %c0_67, %c0_68] : memref<1x4x32x8xbf16, #tpu.memory_space<vmem>>, vector<1x1x32x8xbf16>
    %77 = vector.shape_cast %76 : vector<1x1x32x8xbf16> to vector<32x8xbf16>
    %78 = vector.shape_cast %75 : vector<32x8xbf16> to vector<1x1x32x8xbf16>
    tpu.vector_store %arg4[%c0_65, %c2_66, %c0_67, %c0_68], %78 {strides = array<i32>} : memref<1x4x32x8xbf16, #tpu.memory_space<vmem>>, vector<1x1x32x8xbf16>,
    %c0_69 = arith.constant 0 : index
    %c0_70 = arith.constant 0 : index
    %c1_71 = arith.constant 1 : index
    %79 = vector.load %arg1[%c0_69, %c0_70, %c1_71] : memref<1x64x10xbf16, #tpu.memory_space<vmem>>, vector<1x64x8xbf16>
    %80 = vector.shape_cast %79 : vector<1x64x8xbf16> to vector<64x8xbf16>
    %cst_72 = arith.constant 0.000000e+00 : bf16
    %81 = vector.broadcast %cst_72 : bf16 to vector<64x8xbf16>
    %82 = arith.cmpf ogt, %80, %81 : vector<64x8xbf16>
    %cst_73 = arith.constant 1.000980e-01 : bf16
    %83 = vector.broadcast %cst_73 : bf16 to vector<64x8xbf16>
    %84 = arith.mulf %83, %80 : vector<64x8xbf16>
    %85 = arith.select %82, %80, %84 : vector<64x8xi1>, vector<64x8xbf16>
    %c0_74 = arith.constant 0 : index
    %c0_75 = arith.constant 0 : index
    %86 = vector.load %arg5[%c0_74, %c0_75] : memref<128x8xbf16, #tpu.memory_space<vmem>>, vector<64x8xbf16>
    tpu.vector_store %arg5[%c0_74, %c0_75], %85 {strides = array<i32>} : memref<128x8xbf16, #tpu.memory_space<vmem>>, vector<64x8xbf16>,
    %c0_76 = arith.constant 0 : index
    %c0_77 = arith.constant 0 : index
    %c2_78 = arith.constant 2 : index
    %87 = vector.load %arg1[%c0_76, %c0_77, %c2_78] : memref<1x64x10xbf16, #tpu.memory_space<vmem>>, vector<1x64x8xbf16>
    %88 = vector.shape_cast %87 : vector<1x64x8xbf16> to vector<64x8xbf16>
    %cst_79 = arith.constant 0.000000e+00 : bf16
    %89 = vector.broadcast %cst_79 : bf16 to vector<64x8xbf16>
    %90 = arith.cmpf ogt, %88, %89 : vector<64x8xbf16>
    %cst_80 = arith.constant 1.000980e-01 : bf16
    %91 = vector.broadcast %cst_80 : bf16 to vector<64x8xbf16>
    %92 = arith.mulf %91, %88 : vector<64x8xbf16>
    %93 = arith.select %90, %88, %92 : vector<64x8xi1>, vector<64x8xbf16>
    %c64_81 = arith.constant 64 : index
    %c0_82 = arith.constant 0 : index
    %94 = vector.load %arg5[%c64_81, %c0_82] : memref<128x8xbf16, #tpu.memory_space<vmem>>, vector<64x8xbf16>
    tpu.vector_store %arg5[%c64_81, %c0_82], %93 {strides = array<i32>} : memref<128x8xbf16, #tpu.memory_space<vmem>>, vector<64x8xbf16>,
    %c3 = arith.constant 3 : index
    %c0_83 = arith.constant 0 : index
    %c0_84 = arith.constant 0 : index
    %95 = vector.load %arg2[%c3, %c0_83, %c0_84] : memref<4x32x128xbf16, #tpu.memory_space<vmem>>, vector<1x32x128xbf16>
    %96 = vector.shape_cast %95 : vector<1x32x128xbf16> to vector<32x128xbf16>
    %c0_85 = arith.constant 0 : index
    %c0_86 = arith.constant 0 : index
    %97 = vector.load %arg5[%c0_85, %c0_86] : memref<128x8xbf16, #tpu.memory_space<vmem>>, vector<128x8xbf16>
    %cst_87 = arith.constant dense<0.000000e+00> : vector<32x8xf32>
    %98 = tpu.matmul %96, %97, %cst_87 {dimension_numbers = #tpu.dot_dimension_numbers<[1], [0], [0], [1], [0, 0, 1, 1], [], []>} : vector<32x128xbf16>, vector<128x8xbf16>, vector<32x8xf32> -> vector<32x8xf32>
    %99 = vector.broadcast %0 : vector<32x1xf32> to vector<32x8xf32>
    %100 = arith.addf %98, %99 : vector<32x8xf32>
    %101 = arith.truncf %100 : vector<32x8xf32> to vector<32x8xbf16>
    %c0_88 = arith.constant 0 : index
    %c3_89 = arith.constant 3 : index
    %c0_90 = arith.constant 0 : index
    %c0_91 = arith.constant 0 : index
    %102 = vector.load %arg4[%c0_88, %c3_89, %c0_90, %c0_91] : memref<1x4x32x8xbf16, #tpu.memory_space<vmem>>, vector<1x1x32x8xbf16>
    %103 = vector.shape_cast %102 : vector<1x1x32x8xbf16> to vector<32x8xbf16>
    %104 = vector.shape_cast %101 : vector<32x8xbf16> to vector<1x1x32x8xbf16>
    tpu.vector_store %arg4[%c0_88, %c3_89, %c0_90, %c0_91], %104 {strides = array<i32>} : memref<1x4x32x8xbf16, #tpu.memory_space<vmem>>, vector<1x1x32x8xbf16>,
    return
  }
  func.func @transform_0(%arg0: i32) -> (i32, i32, i32) {
    %c0_i32 = arith.constant 0 : i32
    %c0_i32_0 = arith.constant 0 : i32
    %c0_i32_1 = arith.constant 0 : i32
    return %arg0, %c0_i32, %c0_i32_0 : i32, i32, i32
  }
  func.func @transform_1(%arg0: i32) -> (i32, i32, i32) {
    %c0_i32 = arith.constant 0 : i32
    %c0_i32_0 = arith.constant 0 : i32
    %c0_i32_1 = arith.constant 0 : i32
    %c0_i32_2 = arith.constant 0 : i32
    return %c0_i32, %c0_i32_0, %c0_i32_1 : i32, i32, i32
  }
  func.func @transform_2(%arg0: i32) -> (i32, i32) {
    %c0_i32 = arith.constant 0 : i32
    %c0_i32_0 = arith.constant 0 : i32
    %c0_i32_1 = arith.constant 0 : i32
    return %c0_i32, %c0_i32_0 : i32, i32
  }
  func.func @transform_3(%arg0: i32) -> (i32, i32, i32, i32) {
    %c0_i32 = arith.constant 0 : i32
    %c0_i32_0 = arith.constant 0 : i32
    %c0_i32_1 = arith.constant 0 : i32
    %c0_i32_2 = arith.constant 0 : i32
    return %arg0, %c0_i32, %c0_i32_0, %c0_i32_1 : i32, i32, i32, i32
  }
}

module attributes {stable_mosaic.version = 11 : i64} {
  func.func @kernel(%arg0: i32, %arg1: memref<1x32x34xbf16, #tpu.memory_space<vmem>>, %arg2: memref<4x16x64xbf16, #tpu.memory_space<vmem>>, %arg3: memref<16x1xf32, #tpu.memory_space<vmem>>, %arg4: memref<1x4x16x32xbf16, #tpu.memory_space<vmem>>, %arg5: memref<64x32xbf16, #tpu.memory_space<vmem>>) attributes {dimension_semantics = [#tpu.dimension_semantics<parallel>], iteration_bounds = array<i64: 2>, scalar_prefetch = 0 : i64, scratch_operands = 1 : i64, tpu.core_type = #tpu.core_type<tc>, window_params = [{transform_indices = @transform_0, window_bounds = array<i64: 1, 32, 34>}, {pipeline_mode = #tpu.pipeline_mode<synchronous>, transform_indices = @transform_1, window_bounds = array<i64: 4, 16, 64>}, {pipeline_mode = #tpu.pipeline_mode<synchronous>, transform_indices = @transform_2, window_bounds = array<i64: 16, 1>}, {transform_indices = @transform_3, window_bounds = array<i64: 1, 4, 16, 32>}]} {
    %c0 = arith.constant 0 : index
    %c0_0 = arith.constant 0 : index
    %0 = vector.load %arg3[%c0, %c0_0] : memref<16x1xf32, #tpu.memory_space<vmem>>, vector<16x1xf32>
    %c0_1 = arith.constant 0 : index
    %c0_2 = arith.constant 0 : index
    %c0_3 = arith.constant 0 : index
    %1 = vector.load %arg1[%c0_1, %c0_2, %c0_3] : memref<1x32x34xbf16, #tpu.memory_space<vmem>>, vector<1x32x32xbf16>
    %2 = vector.shape_cast %1 : vector<1x32x32xbf16> to vector<32x32xbf16>
    %cst = arith.constant 0.000000e+00 : bf16
    %3 = vector.broadcast %cst : bf16 to vector<32x32xbf16>
    %4 = arith.cmpf ogt, %2, %3 : vector<32x32xbf16>
    %cst_4 = arith.constant 1.000980e-01 : bf16
    %5 = vector.broadcast %cst_4 : bf16 to vector<32x32xbf16>
    %6 = arith.mulf %5, %2 : vector<32x32xbf16>
    %7 = arith.select %4, %2, %6 : vector<32x32xi1>, vector<32x32xbf16>
    %c0_5 = arith.constant 0 : index
    %c0_6 = arith.constant 0 : index
    %8 = vector.load %arg5[%c0_5, %c0_6] : memref<64x32xbf16, #tpu.memory_space<vmem>>, vector<32x32xbf16>
    tpu.vector_store %arg5[%c0_5, %c0_6], %7 {strides = array<i32>} : memref<64x32xbf16, #tpu.memory_space<vmem>>, vector<32x32xbf16>,
    %c0_7 = arith.constant 0 : index
    %c0_8 = arith.constant 0 : index
    %c1 = arith.constant 1 : index
    %9 = vector.load %arg1[%c0_7, %c0_8, %c1] : memref<1x32x34xbf16, #tpu.memory_space<vmem>>, vector<1x32x32xbf16>
    %10 = vector.shape_cast %9 : vector<1x32x32xbf16> to vector<32x32xbf16>
    %cst_9 = arith.constant 0.000000e+00 : bf16
    %11 = vector.broadcast %cst_9 : bf16 to vector<32x32xbf16>
    %12 = arith.cmpf ogt, %10, %11 : vector<32x32xbf16>
    %cst_10 = arith.constant 1.000980e-01 : bf16
    %13 = vector.broadcast %cst_10 : bf16 to vector<32x32xbf16>
    %14 = arith.mulf %13, %10 : vector<32x32xbf16>
    %15 = arith.select %12, %10, %14 : vector<32x32xi1>, vector<32x32xbf16>
    %c32 = arith.constant 32 : index
    %c0_11 = arith.constant 0 : index
    %16 = vector.load %arg5[%c32, %c0_11] : memref<64x32xbf16, #tpu.memory_space<vmem>>, vector<32x32xbf16>
    tpu.vector_store %arg5[%c32, %c0_11], %15 {strides = array<i32>} : memref<64x32xbf16, #tpu.memory_space<vmem>>, vector<32x32xbf16>,
    %c0_12 = arith.constant 0 : index
    %c0_13 = arith.constant 0 : index
    %c0_14 = arith.constant 0 : index
    %17 = vector.load %arg2[%c0_12, %c0_13, %c0_14] : memref<4x16x64xbf16, #tpu.memory_space<vmem>>, vector<1x16x64xbf16>
    %18 = vector.shape_cast %17 : vector<1x16x64xbf16> to vector<16x64xbf16>
    %c0_15 = arith.constant 0 : index
    %c0_16 = arith.constant 0 : index
    %19 = vector.load %arg5[%c0_15, %c0_16] : memref<64x32xbf16, #tpu.memory_space<vmem>>, vector<64x32xbf16>
    %cst_17 = arith.constant dense<0.000000e+00> : vector<16x32xf32>
    %20 = tpu.matmul %18, %19, %cst_17 {dimension_numbers = #tpu.dot_dimension_numbers<[1], [0], [0], [1], [0, 0, 1, 1], [], []>} : vector<16x64xbf16>, vector<64x32xbf16>, vector<16x32xf32> -> vector<16x32xf32>
    %21 = vector.broadcast %0 : vector<16x1xf32> to vector<16x32xf32>
    %22 = arith.addf %20, %21 : vector<16x32xf32>
    %23 = arith.truncf %22 : vector<16x32xf32> to vector<16x32xbf16>
    %c0_18 = arith.constant 0 : index
    %c0_19 = arith.constant 0 : index
    %c0_20 = arith.constant 0 : index
    %c0_21 = arith.constant 0 : index
    %24 = vector.load %arg4[%c0_18, %c0_19, %c0_20, %c0_21] : memref<1x4x16x32xbf16, #tpu.memory_space<vmem>>, vector<1x1x16x32xbf16>
    %25 = vector.shape_cast %24 : vector<1x1x16x32xbf16> to vector<16x32xbf16>
    %26 = vector.shape_cast %23 : vector<16x32xbf16> to vector<1x1x16x32xbf16>
    tpu.vector_store %arg4[%c0_18, %c0_19, %c0_20, %c0_21], %26 {strides = array<i32>} : memref<1x4x16x32xbf16, #tpu.memory_space<vmem>>, vector<1x1x16x32xbf16>,
    %c0_22 = arith.constant 0 : index
    %c0_23 = arith.constant 0 : index
    %c0_24 = arith.constant 0 : index
    %27 = vector.load %arg1[%c0_22, %c0_23, %c0_24] : memref<1x32x34xbf16, #tpu.memory_space<vmem>>, vector<1x32x32xbf16>
    %28 = vector.shape_cast %27 : vector<1x32x32xbf16> to vector<32x32xbf16>
    %cst_25 = arith.constant 0.000000e+00 : bf16
    %29 = vector.broadcast %cst_25 : bf16 to vector<32x32xbf16>
    %30 = arith.cmpf ogt, %28, %29 : vector<32x32xbf16>
    %cst_26 = arith.constant 1.000980e-01 : bf16
    %31 = vector.broadcast %cst_26 : bf16 to vector<32x32xbf16>
    %32 = arith.mulf %31, %28 : vector<32x32xbf16>
    %33 = arith.select %30, %28, %32 : vector<32x32xi1>, vector<32x32xbf16>
    %c0_27 = arith.constant 0 : index
    %c0_28 = arith.constant 0 : index
    %34 = vector.load %arg5[%c0_27, %c0_28] : memref<64x32xbf16, #tpu.memory_space<vmem>>, vector<32x32xbf16>
    tpu.vector_store %arg5[%c0_27, %c0_28], %33 {strides = array<i32>} : memref<64x32xbf16, #tpu.memory_space<vmem>>, vector<32x32xbf16>,
    %c0_29 = arith.constant 0 : index
    %c0_30 = arith.constant 0 : index
    %c1_31 = arith.constant 1 : index
    %35 = vector.load %arg1[%c0_29, %c0_30, %c1_31] : memref<1x32x34xbf16, #tpu.memory_space<vmem>>, vector<1x32x32xbf16>
    %36 = vector.shape_cast %35 : vector<1x32x32xbf16> to vector<32x32xbf16>
    %cst_32 = arith.constant 0.000000e+00 : bf16
    %37 = vector.broadcast %cst_32 : bf16 to vector<32x32xbf16>
    %38 = arith.cmpf ogt, %36, %37 : vector<32x32xbf16>
    %cst_33 = arith.constant 1.000980e-01 : bf16
    %39 = vector.broadcast %cst_33 : bf16 to vector<32x32xbf16>
    %40 = arith.mulf %39, %36 : vector<32x32xbf16>
    %41 = arith.select %38, %36, %40 : vector<32x32xi1>, vector<32x32xbf16>
    %c32_34 = arith.constant 32 : index
    %c0_35 = arith.constant 0 : index
    %42 = vector.load %arg5[%c32_34, %c0_35] : memref<64x32xbf16, #tpu.memory_space<vmem>>, vector<32x32xbf16>
    tpu.vector_store %arg5[%c32_34, %c0_35], %41 {strides = array<i32>} : memref<64x32xbf16, #tpu.memory_space<vmem>>, vector<32x32xbf16>,
    %c1_36 = arith.constant 1 : index
    %c0_37 = arith.constant 0 : index
    %c0_38 = arith.constant 0 : index
    %43 = vector.load %arg2[%c1_36, %c0_37, %c0_38] : memref<4x16x64xbf16, #tpu.memory_space<vmem>>, vector<1x16x64xbf16>
    %44 = vector.shape_cast %43 : vector<1x16x64xbf16> to vector<16x64xbf16>
    %c0_39 = arith.constant 0 : index
    %c0_40 = arith.constant 0 : index
    %45 = vector.load %arg5[%c0_39, %c0_40] : memref<64x32xbf16, #tpu.memory_space<vmem>>, vector<64x32xbf16>
    %cst_41 = arith.constant dense<0.000000e+00> : vector<16x32xf32>
    %46 = tpu.matmul %44, %45, %cst_41 {dimension_numbers = #tpu.dot_dimension_numbers<[1], [0], [0], [1], [0, 0, 1, 1], [], []>} : vector<16x64xbf16>, vector<64x32xbf16>, vector<16x32xf32> -> vector<16x32xf32>
    %47 = vector.broadcast %0 : vector<16x1xf32> to vector<16x32xf32>
    %48 = arith.addf %46, %47 : vector<16x32xf32>
    %49 = arith.truncf %48 : vector<16x32xf32> to vector<16x32xbf16>
    %c0_42 = arith.constant 0 : index
    %c1_43 = arith.constant 1 : index
    %c0_44 = arith.constant 0 : index
    %c0_45 = arith.constant 0 : index
    %50 = vector.load %arg4[%c0_42, %c1_43, %c0_44, %c0_45] : memref<1x4x16x32xbf16, #tpu.memory_space<vmem>>, vector<1x1x16x32xbf16>
    %51 = vector.shape_cast %50 : vector<1x1x16x32xbf16> to vector<16x32xbf16>
    %52 = vector.shape_cast %49 : vector<16x32xbf16> to vector<1x1x16x32xbf16>
    tpu.vector_store %arg4[%c0_42, %c1_43, %c0_44, %c0_45], %52 {strides = array<i32>} : memref<1x4x16x32xbf16, #tpu.memory_space<vmem>>, vector<1x1x16x32xbf16>,
    %c0_46 = arith.constant 0 : index
    %c0_47 = arith.constant 0 : index
    %c1_48 = arith.constant 1 : index
    %53 = vector.load %arg1[%c0_46, %c0_47, %c1_48] : memref<1x32x34xbf16, #tpu.memory_space<vmem>>, vector<1x32x32xbf16>
    %54 = vector.shape_cast %53 : vector<1x32x32xbf16> to vector<32x32xbf16>
    %cst_49 = arith.constant 0.000000e+00 : bf16
    %55 = vector.broadcast %cst_49 : bf16 to vector<32x32xbf16>
    %56 = arith.cmpf ogt, %54, %55 : vector<32x32xbf16>
    %cst_50 = arith.constant 1.000980e-01 : bf16
    %57 = vector.broadcast %cst_50 : bf16 to vector<32x32xbf16>
    %58 = arith.mulf %57, %54 : vector<32x32xbf16>
    %59 = arith.select %56, %54, %58 : vector<32x32xi1>, vector<32x32xbf16>
    %c0_51 = arith.constant 0 : index
    %c0_52 = arith.constant 0 : index
    %60 = vector.load %arg5[%c0_51, %c0_52] : memref<64x32xbf16, #tpu.memory_space<vmem>>, vector<32x32xbf16>
    tpu.vector_store %arg5[%c0_51, %c0_52], %59 {strides = array<i32>} : memref<64x32xbf16, #tpu.memory_space<vmem>>, vector<32x32xbf16>,
    %c0_53 = arith.constant 0 : index
    %c0_54 = arith.constant 0 : index
    %c2 = arith.constant 2 : index
    %61 = vector.load %arg1[%c0_53, %c0_54, %c2] : memref<1x32x34xbf16, #tpu.memory_space<vmem>>, vector<1x32x32xbf16>
    %62 = vector.shape_cast %61 : vector<1x32x32xbf16> to vector<32x32xbf16>
    %cst_55 = arith.constant 0.000000e+00 : bf16
    %63 = vector.broadcast %cst_55 : bf16 to vector<32x32xbf16>
    %64 = arith.cmpf ogt, %62, %63 : vector<32x32xbf16>
    %cst_56 = arith.constant 1.000980e-01 : bf16
    %65 = vector.broadcast %cst_56 : bf16 to vector<32x32xbf16>
    %66 = arith.mulf %65, %62 : vector<32x32xbf16>
    %67 = arith.select %64, %62, %66 : vector<32x32xi1>, vector<32x32xbf16>
    %c32_57 = arith.constant 32 : index
    %c0_58 = arith.constant 0 : index
    %68 = vector.load %arg5[%c32_57, %c0_58] : memref<64x32xbf16, #tpu.memory_space<vmem>>, vector<32x32xbf16>
    tpu.vector_store %arg5[%c32_57, %c0_58], %67 {strides = array<i32>} : memref<64x32xbf16, #tpu.memory_space<vmem>>, vector<32x32xbf16>,
    %c2_59 = arith.constant 2 : index
    %c0_60 = arith.constant 0 : index
    %c0_61 = arith.constant 0 : index
    %69 = vector.load %arg2[%c2_59, %c0_60, %c0_61] : memref<4x16x64xbf16, #tpu.memory_space<vmem>>, vector<1x16x64xbf16>
    %70 = vector.shape_cast %69 : vector<1x16x64xbf16> to vector<16x64xbf16>
    %c0_62 = arith.constant 0 : index
    %c0_63 = arith.constant 0 : index
    %71 = vector.load %arg5[%c0_62, %c0_63] : memref<64x32xbf16, #tpu.memory_space<vmem>>, vector<64x32xbf16>
    %cst_64 = arith.constant dense<0.000000e+00> : vector<16x32xf32>
    %72 = tpu.matmul %70, %71, %cst_64 {dimension_numbers = #tpu.dot_dimension_numbers<[1], [0], [0], [1], [0, 0, 1, 1], [], []>} : vector<16x64xbf16>, vector<64x32xbf16>, vector<16x32xf32> -> vector<16x32xf32>
    %73 = vector.broadcast %0 : vector<16x1xf32> to vector<16x32xf32>
    %74 = arith.addf %72, %73 : vector<16x32xf32>
    %75 = arith.truncf %74 : vector<16x32xf32> to vector<16x32xbf16>
    %c0_65 = arith.constant 0 : index
    %c2_66 = arith.constant 2 : index
    %c0_67 = arith.constant 0 : index
    %c0_68 = arith.constant 0 : index
    %76 = vector.load %arg4[%c0_65, %c2_66, %c0_67, %c0_68] : memref<1x4x16x32xbf16, #tpu.memory_space<vmem>>, vector<1x1x16x32xbf16>
    %77 = vector.shape_cast %76 : vector<1x1x16x32xbf16> to vector<16x32xbf16>
    %78 = vector.shape_cast %75 : vector<16x32xbf16> to vector<1x1x16x32xbf16>
    tpu.vector_store %arg4[%c0_65, %c2_66, %c0_67, %c0_68], %78 {strides = array<i32>} : memref<1x4x16x32xbf16, #tpu.memory_space<vmem>>, vector<1x1x16x32xbf16>,
    %c0_69 = arith.constant 0 : index
    %c0_70 = arith.constant 0 : index
    %c1_71 = arith.constant 1 : index
    %79 = vector.load %arg1[%c0_69, %c0_70, %c1_71] : memref<1x32x34xbf16, #tpu.memory_space<vmem>>, vector<1x32x32xbf16>
    %80 = vector.shape_cast %79 : vector<1x32x32xbf16> to vector<32x32xbf16>
    %cst_72 = arith.constant 0.000000e+00 : bf16
    %81 = vector.broadcast %cst_72 : bf16 to vector<32x32xbf16>
    %82 = arith.cmpf ogt, %80, %81 : vector<32x32xbf16>
    %cst_73 = arith.constant 1.000980e-01 : bf16
    %83 = vector.broadcast %cst_73 : bf16 to vector<32x32xbf16>
    %84 = arith.mulf %83, %80 : vector<32x32xbf16>
    %85 = arith.select %82, %80, %84 : vector<32x32xi1>, vector<32x32xbf16>
    %c0_74 = arith.constant 0 : index
    %c0_75 = arith.constant 0 : index
    %86 = vector.load %arg5[%c0_74, %c0_75] : memref<64x32xbf16, #tpu.memory_space<vmem>>, vector<32x32xbf16>
    tpu.vector_store %arg5[%c0_74, %c0_75], %85 {strides = array<i32>} : memref<64x32xbf16, #tpu.memory_space<vmem>>, vector<32x32xbf16>,
    %c0_76 = arith.constant 0 : index
    %c0_77 = arith.constant 0 : index
    %c2_78 = arith.constant 2 : index
    %87 = vector.load %arg1[%c0_76, %c0_77, %c2_78] : memref<1x32x34xbf16, #tpu.memory_space<vmem>>, vector<1x32x32xbf16>
    %88 = vector.shape_cast %87 : vector<1x32x32xbf16> to vector<32x32xbf16>
    %cst_79 = arith.constant 0.000000e+00 : bf16
    %89 = vector.broadcast %cst_79 : bf16 to vector<32x32xbf16>
    %90 = arith.cmpf ogt, %88, %89 : vector<32x32xbf16>
    %cst_80 = arith.constant 1.000980e-01 : bf16
    %91 = vector.broadcast %cst_80 : bf16 to vector<32x32xbf16>
    %92 = arith.mulf %91, %88 : vector<32x32xbf16>
    %93 = arith.select %90, %88, %92 : vector<32x32xi1>, vector<32x32xbf16>
    %c32_81 = arith.constant 32 : index
    %c0_82 = arith.constant 0 : index
    %94 = vector.load %arg5[%c32_81, %c0_82] : memref<64x32xbf16, #tpu.memory_space<vmem>>, vector<32x32xbf16>
    tpu.vector_store %arg5[%c32_81, %c0_82], %93 {strides = array<i32>} : memref<64x32xbf16, #tpu.memory_space<vmem>>, vector<32x32xbf16>,
    %c3 = arith.constant 3 : index
    %c0_83 = arith.constant 0 : index
    %c0_84 = arith.constant 0 : index
    %95 = vector.load %arg2[%c3, %c0_83, %c0_84] : memref<4x16x64xbf16, #tpu.memory_space<vmem>>, vector<1x16x64xbf16>
    %96 = vector.shape_cast %95 : vector<1x16x64xbf16> to vector<16x64xbf16>
    %c0_85 = arith.constant 0 : index
    %c0_86 = arith.constant 0 : index
    %97 = vector.load %arg5[%c0_85, %c0_86] : memref<64x32xbf16, #tpu.memory_space<vmem>>, vector<64x32xbf16>
    %cst_87 = arith.constant dense<0.000000e+00> : vector<16x32xf32>
    %98 = tpu.matmul %96, %97, %cst_87 {dimension_numbers = #tpu.dot_dimension_numbers<[1], [0], [0], [1], [0, 0, 1, 1], [], []>} : vector<16x64xbf16>, vector<64x32xbf16>, vector<16x32xf32> -> vector<16x32xf32>
    %99 = vector.broadcast %0 : vector<16x1xf32> to vector<16x32xf32>
    %100 = arith.addf %98, %99 : vector<16x32xf32>
    %101 = arith.truncf %100 : vector<16x32xf32> to vector<16x32xbf16>
    %c0_88 = arith.constant 0 : index
    %c3_89 = arith.constant 3 : index
    %c0_90 = arith.constant 0 : index
    %c0_91 = arith.constant 0 : index
    %102 = vector.load %arg4[%c0_88, %c3_89, %c0_90, %c0_91] : memref<1x4x16x32xbf16, #tpu.memory_space<vmem>>, vector<1x1x16x32xbf16>
    %103 = vector.shape_cast %102 : vector<1x1x16x32xbf16> to vector<16x32xbf16>
    %104 = vector.shape_cast %101 : vector<16x32xbf16> to vector<1x1x16x32xbf16>
    tpu.vector_store %arg4[%c0_88, %c3_89, %c0_90, %c0_91], %104 {strides = array<i32>} : memref<1x4x16x32xbf16, #tpu.memory_space<vmem>>, vector<1x1x16x32xbf16>,
    return
  }
  func.func @transform_0(%arg0: i32) -> (i32, i32, i32) {
    %c0_i32 = arith.constant 0 : i32
    %c0_i32_0 = arith.constant 0 : i32
    %c0_i32_1 = arith.constant 0 : i32
    return %arg0, %c0_i32, %c0_i32_0 : i32, i32, i32
  }
  func.func @transform_1(%arg0: i32) -> (i32, i32, i32) {
    %c0_i32 = arith.constant 0 : i32
    %c0_i32_0 = arith.constant 0 : i32
    %c0_i32_1 = arith.constant 0 : i32
    %c0_i32_2 = arith.constant 0 : i32
    return %c0_i32, %c0_i32_0, %c0_i32_1 : i32, i32, i32
  }
  func.func @transform_2(%arg0: i32) -> (i32, i32) {
    %c0_i32 = arith.constant 0 : i32
    %c0_i32_0 = arith.constant 0 : i32
    %c0_i32_1 = arith.constant 0 : i32
    return %c0_i32, %c0_i32_0 : i32, i32
  }
  func.func @transform_3(%arg0: i32) -> (i32, i32, i32, i32) {
    %c0_i32 = arith.constant 0 : i32
    %c0_i32_0 = arith.constant 0 : i32
    %c0_i32_1 = arith.constant 0 : i32
    %c0_i32_2 = arith.constant 0 : i32
    return %arg0, %c0_i32, %c0_i32_0, %c0_i32_1 : i32, i32, i32, i32
  }
}

module attributes {stable_mosaic.version = 11 : i64} {
  func.func @kernel(%arg0: i32, %arg1: memref<1x32x38xbf16, #tpu.memory_space<vmem>>, %arg2: memref<32x96xbf16, #tpu.memory_space<vmem>>, %arg3: memref<32x1xf32, #tpu.memory_space<vmem>>, %arg4: memref<32x96xbf16, #tpu.memory_space<vmem>>, %arg5: memref<32x1xf32, #tpu.memory_space<vmem>>, %arg6: memref<32x96xbf16, #tpu.memory_space<vmem>>, %arg7: memref<32x1xf32, #tpu.memory_space<vmem>>, %arg8: memref<32x96xbf16, #tpu.memory_space<vmem>>, %arg9: memref<32x1xf32, #tpu.memory_space<vmem>>, %arg10: memref<1x32x34xbf16, #tpu.memory_space<vmem>>, %arg11: memref<32x38xbf16, #tpu.memory_space<vmem>>, %arg12: memref<96x32xbf16, #tpu.memory_space<vmem>>) attributes {dimension_semantics = [#tpu.dimension_semantics<parallel>], iteration_bounds = array<i64: 2>, scalar_prefetch = 0 : i64, scratch_operands = 2 : i64, tpu.core_type = #tpu.core_type<tc>, window_params = [{transform_indices = @transform_0, window_bounds = array<i64: 1, 32, 38>}, {pipeline_mode = #tpu.pipeline_mode<synchronous>, transform_indices = @transform_1, window_bounds = array<i64: 32, 96>}, {pipeline_mode = #tpu.pipeline_mode<synchronous>, transform_indices = @transform_2, window_bounds = array<i64: 32, 1>}, {pipeline_mode = #tpu.pipeline_mode<synchronous>, transform_indices = @transform_3, window_bounds = array<i64: 32, 96>}, {pipeline_mode = #tpu.pipeline_mode<synchronous>, transform_indices = @transform_4, window_bounds = array<i64: 32, 1>}, {pipeline_mode = #tpu.pipeline_mode<synchronous>, transform_indices = @transform_5, window_bounds = array<i64: 32, 96>}, {pipeline_mode = #tpu.pipeline_mode<synchronous>, transform_indices = @transform_6, window_bounds = array<i64: 32, 1>}, {pipeline_mode = #tpu.pipeline_mode<synchronous>, transform_indices = @transform_7, window_bounds = array<i64: 32, 96>}, {pipeline_mode = #tpu.pipeline_mode<synchronous>, transform_indices = @transform_8, window_bounds = array<i64: 32, 1>}, {transform_indices = @transform_9, window_bounds = array<i64: 1, 32, 34>}]} {
    %cst = arith.constant 0.000000e+00 : bf16
    %0 = vector.broadcast %cst : bf16 to vector<32x3xbf16>
    %c0 = arith.constant 0 : index
    %c0_0 = arith.constant 0 : index
    %1 = vector.load %arg11[%c0, %c0_0] : memref<32x38xbf16, #tpu.memory_space<vmem>>, vector<32x3xbf16>
    tpu.vector_store %arg11[%c0, %c0_0], %0 {strides = array<i32>} : memref<32x38xbf16, #tpu.memory_space<vmem>>, vector<32x3xbf16>,
    %cst_1 = arith.constant 0.000000e+00 : bf16
    %2 = vector.broadcast %cst_1 : bf16 to vector<32x3xbf16>
    %c0_2 = arith.constant 0 : index
    %c35 = arith.constant 35 : index
    %3 = vector.load %arg11[%c0_2, %c35] : memref<32x38xbf16, #tpu.memory_space<vmem>>, vector<32x3xbf16>
    tpu.vector_store %arg11[%c0_2, %c35], %2 {strides = array<i32>} : memref<32x38xbf16, #tpu.memory_space<vmem>>, vector<32x3xbf16>,
    %c0_3 = arith.constant 0 : index
    %c0_4 = arith.constant 0 : index
    %c3 = arith.constant 3 : index
    %4 = vector.load %arg1[%c0_3, %c0_4, %c3] : memref<1x32x38xbf16, #tpu.memory_space<vmem>>, vector<1x32x32xbf16>
    %5 = vector.shape_cast %4 : vector<1x32x32xbf16> to vector<32x32xbf16>
    %6 = arith.extf %5 : vector<32x32xbf16> to vector<32x32xf32>
    %cst_5 = arith.constant 0.000000e+00 : f32
    %7 = vector.broadcast %cst_5 : f32 to vector<32x32xf32>
    %c0_6 = arith.constant 0 : index
    %c0_7 = arith.constant 0 : index
    %c2 = arith.constant 2 : index
    %8 = vector.load %arg1[%c0_6, %c0_7, %c2] : memref<1x32x38xbf16, #tpu.memory_space<vmem>>, vector<1x32x32xbf16>
    %9 = vector.shape_cast %8 : vector<1x32x32xbf16> to vector<32x32xbf16>
    %cst_8 = arith.constant 0.000000e+00 : bf16
    %10 = vector.broadcast %cst_8 : bf16 to vector<32x32xbf16>
    %11 = arith.cmpf ogt, %9, %10 : vector<32x32xbf16>
    %cst_9 = arith.constant 1.000980e-01 : bf16
    %12 = vector.broadcast %cst_9 : bf16 to vector<32x32xbf16>
    %13 = arith.mulf %12, %9 : vector<32x32xbf16>
    %14 = arith.select %11, %9, %13 : vector<32x32xi1>, vector<32x32xbf16>
    %c0_10 = arith.constant 0 : index
    %c0_11 = arith.constant 0 : index
    %15 = vector.load %arg12[%c0_10, %c0_11] : memref<96x32xbf16, #tpu.memory_space<vmem>>, vector<32x32xbf16>
    tpu.vector_store %arg12[%c0_10, %c0_11], %14 {strides = array<i32>} : memref<96x32xbf16, #tpu.memory_space<vmem>>, vector<32x32xbf16>,
    %c0_12 = arith.constant 0 : index
    %c0_13 = arith.constant 0 : index
    %c3_14 = arith.constant 3 : index
    %16 = vector.load %arg1[%c0_12, %c0_13, %c3_14] : memref<1x32x38xbf16, #tpu.memory_space<vmem>>, vector<1x32x32xbf16>
    %17 = vector.shape_cast %16 : vector<1x32x32xbf16> to vector<32x32xbf16>
    %cst_15 = arith.constant 0.000000e+00 : bf16
    %18 = vector.broadcast %cst_15 : bf16 to vector<32x32xbf16>
    %19 = arith.cmpf ogt, %17, %18 : vector<32x32xbf16>
    %cst_16 = arith.constant 1.000980e-01 : bf16
    %20 = vector.broadcast %cst_16 : bf16 to vector<32x32xbf16>
    %21 = arith.mulf %20, %17 : vector<32x32xbf16>
    %22 = arith.select %19, %17, %21 : vector<32x32xi1>, vector<32x32xbf16>
    %c32 = arith.constant 32 : index
    %c0_17 = arith.constant 0 : index
    %23 = vector.load %arg12[%c32, %c0_17] : memref<96x32xbf16, #tpu.memory_space<vmem>>, vector<32x32xbf16>
    tpu.vector_store %arg12[%c32, %c0_17], %22 {strides = array<i32>} : memref<96x32xbf16, #tpu.memory_space<vmem>>, vector<32x32xbf16>,
    %c0_18 = arith.constant 0 : index
    %c0_19 = arith.constant 0 : index
    %c4 = arith.constant 4 : index
    %24 = vector.load %arg1[%c0_18, %c0_19, %c4] : memref<1x32x38xbf16, #tpu.memory_space<vmem>>, vector<1x32x32xbf16>
    %25 = vector.shape_cast %24 : vector<1x32x32xbf16> to vector<32x32xbf16>
    %cst_20 = arith.constant 0.000000e+00 : bf16
    %26 = vector.broadcast %cst_20 : bf16 to vector<32x32xbf16>
    %27 = arith.cmpf ogt, %25, %26 : vector<32x32xbf16>
    %cst_21 = arith.constant 1.000980e-01 : bf16
    %28 = vector.broadcast %cst_21 : bf16 to vector<32x32xbf16>
    %29 = arith.mulf %28, %25 : vector<32x32xbf16>
    %30 = arith.select %27, %25, %29 : vector<32x32xi1>, vector<32x32xbf16>
    %c64 = arith.constant 64 : index
    %c0_22 = arith.constant 0 : index
    %31 = vector.load %arg12[%c64, %c0_22] : memref<96x32xbf16, #tpu.memory_space<vmem>>, vector<32x32xbf16>
    tpu.vector_store %arg12[%c64, %c0_22], %30 {strides = array<i32>} : memref<96x32xbf16, #tpu.memory_space<vmem>>, vector<32x32xbf16>,
    %c0_23 = arith.constant 0 : index
    %c0_24 = arith.constant 0 : index
    %32 = vector.load %arg2[%c0_23, %c0_24] : memref<32x96xbf16, #tpu.memory_space<vmem>>, vector<32x96xbf16>
    %c0_25 = arith.constant 0 : index
    %c0_26 = arith.constant 0 : index
    %33 = vector.load %arg12[%c0_25, %c0_26] : memref<96x32xbf16, #tpu.memory_space<vmem>>, vector<96x32xbf16>
    %cst_27 = arith.constant dense<0.000000e+00> : vector<32x32xf32>
    %34 = tpu.matmul %32, %33, %cst_27 {dimension_numbers = #tpu.dot_dimension_numbers<[1], [0], [0], [1], [0, 0, 1, 1], [], []>} : vector<32x96xbf16>, vector<96x32xbf16>, vector<32x32xf32> -> vector<32x32xf32>
    %c0_28 = arith.constant 0 : index
    %c0_29 = arith.constant 0 : index
    %35 = vector.load %arg3[%c0_28, %c0_29] : memref<32x1xf32, #tpu.memory_space<vmem>>, vector<32x1xf32>
    %36 = vector.broadcast %35 : vector<32x1xf32> to vector<32x32xf32>
    %37 = arith.addf %34, %36 : vector<32x32xf32>
    %cst_30 = arith.constant 0.000000e+00 : f32
    %38 = vector.broadcast %cst_30 : f32 to vector<32x32xf32>
    %39 = arith.cmpf ogt, %37, %38 : vector<32x32xf32>
    %cst_31 = arith.constant 1.000000e-01 : f32
    %40 = vector.broadcast %cst_31 : f32 to vector<32x32xf32>
    %41 = arith.mulf %40, %37 : vector<32x32xf32>
    %42 = arith.select %39, %37, %41 : vector<32x32xi1>, vector<32x32xf32>
    %43 = arith.truncf %42 : vector<32x32xf32> to vector<32x32xbf16>
    %c0_32 = arith.constant 0 : index
    %c3_33 = arith.constant 3 : index
    %44 = vector.load %arg11[%c0_32, %c3_33] : memref<32x38xbf16, #tpu.memory_space<vmem>>, vector<32x32xbf16>
    tpu.vector_store %arg11[%c0_32, %c3_33], %43 {strides = array<i32>} : memref<32x38xbf16, #tpu.memory_space<vmem>>, vector<32x32xbf16>,
    %c0_34 = arith.constant 0 : index
    %c2_35 = arith.constant 2 : index
    %45 = vector.load %arg11[%c0_34, %c2_35] : memref<32x38xbf16, #tpu.memory_space<vmem>>, vector<32x32xbf16>
    %c0_36 = arith.constant 0 : index
    %c0_37 = arith.constant 0 : index
    %46 = vector.load %arg12[%c0_36, %c0_37] : memref<96x32xbf16, #tpu.memory_space<vmem>>, vector<32x32xbf16>
    tpu.vector_store %arg12[%c0_36, %c0_37], %45 {strides = array<i32>} : memref<96x32xbf16, #tpu.memory_space<vmem>>, vector<32x32xbf16>,
    %c0_38 = arith.constant 0 : index
    %c3_39 = arith.constant 3 : index
    %47 = vector.load %arg11[%c0_38, %c3_39] : memref<32x38xbf16, #tpu.memory_space<vmem>>, vector<32x32xbf16>
    %c32_40 = arith.constant 32 : index
    %c0_41 = arith.constant 0 : index
    %48 = vector.load %arg12[%c32_40, %c0_41] : memref<96x32xbf16, #tpu.memory_space<vmem>>, vector<32x32xbf16>
    tpu.vector_store %arg12[%c32_40, %c0_41], %47 {strides = array<i32>} : memref<96x32xbf16, #tpu.memory_space<vmem>>, vector<32x32xbf16>,
    %c0_42 = arith.constant 0 : index
    %c4_43 = arith.constant 4 : index
    %49 = vector.load %arg11[%c0_42, %c4_43] : memref<32x38xbf16, #tpu.memory_space<vmem>>, vector<32x32xbf16>
    %c64_44 = arith.constant 64 : index
    %c0_45 = arith.constant 0 : index
    %50 = vector.load %arg12[%c64_44, %c0_45] : memref<96x32xbf16, #tpu.memory_space<vmem>>, vector<32x32xbf16>
    tpu.vector_store %arg12[%c64_44, %c0_45], %49 {strides = array<i32>} : memref<96x32xbf16, #tpu.memory_space<vmem>>, vector<32x32xbf16>,
    %c0_46 = arith.constant 0 : index
    %c0_47 = arith.constant 0 : index
    %51 = vector.load %arg4[%c0_46, %c0_47] : memref<32x96xbf16, #tpu.memory_space<vmem>>, vector<32x96xbf16>
    %c0_48 = arith.constant 0 : index
    %c0_49 = arith.constant 0 : index
    %52 = vector.load %arg12[%c0_48, %c0_49] : memref<96x32xbf16, #tpu.memory_space<vmem>>, vector<96x32xbf16>
    %cst_50 = arith.constant dense<0.000000e+00> : vector<32x32xf32>
    %53 = tpu.matmul %51, %52, %cst_50 {dimension_numbers = #tpu.dot_dimension_numbers<[1], [0], [0], [1], [0, 0, 1, 1], [], []>} : vector<32x96xbf16>, vector<96x32xbf16>, vector<32x32xf32> -> vector<32x32xf32>
    %c0_51 = arith.constant 0 : index
    %c0_52 = arith.constant 0 : index
    %54 = vector.load %arg5[%c0_51, %c0_52] : memref<32x1xf32, #tpu.memory_space<vmem>>, vector<32x1xf32>
    %55 = vector.broadcast %54 : vector<32x1xf32> to vector<32x32xf32>
    %56 = arith.addf %53, %55 : vector<32x32xf32>
    %57 = arith.addf %6, %56 : vector<32x32xf32>
    %cst_53 = arith.constant 0.000000e+00 : f32
    %58 = vector.broadcast %cst_53 : f32 to vector<32x32xf32>
    %59 = arith.cmpf ogt, %57, %58 : vector<32x32xf32>
    %cst_54 = arith.constant 1.000000e-01 : f32
    %60 = vector.broadcast %cst_54 : f32 to vector<32x32xf32>
    %61 = arith.mulf %60, %57 : vector<32x32xf32>
    %62 = arith.select %59, %57, %61 : vector<32x32xi1>, vector<32x32xf32>
    %63 = arith.truncf %62 : vector<32x32xf32> to vector<32x32xbf16>
    %c0_55 = arith.constant 0 : index
    %c3_56 = arith.constant 3 : index
    %64 = vector.load %arg11[%c0_55, %c3_56] : memref<32x38xbf16, #tpu.memory_space<vmem>>, vector<32x32xbf16>
    tpu.vector_store %arg11[%c0_55, %c3_56], %63 {strides = array<i32>} : memref<32x38xbf16, #tpu.memory_space<vmem>>, vector<32x32xbf16>,
    %c0_57 = arith.constant 0 : index
    %c0_58 = arith.constant 0 : index
    %65 = vector.load %arg11[%c0_57, %c0_58] : memref<32x38xbf16, #tpu.memory_space<vmem>>, vector<32x32xbf16>
    %c0_59 = arith.constant 0 : index
    %c0_60 = arith.constant 0 : index
    %66 = vector.load %arg12[%c0_59, %c0_60] : memref<96x32xbf16, #tpu.memory_space<vmem>>, vector<32x32xbf16>
    tpu.vector_store %arg12[%c0_59, %c0_60], %65 {strides = array<i32>} : memref<96x32xbf16, #tpu.memory_space<vmem>>, vector<32x32xbf16>,
    %c0_61 = arith.constant 0 : index
    %c3_62 = arith.constant 3 : index
    %67 = vector.load %arg11[%c0_61, %c3_62] : memref<32x38xbf16, #tpu.memory_space<vmem>>, vector<32x32xbf16>
    %c32_63 = arith.constant 32 : index
    %c0_64 = arith.constant 0 : index
    %68 = vector.load %arg12[%c32_63, %c0_64] : memref<96x32xbf16, #tpu.memory_space<vmem>>, vector<32x32xbf16>
    tpu.vector_store %arg12[%c32_63, %c0_64], %67 {strides = array<i32>} : memref<96x32xbf16, #tpu.memory_space<vmem>>, vector<32x32xbf16>,
    %c0_65 = arith.constant 0 : index
    %c6 = arith.constant 6 : index
    %69 = vector.load %arg11[%c0_65, %c6] : memref<32x38xbf16, #tpu.memory_space<vmem>>, vector<32x32xbf16>
    %c64_66 = arith.constant 64 : index
    %c0_67 = arith.constant 0 : index
    %70 = vector.load %arg12[%c64_66, %c0_67] : memref<96x32xbf16, #tpu.memory_space<vmem>>, vector<32x32xbf16>
    tpu.vector_store %arg12[%c64_66, %c0_67], %69 {strides = array<i32>} : memref<96x32xbf16, #tpu.memory_space<vmem>>, vector<32x32xbf16>,
    %c0_68 = arith.constant 0 : index
    %c0_69 = arith.constant 0 : index
    %71 = vector.load %arg6[%c0_68, %c0_69] : memref<32x96xbf16, #tpu.memory_space<vmem>>, vector<32x96xbf16>
    %c0_70 = arith.constant 0 : index
    %c0_71 = arith.constant 0 : index
    %72 = vector.load %arg12[%c0_70, %c0_71] : memref<96x32xbf16, #tpu.memory_space<vmem>>, vector<96x32xbf16>
    %cst_72 = arith.constant dense<0.000000e+00> : vector<32x32xf32>
    %73 = tpu.matmul %71, %72, %cst_72 {dimension_numbers = #tpu.dot_dimension_numbers<[1], [0], [0], [1], [0, 0, 1, 1], [], []>} : vector<32x96xbf16>, vector<96x32xbf16>, vector<32x32xf32> -> vector<32x32xf32>
    %c0_73 = arith.constant 0 : index
    %c0_74 = arith.constant 0 : index
    %74 = vector.load %arg7[%c0_73, %c0_74] : memref<32x1xf32, #tpu.memory_space<vmem>>, vector<32x1xf32>
    %75 = vector.broadcast %74 : vector<32x1xf32> to vector<32x32xf32>
    %76 = arith.addf %73, %75 : vector<32x32xf32>
    %cst_75 = arith.constant 0.000000e+00 : f32
    %77 = vector.broadcast %cst_75 : f32 to vector<32x32xf32>
    %78 = arith.cmpf ogt, %76, %77 : vector<32x32xf32>
    %cst_76 = arith.constant 1.000000e-01 : f32
    %79 = vector.broadcast %cst_76 : f32 to vector<32x32xf32>
    %80 = arith.mulf %79, %76 : vector<32x32xf32>
    %81 = arith.select %78, %76, %80 : vector<32x32xi1>, vector<32x32xf32>
    %82 = arith.truncf %81 : vector<32x32xf32> to vector<32x32xbf16>
    %c0_77 = arith.constant 0 : index
    %c3_78 = arith.constant 3 : index
    %83 = vector.load %arg11[%c0_77, %c3_78] : memref<32x38xbf16, #tpu.memory_space<vmem>>, vector<32x32xbf16>
    tpu.vector_store %arg11[%c0_77, %c3_78], %82 {strides = array<i32>} : memref<32x38xbf16, #tpu.memory_space<vmem>>, vector<32x32xbf16>,
    %c0_79 = arith.constant 0 : index
    %c2_80 = arith.constant 2 : index
    %84 = vector.load %arg11[%c0_79, %c2_80] : memref<32x38xbf16, #tpu.memory_space<vmem>>, vector<32x32xbf16>
    %c0_81 = arith.constant 0 : index
    %c0_82 = arith.constant 0 : index
    %85 = vector.load %arg12[%c0_81, %c0_82] : memref<96x32xbf16, #tpu.memory_space<vmem>>, vector<32x32xbf16>
    tpu.vector_store %arg12[%c0_81, %c0_82], %84 {strides = array<i32>} : memref<96x32xbf16, #tpu.memory_space<vmem>>, vector<32x32xbf16>,
    %c0_83 = arith.constant 0 : index
    %c3_84 = arith.constant 3 : index
    %86 = vector.load %arg11[%c0_83, %c3_84] : memref<32x38xbf16, #tpu.memory_space<vmem>>, vector<32x32xbf16>
    %c32_85 = arith.constant 32 : index
    %c0_86 = arith.constant 0 : index
    %87 = vector.load %arg12[%c32_85, %c0_86] : memref<96x32xbf16, #tpu.memory_space<vmem>>, vector<32x32xbf16>
    tpu.vector_store %arg12[%c32_85, %c0_86], %86 {strides = array<i32>} : memref<96x32xbf16, #tpu.memory_space<vmem>>, vector<32x32xbf16>,
    %c0_87 = arith.constant 0 : index
    %c4_88 = arith.constant 4 : index
    %88 = vector.load %arg11[%c0_87, %c4_88] : memref<32x38xbf16, #tpu.memory_space<vmem>>, vector<32x32xbf16>
    %c64_89 = arith.constant 64 : index
    %c0_90 = arith.constant 0 : index
    %89 = vector.load %arg12[%c64_89, %c0_90] : memref<96x32xbf16, #tpu.memory_space<vmem>>, vector<32x32xbf16>
    tpu.vector_store %arg12[%c64_89, %c0_90], %88 {strides = array<i32>} : memref<96x32xbf16, #tpu.memory_space<vmem>>, vector<32x32xbf16>,
    %c0_91 = arith.constant 0 : index
    %c0_92 = arith.constant 0 : index
    %90 = vector.load %arg8[%c0_91, %c0_92] : memref<32x96xbf16, #tpu.memory_space<vmem>>, vector<32x96xbf16>
    %c0_93 = arith.constant 0 : index
    %c0_94 = arith.constant 0 : index
    %91 = vector.load %arg12[%c0_93, %c0_94] : memref<96x32xbf16, #tpu.memory_space<vmem>>, vector<96x32xbf16>
    %cst_95 = arith.constant dense<0.000000e+00> : vector<32x32xf32>
    %92 = tpu.matmul %90, %91, %cst_95 {dimension_numbers = #tpu.dot_dimension_numbers<[1], [0], [0], [1], [0, 0, 1, 1], [], []>} : vector<32x96xbf16>, vector<96x32xbf16>, vector<32x32xf32> -> vector<32x32xf32>
    %c0_96 = arith.constant 0 : index
    %c0_97 = arith.constant 0 : index
    %93 = vector.load %arg9[%c0_96, %c0_97] : memref<32x1xf32, #tpu.memory_space<vmem>>, vector<32x1xf32>
    %94 = vector.broadcast %93 : vector<32x1xf32> to vector<32x32xf32>
    %95 = arith.addf %92, %94 : vector<32x32xf32>
    %96 = arith.addf %57, %95 : vector<32x32xf32>
    %97 = arith.addf %7, %96 : vector<32x32xf32>
    %cst_98 = arith.constant 1.000000e+00 : f32
    %98 = vector.broadcast %cst_98 : f32 to vector<32x32xf32>
    %99 = arith.mulf %97, %98 : vector<32x32xf32>
    %cst_99 = arith.constant 0.000000e+00 : bf16
    %100 = vector.broadcast %cst_99 : bf16 to vector<32x1xbf16>
    %c0_100 = arith.constant 0 : index
    %c0_101 = arith.constant 0 : index
    %c0_102 = arith.constant 0 : index
    %101 = vector.load %arg10[%c0_100, %c0_101, %c0_102] : memref<1x32x34xbf16, #tpu.memory_space<vmem>>, vector<1x32x1xbf16>
    %102 = vector.shape_cast %101 : vector<1x32x1xbf16> to vector<32x1xbf16>
    %103 = vector.shape_cast %100 : vector<32x1xbf16> to vector<1x32x1xbf16>
    tpu.vector_store %arg10[%c0_100, %c0_101, %c0_102], %103 {strides = array<i32>} : memref<1x32x34xbf16, #tpu.memory_space<vmem>>, vector<1x32x1xbf16>,
    %cst_103 = arith.constant 0.000000e+00 : bf16
    %104 = vector.broadcast %cst_103 : bf16 to vector<32x1xbf16>
    %c0_104 = arith.constant 0 : index
    %c0_105 = arith.constant 0 : index
    %c33 = arith.constant 33 : index
    %105 = vector.load %arg10[%c0_104, %c0_105, %c33] : memref<1x32x34xbf16, #tpu.memory_space<vmem>>, vector<1x32x1xbf16>
    %106 = vector.shape_cast %105 : vector<1x32x1xbf16> to vector<32x1xbf16>
    %107 = vector.shape_cast %104 : vector<32x1xbf16> to vector<1x32x1xbf16>
    tpu.vector_store %arg10[%c0_104, %c0_105, %c33], %107 {strides = array<i32>} : memref<1x32x34xbf16, #tpu.memory_space<vmem>>, vector<1x32x1xbf16>,
    %108 = arith.truncf %99 : vector<32x32xf32> to vector<32x32xbf16>
    %c0_106 = arith.constant 0 : index
    %c0_107 = arith.constant 0 : index
    %c1 = arith.constant 1 : index
    %109 = vector.load %arg10[%c0_106, %c0_107, %c1] : memref<1x32x34xbf16, #tpu.memory_space<vmem>>, vector<1x32x32xbf16>
    %110 = vector.shape_cast %109 : vector<1x32x32xbf16> to vector<32x32xbf16>
    %111 = vector.shape_cast %108 : vector<32x32xbf16> to vector<1x32x32xbf16>
    tpu.vector_store %arg10[%c0_106, %c0_107, %c1], %111 {strides = array<i32>} : memref<1x32x34xbf16, #tpu.memory_space<vmem>>, vector<1x32x32xbf16>,
    return
  }
  func.func @transform_0(%arg0: i32) -> (i32, i32, i32) {
    %c0_i32 = arith.constant 0 : i32
    %c0_i32_0 = arith.constant 0 : i32
    %c0_i32_1 = arith.constant 0 : i32
    return %arg0, %c0_i32, %c0_i32_0 : i32, i32, i32
  }
  func.func @transform_1(%arg0: i32) -> (i32, i32) {
    %c0_i32 = arith.constant 0 : i32
    %c0_i32_0 = arith.constant 0 : i32
    %c0_i32_1 = arith.constant 0 : i32
    return %c0_i32, %c0_i32_0 : i32, i32
  }
  func.func @transform_2(%arg0: i32) -> (i32, i32) {
    %c0_i32 = arith.constant 0 : i32
    %c0_i32_0 = arith.constant 0 : i32
    %c0_i32_1 = arith.constant 0 : i32
    return %c0_i32, %c0_i32_0 : i32, i32
  }
  func.func @transform_3(%arg0: i32) -> (i32, i32) {
    %c0_i32 = arith.constant 0 : i32
    %c0_i32_0 = arith.constant 0 : i32
    %c0_i32_1 = arith.constant 0 : i32
    return %c0_i32, %c0_i32_0 : i32, i32
  }
  func.func @transform_4(%arg0: i32) -> (i32, i32) {
    %c0_i32 = arith.constant 0 : i32
    %c0_i32_0 = arith.constant 0 : i32
    %c0_i32_1 = arith.constant 0 : i32
    return %c0_i32, %c0_i32_0 : i32, i32
  }
  func.func @transform_5(%arg0: i32) -> (i32, i32) {
    %c0_i32 = arith.constant 0 : i32
    %c0_i32_0 = arith.constant 0 : i32
    %c0_i32_1 = arith.constant 0 : i32
    return %c0_i32, %c0_i32_0 : i32, i32
  }
  func.func @transform_6(%arg0: i32) -> (i32, i32) {
    %c0_i32 = arith.constant 0 : i32
    %c0_i32_0 = arith.constant 0 : i32
    %c0_i32_1 = arith.constant 0 : i32
    return %c0_i32, %c0_i32_0 : i32, i32
  }
  func.func @transform_7(%arg0: i32) -> (i32, i32) {
    %c0_i32 = arith.constant 0 : i32
    %c0_i32_0 = arith.constant 0 : i32
    %c0_i32_1 = arith.constant 0 : i32
    return %c0_i32, %c0_i32_0 : i32, i32
  }
  func.func @transform_8(%arg0: i32) -> (i32, i32) {
    %c0_i32 = arith.constant 0 : i32
    %c0_i32_0 = arith.constant 0 : i32
    %c0_i32_1 = arith.constant 0 : i32
    return %c0_i32, %c0_i32_0 : i32, i32
  }
  func.func @transform_9(%arg0: i32) -> (i32, i32, i32) {
    %c0_i32 = arith.constant 0 : i32
    %c0_i32_0 = arith.constant 0 : i32
    %c0_i32_1 = arith.constant 0 : i32
    return %arg0, %c0_i32, %c0_i32_0 : i32, i32, i32
  }
}

module attributes {stable_mosaic.version = 11 : i64} {
  func.func @kernel(%arg0: i32, %arg1: memref<1x16x134xbf16, #tpu.memory_space<vmem>>, %arg2: memref<16x48xbf16, #tpu.memory_space<vmem>>, %arg3: memref<16x1xf32, #tpu.memory_space<vmem>>, %arg4: memref<16x48xbf16, #tpu.memory_space<vmem>>, %arg5: memref<16x1xf32, #tpu.memory_space<vmem>>, %arg6: memref<16x48xbf16, #tpu.memory_space<vmem>>, %arg7: memref<16x1xf32, #tpu.memory_space<vmem>>, %arg8: memref<16x48xbf16, #tpu.memory_space<vmem>>, %arg9: memref<16x1xf32, #tpu.memory_space<vmem>>, %arg10: memref<16x7xf32, #tpu.memory_space<vmem>>, %arg11: memref<1x1xf32, #tpu.memory_space<vmem>>, %arg12: memref<1x1x128xf32, #tpu.memory_space<vmem>>, %arg13: memref<16x134xbf16, #tpu.memory_space<vmem>>, %arg14: memref<48x128xbf16, #tpu.memory_space<vmem>>) attributes {dimension_semantics = [#tpu.dimension_semantics<parallel>], iteration_bounds = array<i64: 2>, scalar_prefetch = 0 : i64, scratch_operands = 2 : i64, tpu.core_type = #tpu.core_type<tc>, window_params = [{transform_indices = @transform_0, window_bounds = array<i64: 1, 16, 134>}, {pipeline_mode = #tpu.pipeline_mode<synchronous>, transform_indices = @transform_1, window_bounds = array<i64: 16, 48>}, {pipeline_mode = #tpu.pipeline_mode<synchronous>, transform_indices = @transform_2, window_bounds = array<i64: 16, 1>}, {pipeline_mode = #tpu.pipeline_mode<synchronous>, transform_indices = @transform_3, window_bounds = array<i64: 16, 48>}, {pipeline_mode = #tpu.pipeline_mode<synchronous>, transform_indices = @transform_4, window_bounds = array<i64: 16, 1>}, {pipeline_mode = #tpu.pipeline_mode<synchronous>, transform_indices = @transform_5, window_bounds = array<i64: 16, 48>}, {pipeline_mode = #tpu.pipeline_mode<synchronous>, transform_indices = @transform_6, window_bounds = array<i64: 16, 1>}, {pipeline_mode = #tpu.pipeline_mode<synchronous>, transform_indices = @transform_7, window_bounds = array<i64: 16, 48>}, {pipeline_mode = #tpu.pipeline_mode<synchronous>, transform_indices = @transform_8, window_bounds = array<i64: 16, 1>}, {pipeline_mode = #tpu.pipeline_mode<synchronous>, transform_indices = @transform_9, window_bounds = array<i64: 16, 7>}, {pipeline_mode = #tpu.pipeline_mode<synchronous>, transform_indices = @transform_10, window_bounds = array<i64: 1, 1>}, {transform_indices = @transform_11, window_bounds = array<i64: 1, 1, 128>}]} {
    %cst = arith.constant 0.000000e+00 : bf16
    %0 = vector.broadcast %cst : bf16 to vector<16x3xbf16>
    %c0 = arith.constant 0 : index
    %c0_0 = arith.constant 0 : index
    %1 = vector.load %arg13[%c0, %c0_0] : memref<16x134xbf16, #tpu.memory_space<vmem>>, vector<16x3xbf16>
    tpu.vector_store %arg13[%c0, %c0_0], %0 {strides = array<i32>} : memref<16x134xbf16, #tpu.memory_space<vmem>>, vector<16x3xbf16>,
    %cst_1 = arith.constant 0.000000e+00 : bf16
    %2 = vector.broadcast %cst_1 : bf16 to vector<16x3xbf16>
    %c0_2 = arith.constant 0 : index
    %c131 = arith.constant 131 : index
    %3 = vector.load %arg13[%c0_2, %c131] : memref<16x134xbf16, #tpu.memory_space<vmem>>, vector<16x3xbf16>
    tpu.vector_store %arg13[%c0_2, %c131], %2 {strides = array<i32>} : memref<16x134xbf16, #tpu.memory_space<vmem>>, vector<16x3xbf16>,
    %c0_3 = arith.constant 0 : index
    %c0_4 = arith.constant 0 : index
    %c3 = arith.constant 3 : index
    %4 = vector.load %arg1[%c0_3, %c0_4, %c3] : memref<1x16x134xbf16, #tpu.memory_space<vmem>>, vector<1x16x128xbf16>
    %5 = vector.shape_cast %4 : vector<1x16x128xbf16> to vector<16x128xbf16>
    %6 = arith.extf %5 : vector<16x128xbf16> to vector<16x128xf32>
    %cst_5 = arith.constant 0.000000e+00 : f32
    %7 = vector.broadcast %cst_5 : f32 to vector<16x128xf32>
    %c0_6 = arith.constant 0 : index
    %c0_7 = arith.constant 0 : index
    %c2 = arith.constant 2 : index
    %8 = vector.load %arg1[%c0_6, %c0_7, %c2] : memref<1x16x134xbf16, #tpu.memory_space<vmem>>, vector<1x16x128xbf16>
    %9 = vector.shape_cast %8 : vector<1x16x128xbf16> to vector<16x128xbf16>
    %cst_8 = arith.constant 0.000000e+00 : bf16
    %10 = vector.broadcast %cst_8 : bf16 to vector<16x128xbf16>
    %11 = arith.cmpf ogt, %9, %10 : vector<16x128xbf16>
    %cst_9 = arith.constant 1.000980e-01 : bf16
    %12 = vector.broadcast %cst_9 : bf16 to vector<16x128xbf16>
    %13 = arith.mulf %12, %9 : vector<16x128xbf16>
    %14 = arith.select %11, %9, %13 : vector<16x128xi1>, vector<16x128xbf16>
    %c0_10 = arith.constant 0 : index
    %c0_11 = arith.constant 0 : index
    %15 = vector.load %arg14[%c0_10, %c0_11] : memref<48x128xbf16, #tpu.memory_space<vmem>>, vector<16x128xbf16>
    tpu.vector_store %arg14[%c0_10, %c0_11], %14 {strides = array<i32>} : memref<48x128xbf16, #tpu.memory_space<vmem>>, vector<16x128xbf16>,
    %c0_12 = arith.constant 0 : index
    %c0_13 = arith.constant 0 : index
    %c3_14 = arith.constant 3 : index
    %16 = vector.load %arg1[%c0_12, %c0_13, %c3_14] : memref<1x16x134xbf16, #tpu.memory_space<vmem>>, vector<1x16x128xbf16>
    %17 = vector.shape_cast %16 : vector<1x16x128xbf16> to vector<16x128xbf16>
    %cst_15 = arith.constant 0.000000e+00 : bf16
    %18 = vector.broadcast %cst_15 : bf16 to vector<16x128xbf16>
    %19 = arith.cmpf ogt, %17, %18 : vector<16x128xbf16>
    %cst_16 = arith.constant 1.000980e-01 : bf16
    %20 = vector.broadcast %cst_16 : bf16 to vector<16x128xbf16>
    %21 = arith.mulf %20, %17 : vector<16x128xbf16>
    %22 = arith.select %19, %17, %21 : vector<16x128xi1>, vector<16x128xbf16>
    %c16 = arith.constant 16 : index
    %c0_17 = arith.constant 0 : index
    %23 = vector.load %arg14[%c16, %c0_17] : memref<48x128xbf16, #tpu.memory_space<vmem>>, vector<16x128xbf16>
    tpu.vector_store %arg14[%c16, %c0_17], %22 {strides = array<i32>} : memref<48x128xbf16, #tpu.memory_space<vmem>>, vector<16x128xbf16>,
    %c0_18 = arith.constant 0 : index
    %c0_19 = arith.constant 0 : index
    %c4 = arith.constant 4 : index
    %24 = vector.load %arg1[%c0_18, %c0_19, %c4] : memref<1x16x134xbf16, #tpu.memory_space<vmem>>, vector<1x16x128xbf16>
    %25 = vector.shape_cast %24 : vector<1x16x128xbf16> to vector<16x128xbf16>
    %cst_20 = arith.constant 0.000000e+00 : bf16
    %26 = vector.broadcast %cst_20 : bf16 to vector<16x128xbf16>
    %27 = arith.cmpf ogt, %25, %26 : vector<16x128xbf16>
    %cst_21 = arith.constant 1.000980e-01 : bf16
    %28 = vector.broadcast %cst_21 : bf16 to vector<16x128xbf16>
    %29 = arith.mulf %28, %25 : vector<16x128xbf16>
    %30 = arith.select %27, %25, %29 : vector<16x128xi1>, vector<16x128xbf16>
    %c32 = arith.constant 32 : index
    %c0_22 = arith.constant 0 : index
    %31 = vector.load %arg14[%c32, %c0_22] : memref<48x128xbf16, #tpu.memory_space<vmem>>, vector<16x128xbf16>
    tpu.vector_store %arg14[%c32, %c0_22], %30 {strides = array<i32>} : memref<48x128xbf16, #tpu.memory_space<vmem>>, vector<16x128xbf16>,
    %c0_23 = arith.constant 0 : index
    %c0_24 = arith.constant 0 : index
    %32 = vector.load %arg2[%c0_23, %c0_24] : memref<16x48xbf16, #tpu.memory_space<vmem>>, vector<16x48xbf16>
    %c0_25 = arith.constant 0 : index
    %c0_26 = arith.constant 0 : index
    %33 = vector.load %arg14[%c0_25, %c0_26] : memref<48x128xbf16, #tpu.memory_space<vmem>>, vector<48x128xbf16>
    %cst_27 = arith.constant dense<0.000000e+00> : vector<16x128xf32>
    %34 = tpu.matmul %32, %33, %cst_27 {dimension_numbers = #tpu.dot_dimension_numbers<[1], [0], [0], [1], [0, 0, 1, 1], [], []>} : vector<16x48xbf16>, vector<48x128xbf16>, vector<16x128xf32> -> vector<16x128xf32>
    %c0_28 = arith.constant 0 : index
    %c0_29 = arith.constant 0 : index
    %35 = vector.load %arg3[%c0_28, %c0_29] : memref<16x1xf32, #tpu.memory_space<vmem>>, vector<16x1xf32>
    %36 = vector.broadcast %35 : vector<16x1xf32> to vector<16x128xf32>
    %37 = arith.addf %34, %36 : vector<16x128xf32>
    %cst_30 = arith.constant 0.000000e+00 : f32
    %38 = vector.broadcast %cst_30 : f32 to vector<16x128xf32>
    %39 = arith.cmpf ogt, %37, %38 : vector<16x128xf32>
    %cst_31 = arith.constant 1.000000e-01 : f32
    %40 = vector.broadcast %cst_31 : f32 to vector<16x128xf32>
    %41 = arith.mulf %40, %37 : vector<16x128xf32>
    %42 = arith.select %39, %37, %41 : vector<16x128xi1>, vector<16x128xf32>
    %43 = arith.truncf %42 : vector<16x128xf32> to vector<16x128xbf16>
    %c0_32 = arith.constant 0 : index
    %c3_33 = arith.constant 3 : index
    %44 = vector.load %arg13[%c0_32, %c3_33] : memref<16x134xbf16, #tpu.memory_space<vmem>>, vector<16x128xbf16>
    tpu.vector_store %arg13[%c0_32, %c3_33], %43 {strides = array<i32>} : memref<16x134xbf16, #tpu.memory_space<vmem>>, vector<16x128xbf16>,
    %c0_34 = arith.constant 0 : index
    %c2_35 = arith.constant 2 : index
    %45 = vector.load %arg13[%c0_34, %c2_35] : memref<16x134xbf16, #tpu.memory_space<vmem>>, vector<16x128xbf16>
    %c0_36 = arith.constant 0 : index
    %c0_37 = arith.constant 0 : index
    %46 = vector.load %arg14[%c0_36, %c0_37] : memref<48x128xbf16, #tpu.memory_space<vmem>>, vector<16x128xbf16>
    tpu.vector_store %arg14[%c0_36, %c0_37], %45 {strides = array<i32>} : memref<48x128xbf16, #tpu.memory_space<vmem>>, vector<16x128xbf16>,
    %c0_38 = arith.constant 0 : index
    %c3_39 = arith.constant 3 : index
    %47 = vector.load %arg13[%c0_38, %c3_39] : memref<16x134xbf16, #tpu.memory_space<vmem>>, vector<16x128xbf16>
    %c16_40 = arith.constant 16 : index
    %c0_41 = arith.constant 0 : index
    %48 = vector.load %arg14[%c16_40, %c0_41] : memref<48x128xbf16, #tpu.memory_space<vmem>>, vector<16x128xbf16>
    tpu.vector_store %arg14[%c16_40, %c0_41], %47 {strides = array<i32>} : memref<48x128xbf16, #tpu.memory_space<vmem>>, vector<16x128xbf16>,
    %c0_42 = arith.constant 0 : index
    %c4_43 = arith.constant 4 : index
    %49 = vector.load %arg13[%c0_42, %c4_43] : memref<16x134xbf16, #tpu.memory_space<vmem>>, vector<16x128xbf16>
    %c32_44 = arith.constant 32 : index
    %c0_45 = arith.constant 0 : index
    %50 = vector.load %arg14[%c32_44, %c0_45] : memref<48x128xbf16, #tpu.memory_space<vmem>>, vector<16x128xbf16>
    tpu.vector_store %arg14[%c32_44, %c0_45], %49 {strides = array<i32>} : memref<48x128xbf16, #tpu.memory_space<vmem>>, vector<16x128xbf16>,
    %c0_46 = arith.constant 0 : index
    %c0_47 = arith.constant 0 : index
    %51 = vector.load %arg4[%c0_46, %c0_47] : memref<16x48xbf16, #tpu.memory_space<vmem>>, vector<16x48xbf16>
    %c0_48 = arith.constant 0 : index
    %c0_49 = arith.constant 0 : index
    %52 = vector.load %arg14[%c0_48, %c0_49] : memref<48x128xbf16, #tpu.memory_space<vmem>>, vector<48x128xbf16>
    %cst_50 = arith.constant dense<0.000000e+00> : vector<16x128xf32>
    %53 = tpu.matmul %51, %52, %cst_50 {dimension_numbers = #tpu.dot_dimension_numbers<[1], [0], [0], [1], [0, 0, 1, 1], [], []>} : vector<16x48xbf16>, vector<48x128xbf16>, vector<16x128xf32> -> vector<16x128xf32>
    %c0_51 = arith.constant 0 : index
    %c0_52 = arith.constant 0 : index
    %54 = vector.load %arg5[%c0_51, %c0_52] : memref<16x1xf32, #tpu.memory_space<vmem>>, vector<16x1xf32>
    %55 = vector.broadcast %54 : vector<16x1xf32> to vector<16x128xf32>
    %56 = arith.addf %53, %55 : vector<16x128xf32>
    %57 = arith.addf %6, %56 : vector<16x128xf32>
    %cst_53 = arith.constant 0.000000e+00 : f32
    %58 = vector.broadcast %cst_53 : f32 to vector<16x128xf32>
    %59 = arith.cmpf ogt, %57, %58 : vector<16x128xf32>
    %cst_54 = arith.constant 1.000000e-01 : f32
    %60 = vector.broadcast %cst_54 : f32 to vector<16x128xf32>
    %61 = arith.mulf %60, %57 : vector<16x128xf32>
    %62 = arith.select %59, %57, %61 : vector<16x128xi1>, vector<16x128xf32>
    %63 = arith.truncf %62 : vector<16x128xf32> to vector<16x128xbf16>
    %c0_55 = arith.constant 0 : index
    %c3_56 = arith.constant 3 : index
    %64 = vector.load %arg13[%c0_55, %c3_56] : memref<16x134xbf16, #tpu.memory_space<vmem>>, vector<16x128xbf16>
    tpu.vector_store %arg13[%c0_55, %c3_56], %63 {strides = array<i32>} : memref<16x134xbf16, #tpu.memory_space<vmem>>, vector<16x128xbf16>,
    %c0_57 = arith.constant 0 : index
    %c0_58 = arith.constant 0 : index
    %65 = vector.load %arg13[%c0_57, %c0_58] : memref<16x134xbf16, #tpu.memory_space<vmem>>, vector<16x128xbf16>
    %c0_59 = arith.constant 0 : index
    %c0_60 = arith.constant 0 : index
    %66 = vector.load %arg14[%c0_59, %c0_60] : memref<48x128xbf16, #tpu.memory_space<vmem>>, vector<16x128xbf16>
    tpu.vector_store %arg14[%c0_59, %c0_60], %65 {strides = array<i32>} : memref<48x128xbf16, #tpu.memory_space<vmem>>, vector<16x128xbf16>,
    %c0_61 = arith.constant 0 : index
    %c3_62 = arith.constant 3 : index
    %67 = vector.load %arg13[%c0_61, %c3_62] : memref<16x134xbf16, #tpu.memory_space<vmem>>, vector<16x128xbf16>
    %c16_63 = arith.constant 16 : index
    %c0_64 = arith.constant 0 : index
    %68 = vector.load %arg14[%c16_63, %c0_64] : memref<48x128xbf16, #tpu.memory_space<vmem>>, vector<16x128xbf16>
    tpu.vector_store %arg14[%c16_63, %c0_64], %67 {strides = array<i32>} : memref<48x128xbf16, #tpu.memory_space<vmem>>, vector<16x128xbf16>,
    %c0_65 = arith.constant 0 : index
    %c6 = arith.constant 6 : index
    %69 = vector.load %arg13[%c0_65, %c6] : memref<16x134xbf16, #tpu.memory_space<vmem>>, vector<16x128xbf16>
    %c32_66 = arith.constant 32 : index
    %c0_67 = arith.constant 0 : index
    %70 = vector.load %arg14[%c32_66, %c0_67] : memref<48x128xbf16, #tpu.memory_space<vmem>>, vector<16x128xbf16>
    tpu.vector_store %arg14[%c32_66, %c0_67], %69 {strides = array<i32>} : memref<48x128xbf16, #tpu.memory_space<vmem>>, vector<16x128xbf16>,
    %c0_68 = arith.constant 0 : index
    %c0_69 = arith.constant 0 : index
    %71 = vector.load %arg6[%c0_68, %c0_69] : memref<16x48xbf16, #tpu.memory_space<vmem>>, vector<16x48xbf16>
    %c0_70 = arith.constant 0 : index
    %c0_71 = arith.constant 0 : index
    %72 = vector.load %arg14[%c0_70, %c0_71] : memref<48x128xbf16, #tpu.memory_space<vmem>>, vector<48x128xbf16>
    %cst_72 = arith.constant dense<0.000000e+00> : vector<16x128xf32>
    %73 = tpu.matmul %71, %72, %cst_72 {dimension_numbers = #tpu.dot_dimension_numbers<[1], [0], [0], [1], [0, 0, 1, 1], [], []>} : vector<16x48xbf16>, vector<48x128xbf16>, vector<16x128xf32> -> vector<16x128xf32>
    %c0_73 = arith.constant 0 : index
    %c0_74 = arith.constant 0 : index
    %74 = vector.load %arg7[%c0_73, %c0_74] : memref<16x1xf32, #tpu.memory_space<vmem>>, vector<16x1xf32>
    %75 = vector.broadcast %74 : vector<16x1xf32> to vector<16x128xf32>
    %76 = arith.addf %73, %75 : vector<16x128xf32>
    %cst_75 = arith.constant 0.000000e+00 : f32
    %77 = vector.broadcast %cst_75 : f32 to vector<16x128xf32>
    %78 = arith.cmpf ogt, %76, %77 : vector<16x128xf32>
    %cst_76 = arith.constant 1.000000e-01 : f32
    %79 = vector.broadcast %cst_76 : f32 to vector<16x128xf32>
    %80 = arith.mulf %79, %76 : vector<16x128xf32>
    %81 = arith.select %78, %76, %80 : vector<16x128xi1>, vector<16x128xf32>
    %82 = arith.truncf %81 : vector<16x128xf32> to vector<16x128xbf16>
    %c0_77 = arith.constant 0 : index
    %c3_78 = arith.constant 3 : index
    %83 = vector.load %arg13[%c0_77, %c3_78] : memref<16x134xbf16, #tpu.memory_space<vmem>>, vector<16x128xbf16>
    tpu.vector_store %arg13[%c0_77, %c3_78], %82 {strides = array<i32>} : memref<16x134xbf16, #tpu.memory_space<vmem>>, vector<16x128xbf16>,
    %c0_79 = arith.constant 0 : index
    %c2_80 = arith.constant 2 : index
    %84 = vector.load %arg13[%c0_79, %c2_80] : memref<16x134xbf16, #tpu.memory_space<vmem>>, vector<16x128xbf16>
    %c0_81 = arith.constant 0 : index
    %c0_82 = arith.constant 0 : index
    %85 = vector.load %arg14[%c0_81, %c0_82] : memref<48x128xbf16, #tpu.memory_space<vmem>>, vector<16x128xbf16>
    tpu.vector_store %arg14[%c0_81, %c0_82], %84 {strides = array<i32>} : memref<48x128xbf16, #tpu.memory_space<vmem>>, vector<16x128xbf16>,
    %c0_83 = arith.constant 0 : index
    %c3_84 = arith.constant 3 : index
    %86 = vector.load %arg13[%c0_83, %c3_84] : memref<16x134xbf16, #tpu.memory_space<vmem>>, vector<16x128xbf16>
    %c16_85 = arith.constant 16 : index
    %c0_86 = arith.constant 0 : index
    %87 = vector.load %arg14[%c16_85, %c0_86] : memref<48x128xbf16, #tpu.memory_space<vmem>>, vector<16x128xbf16>
    tpu.vector_store %arg14[%c16_85, %c0_86], %86 {strides = array<i32>} : memref<48x128xbf16, #tpu.memory_space<vmem>>, vector<16x128xbf16>,
    %c0_87 = arith.constant 0 : index
    %c4_88 = arith.constant 4 : index
    %88 = vector.load %arg13[%c0_87, %c4_88] : memref<16x134xbf16, #tpu.memory_space<vmem>>, vector<16x128xbf16>
    %c32_89 = arith.constant 32 : index
    %c0_90 = arith.constant 0 : index
    %89 = vector.load %arg14[%c32_89, %c0_90] : memref<48x128xbf16, #tpu.memory_space<vmem>>, vector<16x128xbf16>
    tpu.vector_store %arg14[%c32_89, %c0_90], %88 {strides = array<i32>} : memref<48x128xbf16, #tpu.memory_space<vmem>>, vector<16x128xbf16>,
    %c0_91 = arith.constant 0 : index
    %c0_92 = arith.constant 0 : index
    %90 = vector.load %arg8[%c0_91, %c0_92] : memref<16x48xbf16, #tpu.memory_space<vmem>>, vector<16x48xbf16>
    %c0_93 = arith.constant 0 : index
    %c0_94 = arith.constant 0 : index
    %91 = vector.load %arg14[%c0_93, %c0_94] : memref<48x128xbf16, #tpu.memory_space<vmem>>, vector<48x128xbf16>
    %cst_95 = arith.constant dense<0.000000e+00> : vector<16x128xf32>
    %92 = tpu.matmul %90, %91, %cst_95 {dimension_numbers = #tpu.dot_dimension_numbers<[1], [0], [0], [1], [0, 0, 1, 1], [], []>} : vector<16x48xbf16>, vector<48x128xbf16>, vector<16x128xf32> -> vector<16x128xf32>
    %c0_96 = arith.constant 0 : index
    %c0_97 = arith.constant 0 : index
    %93 = vector.load %arg9[%c0_96, %c0_97] : memref<16x1xf32, #tpu.memory_space<vmem>>, vector<16x1xf32>
    %94 = vector.broadcast %93 : vector<16x1xf32> to vector<16x128xf32>
    %95 = arith.addf %92, %94 : vector<16x128xf32>
    %96 = arith.addf %57, %95 : vector<16x128xf32>
    %97 = arith.addf %7, %96 : vector<16x128xf32>
    %cst_98 = arith.constant 1.000000e+00 : f32
    %98 = vector.broadcast %cst_98 : f32 to vector<16x128xf32>
    %99 = arith.mulf %97, %98 : vector<16x128xf32>
    %cst_99 = arith.constant 0.000000e+00 : f32
    %100 = vector.broadcast %cst_99 : f32 to vector<16x128xf32>
    %101 = arith.cmpf ogt, %99, %100 : vector<16x128xf32>
    %cst_100 = arith.constant 1.000000e-01 : f32
    %102 = vector.broadcast %cst_100 : f32 to vector<16x128xf32>
    %103 = arith.mulf %102, %99 : vector<16x128xf32>
    %104 = arith.select %101, %99, %103 : vector<16x128xi1>, vector<16x128xf32>
    %105 = arith.truncf %104 : vector<16x128xf32> to vector<16x128xbf16>
    %c0_101 = arith.constant 0 : index
    %c3_102 = arith.constant 3 : index
    %106 = vector.load %arg13[%c0_101, %c3_102] : memref<16x134xbf16, #tpu.memory_space<vmem>>, vector<16x128xbf16>
    tpu.vector_store %arg13[%c0_101, %c3_102], %105 {strides = array<i32>} : memref<16x134xbf16, #tpu.memory_space<vmem>>, vector<16x128xbf16>,
    %c0_103 = arith.constant 0 : index
    %c0_104 = arith.constant 0 : index
    %107 = vector.load %arg10[%c0_103, %c0_104] : memref<16x7xf32, #tpu.memory_space<vmem>>, vector<16x7xf32>
    %c0_105 = arith.constant 0 : index
    %c0_106 = arith.constant 0 : index
    %108 = vector.load %arg11[%c0_105, %c0_106] : memref<1x1xf32, #tpu.memory_space<vmem>>, vector<1x1xf32>
    %cst_107 = arith.constant 0.000000e+00 : f32
    %109 = vector.broadcast %cst_107 : f32 to vector<16x128xf32>
    %c0_108 = arith.constant 0 : index
    %c0_109 = arith.constant 0 : index
    %110 = vector.load %arg13[%c0_108, %c0_109] : memref<16x134xbf16, #tpu.memory_space<vmem>>, vector<16x128xbf16>
    %111 = arith.extf %110 : vector<16x128xbf16> to vector<16x128xf32>
    %112 = vector.extract_strided_slice %107 {offsets = [0, 0], sizes = [16, 1], strides = [1, 1]} : vector<16x7xf32> to vector<16x1xf32>
    %113 = vector.broadcast %112 : vector<16x1xf32> to vector<16x128xf32>
    %114 = arith.mulf %111, %113 : vector<16x128xf32>
    %115 = arith.addf %109, %114 : vector<16x128xf32>
    %c0_110 = arith.constant 0 : index
    %c1 = arith.constant 1 : index
    %116 = vector.load %arg13[%c0_110, %c1] : memref<16x134xbf16, #tpu.memory_space<vmem>>, vector<16x128xbf16>
    %117 = arith.extf %116 : vector<16x128xbf16> to vector<16x128xf32>
    %118 = vector.extract_strided_slice %107 {offsets = [0, 1], sizes = [16, 1], strides = [1, 1]} : vector<16x7xf32> to vector<16x1xf32>
    %119 = vector.broadcast %118 : vector<16x1xf32> to vector<16x128xf32>
    %120 = arith.mulf %117, %119 : vector<16x128xf32>
    %121 = arith.addf %115, %120 : vector<16x128xf32>
    %c0_111 = arith.constant 0 : index
    %c2_112 = arith.constant 2 : index
    %122 = vector.load %arg13[%c0_111, %c2_112] : memref<16x134xbf16, #tpu.memory_space<vmem>>, vector<16x128xbf16>
    %123 = arith.extf %122 : vector<16x128xbf16> to vector<16x128xf32>
    %124 = vector.extract_strided_slice %107 {offsets = [0, 2], sizes = [16, 1], strides = [1, 1]} : vector<16x7xf32> to vector<16x1xf32>
    %125 = vector.broadcast %124 : vector<16x1xf32> to vector<16x128xf32>
    %126 = arith.mulf %123, %125 : vector<16x128xf32>
    %127 = arith.addf %121, %126 : vector<16x128xf32>
    %c0_113 = arith.constant 0 : index
    %c3_114 = arith.constant 3 : index
    %128 = vector.load %arg13[%c0_113, %c3_114] : memref<16x134xbf16, #tpu.memory_space<vmem>>, vector<16x128xbf16>
    %129 = arith.extf %128 : vector<16x128xbf16> to vector<16x128xf32>
    %130 = vector.extract_strided_slice %107 {offsets = [0, 3], sizes = [16, 1], strides = [1, 1]} : vector<16x7xf32> to vector<16x1xf32>
    %131 = vector.broadcast %130 : vector<16x1xf32> to vector<16x128xf32>
    %132 = arith.mulf %129, %131 : vector<16x128xf32>
    %133 = arith.addf %127, %132 : vector<16x128xf32>
    %c0_115 = arith.constant 0 : index
    %c4_116 = arith.constant 4 : index
    %134 = vector.load %arg13[%c0_115, %c4_116] : memref<16x134xbf16, #tpu.memory_space<vmem>>, vector<16x128xbf16>
    %135 = arith.extf %134 : vector<16x128xbf16> to vector<16x128xf32>
    %136 = vector.extract_strided_slice %107 {offsets = [0, 4], sizes = [16, 1], strides = [1, 1]} : vector<16x7xf32> to vector<16x1xf32>
    %137 = vector.broadcast %136 : vector<16x1xf32> to vector<16x128xf32>
    %138 = arith.mulf %135, %137 : vector<16x128xf32>
    %139 = arith.addf %133, %138 : vector<16x128xf32>
    %c0_117 = arith.constant 0 : index
    %c5 = arith.constant 5 : index
    %140 = vector.load %arg13[%c0_117, %c5] : memref<16x134xbf16, #tpu.memory_space<vmem>>, vector<16x128xbf16>
    %141 = arith.extf %140 : vector<16x128xbf16> to vector<16x128xf32>
    %142 = vector.extract_strided_slice %107 {offsets = [0, 5], sizes = [16, 1], strides = [1, 1]} : vector<16x7xf32> to vector<16x1xf32>
    %143 = vector.broadcast %142 : vector<16x1xf32> to vector<16x128xf32>
    %144 = arith.mulf %141, %143 : vector<16x128xf32>
    %145 = arith.addf %139, %144 : vector<16x128xf32>
    %c0_118 = arith.constant 0 : index
    %c6_119 = arith.constant 6 : index
    %146 = vector.load %arg13[%c0_118, %c6_119] : memref<16x134xbf16, #tpu.memory_space<vmem>>, vector<16x128xbf16>
    %147 = arith.extf %146 : vector<16x128xbf16> to vector<16x128xf32>
    %148 = vector.extract_strided_slice %107 {offsets = [0, 6], sizes = [16, 1], strides = [1, 1]} : vector<16x7xf32> to vector<16x1xf32>
    %149 = vector.broadcast %148 : vector<16x1xf32> to vector<16x128xf32>
    %150 = arith.mulf %147, %149 : vector<16x128xf32>
    %151 = arith.addf %145, %150 : vector<16x128xf32>
    %cst_120 = arith.constant dense<0.000000e+00> : vector<128xf32>
    %152 = vector.multi_reduction <add>, %151, %cst_120 [0] : vector<16x128xf32> to vector<128xf32>
    %153 = vector.shape_cast %152 : vector<128xf32> to vector<1x128xf32>
    %154 = vector.broadcast %108 : vector<1x1xf32> to vector<1x128xf32>
    %155 = arith.addf %153, %154 : vector<1x128xf32>
    %156 = math.tanh %155 : vector<1x128xf32>
    %c0_121 = arith.constant 0 : index
    %c0_122 = arith.constant 0 : index
    %c0_123 = arith.constant 0 : index
    %157 = vector.load %arg12[%c0_121, %c0_122, %c0_123] : memref<1x1x128xf32, #tpu.memory_space<vmem>>, vector<1x1x128xf32>
    %158 = vector.shape_cast %157 : vector<1x1x128xf32> to vector<1x128xf32>
    %159 = vector.shape_cast %156 : vector<1x128xf32> to vector<1x1x128xf32>
    tpu.vector_store %arg12[%c0_121, %c0_122, %c0_123], %159 {strides = array<i32>} : memref<1x1x128xf32, #tpu.memory_space<vmem>>, vector<1x1x128xf32>,
    return
  }
  func.func @transform_0(%arg0: i32) -> (i32, i32, i32) {
    %c0_i32 = arith.constant 0 : i32
    %c0_i32_0 = arith.constant 0 : i32
    %c0_i32_1 = arith.constant 0 : i32
    return %arg0, %c0_i32, %c0_i32_0 : i32, i32, i32
  }
  func.func @transform_1(%arg0: i32) -> (i32, i32) {
    %c0_i32 = arith.constant 0 : i32
    %c0_i32_0 = arith.constant 0 : i32
    %c0_i32_1 = arith.constant 0 : i32
    return %c0_i32, %c0_i32_0 : i32, i32
  }
  func.func @transform_2(%arg0: i32) -> (i32, i32) {
    %c0_i32 = arith.constant 0 : i32
    %c0_i32_0 = arith.constant 0 : i32
    %c0_i32_1 = arith.constant 0 : i32
    return %c0_i32, %c0_i32_0 : i32, i32
  }
  func.func @transform_3(%arg0: i32) -> (i32, i32) {
    %c0_i32 = arith.constant 0 : i32
    %c0_i32_0 = arith.constant 0 : i32
    %c0_i32_1 = arith.constant 0 : i32
    return %c0_i32, %c0_i32_0 : i32, i32
  }
  func.func @transform_4(%arg0: i32) -> (i32, i32) {
    %c0_i32 = arith.constant 0 : i32
    %c0_i32_0 = arith.constant 0 : i32
    %c0_i32_1 = arith.constant 0 : i32
    return %c0_i32, %c0_i32_0 : i32, i32
  }
  func.func @transform_5(%arg0: i32) -> (i32, i32) {
    %c0_i32 = arith.constant 0 : i32
    %c0_i32_0 = arith.constant 0 : i32
    %c0_i32_1 = arith.constant 0 : i32
    return %c0_i32, %c0_i32_0 : i32, i32
  }
  func.func @transform_6(%arg0: i32) -> (i32, i32) {
    %c0_i32 = arith.constant 0 : i32
    %c0_i32_0 = arith.constant 0 : i32
    %c0_i32_1 = arith.constant 0 : i32
    return %c0_i32, %c0_i32_0 : i32, i32
  }
  func.func @transform_7(%arg0: i32) -> (i32, i32) {
    %c0_i32 = arith.constant 0 : i32
    %c0_i32_0 = arith.constant 0 : i32
    %c0_i32_1 = arith.constant 0 : i32
    return %c0_i32, %c0_i32_0 : i32, i32
  }
  func.func @transform_8(%arg0: i32) -> (i32, i32) {
    %c0_i32 = arith.constant 0 : i32
    %c0_i32_0 = arith.constant 0 : i32
    %c0_i32_1 = arith.constant 0 : i32
    return %c0_i32, %c0_i32_0 : i32, i32
  }
  func.func @transform_9(%arg0: i32) -> (i32, i32) {
    %c0_i32 = arith.constant 0 : i32
    %c0_i32_0 = arith.constant 0 : i32
    %c0_i32_1 = arith.constant 0 : i32
    return %c0_i32, %c0_i32_0 : i32, i32
  }
  func.func @transform_10(%arg0: i32) -> (i32, i32) {
    %c0_i32 = arith.constant 0 : i32
    %c0_i32_0 = arith.constant 0 : i32
    %c0_i32_1 = arith.constant 0 : i32
    return %c0_i32, %c0_i32_0 : i32, i32
  }
  func.func @transform_11(%arg0: i32) -> (i32, i32, i32) {
    %c0_i32 = arith.constant 0 : i32
    %c0_i32_0 = arith.constant 0 : i32
    %c0_i32_1 = arith.constant 0 : i32
    return %arg0, %c0_i32, %c0_i32_0 : i32, i32, i32
  }
}

</mosaic_0001>

<llo_original>
// kernel: a_call__.5
$region0: #{a_call__.5}
  #allocation0 [shape = 'u32[]', space=smem, size = 0x4, offset = 0x4, fixed_abs, tag = 'smem constant byte address 0x4 - core index']
  #allocation1 [shape = 'u32[72,128]{1,0:T(1,128)}', space=vmem, size = 0x9000, scoped, tag = 'internal scratch']
  #allocation2 [shape = 'bf16[224,8]{1,0:T(8,128)(2,1)}', space=vmem, size = 0xe000, scoped, tag = 'scratch operand']
  %s0 = inlined_call_operand.vmem [shape: bf16[2,32,14], index: 0, kind: input, shape index: {}]
  %s1 = inlined_call_operand.vmem [shape: bf16[64,224], index: 1, kind: input, shape index: {}]
  %s2 = inlined_call_operand.vmem [shape: f32[64,1], index: 2, kind: input, shape index: {}]
  %s3 = inlined_call_operand.vmem [shape: bf16[2,64,10], index: 3, kind: output, shape index: {}]
  %s4 = sld [smem:[#allocation0]]
  $region45: #{a_call__.5} parent=0
    _
  %s6 = ssub.s32 1, %s4
  %s7 = scalar_select 0, %s6, %s4
  loop: start=0, step=1, limit=4
  $region2: #{a_call__.5} parent=0 // loop_pre_header
    _
  $region3: #{a_call__.5} parent=0 // loop_header
    %s9 = sphi 0, %s13
    %p10 = scmp.ge.s32.totalorder %s9, 4
    %s19 = sphi 0, %s21
    %s22 = sphi 0, %s19
    %s23 = sphi 0, %s22
    %s39 = sphi 0, %s23
    %s43 = sphi 0, %s43
    %s45 = sphi 0, %s43
    %s46 = sphi 0, %s45
    %s60 = sphi 0, %s46
    %s64 = sphi 0, %s64
    %s66 = sphi 0, %s64
    %s67 = sphi 0, %s66
    %s81 = sphi 0, %s67
    %s87 = sphi 0, %s89
    %s90 = sphi 0, %s87
    %s91 = sphi 0, %s90
    %s107 = sphi 0, %s91
  $region4: #{a_call__.5} parent=0 // loop_header_branch
    %12 = sbr.rel (%p10) target = $region8
  $region5: #{a_call__.5} parent=0 // loop_body
    %s14 = ssub.s32 %s9, 1
    %s15 = ssub.s32 %s9, 2
    %s16 = sadd.s32 %s9, 1
    %s17 = ssub.s32 %s9, %s16
    %p18 = scmp.eq.s32.totalorder %s17, 0
    %s20 = sadd.s32 %s19, 1
    %s21 = scalar_select %p18, %s19, %s20
    %p24 = pneg %p18
    %p25 = scmp.eq.s32.totalorder %s9, 1
    %p26 = por %p24, %p25
    %p27 = scmp.ne.s32.totalorder %s19, %s22
    %p28 = scmp.eq.s32.totalorder %s9, 0
    %p29 = por %p27, %p28
    %p30 = scmp.ne.s32.totalorder %s19, %s22
    %p31 = scmp.eq.s32.totalorder %s14, 1
    %p32 = por %p30, %p31
    %p33 = scmp.ne.s32.totalorder %s22, %s23
    %p34 = scmp.eq.s32.totalorder %s14, 0
    %p35 = por %p33, %p34
    %p36 = scmp.ne.s32.totalorder %s22, %s23
    %p37 = scmp.eq.s32.totalorder %s15, 1
    %p38 = por %p36, %p37
    %p40 = scmp.ne.s32.totalorder %s23, %s39
    %p41 = scmp.eq.s32.totalorder %s15, 0
    %p42 = por %p40, %p41
    %s44 = sadd.s32 %s43, 1
    %p47 = scmp.eq.s32.totalorder %s9, 1
    %p48 = scmp.ne.s32.totalorder %s43, %s45
    %p49 = scmp.eq.s32.totalorder %s9, 0
    %p50 = por %p48, %p49
    %p51 = scmp.ne.s32.totalorder %s43, %s45
    %p52 = scmp.eq.s32.totalorder %s14, 1
    %p53 = por %p51, %p52
    %p54 = scmp.ne.s32.totalorder %s45, %s46
    %p55 = scmp.eq.s32.totalorder %s14, 0
    %p56 = por %p54, %p55
    %p57 = scmp.ne.s32.totalorder %s45, %s46
    %p58 = scmp.eq.s32.totalorder %s15, 1
    %p59 = por %p57, %p58
    %p61 = scmp.ne.s32.totalorder %s46, %s60
    %p62 = scmp.eq.s32.totalorder %s15, 0
    %p63 = por %p61, %p62
    %s65 = sadd.s32 %s64, 1
    %p68 = scmp.eq.s32.totalorder %s9, 1
    %p69 = scmp.ne.s32.totalorder %s64, %s66
    %p70 = scmp.eq.s32.totalorder %s9, 0
    %p71 = por %p69, %p70
    %p72 = scmp.ne.s32.totalorder %s64, %s66
    %p73 = scmp.eq.s32.totalorder %s14, 1
    %p74 = por %p72, %p73
    %p75 = scmp.ne.s32.totalorder %s66, %s67
    %p76 = scmp.eq.s32.totalorder %s14, 0
    %p77 = por %p75, %p76
    %p78 = scmp.ne.s32.totalorder %s66, %s67
    %p79 = scmp.eq.s32.totalorder %s15, 1
    %p80 = por %p78, %p79
    %p82 = scmp.ne.s32.totalorder %s67, %s81
    %p83 = scmp.eq.s32.totalorder %s15, 0
    %p84 = por %p82, %p83
    %s85 = ssub.s32 %s9, %s16
    %p86 = scmp.eq.s32.totalorder %s85, 0
    %s88 = sadd.s32 %s87, 1
    %s89 = scalar_select %p86, %s87, %s88
    %p92 = pneg %p86
    %p93 = scmp.eq.s32.totalorder %s9, 1
    %p94 = por %p92, %p93
    %p95 = scmp.ne.s32.totalorder %s87, %s90
    %p96 = scmp.eq.s32.totalorder %s9, 0
    %p97 = por %p95, %p96
    %p98 = scmp.ne.s32.totalorder %s87, %s90
    %p99 = scmp.eq.s32.totalorder %s14, 1
    %p100 = por %p98, %p99
    %p101 = scmp.ne.s32.totalorder %s90, %s91
    %p102 = scmp.eq.s32.totalorder %s14, 0
    %p103 = por %p101, %p102
    %p104 = scmp.ne.s32.totalorder %s90, %s91
    %p105 = scmp.eq.s32.totalorder %s15, 1
    %p106 = por %p104, %p105
    %p108 = scmp.ne.s32.totalorder %s91, %s107
    %p109 = scmp.eq.s32.totalorder %s15, 0
    %p110 = por %p108, %p109
    %p111 = scmp.le.s32.totalorder 1, %s9
    %p112 = scmp.lt.s32.totalorder %s9, 3
    %p113 = pnand %p111, %p112
    %p114 = pneg %p113
    // Predicated region
    $region9: #{a_call__.5} parent=5 // pred_check
      _
    $region10: #{a_call__.5} parent=5 // pred_check_branch
      %116 = sbr.rel (%p113) target = $region12
    $region11: #{a_call__.5} parent=5 // pred_region
      %s117 = ssub.s32 %s9, 1
      // Predicated region
      $region13: #{a_call__.5} parent=11 // pred_check
        %p118 = pneg %p56
      $region14: #{a_call__.5} parent=11 // pred_check_branch
        %120 = sbr.rel (%p118) target = $region16
      $region15: #{a_call__.5} parent=11 // pred_region
        _
      $region16: #{a_call__.5} parent=11 // pred_fallthru
        _
      // Predicated region
      $region17: #{a_call__.5} parent=11 // pred_check
        %p121 = pneg %p77
      $region18: #{a_call__.5} parent=11 // pred_check_branch
        %123 = sbr.rel (%p121) target = $region20
      $region19: #{a_call__.5} parent=11 // pred_region
        _
      $region20: #{a_call__.5} parent=11 // pred_fallthru
        _
    $region12: #{a_call__.5} parent=5 // pred_fallthru
      _
    %p124 = scmp.lt.s32.totalorder %s9, 2
    // Predicated region
    $region21: #{a_call__.5} parent=5 // pred_check
      %p125 = pneg %p124
    $region22: #{a_call__.5} parent=5 // pred_check_branch
      %127 = sbr.rel (%p125) target = $region24
    $region23: #{a_call__.5} parent=5 // pred_region
      // Predicated region
      $region25: #{a_call__.5} parent=23 // pred_check
        %p128 = pneg %p29
      $region26: #{a_call__.5} parent=23 // pred_check_branch
        %130 = sbr.rel (%p128) target = $region28
      $region27: #{a_call__.5} parent=23 // pred_region
        %p131 = scmp.lt.s32.totalorder %s9, 1
        %s132 = scalar_select %p131, %s9, 1
        %s133 = smul.addr %s132, 4
        %s134 = smul.addr %s133, 4
        %s135 = scalar_lea.vmem %s0, %s134
      $region28: #{a_call__.5} parent=23 // pred_fallthru
        _
    $region24: #{a_call__.5} parent=5 // pred_fallthru
      _
    %p136 = scmp.le.s32.totalorder 1, %s9
    %p137 = scmp.lt.s32.totalorder %s9, 3
    %p138 = pnand %p136, %p137
    %p139 = pneg %p138
    // Predicated region
    $region29: #{a_call__.5} parent=5 // pred_check
      _
    $region30: #{a_call__.5} parent=5 // pred_check_branch
      %141 = sbr.rel (%p138) target = $region32
    $region31: #{a_call__.5} parent=5 // pred_region
      %s142 = ssub.s32 %s9, 1
      %p143 = scmp.lt.s32.totalorder %s14, 1
      %s144 = scalar_select %p143, %s14, 1
      %s145 = smul.addr %s144, 4
      %s146 = smul.addr %s145, 4
      %s147 = scalar_lea.vmem %s0, %s146
      %p148 = pneg %p35
      %p149 = pneg %p32
      %p150 = pneg %p56
      %p151 = pneg %p53
      %p152 = pneg %p77
      %p153 = pneg %p74
      %p154 = pneg %p103
      %p155 = pneg %p100
      %p156 = scmp.lt.s32.totalorder %s14, 1
      %s157 = scalar_select %p156, %s14, 1
      %s158 = smul.addr %s157, 8
      %s159 = smul.addr %s158, 4
      %s160 = scalar_lea.vmem %s3, %s159
      %p161 = scmp.lt.s32.totalorder %s14, 1
      %s162 = scalar_select %p161, %s14, 1
      %s163 = smul.addr %s162, 4
      %s164 = smul.addr %s163, 4
      %s165 = scalar_lea.vmem %s0, %s164
      %p166 = scmp.lt.s32.totalorder %s14, 1
      %s167 = scalar_select %p166, %s14, 1
      %s168 = smul.addr %s167, 8
      %s169 = smul.addr %s168, 4
      %s170 = scalar_lea.vmem %s3, %s169
      %v172 = vld [vmem:[%s165] sm:$0xf]
      %v173 = vld [vmem:[%s165 + $0x4] sm:$0xf]
      %v174 = vld [vmem:[%s165 + $0x8] sm:$0xf]
      %v175 = vld [vmem:[%s165 + $0xc] sm:$0xf]
      %vm176 = vcmask 60416
      %177 = vst.msk [vmem:[#allocation2] sm:$0xf] %vm176, %v172
      %178 = vst.msk [vmem:[#allocation2 + $0x4] sm:$0xf] %vm176, %v173
      %179 = vst.msk [vmem:[#allocation2 + $0x8] sm:$0xf] %vm176, %v174
      %180 = vst.msk [vmem:[#allocation2 + $0xc] sm:$0xf] %vm176, %v175
      %v181 = vld [vmem:[%s165] sm:$0xf]
      %v182 = vld [vmem:[%s165 + $0x4] sm:$0xf]
      %v183 = vld [vmem:[%s165 + $0x8] sm:$0xf]
      %v184 = vld [vmem:[%s165 + $0xc] sm:$0xf]
      %189 = vrot.lane.b32.xlu0 %v181, 127
      %v190 = vpop.permute.xlu0 %189
      %191 = vrot.lane.b32.xlu0 %v182, 127
      %v192 = vpop.permute.xlu0 %191
      %193 = vrot.lane.b32.xlu0 %v183, 127
      %v194 = vpop.permute.xlu0 %193
      %195 = vrot.lane.b32.xlu0 %v184, 127
      %v196 = vpop.permute.xlu0 %195
      %201 = vst.msk [vmem:[#allocation2 + $0x10] sm:$0xf] %vm176, %v190
      %202 = vst.msk [vmem:[#allocation2 + $0x14] sm:$0xf] %vm176, %v192
      %203 = vst.msk [vmem:[#allocation2 + $0x18] sm:$0xf] %vm176, %v194
      %204 = vst.msk [vmem:[#allocation2 + $0x1c] sm:$0xf] %vm176, %v196
      %v205 = vld [vmem:[%s165] sm:$0xf]
      %v206 = vld [vmem:[%s165 + $0x4] sm:$0xf]
      %v207 = vld [vmem:[%s165 + $0x8] sm:$0xf]
      %v208 = vld [vmem:[%s165 + $0xc] sm:$0xf]
      %213 = vrot.lane.b32.xlu0 %v205, 126
      %v214 = vpop.permute.xlu0 %213
      %215 = vrot.lane.b32.xlu0 %v206, 126
      %v216 = vpop.permute.xlu0 %215
      %217 = vrot.lane.b32.xlu0 %v207, 126
      %v218 = vpop.permute.xlu0 %217
      %219 = vrot.lane.b32.xlu0 %v208, 126
      %v220 = vpop.permute.xlu0 %219
      %225 = vst.msk [vmem:[#allocation2 + $0x20] sm:$0xf] %vm176, %v214
      %226 = vst.msk [vmem:[#allocation2 + $0x24] sm:$0xf] %vm176, %v216
      %227 = vst.msk [vmem:[#allocation2 + $0x28] sm:$0xf] %vm176, %v218
      %228 = vst.msk [vmem:[#allocation2 + $0x2c] sm:$0xf] %vm176, %v220
      %v229 = vld [vmem:[%s165] sm:$0xf]
      %v230 = vld [vmem:[%s165 + $0x4] sm:$0xf]
      %v231 = vld [vmem:[%s165 + $0x8] sm:$0xf]
      %v232 = vld [vmem:[%s165 + $0xc] sm:$0xf]
      %237 = vrot.lane.b32.xlu0 %v229, 125
      %v238 = vpop.permute.xlu0 %237
      %239 = vrot.lane.b32.xlu0 %v230, 125
      %v240 = vpop.permute.xlu0 %239
      %241 = vrot.lane.b32.xlu0 %v231, 125
      %v242 = vpop.permute.xlu0 %241
      %243 = vrot.lane.b32.xlu0 %v232, 125
      %v244 = vpop.permute.xlu0 %243
      %249 = vst.msk [vmem:[#allocation2 + $0x30] sm:$0xf] %vm176, %v238
      %250 = vst.msk [vmem:[#allocation2 + $0x34] sm:$0xf] %vm176, %v240
      %251 = vst.msk [vmem:[#allocation2 + $0x38] sm:$0xf] %vm176, %v242
      %252 = vst.msk [vmem:[#allocation2 + $0x3c] sm:$0xf] %vm176, %v244
      %v253 = vld [vmem:[%s165] sm:$0xf]
      %v254 = vld [vmem:[%s165 + $0x4] sm:$0xf]
      %v255 = vld [vmem:[%s165 + $0x8] sm:$0xf]
      %v256 = vld [vmem:[%s165 + $0xc] sm:$0xf]
      %261 = vrot.lane.b32.xlu0 %v253, 124
      %v262 = vpop.permute.xlu0 %261
      %263 = vrot.lane.b32.xlu0 %v254, 124
      %v264 = vpop.permute.xlu0 %263
      %265 = vrot.lane.b32.xlu0 %v255, 124
      %v266 = vpop.permute.xlu0 %265
      %267 = vrot.lane.b32.xlu0 %v256, 124
      %v268 = vpop.permute.xlu0 %267
      %273 = vst.msk [vmem:[#allocation2 + $0x40] sm:$0xf] %vm176, %v262
      %274 = vst.msk [vmem:[#allocation2 + $0x44] sm:$0xf] %vm176, %v264
      %275 = vst.msk [vmem:[#allocation2 + $0x48] sm:$0xf] %vm176, %v266
      %276 = vst.msk [vmem:[#allocation2 + $0x4c] sm:$0xf] %vm176, %v268
      %v277 = vld [vmem:[%s165] sm:$0xf]
      %v278 = vld [vmem:[%s165 + $0x4] sm:$0xf]
      %v279 = vld [vmem:[%s165 + $0x8] sm:$0xf]
      %v280 = vld [vmem:[%s165 + $0xc] sm:$0xf]
      %285 = vrot.lane.b32.xlu0 %v277, 123
      %v286 = vpop.permute.xlu0 %285
      %287 = vrot.lane.b32.xlu0 %v278, 123
      %v288 = vpop.permute.xlu0 %287
      %289 = vrot.lane.b32.xlu0 %v279, 123
      %v290 = vpop.permute.xlu0 %289
      %291 = vrot.lane.b32.xlu0 %v280, 123
      %v292 = vpop.permute.xlu0 %291
      %297 = vst.msk [vmem:[#allocation2 + $0x50] sm:$0xf] %vm176, %v286
      %298 = vst.msk [vmem:[#allocation2 + $0x54] sm:$0xf] %vm176, %v288
      %299 = vst.msk [vmem:[#allocation2 + $0x58] sm:$0xf] %vm176, %v290
      %300 = vst.msk [vmem:[#allocation2 + $0x5c] sm:$0xf] %vm176, %v292
      %v301 = vld [vmem:[%s165] sm:$0xf]
      %v302 = vld [vmem:[%s165 + $0x4] sm:$0xf]
      %v303 = vld [vmem:[%s165 + $0x8] sm:$0xf]
      %v304 = vld [vmem:[%s165 + $0xc] sm:$0xf]
      %309 = vrot.lane.b32.xlu0 %v301, 122
      %v310 = vpop.permute.xlu0 %309
      %311 = vrot.lane.b32.xlu0 %v302, 122
      %v312 = vpop.permute.xlu0 %311
      %313 = vrot.lane.b32.xlu0 %v303, 122
      %v314 = vpop.permute.xlu0 %313
      %315 = vrot.lane.b32.xlu0 %v304, 122
      %v316 = vpop.permute.xlu0 %315
      %321 = vst.msk [vmem:[#allocation2 + $0x60] sm:$0xf] %vm176, %v310
      %322 = vst.msk [vmem:[#allocation2 + $0x64] sm:$0xf] %vm176, %v312
      %323 = vst.msk [vmem:[#allocation2 + $0x68] sm:$0xf] %vm176, %v314
      %324 = vst.msk [vmem:[#allocation2 + $0x6c] sm:$0xf] %vm176, %v316
      %v325 = vld [vmem:[%s1] sm:$0xff]
      %v326 = vld [vmem:[%s1 + $0x8] sm:$0xff]
      %v327 = vld [vmem:[%s1 + $0x10] sm:$0xff]
      %v328 = vld [vmem:[%s1 + $0x18] sm:$0xff]
      %v329 = vld [vmem:[%s1 + $0x20] sm:$0xff]
      %v330 = vld [vmem:[%s1 + $0x28] sm:$0xff]
      %v331 = vld [vmem:[%s1 + $0x30] sm:$0xff]
      %v332 = vld [vmem:[%s1 + $0x38] sm:$0xff]
      %v333 = vld [vmem:[#allocation2] sm:$0xf]
      %v334 = vld [vmem:[#allocation2 + $0x4] sm:$0xf]
      %v335 = vld [vmem:[#allocation2 + $0x8] sm:$0xf]
      %v336 = vld [vmem:[#allocation2 + $0xc] sm:$0xf]
      %v337 = vld [vmem:[#allocation2 + $0x10] sm:$0xf]
      %v338 = vld [vmem:[#allocation2 + $0x14] sm:$0xf]
      %v339 = vld [vmem:[#allocation2 + $0x18] sm:$0xf]
      %v340 = vld [vmem:[#allocation2 + $0x1c] sm:$0xf]
      %v341 = vld [vmem:[#allocation2 + $0x20] sm:$0xf]
      %v342 = vld [vmem:[#allocation2 + $0x24] sm:$0xf]
      %v343 = vld [vmem:[#allocation2 + $0x28] sm:$0xf]
      %v344 = vld [vmem:[#allocation2 + $0x2c] sm:$0xf]
      %v345 = vld [vmem:[#allocation2 + $0x30] sm:$0xf]
      %v346 = vld [vmem:[#allocation2 + $0x34] sm:$0xf]
      %v347 = vld [vmem:[#allocation2 + $0x38] sm:$0xf]
      %v348 = vld [vmem:[#allocation2 + $0x3c] sm:$0xf]
      %v349 = vld [vmem:[#allocation2 + $0x40] sm:$0xf]
      %v350 = vld [vmem:[#allocation2 + $0x44] sm:$0xf]
      %v351 = vld [vmem:[#allocation2 + $0x48] sm:$0xf]
      %v352 = vld [vmem:[#allocation2 + $0x4c] sm:$0xf]
      %v353 = vld [vmem:[#allocation2 + $0x50] sm:$0xf]
      %v354 = vld [vmem:[#allocation2 + $0x54] sm:$0xf]
      %v355 = vld [vmem:[#allocation2 + $0x58] sm:$0xf]
      %v356 = vld [vmem:[#allocation2 + $0x5c] sm:$0xf]
      %v357 = vld [vmem:[#allocation2 + $0x60] sm:$0xf]
      %v358 = vld [vmem:[#allocation2 + $0x64] sm:$0xf]
      %v359 = vld [vmem:[#allocation2 + $0x68] sm:$0xf]
      %v360 = vld [vmem:[#allocation2 + $0x6c] sm:$0xf]
      %v361 = vld [vmem:[%s2] sm:$0xff]
      %v362 = vld [vmem:[%s2 + $0x8] sm:$0xff]
      %v363 = vld [vmem:[%s2 + $0x10] sm:$0xff]
      %v364 = vld [vmem:[%s2 + $0x18] sm:$0xff]
      %v365 = vld [vmem:[%s2 + $0x20] sm:$0xff]
      %v366 = vld [vmem:[%s2 + $0x28] sm:$0xff]
      %v367 = vld [vmem:[%s2 + $0x30] sm:$0xff]
      %v368 = vld [vmem:[%s2 + $0x38] sm:$0xff]
      %370 = vset.pattern.permute.xlu0 0
      %371 = vperm.xlu0 %370, %v361
      %v372 = vpop.permute.xlu0 %371
      %375 = vset.pattern.permute.xlu0 0
      %376 = vperm.xlu0 %375, %v362
      %v377 = vpop.permute.xlu0 %376
      %380 = vset.pattern.permute.xlu0 0
      %381 = vperm.xlu0 %380, %v363
      %v382 = vpop.permute.xlu0 %381
      %385 = vset.pattern.permute.xlu0 0
      %386 = vperm.xlu0 %385, %v364
      %v387 = vpop.permute.xlu0 %386
      %390 = vset.pattern.permute.xlu0 0
      %391 = vperm.xlu0 %390, %v365
      %v392 = vpop.permute.xlu0 %391
      %395 = vset.pattern.permute.xlu0 0
      %396 = vperm.xlu0 %395, %v366
      %v397 = vpop.permute.xlu0 %396
      %400 = vset.pattern.permute.xlu0 0
      %401 = vperm.xlu0 %400, %v367
      %v402 = vpop.permute.xlu0 %401
      %405 = vset.pattern.permute.xlu0 0
      %406 = vperm.xlu0 %405, %v368
      %v407 = vpop.permute.xlu0 %406
      %v417 = vunpack.c.l.b16 %v325
      %v418 = vunpack.c.h.b16 %v325
      %v419 = vunpack.c.l.b16 %v326
      %v420 = vunpack.c.h.b16 %v326
      %v421 = vunpack.c.l.b16 %v327
      %v422 = vunpack.c.h.b16 %v327
      %v423 = vunpack.c.l.b16 %v328
      %v424 = vunpack.c.h.b16 %v328
      %v425 = vunpack.c.l.b16 %v329
      %v426 = vunpack.c.h.b16 %v329
      %v427 = vunpack.c.l.b16 %v330
      %v428 = vunpack.c.h.b16 %v330
      %v429 = vunpack.c.l.b16 %v331
      %v430 = vunpack.c.h.b16 %v331
      %v431 = vunpack.c.l.b16 %v332
      %v432 = vunpack.c.h.b16 %v332
      %v433 = vpack.c.b16 %v419, %v417
      %v434 = vpack.c.b16 %v420, %v418
      %v435 = vpack.c.b16 %v423, %v421
      %v436 = vpack.c.b16 %v424, %v422
      %v437 = vpack.c.b16 %v427, %v425
      %v438 = vpack.c.b16 %v428, %v426
      %v439 = vpack.c.b16 %v431, %v429
      %v440 = vpack.c.b16 %v432, %v430
      %v473 = vunpack.c.l.b16 %v333
      %v474 = vunpack.c.l.b16 %v334
      %v475 = vunpack.c.l.b16 %v335
      %v476 = vunpack.c.l.b16 %v336
      %v477 = vunpack.c.l.b16 %v337
      %v478 = vunpack.c.l.b16 %v338
      %v479 = vunpack.c.l.b16 %v339
      %v480 = vunpack.c.l.b16 %v340
      %v481 = vunpack.c.l.b16 %v341
      %v482 = vunpack.c.l.b16 %v342
      %v483 = vunpack.c.l.b16 %v343
      %v484 = vunpack.c.l.b16 %v344
      %v485 = vunpack.c.l.b16 %v345
      %v486 = vunpack.c.l.b16 %v346
      %v487 = vunpack.c.l.b16 %v347
      %v488 = vunpack.c.l.b16 %v348
      %v489 = vunpack.c.l.b16 %v349
      %v490 = vunpack.c.l.b16 %v350
      %v491 = vunpack.c.l.b16 %v351
      %v492 = vunpack.c.l.b16 %v352
      %v493 = vunpack.c.l.b16 %v353
      %v494 = vunpack.c.l.b16 %v354
      %v495 = vunpack.c.l.b16 %v355
      %v496 = vunpack.c.l.b16 %v356
      %v497 = vunpack.c.l.b16 %v357
      %v498 = vunpack.c.l.b16 %v358
      %v499 = vunpack.c.l.b16 %v359
      %v500 = vunpack.c.l.b16 %v360
      %v501 = vpack.c.b16 %v474, %v473
      %v502 = vpack.c.b16 %v476, %v475
      %v503 = vpack.c.b16 %v478, %v477
      %v504 = vpack.c.b16 %v480, %v479
      %v505 = vpack.c.b16 %v482, %v481
      %v506 = vpack.c.b16 %v484, %v483
      %v507 = vpack.c.b16 %v486, %v485
      %v508 = vpack.c.b16 %v488, %v487
      %v509 = vpack.c.b16 %v490, %v489
      %v510 = vpack.c.b16 %v492, %v491
      %v511 = vpack.c.b16 %v494, %v493
      %v512 = vpack.c.b16 %v496, %v495
      %v513 = vpack.c.b16 %v498, %v497
      %v514 = vpack.c.b16 %v500, %v499
      %vm529 = vcmask 785408
      %v531 = vsel %vm529, %v434, 0
      %v534 = vsel %vm529, %v436, 0
      %v537 = vsel %vm529, %v438, 0
      %v540 = vsel %vm529, %v440, 0
      %542 = vmatpush.bf16.msra.mxu0 %v508
      %543 = vmatpush.bf16.msra.mxu0 %v507
      %544 = vmatpush.bf16.msra.mxu0 %v506
      %545 = vmatpush.bf16.msra.mxu0 %v505
      %546 = vmatpush.bf16.msra.mxu0 %v504
      %547 = vmatpush.bf16.msra.mxu0 %v503
      %548 = vmatpush.bf16.msra.mxu0 %v502
      %549 = vmatpush.bf16.msra.mxu0 %v501
      %550 = vmatmul.bf16.gmra.mxu0 %v433
      %v551 = vpop.f32.mrf.mxu0
      %v552 = vadd.f32 %v372, %v551
      %v553 = vpop.f32.mrf.mxu0
      %v554 = vadd.f32 %v377, %v553
      %555 = vmatmul.bf16.gmra.mxu0 %v435
      %v556 = vpop.f32.mrf.mxu0
      %v557 = vadd.f32 %v382, %v556
      %v558 = vpop.f32.mrf.mxu0
      %v559 = vadd.f32 %v387, %v558
      %560 = vmatmul.bf16.gmra.mxu0 %v437
      %v561 = vpop.f32.mrf.mxu0
      %v562 = vadd.f32 %v392, %v561
      %v563 = vpop.f32.mrf.mxu0
      %v564 = vadd.f32 %v397, %v563
      %565 = vmatmul.bf16.gmra.mxu0 %v439
      %v566 = vpop.f32.mrf.mxu0
      %v567 = vadd.f32 %v402, %v566
      %v568 = vpop.f32.mrf.mxu0
      %v569 = vadd.f32 %v407, %v568
      %570 = vdwg.mxu0
      %571 = vmatpush.bf16.msra.mxu0 0
      %572 = vmatpush.bf16.msra.mxu0 0
      %573 = vmatpush.bf16.msra.mxu0 %v514
      %574 = vmatpush.bf16.msra.mxu0 %v513
      %575 = vmatpush.bf16.msra.mxu0 %v512
      %576 = vmatpush.bf16.msra.mxu0 %v511
      %577 = vmatpush.bf16.msra.mxu0 %v510
      %578 = vmatpush.bf16.msra.mxu0 %v509
      %579 = vmatmul.bf16.gmra.mxu0 %v531
      %v580 = vpop.f32.mrf.mxu0
      %v581 = vadd.f32 %v552, %v580
      %v582 = vpop.f32.mrf.mxu0
      %v583 = vadd.f32 %v554, %v582
      %584 = vmatmul.bf16.gmra.mxu0 %v534
      %v585 = vpop.f32.mrf.mxu0
      %v586 = vadd.f32 %v557, %v585
      %v587 = vpop.f32.mrf.mxu0
      %v588 = vadd.f32 %v559, %v587
      %589 = vmatmul.bf16.gmra.mxu0 %v537
      %v590 = vpop.f32.mrf.mxu0
      %v591 = vadd.f32 %v562, %v590
      %v592 = vpop.f32.mrf.mxu0
      %v593 = vadd.f32 %v564, %v592
      %594 = vmatmul.bf16.gmra.mxu0 %v540
      %v595 = vpop.f32.mrf.mxu0
      %v596 = vadd.f32 %v567, %v595
      %v597 = vpop.f32.mrf.mxu0
      %v598 = vadd.f32 %v569, %v597
      %599 = vdwg.mxu0
      %vm600 = vcmask 3072
      %601 = vst.msk [vmem:[%s170] sm:$0xf] %vm600, 0
      %602 = vst.msk [vmem:[%s170 + $0x4] sm:$0xf] %vm600, 0
      %603 = vst.msk [vmem:[%s170 + $0x8] sm:$0xf] %vm600, 0
      %604 = vst.msk [vmem:[%s170 + $0xc] sm:$0xf] %vm600, 0
      %605 = vst.msk [vmem:[%s170 + $0x10] sm:$0xf] %vm600, 0
      %606 = vst.msk [vmem:[%s170 + $0x14] sm:$0xf] %vm600, 0
      %607 = vst.msk [vmem:[%s170 + $0x18] sm:$0xf] %vm600, 0
      %608 = vst.msk [vmem:[%s170 + $0x1c] sm:$0xf] %vm600, 0
      %vm609 = vcmask 76872
      %610 = vst.msk [vmem:[%s170] sm:$0xf] %vm609, 0
      %611 = vst.msk [vmem:[%s170 + $0x4] sm:$0xf] %vm609, 0
      %612 = vst.msk [vmem:[%s170 + $0x8] sm:$0xf] %vm609, 0
      %613 = vst.msk [vmem:[%s170 + $0xc] sm:$0xf] %vm609, 0
      %614 = vst.msk [vmem:[%s170 + $0x10] sm:$0xf] %vm609, 0
      %615 = vst.msk [vmem:[%s170 + $0x14] sm:$0xf] %vm609, 0
      %616 = vst.msk [vmem:[%s170 + $0x18] sm:$0xf] %vm609, 0
      %617 = vst.msk [vmem:[%s170 + $0x1c] sm:$0xf] %vm609, 0
      %v618 = vpack.c.bf16 %v581, %v581
      %v619 = vpack.c.bf16 %v583, %v583
      %v620 = vpack.c.bf16 %v586, %v586
      %v621 = vpack.c.bf16 %v588, %v588
      %v622 = vpack.c.bf16 %v591, %v591
      %v623 = vpack.c.bf16 %v593, %v593
      %v624 = vpack.c.bf16 %v596, %v596
      %v625 = vpack.c.bf16 %v598, %v598
      %634 = vrot.lane.b32.xlu0 %v618, 1
      %v635 = vpop.permute.xlu0 %634
      %636 = vrot.lane.b32.xlu0 %v619, 1
      %v637 = vpop.permute.xlu0 %636
      %638 = vrot.lane.b32.xlu0 %v620, 1
      %v639 = vpop.permute.xlu0 %638
      %640 = vrot.lane.b32.xlu0 %v621, 1
      %v641 = vpop.permute.xlu0 %640
      %642 = vrot.lane.b32.xlu0 %v622, 1
      %v643 = vpop.permute.xlu0 %642
      %644 = vrot.lane.b32.xlu0 %v623, 1
      %v645 = vpop.permute.xlu0 %644
      %646 = vrot.lane.b32.xlu0 %v624, 1
      %v647 = vpop.permute.xlu0 %646
      %648 = vrot.lane.b32.xlu0 %v625, 1
      %v649 = vpop.permute.xlu0 %648
      %vm658 = vcmask 68616
      %659 = vst.msk [vmem:[%s170] sm:$0xf] %vm658, %v635
      %660 = vst.msk [vmem:[%s170 + $0x4] sm:$0xf] %vm658, %v637
      %661 = vst.msk [vmem:[%s170 + $0x8] sm:$0xf] %vm658, %v639
      %662 = vst.msk [vmem:[%s170 + $0xc] sm:$0xf] %vm658, %v641
      %663 = vst.msk [vmem:[%s170 + $0x10] sm:$0xf] %vm658, %v643
      %664 = vst.msk [vmem:[%s170 + $0x14] sm:$0xf] %vm658, %v645
      %665 = vst.msk [vmem:[%s170 + $0x18] sm:$0xf] %vm658, %v647
      %666 = vst.msk [vmem:[%s170 + $0x1c] sm:$0xf] %vm658, %v649
      %p667 = scmp.lt.s32.totalorder %s14, 1
      %s668 = scalar_select %p667, %s14, 1
      %s669 = smul.addr %s668, 8
      %s670 = smul.addr %s669, 4
      %s671 = scalar_lea.vmem %s3, %s670
      // Predicated region
      $region33: #{a_call__.5} parent=31 // pred_check
        %p672 = pneg %p100
      $region34: #{a_call__.5} parent=31 // pred_check_branch
        %674 = sbr.rel (%p672) target = $region36
      $region35: #{a_call__.5} parent=31 // pred_region
        _
      $region36: #{a_call__.5} parent=31 // pred_fallthru
        _
    $region32: #{a_call__.5} parent=5 // pred_fallthru
      _
    %p675 = scmp.le.s32.totalorder 2, %s9
    // Predicated region
    $region37: #{a_call__.5} parent=5 // pred_check
      %p676 = pneg %p675
    $region38: #{a_call__.5} parent=5 // pred_check_branch
      %678 = sbr.rel (%p676) target = $region40
    $region39: #{a_call__.5} parent=5 // pred_region
      %s679 = ssub.s32 %s9, 2
      // Predicated region
      $region41: #{a_call__.5} parent=39 // pred_check
        %p680 = pneg %p106
      $region42: #{a_call__.5} parent=39 // pred_check_branch
        %682 = sbr.rel (%p680) target = $region44
      $region43: #{a_call__.5} parent=39 // pred_region
        %p683 = scmp.lt.s32.totalorder %s15, 1
        %s684 = scalar_select %p683, %s15, 1
        %s685 = smul.addr %s684, 8
        %s686 = smul.addr %s685, 4
        %s687 = scalar_lea.vmem %s3, %s686
      $region44: #{a_call__.5} parent=39 // pred_fallthru
        _
    $region40: #{a_call__.5} parent=5 // pred_fallthru
      _
  $region6: #{a_call__.5} parent=0 // loop_footer
    %s13 = sadd.s32 1, %s9
  $region7: #{a_call__.5} parent=0 // loop_footer_branch
    %8 = sbr.rel target = $region3
  $region8: #{a_call__.5} parent=0 // loop_exit
    _

// kernel: a_call__.8
$region0: #{a_call__.8}
  #allocation0 [shape = 'u32[]', space=smem, size = 0x4, offset = 0x4, fixed_abs, tag = 'smem constant byte address 0x4 - core index']
  #allocation1 [shape = 'u32[72,128]{1,0:T(1,128)}', space=vmem, size = 0x9000, scoped, tag = 'internal scratch']
  #allocation2 [shape = 'bf16[64,32]{1,0:T(8,128)(2,1)}', space=vmem, size = 0x4000, scoped, tag = 'scratch operand']
  %s0 = inlined_call_operand.vmem [shape: bf16[2,32,34], index: 0, kind: input, shape index: {}]
  %s1 = inlined_call_operand.vmem [shape: bf16[4,16,64], index: 1, kind: input, shape index: {}]
  %s2 = inlined_call_operand.vmem [shape: f32[16,1], index: 2, kind: input, shape index: {}]
  %s3 = inlined_call_operand.vmem [shape: bf16[2,4,16,32], index: 3, kind: output, shape index: {}]
  %s4 = sld [smem:[#allocation0]]
  $region45: #{a_call__.8} parent=0
    _
  %s6 = ssub.s32 1, %s4
  %s7 = scalar_select 0, %s6, %s4
  loop: start=0, step=1, limit=4
  $region2: #{a_call__.8} parent=0 // loop_pre_header
    _
  $region3: #{a_call__.8} parent=0 // loop_header
    %s9 = sphi 0, %s13
    %p10 = scmp.ge.s32.totalorder %s9, 4
    %s19 = sphi 0, %s21
    %s22 = sphi 0, %s19
    %s23 = sphi 0, %s22
    %s39 = sphi 0, %s23
    %s43 = sphi 0, %s43
    %s45 = sphi 0, %s43
    %s46 = sphi 0, %s45
    %s60 = sphi 0, %s46
    %s64 = sphi 0, %s64
    %s66 = sphi 0, %s64
    %s67 = sphi 0, %s66
    %s81 = sphi 0, %s67
    %s87 = sphi 0, %s89
    %s90 = sphi 0, %s87
    %s91 = sphi 0, %s90
    %s107 = sphi 0, %s91
  $region4: #{a_call__.8} parent=0 // loop_header_branch
    %12 = sbr.rel (%p10) target = $region8
  $region5: #{a_call__.8} parent=0 // loop_body
    %s14 = ssub.s32 %s9, 1
    %s15 = ssub.s32 %s9, 2
    %s16 = sadd.s32 %s9, 1
    %s17 = ssub.s32 %s9, %s16
    %p18 = scmp.eq.s32.totalorder %s17, 0
    %s20 = sadd.s32 %s19, 1
    %s21 = scalar_select %p18, %s19, %s20
    %p24 = pneg %p18
    %p25 = scmp.eq.s32.totalorder %s9, 1
    %p26 = por %p24, %p25
    %p27 = scmp.ne.s32.totalorder %s19, %s22
    %p28 = scmp.eq.s32.totalorder %s9, 0
    %p29 = por %p27, %p28
    %p30 = scmp.ne.s32.totalorder %s19, %s22
    %p31 = scmp.eq.s32.totalorder %s14, 1
    %p32 = por %p30, %p31
    %p33 = scmp.ne.s32.totalorder %s22, %s23
    %p34 = scmp.eq.s32.totalorder %s14, 0
    %p35 = por %p33, %p34
    %p36 = scmp.ne.s32.totalorder %s22, %s23
    %p37 = scmp.eq.s32.totalorder %s15, 1
    %p38 = por %p36, %p37
    %p40 = scmp.ne.s32.totalorder %s23, %s39
    %p41 = scmp.eq.s32.totalorder %s15, 0
    %p42 = por %p40, %p41
    %s44 = sadd.s32 %s43, 1
    %p47 = scmp.eq.s32.totalorder %s9, 1
    %p48 = scmp.ne.s32.totalorder %s43, %s45
    %p49 = scmp.eq.s32.totalorder %s9, 0
    %p50 = por %p48, %p49
    %p51 = scmp.ne.s32.totalorder %s43, %s45
    %p52 = scmp.eq.s32.totalorder %s14, 1
    %p53 = por %p51, %p52
    %p54 = scmp.ne.s32.totalorder %s45, %s46
    %p55 = scmp.eq.s32.totalorder %s14, 0
    %p56 = por %p54, %p55
    %p57 = scmp.ne.s32.totalorder %s45, %s46
    %p58 = scmp.eq.s32.totalorder %s15, 1
    %p59 = por %p57, %p58
    %p61 = scmp.ne.s32.totalorder %s46, %s60
    %p62 = scmp.eq.s32.totalorder %s15, 0
    %p63 = por %p61, %p62
    %s65 = sadd.s32 %s64, 1
    %p68 = scmp.eq.s32.totalorder %s9, 1
    %p69 = scmp.ne.s32.totalorder %s64, %s66
    %p70 = scmp.eq.s32.totalorder %s9, 0
    %p71 = por %p69, %p70
    %p72 = scmp.ne.s32.totalorder %s64, %s66
    %p73 = scmp.eq.s32.totalorder %s14, 1
    %p74 = por %p72, %p73
    %p75 = scmp.ne.s32.totalorder %s66, %s67
    %p76 = scmp.eq.s32.totalorder %s14, 0
    %p77 = por %p75, %p76
    %p78 = scmp.ne.s32.totalorder %s66, %s67
    %p79 = scmp.eq.s32.totalorder %s15, 1
    %p80 = por %p78, %p79
    %p82 = scmp.ne.s32.totalorder %s67, %s81
    %p83 = scmp.eq.s32.totalorder %s15, 0
    %p84 = por %p82, %p83
    %s85 = ssub.s32 %s9, %s16
    %p86 = scmp.eq.s32.totalorder %s85, 0
    %s88 = sadd.s32 %s87, 1
    %s89 = scalar_select %p86, %s87, %s88
    %p92 = pneg %p86
    %p93 = scmp.eq.s32.totalorder %s9, 1
    %p94 = por %p92, %p93
    %p95 = scmp.ne.s32.totalorder %s87, %s90
    %p96 = scmp.eq.s32.totalorder %s9, 0
    %p97 = por %p95, %p96
    %p98 = scmp.ne.s32.totalorder %s87, %s90
    %p99 = scmp.eq.s32.totalorder %s14, 1
    %p100 = por %p98, %p99
    %p101 = scmp.ne.s32.totalorder %s90, %s91
    %p102 = scmp.eq.s32.totalorder %s14, 0
    %p103 = por %p101, %p102
    %p104 = scmp.ne.s32.totalorder %s90, %s91
    %p105 = scmp.eq.s32.totalorder %s15, 1
    %p106 = por %p104, %p105
    %p108 = scmp.ne.s32.totalorder %s91, %s107
    %p109 = scmp.eq.s32.totalorder %s15, 0
    %p110 = por %p108, %p109
    %p111 = scmp.le.s32.totalorder 1, %s9
    %p112 = scmp.lt.s32.totalorder %s9, 3
    %p113 = pnand %p111, %p112
    %p114 = pneg %p113
    // Predicated region
    $region9: #{a_call__.8} parent=5 // pred_check
      _
    $region10: #{a_call__.8} parent=5 // pred_check_branch
      %116 = sbr.rel (%p113) target = $region12
    $region11: #{a_call__.8} parent=5 // pred_region
      %s117 = ssub.s32 %s9, 1
      // Predicated region
      $region13: #{a_call__.8} parent=11 // pred_check
        %p118 = pneg %p56
      $region14: #{a_call__.8} parent=11 // pred_check_branch
        %120 = sbr.rel (%p118) target = $region16
      $region15: #{a_call__.8} parent=11 // pred_region
        _
      $region16: #{a_call__.8} parent=11 // pred_fallthru
        _
      // Predicated region
      $region17: #{a_call__.8} parent=11 // pred_check
        %p121 = pneg %p77
      $region18: #{a_call__.8} parent=11 // pred_check_branch
        %123 = sbr.rel (%p121) target = $region20
      $region19: #{a_call__.8} parent=11 // pred_region
        _
      $region20: #{a_call__.8} parent=11 // pred_fallthru
        _
    $region12: #{a_call__.8} parent=5 // pred_fallthru
      _
    %p124 = scmp.lt.s32.totalorder %s9, 2
    // Predicated region
    $region21: #{a_call__.8} parent=5 // pred_check
      %p125 = pneg %p124
    $region22: #{a_call__.8} parent=5 // pred_check_branch
      %127 = sbr.rel (%p125) target = $region24
    $region23: #{a_call__.8} parent=5 // pred_region
      // Predicated region
      $region25: #{a_call__.8} parent=23 // pred_check
        %p128 = pneg %p29
      $region26: #{a_call__.8} parent=23 // pred_check_branch
        %130 = sbr.rel (%p128) target = $region28
      $region27: #{a_call__.8} parent=23 // pred_region
        %p131 = scmp.lt.s32.totalorder %s9, 1
        %s132 = scalar_select %p131, %s9, 1
        %s133 = smul.addr %s132, 4
        %s134 = smul.addr %s133, 4
        %s135 = scalar_lea.vmem %s0, %s134
      $region28: #{a_call__.8} parent=23 // pred_fallthru
        _
    $region24: #{a_call__.8} parent=5 // pred_fallthru
      _
    %p136 = scmp.le.s32.totalorder 1, %s9
    %p137 = scmp.lt.s32.totalorder %s9, 3
    %p138 = pnand %p136, %p137
    %p139 = pneg %p138
    // Predicated region
    $region29: #{a_call__.8} parent=5 // pred_check
      _
    $region30: #{a_call__.8} parent=5 // pred_check_branch
      %141 = sbr.rel (%p138) target = $region32
    $region31: #{a_call__.8} parent=5 // pred_region
      %s142 = ssub.s32 %s9, 1
      %p143 = scmp.lt.s32.totalorder %s14, 1
      %s144 = scalar_select %p143, %s14, 1
      %s145 = smul.addr %s144, 4
      %s146 = smul.addr %s145, 4
      %s147 = scalar_lea.vmem %s0, %s146
      %p148 = pneg %p35
      %p149 = pneg %p32
      %p150 = pneg %p56
      %p151 = pneg %p53
      %p152 = pneg %p77
      %p153 = pneg %p74
      %p154 = pneg %p103
      %p155 = pneg %p100
      %p156 = scmp.lt.s32.totalorder %s14, 1
      %s157 = scalar_select %p156, %s14, 1
      %s158 = smul.addr %s157, 8
      %s159 = smul.addr %s158, 4
      %s160 = scalar_lea.vmem %s3, %s159
      %p161 = scmp.lt.s32.totalorder %s14, 1
      %s162 = scalar_select %p161, %s14, 1
      %s163 = smul.addr %s162, 4
      %s164 = smul.addr %s163, 4
      %s165 = scalar_lea.vmem %s0, %s164
      %p166 = scmp.lt.s32.totalorder %s14, 1
      %s167 = scalar_select %p166, %s14, 1
      %s168 = smul.addr %s167, 8
      %s169 = smul.addr %s168, 4
      %s170 = scalar_lea.vmem %s3, %s169
      %v172 = vld [vmem:[%s2] sm:$0xff]
      %v173 = vld [vmem:[%s2 + $0x8] sm:$0xff]
      %v174 = vld [vmem:[%s165] sm:$0xf]
      %v175 = vld [vmem:[%s165 + $0x4] sm:$0xf]
      %v176 = vld [vmem:[%s165 + $0x8] sm:$0xf]
      %v177 = vld [vmem:[%s165 + $0xc] sm:$0xf]
      %v178 = vunpack.c.l.bf16 %v174
      %v179 = vunpack.c.l.bf16 %v175
      %v180 = vunpack.c.l.bf16 %v176
      %v181 = vunpack.c.l.bf16 %v177
      %vm182 = vcmp.gt.f32.partialorder %v178, 0.0
      %vm183 = vcmp.gt.f32.partialorder %v179, 0.0
      %vm184 = vcmp.gt.f32.partialorder %v180, 0.0
      %vm185 = vcmp.gt.f32.partialorder %v181, 0.0
      %v186 = vmul.f32 %v178, 0.100097656
      %v187 = vmul.f32 %v179, 0.100097656
      %v188 = vmul.f32 %v180, 0.100097656
      %v189 = vmul.f32 %v181, 0.100097656
      %v190 = vpack.c.bf16 %v186, %v186
      %v191 = vpack.c.bf16 %v187, %v187
      %v192 = vpack.c.bf16 %v188, %v188
      %v193 = vpack.c.bf16 %v189, %v189
      %vm194 = vmpackc.low %vm182, %vm182
      %vm195 = vmpackc.low %vm183, %vm183
      %vm196 = vmpackc.low %vm184, %vm184
      %vm197 = vmpackc.low %vm185, %vm185
      %v198 = vsel %vm194, %v174, %v190
      %v199 = vsel %vm195, %v175, %v191
      %v200 = vsel %vm196, %v176, %v192
      %v201 = vsel %vm197, %v177, %v193
      %vm202 = vcmask 257024
      %203 = vst.msk [vmem:[#allocation2] sm:$0xf] %vm202, %v198
      %204 = vst.msk [vmem:[#allocation2 + $0x4] sm:$0xf] %vm202, %v199
      %205 = vst.msk [vmem:[#allocation2 + $0x8] sm:$0xf] %vm202, %v200
      %206 = vst.msk [vmem:[#allocation2 + $0xc] sm:$0xf] %vm202, %v201
      %v207 = vld [vmem:[%s165] sm:$0xf]
      %v208 = vld [vmem:[%s165 + $0x4] sm:$0xf]
      %v209 = vld [vmem:[%s165 + $0x8] sm:$0xf]
      %v210 = vld [vmem:[%s165 + $0xc] sm:$0xf]
      %v211 = vunpack.c.l.bf16 %v207
      %v212 = vunpack.c.l.bf16 %v208
      %v213 = vunpack.c.l.bf16 %v209
      %v214 = vunpack.c.l.bf16 %v210
      %vm215 = vcmp.gt.f32.partialorder %v211, 0.0
      %vm216 = vcmp.gt.f32.partialorder %v212, 0.0
      %vm217 = vcmp.gt.f32.partialorder %v213, 0.0
      %vm218 = vcmp.gt.f32.partialorder %v214, 0.0
      %v219 = vmul.f32 %v211, 0.100097656
      %v220 = vmul.f32 %v212, 0.100097656
      %v221 = vmul.f32 %v213, 0.100097656
      %v222 = vmul.f32 %v214, 0.100097656
      %v223 = vpack.c.bf16 %v219, %v219
      %v224 = vpack.c.bf16 %v220, %v220
      %v225 = vpack.c.bf16 %v221, %v221
      %v226 = vpack.c.bf16 %v222, %v222
      %vm227 = vmpackc.low %vm215, %vm215
      %vm228 = vmpackc.low %vm216, %vm216
      %vm229 = vmpackc.low %vm217, %vm217
      %vm230 = vmpackc.low %vm218, %vm218
      %v231 = vsel %vm227, %v207, %v223
      %v232 = vsel %vm228, %v208, %v224
      %v233 = vsel %vm229, %v209, %v225
      %v234 = vsel %vm230, %v210, %v226
      %239 = vrot.lane.b32.xlu0 %v231, 127
      %v240 = vpop.permute.xlu0 %239
      %241 = vrot.lane.b32.xlu0 %v232, 127
      %v242 = vpop.permute.xlu0 %241
      %243 = vrot.lane.b32.xlu0 %v233, 127
      %v244 = vpop.permute.xlu0 %243
      %245 = vrot.lane.b32.xlu0 %v234, 127
      %v246 = vpop.permute.xlu0 %245
      %251 = vst.msk [vmem:[#allocation2 + $0x10] sm:$0xf] %vm202, %v240
      %252 = vst.msk [vmem:[#allocation2 + $0x14] sm:$0xf] %vm202, %v242
      %253 = vst.msk [vmem:[#allocation2 + $0x18] sm:$0xf] %vm202, %v244
      %254 = vst.msk [vmem:[#allocation2 + $0x1c] sm:$0xf] %vm202, %v246
      %v255 = vld [vmem:[%s1] sm:$0xf]
      %v256 = vld [vmem:[%s1 + $0x4] sm:$0xf]
      %v257 = vld [vmem:[#allocation2] sm:$0xf]
      %v258 = vld [vmem:[#allocation2 + $0x4] sm:$0xf]
      %v259 = vld [vmem:[#allocation2 + $0x8] sm:$0xf]
      %v260 = vld [vmem:[#allocation2 + $0xc] sm:$0xf]
      %v261 = vld [vmem:[#allocation2 + $0x10] sm:$0xf]
      %v262 = vld [vmem:[#allocation2 + $0x14] sm:$0xf]
      %v263 = vld [vmem:[#allocation2 + $0x18] sm:$0xf]
      %v264 = vld [vmem:[#allocation2 + $0x1c] sm:$0xf]
      %266 = vset.pattern.permute.xlu0 0
      %267 = vperm.xlu0 %266, %v172
      %v268 = vpop.permute.xlu0 %267
      %271 = vset.pattern.permute.xlu0 0
      %272 = vperm.xlu0 %271, %v173
      %v273 = vpop.permute.xlu0 %272
      %v277 = vunpack.c.l.b16 %v255
      %v278 = vunpack.c.l.b16 %v256
      %v279 = vpack.c.b16 %v278, %v277
      %v288 = vunpack.c.l.b16 %v257
      %v289 = vunpack.c.l.b16 %v258
      %v290 = vunpack.c.l.b16 %v259
      %v291 = vunpack.c.l.b16 %v260
      %v292 = vunpack.c.l.b16 %v261
      %v293 = vunpack.c.l.b16 %v262
      %v294 = vunpack.c.l.b16 %v263
      %v295 = vunpack.c.l.b16 %v264
      %v296 = vpack.c.b16 %v289, %v288
      %v297 = vpack.c.b16 %v291, %v290
      %v298 = vpack.c.b16 %v293, %v292
      %v299 = vpack.c.b16 %v295, %v294
      %vm304 = vcmask 523264
      %v306 = vsel %vm304, %v279, 0
      %308 = vmatpush.bf16.msra.mxu0 0
      %309 = vmatpush.bf16.msra.mxu0 0
      %310 = vmatpush.bf16.msra.mxu0 0
      %311 = vmatpush.bf16.msra.mxu0 0
      %312 = vmatpush.bf16.msra.mxu0 %v299
      %313 = vmatpush.bf16.msra.mxu0 %v298
      %314 = vmatpush.bf16.msra.mxu0 %v297
      %315 = vmatpush.bf16.msra.mxu0 %v296
      %316 = vmatmul.bf16.gmra.mxu0 %v306
      %v317 = vpop.f32.mrf.mxu0
      %v318 = vadd.f32 %v268, %v317
      %v319 = vpop.f32.mrf.mxu0
      %v320 = vadd.f32 %v273, %v319
      %321 = vdwg.mxu0
      %v322 = vpack.c.bf16 %v318, %v318
      %v323 = vpack.c.bf16 %v320, %v320
      %324 = vst.msk [vmem:[%s170] sm:$0xf] %vm202, %v322
      %325 = vst.msk [vmem:[%s170 + $0x4] sm:$0xf] %vm202, %v323
      %v326 = vld [vmem:[%s165] sm:$0xf]
      %v327 = vld [vmem:[%s165 + $0x4] sm:$0xf]
      %v328 = vld [vmem:[%s165 + $0x8] sm:$0xf]
      %v329 = vld [vmem:[%s165 + $0xc] sm:$0xf]
      %v330 = vunpack.c.l.bf16 %v326
      %v331 = vunpack.c.l.bf16 %v327
      %v332 = vunpack.c.l.bf16 %v328
      %v333 = vunpack.c.l.bf16 %v329
      %vm334 = vcmp.gt.f32.partialorder %v330, 0.0
      %vm335 = vcmp.gt.f32.partialorder %v331, 0.0
      %vm336 = vcmp.gt.f32.partialorder %v332, 0.0
      %vm337 = vcmp.gt.f32.partialorder %v333, 0.0
      %v338 = vmul.f32 %v330, 0.100097656
      %v339 = vmul.f32 %v331, 0.100097656
      %v340 = vmul.f32 %v332, 0.100097656
      %v341 = vmul.f32 %v333, 0.100097656
      %v342 = vpack.c.bf16 %v338, %v338
      %v343 = vpack.c.bf16 %v339, %v339
      %v344 = vpack.c.bf16 %v340, %v340
      %v345 = vpack.c.bf16 %v341, %v341
      %vm346 = vmpackc.low %vm334, %vm334
      %vm347 = vmpackc.low %vm335, %vm335
      %vm348 = vmpackc.low %vm336, %vm336
      %vm349 = vmpackc.low %vm337, %vm337
      %v350 = vsel %vm346, %v326, %v342
      %v351 = vsel %vm347, %v327, %v343
      %v352 = vsel %vm348, %v328, %v344
      %v353 = vsel %vm349, %v329, %v345
      %354 = vst.msk [vmem:[#allocation2] sm:$0xf] %vm202, %v350
      %355 = vst.msk [vmem:[#allocation2 + $0x4] sm:$0xf] %vm202, %v351
      %356 = vst.msk [vmem:[#allocation2 + $0x8] sm:$0xf] %vm202, %v352
      %357 = vst.msk [vmem:[#allocation2 + $0xc] sm:$0xf] %vm202, %v353
      %v358 = vld [vmem:[%s165] sm:$0xf]
      %v359 = vld [vmem:[%s165 + $0x4] sm:$0xf]
      %v360 = vld [vmem:[%s165 + $0x8] sm:$0xf]
      %v361 = vld [vmem:[%s165 + $0xc] sm:$0xf]
      %v362 = vunpack.c.l.bf16 %v358
      %v363 = vunpack.c.l.bf16 %v359
      %v364 = vunpack.c.l.bf16 %v360
      %v365 = vunpack.c.l.bf16 %v361
      %vm366 = vcmp.gt.f32.partialorder %v362, 0.0
      %vm367 = vcmp.gt.f32.partialorder %v363, 0.0
      %vm368 = vcmp.gt.f32.partialorder %v364, 0.0
      %vm369 = vcmp.gt.f32.partialorder %v365, 0.0
      %v370 = vmul.f32 %v362, 0.100097656
      %v371 = vmul.f32 %v363, 0.100097656
      %v372 = vmul.f32 %v364, 0.100097656
      %v373 = vmul.f32 %v365, 0.100097656
      %v374 = vpack.c.bf16 %v370, %v370
      %v375 = vpack.c.bf16 %v371, %v371
      %v376 = vpack.c.bf16 %v372, %v372
      %v377 = vpack.c.bf16 %v373, %v373
      %vm378 = vmpackc.low %vm366, %vm366
      %vm379 = vmpackc.low %vm367, %vm367
      %vm380 = vmpackc.low %vm368, %vm368
      %vm381 = vmpackc.low %vm369, %vm369
      %v382 = vsel %vm378, %v358, %v374
      %v383 = vsel %vm379, %v359, %v375
      %v384 = vsel %vm380, %v360, %v376
      %v385 = vsel %vm381, %v361, %v377
      %390 = vrot.lane.b32.xlu0 %v382, 127
      %v391 = vpop.permute.xlu0 %390
      %392 = vrot.lane.b32.xlu0 %v383, 127
      %v393 = vpop.permute.xlu0 %392
      %394 = vrot.lane.b32.xlu0 %v384, 127
      %v395 = vpop.permute.xlu0 %394
      %396 = vrot.lane.b32.xlu0 %v385, 127
      %v397 = vpop.permute.xlu0 %396
      %402 = vst.msk [vmem:[#allocation2 + $0x10] sm:$0xf] %vm202, %v391
      %403 = vst.msk [vmem:[#allocation2 + $0x14] sm:$0xf] %vm202, %v393
      %404 = vst.msk [vmem:[#allocation2 + $0x18] sm:$0xf] %vm202, %v395
      %405 = vst.msk [vmem:[#allocation2 + $0x1c] sm:$0xf] %vm202, %v397
      %s406 = scalar_lea.vmem %s1, 8
      %v407 = vld [vmem:[%s406] sm:$0xf]
      %v408 = vld [vmem:[%s406 + $0x4] sm:$0xf]
      %v409 = vld [vmem:[#allocation2] sm:$0xf]
      %v410 = vld [vmem:[#allocation2 + $0x4] sm:$0xf]
      %v411 = vld [vmem:[#allocation2 + $0x8] sm:$0xf]
      %v412 = vld [vmem:[#allocation2 + $0xc] sm:$0xf]
      %v413 = vld [vmem:[#allocation2 + $0x10] sm:$0xf]
      %v414 = vld [vmem:[#allocation2 + $0x14] sm:$0xf]
      %v415 = vld [vmem:[#allocation2 + $0x18] sm:$0xf]
      %v416 = vld [vmem:[#allocation2 + $0x1c] sm:$0xf]
      %v419 = vunpack.c.l.b16 %v407
      %v420 = vunpack.c.l.b16 %v408
      %v421 = vpack.c.b16 %v420, %v419
      %v430 = vunpack.c.l.b16 %v409
      %v431 = vunpack.c.l.b16 %v410
      %v432 = vunpack.c.l.b16 %v411
      %v433 = vunpack.c.l.b16 %v412
      %v434 = vunpack.c.l.b16 %v413
      %v435 = vunpack.c.l.b16 %v414
      %v436 = vunpack.c.l.b16 %v415
      %v437 = vunpack.c.l.b16 %v416
      %v438 = vpack.c.b16 %v431, %v430
      %v439 = vpack.c.b16 %v433, %v432
      %v440 = vpack.c.b16 %v435, %v434
      %v441 = vpack.c.b16 %v437, %v436
      %v447 = vsel %vm304, %v421, 0
      %449 = vmatpush.bf16.msra.mxu0 0
      %450 = vmatpush.bf16.msra.mxu0 0
      %451 = vmatpush.bf16.msra.mxu0 0
      %452 = vmatpush.bf16.msra.mxu0 0
      %453 = vmatpush.bf16.msra.mxu0 %v441
      %454 = vmatpush.bf16.msra.mxu0 %v440
      %455 = vmatpush.bf16.msra.mxu0 %v439
      %456 = vmatpush.bf16.msra.mxu0 %v438
      %457 = vmatmul.bf16.gmra.mxu0 %v447
      %v458 = vpop.f32.mrf.mxu0
      %v459 = vadd.f32 %v268, %v458
      %v460 = vpop.f32.mrf.mxu0
      %v461 = vadd.f32 %v273, %v460
      %462 = vdwg.mxu0
      %v463 = vpack.c.bf16 %v459, %v459
      %v464 = vpack.c.bf16 %v461, %v461
      %s465 = scalar_lea.vmem %s170, 8
      %466 = vst.msk [vmem:[%s465] sm:$0xf] %vm202, %v463
      %467 = vst.msk [vmem:[%s465 + $0x4] sm:$0xf] %vm202, %v464
      %v468 = vld [vmem:[%s165] sm:$0xf]
      %v469 = vld [vmem:[%s165 + $0x4] sm:$0xf]
      %v470 = vld [vmem:[%s165 + $0x8] sm:$0xf]
      %v471 = vld [vmem:[%s165 + $0xc] sm:$0xf]
      %v472 = vunpack.c.l.bf16 %v468
      %v473 = vunpack.c.l.bf16 %v469
      %v474 = vunpack.c.l.bf16 %v470
      %v475 = vunpack.c.l.bf16 %v471
      %vm476 = vcmp.gt.f32.partialorder %v472, 0.0
      %vm477 = vcmp.gt.f32.partialorder %v473, 0.0
      %vm478 = vcmp.gt.f32.partialorder %v474, 0.0
      %vm479 = vcmp.gt.f32.partialorder %v475, 0.0
      %v480 = vmul.f32 %v472, 0.100097656
      %v481 = vmul.f32 %v473, 0.100097656
      %v482 = vmul.f32 %v474, 0.100097656
      %v483 = vmul.f32 %v475, 0.100097656
      %v484 = vpack.c.bf16 %v480, %v480
      %v485 = vpack.c.bf16 %v481, %v481
      %v486 = vpack.c.bf16 %v482, %v482
      %v487 = vpack.c.bf16 %v483, %v483
      %vm488 = vmpackc.low %vm476, %vm476
      %vm489 = vmpackc.low %vm477, %vm477
      %vm490 = vmpackc.low %vm478, %vm478
      %vm491 = vmpackc.low %vm479, %vm479
      %v492 = vsel %vm488, %v468, %v484
      %v493 = vsel %vm489, %v469, %v485
      %v494 = vsel %vm490, %v470, %v486
      %v495 = vsel %vm491, %v471, %v487
      %500 = vrot.lane.b32.xlu0 %v492, 127
      %v501 = vpop.permute.xlu0 %500
      %502 = vrot.lane.b32.xlu0 %v493, 127
      %v503 = vpop.permute.xlu0 %502
      %504 = vrot.lane.b32.xlu0 %v494, 127
      %v505 = vpop.permute.xlu0 %504
      %506 = vrot.lane.b32.xlu0 %v495, 127
      %v507 = vpop.permute.xlu0 %506
      %512 = vst.msk [vmem:[#allocation2] sm:$0xf] %vm202, %v501
      %513 = vst.msk [vmem:[#allocation2 + $0x4] sm:$0xf] %vm202, %v503
      %514 = vst.msk [vmem:[#allocation2 + $0x8] sm:$0xf] %vm202, %v505
      %515 = vst.msk [vmem:[#allocation2 + $0xc] sm:$0xf] %vm202, %v507
      %v516 = vld [vmem:[%s165] sm:$0xf]
      %v517 = vld [vmem:[%s165 + $0x4] sm:$0xf]
      %v518 = vld [vmem:[%s165 + $0x8] sm:$0xf]
      %v519 = vld [vmem:[%s165 + $0xc] sm:$0xf]
      %v520 = vunpack.c.l.bf16 %v516
      %v521 = vunpack.c.l.bf16 %v517
      %v522 = vunpack.c.l.bf16 %v518
      %v523 = vunpack.c.l.bf16 %v519
      %vm524 = vcmp.gt.f32.partialorder %v520, 0.0
      %vm525 = vcmp.gt.f32.partialorder %v521, 0.0
      %vm526 = vcmp.gt.f32.partialorder %v522, 0.0
      %vm527 = vcmp.gt.f32.partialorder %v523, 0.0
      %v528 = vmul.f32 %v520, 0.100097656
      %v529 = vmul.f32 %v521, 0.100097656
      %v530 = vmul.f32 %v522, 0.100097656
      %v531 = vmul.f32 %v523, 0.100097656
      %v532 = vpack.c.bf16 %v528, %v528
      %v533 = vpack.c.bf16 %v529, %v529
      %v534 = vpack.c.bf16 %v530, %v530
      %v535 = vpack.c.bf16 %v531, %v531
      %vm536 = vmpackc.low %vm524, %vm524
      %vm537 = vmpackc.low %vm525, %vm525
      %vm538 = vmpackc.low %vm526, %vm526
      %vm539 = vmpackc.low %vm527, %vm527
      %v540 = vsel %vm536, %v516, %v532
      %v541 = vsel %vm537, %v517, %v533
      %v542 = vsel %vm538, %v518, %v534
      %v543 = vsel %vm539, %v519, %v535
      %548 = vrot.lane.b32.xlu0 %v540, 126
      %v549 = vpop.permute.xlu0 %548
      %550 = vrot.lane.b32.xlu0 %v541, 126
      %v551 = vpop.permute.xlu0 %550
      %552 = vrot.lane.b32.xlu0 %v542, 126
      %v553 = vpop.permute.xlu0 %552
      %554 = vrot.lane.b32.xlu0 %v543, 126
      %v555 = vpop.permute.xlu0 %554
      %560 = vst.msk [vmem:[#allocation2 + $0x10] sm:$0xf] %vm202, %v549
      %561 = vst.msk [vmem:[#allocation2 + $0x14] sm:$0xf] %vm202, %v551
      %562 = vst.msk [vmem:[#allocation2 + $0x18] sm:$0xf] %vm202, %v553
      %563 = vst.msk [vmem:[#allocation2 + $0x1c] sm:$0xf] %vm202, %v555
      %s564 = scalar_lea.vmem %s1, 16
      %v565 = vld [vmem:[%s564] sm:$0xf]
      %v566 = vld [vmem:[%s564 + $0x4] sm:$0xf]
      %v567 = vld [vmem:[#allocation2] sm:$0xf]
      %v568 = vld [vmem:[#allocation2 + $0x4] sm:$0xf]
      %v569 = vld [vmem:[#allocation2 + $0x8] sm:$0xf]
      %v570 = vld [vmem:[#allocation2 + $0xc] sm:$0xf]
      %v571 = vld [vmem:[#allocation2 + $0x10] sm:$0xf]
      %v572 = vld [vmem:[#allocation2 + $0x14] sm:$0xf]
      %v573 = vld [vmem:[#allocation2 + $0x18] sm:$0xf]
      %v574 = vld [vmem:[#allocation2 + $0x1c] sm:$0xf]
      %v577 = vunpack.c.l.b16 %v565
      %v578 = vunpack.c.l.b16 %v566
      %v579 = vpack.c.b16 %v578, %v577
      %v588 = vunpack.c.l.b16 %v567
      %v589 = vunpack.c.l.b16 %v568
      %v590 = vunpack.c.l.b16 %v569
      %v591 = vunpack.c.l.b16 %v570
      %v592 = vunpack.c.l.b16 %v571
      %v593 = vunpack.c.l.b16 %v572
      %v594 = vunpack.c.l.b16 %v573
      %v595 = vunpack.c.l.b16 %v574
      %v596 = vpack.c.b16 %v589, %v588
      %v597 = vpack.c.b16 %v591, %v590
      %v598 = vpack.c.b16 %v593, %v592
      %v599 = vpack.c.b16 %v595, %v594
      %v605 = vsel %vm304, %v579, 0
      %607 = vmatpush.bf16.msra.mxu0 0
      %608 = vmatpush.bf16.msra.mxu0 0
      %609 = vmatpush.bf16.msra.mxu0 0
      %610 = vmatpush.bf16.msra.mxu0 0
      %611 = vmatpush.bf16.msra.mxu0 %v599
      %612 = vmatpush.bf16.msra.mxu0 %v598
      %613 = vmatpush.bf16.msra.mxu0 %v597
      %614 = vmatpush.bf16.msra.mxu0 %v596
      %615 = vmatmul.bf16.gmra.mxu0 %v605
      %v616 = vpop.f32.mrf.mxu0
      %v617 = vadd.f32 %v268, %v616
      %v618 = vpop.f32.mrf.mxu0
      %v619 = vadd.f32 %v273, %v618
      %620 = vdwg.mxu0
      %v621 = vpack.c.bf16 %v617, %v617
      %v622 = vpack.c.bf16 %v619, %v619
      %s623 = scalar_lea.vmem %s170, 16
      %624 = vst.msk [vmem:[%s623] sm:$0xf] %vm202, %v621
      %625 = vst.msk [vmem:[%s623 + $0x4] sm:$0xf] %vm202, %v622
      %v626 = vld [vmem:[%s165] sm:$0xf]
      %v627 = vld [vmem:[%s165 + $0x4] sm:$0xf]
      %v628 = vld [vmem:[%s165 + $0x8] sm:$0xf]
      %v629 = vld [vmem:[%s165 + $0xc] sm:$0xf]
      %v630 = vunpack.c.l.bf16 %v626
      %v631 = vunpack.c.l.bf16 %v627
      %v632 = vunpack.c.l.bf16 %v628
      %v633 = vunpack.c.l.bf16 %v629
      %vm634 = vcmp.gt.f32.partialorder %v630, 0.0
      %vm635 = vcmp.gt.f32.partialorder %v631, 0.0
      %vm636 = vcmp.gt.f32.partialorder %v632, 0.0
      %vm637 = vcmp.gt.f32.partialorder %v633, 0.0
      %v638 = vmul.f32 %v630, 0.100097656
      %v639 = vmul.f32 %v631, 0.100097656
      %v640 = vmul.f32 %v632, 0.100097656
      %v641 = vmul.f32 %v633, 0.100097656
      %v642 = vpack.c.bf16 %v638, %v638
      %v643 = vpack.c.bf16 %v639, %v639
      %v644 = vpack.c.bf16 %v640, %v640
      %v645 = vpack.c.bf16 %v641, %v641
      %vm646 = vmpackc.low %vm634, %vm634
      %vm647 = vmpackc.low %vm635, %vm635
      %vm648 = vmpackc.low %vm636, %vm636
      %vm649 = vmpackc.low %vm637, %vm637
      %v650 = vsel %vm646, %v626, %v642
      %v651 = vsel %vm647, %v627, %v643
      %v652 = vsel %vm648, %v628, %v644
      %v653 = vsel %vm649, %v629, %v645
      %658 = vrot.lane.b32.xlu0 %v650, 127
      %v659 = vpop.permute.xlu0 %658
      %660 = vrot.lane.b32.xlu0 %v651, 127
      %v661 = vpop.permute.xlu0 %660
      %662 = vrot.lane.b32.xlu0 %v652, 127
      %v663 = vpop.permute.xlu0 %662
      %664 = vrot.lane.b32.xlu0 %v653, 127
      %v665 = vpop.permute.xlu0 %664
      %670 = vst.msk [vmem:[#allocation2] sm:$0xf] %vm202, %v659
      %671 = vst.msk [vmem:[#allocation2 + $0x4] sm:$0xf] %vm202, %v661
      %672 = vst.msk [vmem:[#allocation2 + $0x8] sm:$0xf] %vm202, %v663
      %673 = vst.msk [vmem:[#allocation2 + $0xc] sm:$0xf] %vm202, %v665
      %v674 = vld [vmem:[%s165] sm:$0xf]
      %v675 = vld [vmem:[%s165 + $0x4] sm:$0xf]
      %v676 = vld [vmem:[%s165 + $0x8] sm:$0xf]
      %v677 = vld [vmem:[%s165 + $0xc] sm:$0xf]
      %v678 = vunpack.c.l.bf16 %v674
      %v679 = vunpack.c.l.bf16 %v675
      %v680 = vunpack.c.l.bf16 %v676
      %v681 = vunpack.c.l.bf16 %v677
      %vm682 = vcmp.gt.f32.partialorder %v678, 0.0
      %vm683 = vcmp.gt.f32.partialorder %v679, 0.0
      %vm684 = vcmp.gt.f32.partialorder %v680, 0.0
      %vm685 = vcmp.gt.f32.partialorder %v681, 0.0
      %v686 = vmul.f32 %v678, 0.100097656
      %v687 = vmul.f32 %v679, 0.100097656
      %v688 = vmul.f32 %v680, 0.100097656
      %v689 = vmul.f32 %v681, 0.100097656
      %v690 = vpack.c.bf16 %v686, %v686
      %v691 = vpack.c.bf16 %v687, %v687
      %v692 = vpack.c.bf16 %v688, %v688
      %v693 = vpack.c.bf16 %v689, %v689
      %vm694 = vmpackc.low %vm682, %vm682
      %vm695 = vmpackc.low %vm683, %vm683
      %vm696 = vmpackc.low %vm684, %vm684
      %vm697 = vmpackc.low %vm685, %vm685
      %v698 = vsel %vm694, %v674, %v690
      %v699 = vsel %vm695, %v675, %v691
      %v700 = vsel %vm696, %v676, %v692
      %v701 = vsel %vm697, %v677, %v693
      %706 = vrot.lane.b32.xlu0 %v698, 126
      %v707 = vpop.permute.xlu0 %706
      %708 = vrot.lane.b32.xlu0 %v699, 126
      %v709 = vpop.permute.xlu0 %708
      %710 = vrot.lane.b32.xlu0 %v700, 126
      %v711 = vpop.permute.xlu0 %710
      %712 = vrot.lane.b32.xlu0 %v701, 126
      %v713 = vpop.permute.xlu0 %712
      %718 = vst.msk [vmem:[#allocation2 + $0x10] sm:$0xf] %vm202, %v707
      %719 = vst.msk [vmem:[#allocation2 + $0x14] sm:$0xf] %vm202, %v709
      %720 = vst.msk [vmem:[#allocation2 + $0x18] sm:$0xf] %vm202, %v711
      %721 = vst.msk [vmem:[#allocation2 + $0x1c] sm:$0xf] %vm202, %v713
      %s722 = scalar_lea.vmem %s1, 24
      %v723 = vld [vmem:[%s722] sm:$0xf]
      %v724 = vld [vmem:[%s722 + $0x4] sm:$0xf]
      %v725 = vld [vmem:[#allocation2] sm:$0xf]
      %v726 = vld [vmem:[#allocation2 + $0x4] sm:$0xf]
      %v727 = vld [vmem:[#allocation2 + $0x8] sm:$0xf]
      %v728 = vld [vmem:[#allocation2 + $0xc] sm:$0xf]
      %v729 = vld [vmem:[#allocation2 + $0x10] sm:$0xf]
      %v730 = vld [vmem:[#allocation2 + $0x14] sm:$0xf]
      %v731 = vld [vmem:[#allocation2 + $0x18] sm:$0xf]
      %v732 = vld [vmem:[#allocation2 + $0x1c] sm:$0xf]
      %v735 = vunpack.c.l.b16 %v723
      %v736 = vunpack.c.l.b16 %v724
      %v737 = vpack.c.b16 %v736, %v735
      %v746 = vunpack.c.l.b16 %v725
      %v747 = vunpack.c.l.b16 %v726
      %v748 = vunpack.c.l.b16 %v727
      %v749 = vunpack.c.l.b16 %v728
      %v750 = vunpack.c.l.b16 %v729
      %v751 = vunpack.c.l.b16 %v730
      %v752 = vunpack.c.l.b16 %v731
      %v753 = vunpack.c.l.b16 %v732
      %v754 = vpack.c.b16 %v747, %v746
      %v755 = vpack.c.b16 %v749, %v748
      %v756 = vpack.c.b16 %v751, %v750
      %v757 = vpack.c.b16 %v753, %v752
      %v763 = vsel %vm304, %v737, 0
      %765 = vmatpush.bf16.msra.mxu0 0
      %766 = vmatpush.bf16.msra.mxu0 0
      %767 = vmatpush.bf16.msra.mxu0 0
      %768 = vmatpush.bf16.msra.mxu0 0
      %769 = vmatpush.bf16.msra.mxu0 %v757
      %770 = vmatpush.bf16.msra.mxu0 %v756
      %771 = vmatpush.bf16.msra.mxu0 %v755
      %772 = vmatpush.bf16.msra.mxu0 %v754
      %773 = vmatmul.bf16.gmra.mxu0 %v763
      %v774 = vpop.f32.mrf.mxu0
      %v775 = vadd.f32 %v268, %v774
      %v776 = vpop.f32.mrf.mxu0
      %v777 = vadd.f32 %v273, %v776
      %778 = vdwg.mxu0
      %v779 = vpack.c.bf16 %v775, %v775
      %v780 = vpack.c.bf16 %v777, %v777
      %s781 = scalar_lea.vmem %s170, 24
      %782 = vst.msk [vmem:[%s781] sm:$0xf] %vm202, %v779
      %783 = vst.msk [vmem:[%s781 + $0x4] sm:$0xf] %vm202, %v780
      %p784 = scmp.lt.s32.totalorder %s14, 1
      %s785 = scalar_select %p784, %s14, 1
      %s786 = smul.addr %s785, 8
      %s787 = smul.addr %s786, 4
      %s788 = scalar_lea.vmem %s3, %s787
      // Predicated region
      $region33: #{a_call__.8} parent=31 // pred_check
        %p789 = pneg %p100
      $region34: #{a_call__.8} parent=31 // pred_check_branch
        %791 = sbr.rel (%p789) target = $region36
      $region35: #{a_call__.8} parent=31 // pred_region
        _
      $region36: #{a_call__.8} parent=31 // pred_fallthru
        _
    $region32: #{a_call__.8} parent=5 // pred_fallthru
      _
    %p792 = scmp.le.s32.totalorder 2, %s9
    // Predicated region
    $region37: #{a_call__.8} parent=5 // pred_check
      %p793 = pneg %p792
    $region38: #{a_call__.8} parent=5 // pred_check_branch
      %795 = sbr.rel (%p793) target = $region40
    $region39: #{a_call__.8} parent=5 // pred_region
      %s796 = ssub.s32 %s9, 2
      // Predicated region
      $region41: #{a_call__.8} parent=39 // pred_check
        %p797 = pneg %p106
      $region42: #{a_call__.8} parent=39 // pred_check_branch
        %799 = sbr.rel (%p797) target = $region44
      $region43: #{a_call__.8} parent=39 // pred_region
        %p800 = scmp.lt.s32.totalorder %s15, 1
        %s801 = scalar_select %p800, %s15, 1
        %s802 = smul.addr %s801, 8
        %s803 = smul.addr %s802, 4
        %s804 = scalar_lea.vmem %s3, %s803
      $region44: #{a_call__.8} parent=39 // pred_fallthru
        _
    $region40: #{a_call__.8} parent=5 // pred_fallthru
      _
  $region6: #{a_call__.8} parent=0 // loop_footer
    %s13 = sadd.s32 1, %s9
  $region7: #{a_call__.8} parent=0 // loop_footer_branch
    %8 = sbr.rel target = $region3
  $region8: #{a_call__.8} parent=0 // loop_exit
    _

// kernel: a_call__.7
$region0: #{a_call__.7}
  #allocation0 [shape = 'u32[]', space=smem, size = 0x4, offset = 0x4, fixed_abs, tag = 'smem constant byte address 0x4 - core index']
  #allocation1 [shape = 'u32[72,128]{1,0:T(1,128)}', space=vmem, size = 0x9000, scoped, tag = 'internal scratch']
  #allocation2 [shape = 'bf16[32,38]{1,0:T(8,128)(2,1)}', space=vmem, size = 0x2000, scoped, tag = 'scratch operand']
  #allocation3 [shape = 'bf16[96,32]{1,0:T(8,128)(2,1)}', space=vmem, size = 0x6000, scoped, tag = 'scratch operand']
  %s0 = inlined_call_operand.vmem [shape: bf16[2,32,38], index: 0, kind: input, shape index: {}]
  %s1 = inlined_call_operand.vmem [shape: bf16[32,96], index: 1, kind: input, shape index: {}]
  %s2 = inlined_call_operand.vmem [shape: f32[32,1], index: 2, kind: input, shape index: {}]
  %s3 = inlined_call_operand.vmem [shape: bf16[32,96], index: 3, kind: input, shape index: {}]
  %s4 = inlined_call_operand.vmem [shape: f32[32,1], index: 4, kind: input, shape index: {}]
  %s5 = inlined_call_operand.vmem [shape: bf16[32,96], index: 5, kind: input, shape index: {}]
  %s6 = inlined_call_operand.vmem [shape: f32[32,1], index: 6, kind: input, shape index: {}]
  %s7 = inlined_call_operand.vmem [shape: bf16[32,96], index: 7, kind: input, shape index: {}]
  %s8 = inlined_call_operand.vmem [shape: f32[32,1], index: 8, kind: input, shape index: {}]
  %s9 = inlined_call_operand.vmem [shape: bf16[2,32,34], index: 9, kind: output, shape index: {}]
  %s10 = sld [smem:[#allocation0]]
  $region69: #{a_call__.7} parent=0
    _
  %s12 = ssub.s32 1, %s10
  %s13 = scalar_select 0, %s12, %s10
  loop: start=0, step=1, limit=4
  $region2: #{a_call__.7} parent=0 // loop_pre_header
    _
  $region3: #{a_call__.7} parent=0 // loop_header
    %s15 = sphi 0, %s19
    %p16 = scmp.ge.s32.totalorder %s15, 4
    %s25 = sphi 0, %s27
    %s28 = sphi 0, %s25
    %s29 = sphi 0, %s28
    %s45 = sphi 0, %s29
    %s49 = sphi 0, %s49
    %s51 = sphi 0, %s49
    %s52 = sphi 0, %s51
    %s66 = sphi 0, %s52
    %s70 = sphi 0, %s70
    %s72 = sphi 0, %s70
    %s73 = sphi 0, %s72
    %s87 = sphi 0, %s73
    %s91 = sphi 0, %s91
    %s93 = sphi 0, %s91
    %s94 = sphi 0, %s93
    %s108 = sphi 0, %s94
    %s112 = sphi 0, %s112
    %s114 = sphi 0, %s112
    %s115 = sphi 0, %s114
    %s129 = sphi 0, %s115
    %s133 = sphi 0, %s133
    %s135 = sphi 0, %s133
    %s136 = sphi 0, %s135
    %s150 = sphi 0, %s136
    %s154 = sphi 0, %s154
    %s156 = sphi 0, %s154
    %s157 = sphi 0, %s156
    %s171 = sphi 0, %s157
    %s175 = sphi 0, %s175
    %s177 = sphi 0, %s175
    %s178 = sphi 0, %s177
    %s192 = sphi 0, %s178
    %s196 = sphi 0, %s196
    %s198 = sphi 0, %s196
    %s199 = sphi 0, %s198
    %s213 = sphi 0, %s199
    %s219 = sphi 0, %s221
    %s222 = sphi 0, %s219
    %s223 = sphi 0, %s222
    %s239 = sphi 0, %s223
  $region4: #{a_call__.7} parent=0 // loop_header_branch
    %18 = sbr.rel (%p16) target = $region8
  $region5: #{a_call__.7} parent=0 // loop_body
    %s20 = ssub.s32 %s15, 1
    %s21 = ssub.s32 %s15, 2
    %s22 = sadd.s32 %s15, 1
    %s23 = ssub.s32 %s15, %s22
    %p24 = scmp.eq.s32.totalorder %s23, 0
    %s26 = sadd.s32 %s25, 1
    %s27 = scalar_select %p24, %s25, %s26
    %p30 = pneg %p24
    %p31 = scmp.eq.s32.totalorder %s15, 1
    %p32 = por %p30, %p31
    %p33 = scmp.ne.s32.totalorder %s25, %s28
    %p34 = scmp.eq.s32.totalorder %s15, 0
    %p35 = por %p33, %p34
    %p36 = scmp.ne.s32.totalorder %s25, %s28
    %p37 = scmp.eq.s32.totalorder %s20, 1
    %p38 = por %p36, %p37
    %p39 = scmp.ne.s32.totalorder %s28, %s29
    %p40 = scmp.eq.s32.totalorder %s20, 0
    %p41 = por %p39, %p40
    %p42 = scmp.ne.s32.totalorder %s28, %s29
    %p43 = scmp.eq.s32.totalorder %s21, 1
    %p44 = por %p42, %p43
    %p46 = scmp.ne.s32.totalorder %s29, %s45
    %p47 = scmp.eq.s32.totalorder %s21, 0
    %p48 = por %p46, %p47
    %s50 = sadd.s32 %s49, 1
    %p53 = scmp.eq.s32.totalorder %s15, 1
    %p54 = scmp.ne.s32.totalorder %s49, %s51
    %p55 = scmp.eq.s32.totalorder %s15, 0
    %p56 = por %p54, %p55
    %p57 = scmp.ne.s32.totalorder %s49, %s51
    %p58 = scmp.eq.s32.totalorder %s20, 1
    %p59 = por %p57, %p58
    %p60 = scmp.ne.s32.totalorder %s51, %s52
    %p61 = scmp.eq.s32.totalorder %s20, 0
    %p62 = por %p60, %p61
    %p63 = scmp.ne.s32.totalorder %s51, %s52
    %p64 = scmp.eq.s32.totalorder %s21, 1
    %p65 = por %p63, %p64
    %p67 = scmp.ne.s32.totalorder %s52, %s66
    %p68 = scmp.eq.s32.totalorder %s21, 0
    %p69 = por %p67, %p68
    %s71 = sadd.s32 %s70, 1
    %p74 = scmp.eq.s32.totalorder %s15, 1
    %p75 = scmp.ne.s32.totalorder %s70, %s72
    %p76 = scmp.eq.s32.totalorder %s15, 0
    %p77 = por %p75, %p76
    %p78 = scmp.ne.s32.totalorder %s70, %s72
    %p79 = scmp.eq.s32.totalorder %s20, 1
    %p80 = por %p78, %p79
    %p81 = scmp.ne.s32.totalorder %s72, %s73
    %p82 = scmp.eq.s32.totalorder %s20, 0
    %p83 = por %p81, %p82
    %p84 = scmp.ne.s32.totalorder %s72, %s73
    %p85 = scmp.eq.s32.totalorder %s21, 1
    %p86 = por %p84, %p85
    %p88 = scmp.ne.s32.totalorder %s73, %s87
    %p89 = scmp.eq.s32.totalorder %s21, 0
    %p90 = por %p88, %p89
    %s92 = sadd.s32 %s91, 1
    %p95 = scmp.eq.s32.totalorder %s15, 1
    %p96 = scmp.ne.s32.totalorder %s91, %s93
    %p97 = scmp.eq.s32.totalorder %s15, 0
    %p98 = por %p96, %p97
    %p99 = scmp.ne.s32.totalorder %s91, %s93
    %p100 = scmp.eq.s32.totalorder %s20, 1
    %p101 = por %p99, %p100
    %p102 = scmp.ne.s32.totalorder %s93, %s94
    %p103 = scmp.eq.s32.totalorder %s20, 0
    %p104 = por %p102, %p103
    %p105 = scmp.ne.s32.totalorder %s93, %s94
    %p106 = scmp.eq.s32.totalorder %s21, 1
    %p107 = por %p105, %p106
    %p109 = scmp.ne.s32.totalorder %s94, %s108
    %p110 = scmp.eq.s32.totalorder %s21, 0
    %p111 = por %p109, %p110
    %s113 = sadd.s32 %s112, 1
    %p116 = scmp.eq.s32.totalorder %s15, 1
    %p117 = scmp.ne.s32.totalorder %s112, %s114
    %p118 = scmp.eq.s32.totalorder %s15, 0
    %p119 = por %p117, %p118
    %p120 = scmp.ne.s32.totalorder %s112, %s114
    %p121 = scmp.eq.s32.totalorder %s20, 1
    %p122 = por %p120, %p121
    %p123 = scmp.ne.s32.totalorder %s114, %s115
    %p124 = scmp.eq.s32.totalorder %s20, 0
    %p125 = por %p123, %p124
    %p126 = scmp.ne.s32.totalorder %s114, %s115
    %p127 = scmp.eq.s32.totalorder %s21, 1
    %p128 = por %p126, %p127
    %p130 = scmp.ne.s32.totalorder %s115, %s129
    %p131 = scmp.eq.s32.totalorder %s21, 0
    %p132 = por %p130, %p131
    %s134 = sadd.s32 %s133, 1
    %p137 = scmp.eq.s32.totalorder %s15, 1
    %p138 = scmp.ne.s32.totalorder %s133, %s135
    %p139 = scmp.eq.s32.totalorder %s15, 0
    %p140 = por %p138, %p139
    %p141 = scmp.ne.s32.totalorder %s133, %s135
    %p142 = scmp.eq.s32.totalorder %s20, 1
    %p143 = por %p141, %p142
    %p144 = scmp.ne.s32.totalorder %s135, %s136
    %p145 = scmp.eq.s32.totalorder %s20, 0
    %p146 = por %p144, %p145
    %p147 = scmp.ne.s32.totalorder %s135, %s136
    %p148 = scmp.eq.s32.totalorder %s21, 1
    %p149 = por %p147, %p148
    %p151 = scmp.ne.s32.totalorder %s136, %s150
    %p152 = scmp.eq.s32.totalorder %s21, 0
    %p153 = por %p151, %p152
    %s155 = sadd.s32 %s154, 1
    %p158 = scmp.eq.s32.totalorder %s15, 1
    %p159 = scmp.ne.s32.totalorder %s154, %s156
    %p160 = scmp.eq.s32.totalorder %s15, 0
    %p161 = por %p159, %p160
    %p162 = scmp.ne.s32.totalorder %s154, %s156
    %p163 = scmp.eq.s32.totalorder %s20, 1
    %p164 = por %p162, %p163
    %p165 = scmp.ne.s32.totalorder %s156, %s157
    %p166 = scmp.eq.s32.totalorder %s20, 0
    %p167 = por %p165, %p166
    %p168 = scmp.ne.s32.totalorder %s156, %s157
    %p169 = scmp.eq.s32.totalorder %s21, 1
    %p170 = por %p168, %p169
    %p172 = scmp.ne.s32.totalorder %s157, %s171
    %p173 = scmp.eq.s32.totalorder %s21, 0
    %p174 = por %p172, %p173
    %s176 = sadd.s32 %s175, 1
    %p179 = scmp.eq.s32.totalorder %s15, 1
    %p180 = scmp.ne.s32.totalorder %s175, %s177
    %p181 = scmp.eq.s32.totalorder %s15, 0
    %p182 = por %p180, %p181
    %p183 = scmp.ne.s32.totalorder %s175, %s177
    %p184 = scmp.eq.s32.totalorder %s20, 1
    %p185 = por %p183, %p184
    %p186 = scmp.ne.s32.totalorder %s177, %s178
    %p187 = scmp.eq.s32.totalorder %s20, 0
    %p188 = por %p186, %p187
    %p189 = scmp.ne.s32.totalorder %s177, %s178
    %p190 = scmp.eq.s32.totalorder %s21, 1
    %p191 = por %p189, %p190
    %p193 = scmp.ne.s32.totalorder %s178, %s192
    %p194 = scmp.eq.s32.totalorder %s21, 0
    %p195 = por %p193, %p194
    %s197 = sadd.s32 %s196, 1
    %p200 = scmp.eq.s32.totalorder %s15, 1
    %p201 = scmp.ne.s32.totalorder %s196, %s198
    %p202 = scmp.eq.s32.totalorder %s15, 0
    %p203 = por %p201, %p202
    %p204 = scmp.ne.s32.totalorder %s196, %s198
    %p205 = scmp.eq.s32.totalorder %s20, 1
    %p206 = por %p204, %p205
    %p207 = scmp.ne.s32.totalorder %s198, %s199
    %p208 = scmp.eq.s32.totalorder %s20, 0
    %p209 = por %p207, %p208
    %p210 = scmp.ne.s32.totalorder %s198, %s199
    %p211 = scmp.eq.s32.totalorder %s21, 1
    %p212 = por %p210, %p211
    %p214 = scmp.ne.s32.totalorder %s199, %s213
    %p215 = scmp.eq.s32.totalorder %s21, 0
    %p216 = por %p214, %p215
    %s217 = ssub.s32 %s15, %s22
    %p218 = scmp.eq.s32.totalorder %s217, 0
    %s220 = sadd.s32 %s219, 1
    %s221 = scalar_select %p218, %s219, %s220
    %p224 = pneg %p218
    %p225 = scmp.eq.s32.totalorder %s15, 1
    %p226 = por %p224, %p225
    %p227 = scmp.ne.s32.totalorder %s219, %s222
    %p228 = scmp.eq.s32.totalorder %s15, 0
    %p229 = por %p227, %p228
    %p230 = scmp.ne.s32.totalorder %s219, %s222
    %p231 = scmp.eq.s32.totalorder %s20, 1
    %p232 = por %p230, %p231
    %p233 = scmp.ne.s32.totalorder %s222, %s223
    %p234 = scmp.eq.s32.totalorder %s20, 0
    %p235 = por %p233, %p234
    %p236 = scmp.ne.s32.totalorder %s222, %s223
    %p237 = scmp.eq.s32.totalorder %s21, 1
    %p238 = por %p236, %p237
    %p240 = scmp.ne.s32.totalorder %s223, %s239
    %p241 = scmp.eq.s32.totalorder %s21, 0
    %p242 = por %p240, %p241
    %p243 = scmp.le.s32.totalorder 1, %s15
    %p244 = scmp.lt.s32.totalorder %s15, 3
    %p245 = pnand %p243, %p244
    %p246 = pneg %p245
    // Predicated region
    $region9: #{a_call__.7} parent=5 // pred_check
      _
    $region10: #{a_call__.7} parent=5 // pred_check_branch
      %248 = sbr.rel (%p245) target = $region12
    $region11: #{a_call__.7} parent=5 // pred_region
      %s249 = ssub.s32 %s15, 1
      // Predicated region
      $region13: #{a_call__.7} parent=11 // pred_check
        %p250 = pneg %p62
      $region14: #{a_call__.7} parent=11 // pred_check_branch
        %252 = sbr.rel (%p250) target = $region16
      $region15: #{a_call__.7} parent=11 // pred_region
        _
      $region16: #{a_call__.7} parent=11 // pred_fallthru
        _
      // Predicated region
      $region17: #{a_call__.7} parent=11 // pred_check
        %p253 = pneg %p83
      $region18: #{a_call__.7} parent=11 // pred_check_branch
        %255 = sbr.rel (%p253) target = $region20
      $region19: #{a_call__.7} parent=11 // pred_region
        _
      $region20: #{a_call__.7} parent=11 // pred_fallthru
        _
      // Predicated region
      $region21: #{a_call__.7} parent=11 // pred_check
        %p256 = pneg %p104
      $region22: #{a_call__.7} parent=11 // pred_check_branch
        %258 = sbr.rel (%p256) target = $region24
      $region23: #{a_call__.7} parent=11 // pred_region
        _
      $region24: #{a_call__.7} parent=11 // pred_fallthru
        _
      // Predicated region
      $region25: #{a_call__.7} parent=11 // pred_check
        %p259 = pneg %p125
      $region26: #{a_call__.7} parent=11 // pred_check_branch
        %261 = sbr.rel (%p259) target = $region28
      $region27: #{a_call__.7} parent=11 // pred_region
        _
      $region28: #{a_call__.7} parent=11 // pred_fallthru
        _
      // Predicated region
      $region29: #{a_call__.7} parent=11 // pred_check
        %p262 = pneg %p146
      $region30: #{a_call__.7} parent=11 // pred_check_branch
        %264 = sbr.rel (%p262) target = $region32
      $region31: #{a_call__.7} parent=11 // pred_region
        _
      $region32: #{a_call__.7} parent=11 // pred_fallthru
        _
      // Predicated region
      $region33: #{a_call__.7} parent=11 // pred_check
        %p265 = pneg %p167
      $region34: #{a_call__.7} parent=11 // pred_check_branch
        %267 = sbr.rel (%p265) target = $region36
      $region35: #{a_call__.7} parent=11 // pred_region
        _
      $region36: #{a_call__.7} parent=11 // pred_fallthru
        _
      // Predicated region
      $region37: #{a_call__.7} parent=11 // pred_check
        %p268 = pneg %p188
      $region38: #{a_call__.7} parent=11 // pred_check_branch
        %270 = sbr.rel (%p268) target = $region40
      $region39: #{a_call__.7} parent=11 // pred_region
        _
      $region40: #{a_call__.7} parent=11 // pred_fallthru
        _
      // Predicated region
      $region41: #{a_call__.7} parent=11 // pred_check
        %p271 = pneg %p209
      $region42: #{a_call__.7} parent=11 // pred_check_branch
        %273 = sbr.rel (%p271) target = $region44
      $region43: #{a_call__.7} parent=11 // pred_region
        _
      $region44: #{a_call__.7} parent=11 // pred_fallthru
        _
    $region12: #{a_call__.7} parent=5 // pred_fallthru
      _
    %p274 = scmp.lt.s32.totalorder %s15, 2
    // Predicated region
    $region45: #{a_call__.7} parent=5 // pred_check
      %p275 = pneg %p274
    $region46: #{a_call__.7} parent=5 // pred_check_branch
      %277 = sbr.rel (%p275) target = $region48
    $region47: #{a_call__.7} parent=5 // pred_region
      // Predicated region
      $region49: #{a_call__.7} parent=47 // pred_check
        %p278 = pneg %p35
      $region50: #{a_call__.7} parent=47 // pred_check_branch
        %280 = sbr.rel (%p278) target = $region52
      $region51: #{a_call__.7} parent=47 // pred_region
        %p281 = scmp.lt.s32.totalorder %s15, 1
        %s282 = scalar_select %p281, %s15, 1
        %s283 = smul.addr %s282, 4
        %s284 = smul.addr %s283, 4
        %s285 = scalar_lea.vmem %s0, %s284
      $region52: #{a_call__.7} parent=47 // pred_fallthru
        _
    $region48: #{a_call__.7} parent=5 // pred_fallthru
      _
    %p286 = scmp.le.s32.totalorder 1, %s15
    %p287 = scmp.lt.s32.totalorder %s15, 3
    %p288 = pnand %p286, %p287
    %p289 = pneg %p288
    // Predicated region
    $region53: #{a_call__.7} parent=5 // pred_check
      _
    $region54: #{a_call__.7} parent=5 // pred_check_branch
      %291 = sbr.rel (%p288) target = $region56
    $region55: #{a_call__.7} parent=5 // pred_region
      %s292 = ssub.s32 %s15, 1
      %p293 = scmp.lt.s32.totalorder %s20, 1
      %s294 = scalar_select %p293, %s20, 1
      %s295 = smul.addr %s294, 4
      %s296 = smul.addr %s295, 4
      %s297 = scalar_lea.vmem %s0, %s296
      %p298 = pneg %p41
      %p299 = pneg %p38
      %p300 = pneg %p62
      %p301 = pneg %p59
      %p302 = pneg %p83
      %p303 = pneg %p80
      %p304 = pneg %p104
      %p305 = pneg %p101
      %p306 = pneg %p125
      %p307 = pneg %p122
      %p308 = pneg %p146
      %p309 = pneg %p143
      %p310 = pneg %p167
      %p311 = pneg %p164
      %p312 = pneg %p188
      %p313 = pneg %p185
      %p314 = pneg %p209
      %p315 = pneg %p206
      %p316 = pneg %p235
      %p317 = pneg %p232
      %p318 = scmp.lt.s32.totalorder %s20, 1
      %s319 = scalar_select %p318, %s20, 1
      %s320 = smul.addr %s319, 4
      %s321 = smul.addr %s320, 4
      %s322 = scalar_lea.vmem %s9, %s321
      %p323 = scmp.lt.s32.totalorder %s20, 1
      %s324 = scalar_select %p323, %s20, 1
      %s325 = smul.addr %s324, 4
      %s326 = smul.addr %s325, 4
      %s327 = scalar_lea.vmem %s0, %s326
      %p328 = scmp.lt.s32.totalorder %s20, 1
      %s329 = scalar_select %p328, %s20, 1
      %s330 = smul.addr %s329, 4
      %s331 = smul.addr %s330, 4
      %s332 = scalar_lea.vmem %s9, %s331
      %vm334 = vcmask 19456
      %335 = vst.msk [vmem:[#allocation2] sm:$0xf] %vm334, 0
      %336 = vst.msk [vmem:[#allocation2 + $0x4] sm:$0xf] %vm334, 0
      %337 = vst.msk [vmem:[#allocation2 + $0x8] sm:$0xf] %vm334, 0
      %338 = vst.msk [vmem:[#allocation2 + $0xc] sm:$0xf] %vm334, 0
      %vm339 = vcmask 306456
      %340 = vst.msk [vmem:[#allocation2] sm:$0xf] %vm339, 0
      %341 = vst.msk [vmem:[#allocation2 + $0x4] sm:$0xf] %vm339, 0
      %342 = vst.msk [vmem:[#allocation2 + $0x8] sm:$0xf] %vm339, 0
      %343 = vst.msk [vmem:[#allocation2 + $0xc] sm:$0xf] %vm339, 0
      %v344 = vld [vmem:[%s327] sm:$0xf]
      %v345 = vld [vmem:[%s327 + $0x4] sm:$0xf]
      %v346 = vld [vmem:[%s327 + $0x8] sm:$0xf]
      %v347 = vld [vmem:[%s327 + $0xc] sm:$0xf]
      %v348 = vunpack.c.l.bf16 %v344
      %v349 = vunpack.c.l.bf16 %v345
      %v350 = vunpack.c.l.bf16 %v346
      %v351 = vunpack.c.l.bf16 %v347
      %vm352 = vcmp.gt.f32.partialorder %v348, 0.0
      %vm353 = vcmp.gt.f32.partialorder %v349, 0.0
      %vm354 = vcmp.gt.f32.partialorder %v350, 0.0
      %vm355 = vcmp.gt.f32.partialorder %v351, 0.0
      %v356 = vmul.f32 %v348, 0.100097656
      %v357 = vmul.f32 %v349, 0.100097656
      %v358 = vmul.f32 %v350, 0.100097656
      %v359 = vmul.f32 %v351, 0.100097656
      %v360 = vpack.c.bf16 %v356, %v356
      %v361 = vpack.c.bf16 %v357, %v357
      %v362 = vpack.c.bf16 %v358, %v358
      %v363 = vpack.c.bf16 %v359, %v359
      %vm364 = vmpackc.low %vm352, %vm352
      %vm365 = vmpackc.low %vm353, %vm353
      %vm366 = vmpackc.low %vm354, %vm354
      %vm367 = vmpackc.low %vm355, %vm355
      %v368 = vsel %vm364, %v344, %v360
      %v369 = vsel %vm365, %v345, %v361
      %v370 = vsel %vm366, %v346, %v362
      %v371 = vsel %vm367, %v347, %v363
      %376 = vrot.lane.b32.xlu0 %v368, 126
      %v377 = vpop.permute.xlu0 %376
      %378 = vrot.lane.b32.xlu0 %v369, 126
      %v379 = vpop.permute.xlu0 %378
      %380 = vrot.lane.b32.xlu0 %v370, 126
      %v381 = vpop.permute.xlu0 %380
      %382 = vrot.lane.b32.xlu0 %v371, 126
      %v383 = vpop.permute.xlu0 %382
      %vm388 = vcmask 257024
      %389 = vst.msk [vmem:[#allocation3] sm:$0xf] %vm388, %v377
      %390 = vst.msk [vmem:[#allocation3 + $0x4] sm:$0xf] %vm388, %v379
      %391 = vst.msk [vmem:[#allocation3 + $0x8] sm:$0xf] %vm388, %v381
      %392 = vst.msk [vmem:[#allocation3 + $0xc] sm:$0xf] %vm388, %v383
      %v393 = vld [vmem:[%s327] sm:$0xf]
      %v394 = vld [vmem:[%s327 + $0x4] sm:$0xf]
      %v395 = vld [vmem:[%s327 + $0x8] sm:$0xf]
      %v396 = vld [vmem:[%s327 + $0xc] sm:$0xf]
      %v397 = vunpack.c.l.bf16 %v393
      %v398 = vunpack.c.l.bf16 %v394
      %v399 = vunpack.c.l.bf16 %v395
      %v400 = vunpack.c.l.bf16 %v396
      %vm401 = vcmp.gt.f32.partialorder %v397, 0.0
      %vm402 = vcmp.gt.f32.partialorder %v398, 0.0
      %vm403 = vcmp.gt.f32.partialorder %v399, 0.0
      %vm404 = vcmp.gt.f32.partialorder %v400, 0.0
      %v405 = vmul.f32 %v397, 0.100097656
      %v406 = vmul.f32 %v398, 0.100097656
      %v407 = vmul.f32 %v399, 0.100097656
      %v408 = vmul.f32 %v400, 0.100097656
      %v409 = vpack.c.bf16 %v405, %v405
      %v410 = vpack.c.bf16 %v406, %v406
      %v411 = vpack.c.bf16 %v407, %v407
      %v412 = vpack.c.bf16 %v408, %v408
      %vm413 = vmpackc.low %vm401, %vm401
      %vm414 = vmpackc.low %vm402, %vm402
      %vm415 = vmpackc.low %vm403, %vm403
      %vm416 = vmpackc.low %vm404, %vm404
      %v417 = vsel %vm413, %v393, %v409
      %v418 = vsel %vm414, %v394, %v410
      %v419 = vsel %vm415, %v395, %v411
      %v420 = vsel %vm416, %v396, %v412
      %425 = vrot.lane.b32.xlu0 %v417, 125
      %v426 = vpop.permute.xlu0 %425
      %427 = vrot.lane.b32.xlu0 %v418, 125
      %v428 = vpop.permute.xlu0 %427
      %429 = vrot.lane.b32.xlu0 %v419, 125
      %v430 = vpop.permute.xlu0 %429
      %431 = vrot.lane.b32.xlu0 %v420, 125
      %v432 = vpop.permute.xlu0 %431
      %437 = vst.msk [vmem:[#allocation3 + $0x10] sm:$0xf] %vm388, %v426
      %438 = vst.msk [vmem:[#allocation3 + $0x14] sm:$0xf] %vm388, %v428
      %439 = vst.msk [vmem:[#allocation3 + $0x18] sm:$0xf] %vm388, %v430
      %440 = vst.msk [vmem:[#allocation3 + $0x1c] sm:$0xf] %vm388, %v432
      %v441 = vld [vmem:[%s327] sm:$0xf]
      %v442 = vld [vmem:[%s327 + $0x4] sm:$0xf]
      %v443 = vld [vmem:[%s327 + $0x8] sm:$0xf]
      %v444 = vld [vmem:[%s327 + $0xc] sm:$0xf]
      %v445 = vunpack.c.l.bf16 %v441
      %v446 = vunpack.c.l.bf16 %v442
      %v447 = vunpack.c.l.bf16 %v443
      %v448 = vunpack.c.l.bf16 %v444
      %vm449 = vcmp.gt.f32.partialorder %v445, 0.0
      %vm450 = vcmp.gt.f32.partialorder %v446, 0.0
      %vm451 = vcmp.gt.f32.partialorder %v447, 0.0
      %vm452 = vcmp.gt.f32.partialorder %v448, 0.0
      %v453 = vmul.f32 %v445, 0.100097656
      %v454 = vmul.f32 %v446, 0.100097656
      %v455 = vmul.f32 %v447, 0.100097656
      %v456 = vmul.f32 %v448, 0.100097656
      %v457 = vpack.c.bf16 %v453, %v453
      %v458 = vpack.c.bf16 %v454, %v454
      %v459 = vpack.c.bf16 %v455, %v455
      %v460 = vpack.c.bf16 %v456, %v456
      %vm461 = vmpackc.low %vm449, %vm449
      %vm462 = vmpackc.low %vm450, %vm450
      %vm463 = vmpackc.low %vm451, %vm451
      %vm464 = vmpackc.low %vm452, %vm452
      %v465 = vsel %vm461, %v441, %v457
      %v466 = vsel %vm462, %v442, %v458
      %v467 = vsel %vm463, %v443, %v459
      %v468 = vsel %vm464, %v444, %v460
      %473 = vrot.lane.b32.xlu0 %v465, 124
      %v474 = vpop.permute.xlu0 %473
      %475 = vrot.lane.b32.xlu0 %v466, 124
      %v476 = vpop.permute.xlu0 %475
      %477 = vrot.lane.b32.xlu0 %v467, 124
      %v478 = vpop.permute.xlu0 %477
      %479 = vrot.lane.b32.xlu0 %v468, 124
      %v480 = vpop.permute.xlu0 %479
      %485 = vst.msk [vmem:[#allocation3 + $0x20] sm:$0xf] %vm388, %v474
      %486 = vst.msk [vmem:[#allocation3 + $0x24] sm:$0xf] %vm388, %v476
      %487 = vst.msk [vmem:[#allocation3 + $0x28] sm:$0xf] %vm388, %v478
      %488 = vst.msk [vmem:[#allocation3 + $0x2c] sm:$0xf] %vm388, %v480
      %v489 = vld [vmem:[%s1] sm:$0xf]
      %v490 = vld [vmem:[%s1 + $0x4] sm:$0xf]
      %v491 = vld [vmem:[%s1 + $0x8] sm:$0xf]
      %v492 = vld [vmem:[%s1 + $0xc] sm:$0xf]
      %v493 = vld [vmem:[#allocation3] sm:$0xf]
      %v494 = vld [vmem:[#allocation3 + $0x4] sm:$0xf]
      %v495 = vld [vmem:[#allocation3 + $0x8] sm:$0xf]
      %v496 = vld [vmem:[#allocation3 + $0xc] sm:$0xf]
      %v497 = vld [vmem:[#allocation3 + $0x10] sm:$0xf]
      %v498 = vld [vmem:[#allocation3 + $0x14] sm:$0xf]
      %v499 = vld [vmem:[#allocation3 + $0x18] sm:$0xf]
      %v500 = vld [vmem:[#allocation3 + $0x1c] sm:$0xf]
      %v501 = vld [vmem:[#allocation3 + $0x20] sm:$0xf]
      %v502 = vld [vmem:[#allocation3 + $0x24] sm:$0xf]
      %v503 = vld [vmem:[#allocation3 + $0x28] sm:$0xf]
      %v504 = vld [vmem:[#allocation3 + $0x2c] sm:$0xf]
      %v505 = vld [vmem:[%s2] sm:$0xff]
      %v506 = vld [vmem:[%s2 + $0x8] sm:$0xff]
      %v507 = vld [vmem:[%s2 + $0x10] sm:$0xff]
      %v508 = vld [vmem:[%s2 + $0x18] sm:$0xff]
      %510 = vset.pattern.permute.xlu0 0
      %511 = vperm.xlu0 %510, %v505
      %v512 = vpop.permute.xlu0 %511
      %515 = vset.pattern.permute.xlu0 0
      %516 = vperm.xlu0 %515, %v506
      %v517 = vpop.permute.xlu0 %516
      %520 = vset.pattern.permute.xlu0 0
      %521 = vperm.xlu0 %520, %v507
      %v522 = vpop.permute.xlu0 %521
      %525 = vset.pattern.permute.xlu0 0
      %526 = vperm.xlu0 %525, %v508
      %v527 = vpop.permute.xlu0 %526
      %v533 = vunpack.c.l.b16 %v489
      %v534 = vunpack.c.l.b16 %v490
      %v535 = vunpack.c.l.b16 %v491
      %v536 = vunpack.c.l.b16 %v492
      %v537 = vpack.c.b16 %v534, %v533
      %v538 = vpack.c.b16 %v536, %v535
      %v551 = vunpack.c.l.b16 %v493
      %v552 = vunpack.c.l.b16 %v494
      %v553 = vunpack.c.l.b16 %v495
      %v554 = vunpack.c.l.b16 %v496
      %v555 = vunpack.c.l.b16 %v497
      %v556 = vunpack.c.l.b16 %v498
      %v557 = vunpack.c.l.b16 %v499
      %v558 = vunpack.c.l.b16 %v500
      %v559 = vunpack.c.l.b16 %v501
      %v560 = vunpack.c.l.b16 %v502
      %v561 = vunpack.c.l.b16 %v503
      %v562 = vunpack.c.l.b16 %v504
      %v563 = vpack.c.b16 %v552, %v551
      %v564 = vpack.c.b16 %v554, %v553
      %v565 = vpack.c.b16 %v556, %v555
      %v566 = vpack.c.b16 %v558, %v557
      %v567 = vpack.c.b16 %v560, %v559
      %v568 = vpack.c.b16 %v562, %v561
      %vm575 = vcmask 785408
      %v577 = vsel %vm575, %v537, 0
      %v580 = vsel %vm575, %v538, 0
      %582 = vmatpush.bf16.msra.mxu0 0
      %583 = vmatpush.bf16.msra.mxu0 0
      %584 = vmatpush.bf16.msra.mxu0 %v568
      %585 = vmatpush.bf16.msra.mxu0 %v567
      %586 = vmatpush.bf16.msra.mxu0 %v566
      %587 = vmatpush.bf16.msra.mxu0 %v565
      %588 = vmatpush.bf16.msra.mxu0 %v564
      %589 = vmatpush.bf16.msra.mxu0 %v563
      %590 = vmatmul.bf16.gmra.mxu0 %v577
      %v591 = vpop.f32.mrf.mxu0
      %v592 = vadd.f32 %v512, %v591
      %v593 = vpop.f32.mrf.mxu0
      %v594 = vadd.f32 %v517, %v593
      %595 = vmatmul.bf16.gmra.mxu0 %v580
      %v596 = vpop.f32.mrf.mxu0
      %v597 = vadd.f32 %v522, %v596
      %v598 = vpop.f32.mrf.mxu0
      %v599 = vadd.f32 %v527, %v598
      %600 = vdwg.mxu0
      %vm601 = vcmp.gt.f32.partialorder %v592, 0.0
      %vm602 = vcmp.gt.f32.partialorder %v594, 0.0
      %vm603 = vcmp.gt.f32.partialorder %v597, 0.0
      %vm604 = vcmp.gt.f32.partialorder %v599, 0.0
      %v605 = vmul.f32 %v592, 0.1
      %v606 = vmul.f32 %v594, 0.1
      %v607 = vmul.f32 %v597, 0.1
      %v608 = vmul.f32 %v599, 0.1
      %v609 = vsel %vm601, %v592, %v605
      %v610 = vsel %vm602, %v594, %v606
      %v611 = vsel %vm603, %v597, %v607
      %v612 = vsel %vm604, %v599, %v608
      %v613 = vpack.c.bf16 %v609, %v609
      %v614 = vpack.c.bf16 %v610, %v610
      %v615 = vpack.c.bf16 %v611, %v611
      %v616 = vpack.c.bf16 %v612, %v612
      %621 = vrot.lane.b32.xlu0 %v613, 3
      %v622 = vpop.permute.xlu0 %621
      %623 = vrot.lane.b32.xlu0 %v614, 3
      %v624 = vpop.permute.xlu0 %623
      %625 = vrot.lane.b32.xlu0 %v615, 3
      %v626 = vpop.permute.xlu0 %625
      %627 = vrot.lane.b32.xlu0 %v616, 3
      %v628 = vpop.permute.xlu0 %627
      %vm633 = vcmask 281624
      %634 = vst.msk [vmem:[#allocation2] sm:$0xf] %vm633, %v622
      %635 = vst.msk [vmem:[#allocation2 + $0x4] sm:$0xf] %vm633, %v624
      %636 = vst.msk [vmem:[#allocation2 + $0x8] sm:$0xf] %vm633, %v626
      %637 = vst.msk [vmem:[#allocation2 + $0xc] sm:$0xf] %vm633, %v628
      %v638 = vld [vmem:[#allocation2] sm:$0xf]
      %v639 = vld [vmem:[#allocation2 + $0x4] sm:$0xf]
      %v640 = vld [vmem:[#allocation2 + $0x8] sm:$0xf]
      %v641 = vld [vmem:[#allocation2 + $0xc] sm:$0xf]
      %646 = vrot.lane.b32.xlu0 %v638, 126
      %v647 = vpop.permute.xlu0 %646
      %648 = vrot.lane.b32.xlu0 %v639, 126
      %v649 = vpop.permute.xlu0 %648
      %650 = vrot.lane.b32.xlu0 %v640, 126
      %v651 = vpop.permute.xlu0 %650
      %652 = vrot.lane.b32.xlu0 %v641, 126
      %v653 = vpop.permute.xlu0 %652
      %658 = vst.msk [vmem:[#allocation3] sm:$0xf] %vm388, %v647
      %659 = vst.msk [vmem:[#allocation3 + $0x4] sm:$0xf] %vm388, %v649
      %660 = vst.msk [vmem:[#allocation3 + $0x8] sm:$0xf] %vm388, %v651
      %661 = vst.msk [vmem:[#allocation3 + $0xc] sm:$0xf] %vm388, %v653
      %v662 = vld [vmem:[#allocation2] sm:$0xf]
      %v663 = vld [vmem:[#allocation2 + $0x4] sm:$0xf]
      %v664 = vld [vmem:[#allocation2 + $0x8] sm:$0xf]
      %v665 = vld [vmem:[#allocation2 + $0xc] sm:$0xf]
      %670 = vrot.lane.b32.xlu0 %v662, 125
      %v671 = vpop.permute.xlu0 %670
      %672 = vrot.lane.b32.xlu0 %v663, 125
      %v673 = vpop.permute.xlu0 %672
      %674 = vrot.lane.b32.xlu0 %v664, 125
      %v675 = vpop.permute.xlu0 %674
      %676 = vrot.lane.b32.xlu0 %v665, 125
      %v677 = vpop.permute.xlu0 %676
      %682 = vst.msk [vmem:[#allocation3 + $0x10] sm:$0xf] %vm388, %v671
      %683 = vst.msk [vmem:[#allocation3 + $0x14] sm:$0xf] %vm388, %v673
      %684 = vst.msk [vmem:[#allocation3 + $0x18] sm:$0xf] %vm388, %v675
      %685 = vst.msk [vmem:[#allocation3 + $0x1c] sm:$0xf] %vm388, %v677
      %v686 = vld [vmem:[#allocation2] sm:$0xf]
      %v687 = vld [vmem:[#allocation2 + $0x4] sm:$0xf]
      %v688 = vld [vmem:[#allocation2 + $0x8] sm:$0xf]
      %v689 = vld [vmem:[#allocation2 + $0xc] sm:$0xf]
      %694 = vrot.lane.b32.xlu0 %v686, 124
      %v695 = vpop.permute.xlu0 %694
      %696 = vrot.lane.b32.xlu0 %v687, 124
      %v697 = vpop.permute.xlu0 %696
      %698 = vrot.lane.b32.xlu0 %v688, 124
      %v699 = vpop.permute.xlu0 %698
      %700 = vrot.lane.b32.xlu0 %v689, 124
      %v701 = vpop.permute.xlu0 %700
      %706 = vst.msk [vmem:[#allocation3 + $0x20] sm:$0xf] %vm388, %v695
      %707 = vst.msk [vmem:[#allocation3 + $0x24] sm:$0xf] %vm388, %v697
      %708 = vst.msk [vmem:[#allocation3 + $0x28] sm:$0xf] %vm388, %v699
      %709 = vst.msk [vmem:[#allocation3 + $0x2c] sm:$0xf] %vm388, %v701
      %v710 = vld [vmem:[%s3] sm:$0xf]
      %v711 = vld [vmem:[%s3 + $0x4] sm:$0xf]
      %v712 = vld [vmem:[%s3 + $0x8] sm:$0xf]
      %v713 = vld [vmem:[%s3 + $0xc] sm:$0xf]
      %v714 = vld [vmem:[#allocation3] sm:$0xf]
      %v715 = vld [vmem:[#allocation3 + $0x4] sm:$0xf]
      %v716 = vld [vmem:[#allocation3 + $0x8] sm:$0xf]
      %v717 = vld [vmem:[#allocation3 + $0xc] sm:$0xf]
      %v718 = vld [vmem:[#allocation3 + $0x10] sm:$0xf]
      %v719 = vld [vmem:[#allocation3 + $0x14] sm:$0xf]
      %v720 = vld [vmem:[#allocation3 + $0x18] sm:$0xf]
      %v721 = vld [vmem:[#allocation3 + $0x1c] sm:$0xf]
      %v722 = vld [vmem:[#allocation3 + $0x20] sm:$0xf]
      %v723 = vld [vmem:[#allocation3 + $0x24] sm:$0xf]
      %v724 = vld [vmem:[#allocation3 + $0x28] sm:$0xf]
      %v725 = vld [vmem:[#allocation3 + $0x2c] sm:$0xf]
      %v726 = vld [vmem:[%s4] sm:$0xff]
      %v727 = vld [vmem:[%s4 + $0x8] sm:$0xff]
      %v728 = vld [vmem:[%s4 + $0x10] sm:$0xff]
      %v729 = vld [vmem:[%s4 + $0x18] sm:$0xff]
      %731 = vset.pattern.permute.xlu0 0
      %732 = vperm.xlu0 %731, %v726
      %v733 = vpop.permute.xlu0 %732
      %736 = vset.pattern.permute.xlu0 0
      %737 = vperm.xlu0 %736, %v727
      %v738 = vpop.permute.xlu0 %737
      %741 = vset.pattern.permute.xlu0 0
      %742 = vperm.xlu0 %741, %v728
      %v743 = vpop.permute.xlu0 %742
      %746 = vset.pattern.permute.xlu0 0
      %747 = vperm.xlu0 %746, %v729
      %v748 = vpop.permute.xlu0 %747
      %v754 = vunpack.c.l.b16 %v710
      %v755 = vunpack.c.l.b16 %v711
      %v756 = vunpack.c.l.b16 %v712
      %v757 = vunpack.c.l.b16 %v713
      %v758 = vpack.c.b16 %v755, %v754
      %v759 = vpack.c.b16 %v757, %v756
      %v772 = vunpack.c.l.b16 %v714
      %v773 = vunpack.c.l.b16 %v715
      %v774 = vunpack.c.l.b16 %v716
      %v775 = vunpack.c.l.b16 %v717
      %v776 = vunpack.c.l.b16 %v718
      %v777 = vunpack.c.l.b16 %v719
      %v778 = vunpack.c.l.b16 %v720
      %v779 = vunpack.c.l.b16 %v721
      %v780 = vunpack.c.l.b16 %v722
      %v781 = vunpack.c.l.b16 %v723
      %v782 = vunpack.c.l.b16 %v724
      %v783 = vunpack.c.l.b16 %v725
      %v784 = vpack.c.b16 %v773, %v772
      %v785 = vpack.c.b16 %v775, %v774
      %v786 = vpack.c.b16 %v777, %v776
      %v787 = vpack.c.b16 %v779, %v778
      %v788 = vpack.c.b16 %v781, %v780
      %v789 = vpack.c.b16 %v783, %v782
      %v797 = vsel %vm575, %v758, 0
      %v800 = vsel %vm575, %v759, 0
      %802 = vmatpush.bf16.msra.mxu0 0
      %803 = vmatpush.bf16.msra.mxu0 0
      %804 = vmatpush.bf16.msra.mxu0 %v789
      %805 = vmatpush.bf16.msra.mxu0 %v788
      %806 = vmatpush.bf16.msra.mxu0 %v787
      %807 = vmatpush.bf16.msra.mxu0 %v786
      %808 = vmatpush.bf16.msra.mxu0 %v785
      %809 = vmatpush.bf16.msra.mxu0 %v784
      %810 = vmatmul.bf16.gmra.mxu0 %v797
      %v811 = vpop.f32.mrf.mxu0
      %v812 = vadd.f32 %v733, %v811
      %v813 = vpop.f32.mrf.mxu0
      %v814 = vadd.f32 %v738, %v813
      %815 = vmatmul.bf16.gmra.mxu0 %v800
      %v816 = vpop.f32.mrf.mxu0
      %v817 = vadd.f32 %v743, %v816
      %v818 = vpop.f32.mrf.mxu0
      %v819 = vadd.f32 %v748, %v818
      %820 = vdwg.mxu0
      %825 = vrot.lane.b32.xlu0 %v812, 3
      %v826 = vpop.permute.xlu0 %825
      %827 = vrot.lane.b32.xlu0 %v814, 3
      %v828 = vpop.permute.xlu0 %827
      %829 = vrot.lane.b32.xlu0 %v817, 3
      %v830 = vpop.permute.xlu0 %829
      %831 = vrot.lane.b32.xlu0 %v819, 3
      %v832 = vpop.permute.xlu0 %831
      %v837 = vadd.f32 %v348, %v826
      %v838 = vadd.f32 %v349, %v828
      %v839 = vadd.f32 %v350, %v830
      %v840 = vadd.f32 %v351, %v832
      %vm841 = vcmp.gt.f32.partialorder %v837, 0.0
      %vm842 = vcmp.gt.f32.partialorder %v838, 0.0
      %vm843 = vcmp.gt.f32.partialorder %v839, 0.0
      %vm844 = vcmp.gt.f32.partialorder %v840, 0.0
      %v845 = vmul.f32 %v837, 0.1
      %v846 = vmul.f32 %v838, 0.1
      %v847 = vmul.f32 %v839, 0.1
      %v848 = vmul.f32 %v840, 0.1
      %v849 = vsel %vm841, %v837, %v845
      %v850 = vsel %vm842, %v838, %v846
      %v851 = vsel %vm843, %v839, %v847
      %v852 = vsel %vm844, %v840, %v848
      %v853 = vpack.c.bf16 %v849, %v849
      %v854 = vpack.c.bf16 %v850, %v850
      %v855 = vpack.c.bf16 %v851, %v851
      %v856 = vpack.c.bf16 %v852, %v852
      %857 = vst.msk [vmem:[#allocation2] sm:$0xf] %vm633, %v853
      %858 = vst.msk [vmem:[#allocation2 + $0x4] sm:$0xf] %vm633, %v854
      %859 = vst.msk [vmem:[#allocation2 + $0x8] sm:$0xf] %vm633, %v855
      %860 = vst.msk [vmem:[#allocation2 + $0xc] sm:$0xf] %vm633, %v856
      %v861 = vld [vmem:[#allocation2] sm:$0xf]
      %v862 = vld [vmem:[#allocation2 + $0x4] sm:$0xf]
      %v863 = vld [vmem:[#allocation2 + $0x8] sm:$0xf]
      %v864 = vld [vmem:[#allocation2 + $0xc] sm:$0xf]
      %865 = vst.msk [vmem:[#allocation3] sm:$0xf] %vm388, %v861
      %866 = vst.msk [vmem:[#allocation3 + $0x4] sm:$0xf] %vm388, %v862
      %867 = vst.msk [vmem:[#allocation3 + $0x8] sm:$0xf] %vm388, %v863
      %868 = vst.msk [vmem:[#allocation3 + $0xc] sm:$0xf] %vm388, %v864
      %v869 = vld [vmem:[#allocation2] sm:$0xf]
      %v870 = vld [vmem:[#allocation2 + $0x4] sm:$0xf]
      %v871 = vld [vmem:[#allocation2 + $0x8] sm:$0xf]
      %v872 = vld [vmem:[#allocation2 + $0xc] sm:$0xf]
      %877 = vrot.lane.b32.xlu0 %v869, 125
      %v878 = vpop.permute.xlu0 %877
      %879 = vrot.lane.b32.xlu0 %v870, 125
      %v880 = vpop.permute.xlu0 %879
      %881 = vrot.lane.b32.xlu0 %v871, 125
      %v882 = vpop.permute.xlu0 %881
      %883 = vrot.lane.b32.xlu0 %v872, 125
      %v884 = vpop.permute.xlu0 %883
      %889 = vst.msk [vmem:[#allocation3 + $0x10] sm:$0xf] %vm388, %v878
      %890 = vst.msk [vmem:[#allocation3 + $0x14] sm:$0xf] %vm388, %v880
      %891 = vst.msk [vmem:[#allocation3 + $0x18] sm:$0xf] %vm388, %v882
      %892 = vst.msk [vmem:[#allocation3 + $0x1c] sm:$0xf] %vm388, %v884
      %v893 = vld [vmem:[#allocation2] sm:$0xf]
      %v894 = vld [vmem:[#allocation2 + $0x4] sm:$0xf]
      %v895 = vld [vmem:[#allocation2 + $0x8] sm:$0xf]
      %v896 = vld [vmem:[#allocation2 + $0xc] sm:$0xf]
      %901 = vrot.lane.b32.xlu0 %v893, 122
      %v902 = vpop.permute.xlu0 %901
      %903 = vrot.lane.b32.xlu0 %v894, 122
      %v904 = vpop.permute.xlu0 %903
      %905 = vrot.lane.b32.xlu0 %v895, 122
      %v906 = vpop.permute.xlu0 %905
      %907 = vrot.lane.b32.xlu0 %v896, 122
      %v908 = vpop.permute.xlu0 %907
      %913 = vst.msk [vmem:[#allocation3 + $0x20] sm:$0xf] %vm388, %v902
      %914 = vst.msk [vmem:[#allocation3 + $0x24] sm:$0xf] %vm388, %v904
      %915 = vst.msk [vmem:[#allocation3 + $0x28] sm:$0xf] %vm388, %v906
      %916 = vst.msk [vmem:[#allocation3 + $0x2c] sm:$0xf] %vm388, %v908
      %v917 = vld [vmem:[%s5] sm:$0xf]
      %v918 = vld [vmem:[%s5 + $0x4] sm:$0xf]
      %v919 = vld [vmem:[%s5 + $0x8] sm:$0xf]
      %v920 = vld [vmem:[%s5 + $0xc] sm:$0xf]
      %v921 = vld [vmem:[#allocation3] sm:$0xf]
      %v922 = vld [vmem:[#allocation3 + $0x4] sm:$0xf]
      %v923 = vld [vmem:[#allocation3 + $0x8] sm:$0xf]
      %v924 = vld [vmem:[#allocation3 + $0xc] sm:$0xf]
      %v925 = vld [vmem:[#allocation3 + $0x10] sm:$0xf]
      %v926 = vld [vmem:[#allocation3 + $0x14] sm:$0xf]
      %v927 = vld [vmem:[#allocation3 + $0x18] sm:$0xf]
      %v928 = vld [vmem:[#allocation3 + $0x1c] sm:$0xf]
      %v929 = vld [vmem:[#allocation3 + $0x20] sm:$0xf]
      %v930 = vld [vmem:[#allocation3 + $0x24] sm:$0xf]
      %v931 = vld [vmem:[#allocation3 + $0x28] sm:$0xf]
      %v932 = vld [vmem:[#allocation3 + $0x2c] sm:$0xf]
      %v933 = vld [vmem:[%s6] sm:$0xff]
      %v934 = vld [vmem:[%s6 + $0x8] sm:$0xff]
      %v935 = vld [vmem:[%s6 + $0x10] sm:$0xff]
      %v936 = vld [vmem:[%s6 + $0x18] sm:$0xff]
      %938 = vset.pattern.permute.xlu0 0
      %939 = vperm.xlu0 %938, %v933
      %v940 = vpop.permute.xlu0 %939
      %943 = vset.pattern.permute.xlu0 0
      %944 = vperm.xlu0 %943, %v934
      %v945 = vpop.permute.xlu0 %944
      %948 = vset.pattern.permute.xlu0 0
      %949 = vperm.xlu0 %948, %v935
      %v950 = vpop.permute.xlu0 %949
      %953 = vset.pattern.permute.xlu0 0
      %954 = vperm.xlu0 %953, %v936
      %v955 = vpop.permute.xlu0 %954
      %v961 = vunpack.c.l.b16 %v917
      %v962 = vunpack.c.l.b16 %v918
      %v963 = vunpack.c.l.b16 %v919
      %v964 = vunpack.c.l.b16 %v920
      %v965 = vpack.c.b16 %v962, %v961
      %v966 = vpack.c.b16 %v964, %v963
      %v979 = vunpack.c.l.b16 %v921
      %v980 = vunpack.c.l.b16 %v922
      %v981 = vunpack.c.l.b16 %v923
      %v982 = vunpack.c.l.b16 %v924
      %v983 = vunpack.c.l.b16 %v925
      %v984 = vunpack.c.l.b16 %v926
      %v985 = vunpack.c.l.b16 %v927
      %v986 = vunpack.c.l.b16 %v928
      %v987 = vunpack.c.l.b16 %v929
      %v988 = vunpack.c.l.b16 %v930
      %v989 = vunpack.c.l.b16 %v931
      %v990 = vunpack.c.l.b16 %v932
      %v991 = vpack.c.b16 %v980, %v979
      %v992 = vpack.c.b16 %v982, %v981
      %v993 = vpack.c.b16 %v984, %v983
      %v994 = vpack.c.b16 %v986, %v985
      %v995 = vpack.c.b16 %v988, %v987
      %v996 = vpack.c.b16 %v990, %v989
      %v1004 = vsel %vm575, %v965, 0
      %v1007 = vsel %vm575, %v966, 0
      %1009 = vmatpush.bf16.msra.mxu0 0
      %1010 = vmatpush.bf16.msra.mxu0 0
      %1011 = vmatpush.bf16.msra.mxu0 %v996
      %1012 = vmatpush.bf16.msra.mxu0 %v995
      %1013 = vmatpush.bf16.msra.mxu0 %v994
      %1014 = vmatpush.bf16.msra.mxu0 %v993
      %1015 = vmatpush.bf16.msra.mxu0 %v992
      %1016 = vmatpush.bf16.msra.mxu0 %v991
      %1017 = vmatmul.bf16.gmra.mxu0 %v1004
      %v1018 = vpop.f32.mrf.mxu0
      %v1019 = vadd.f32 %v940, %v1018
      %v1020 = vpop.f32.mrf.mxu0
      %v1021 = vadd.f32 %v945, %v1020
      %1022 = vmatmul.bf16.gmra.mxu0 %v1007
      %v1023 = vpop.f32.mrf.mxu0
      %v1024 = vadd.f32 %v950, %v1023
      %v1025 = vpop.f32.mrf.mxu0
      %v1026 = vadd.f32 %v955, %v1025
      %1027 = vdwg.mxu0
      %vm1028 = vcmp.gt.f32.partialorder %v1019, 0.0
      %vm1029 = vcmp.gt.f32.partialorder %v1021, 0.0
      %vm1030 = vcmp.gt.f32.partialorder %v1024, 0.0
      %vm1031 = vcmp.gt.f32.partialorder %v1026, 0.0
      %v1032 = vmul.f32 %v1019, 0.1
      %v1033 = vmul.f32 %v1021, 0.1
      %v1034 = vmul.f32 %v1024, 0.1
      %v1035 = vmul.f32 %v1026, 0.1
      %v1036 = vsel %vm1028, %v1019, %v1032
      %v1037 = vsel %vm1029, %v1021, %v1033
      %v1038 = vsel %vm1030, %v1024, %v1034
      %v1039 = vsel %vm1031, %v1026, %v1035
      %v1040 = vpack.c.bf16 %v1036, %v1036
      %v1041 = vpack.c.bf16 %v1037, %v1037
      %v1042 = vpack.c.bf16 %v1038, %v1038
      %v1043 = vpack.c.bf16 %v1039, %v1039
      %1048 = vrot.lane.b32.xlu0 %v1040, 3
      %v1049 = vpop.permute.xlu0 %1048
      %1050 = vrot.lane.b32.xlu0 %v1041, 3
      %v1051 = vpop.permute.xlu0 %1050
      %1052 = vrot.lane.b32.xlu0 %v1042, 3
      %v1053 = vpop.permute.xlu0 %1052
      %1054 = vrot.lane.b32.xlu0 %v1043, 3
      %v1055 = vpop.permute.xlu0 %1054
      %1060 = vst.msk [vmem:[#allocation2] sm:$0xf] %vm633, %v1049
      %1061 = vst.msk [vmem:[#allocation2 + $0x4] sm:$0xf] %vm633, %v1051
      %1062 = vst.msk [vmem:[#allocation2 + $0x8] sm:$0xf] %vm633, %v1053
      %1063 = vst.msk [vmem:[#allocation2 + $0xc] sm:$0xf] %vm633, %v1055
      %v1064 = vld [vmem:[#allocation2] sm:$0xf]
      %v1065 = vld [vmem:[#allocation2 + $0x4] sm:$0xf]
      %v1066 = vld [vmem:[#allocation2 + $0x8] sm:$0xf]
      %v1067 = vld [vmem:[#allocation2 + $0xc] sm:$0xf]
      %1072 = vrot.lane.b32.xlu0 %v1064, 126
      %v1073 = vpop.permute.xlu0 %1072
      %1074 = vrot.lane.b32.xlu0 %v1065, 126
      %v1075 = vpop.permute.xlu0 %1074
      %1076 = vrot.lane.b32.xlu0 %v1066, 126
      %v1077 = vpop.permute.xlu0 %1076
      %1078 = vrot.lane.b32.xlu0 %v1067, 126
      %v1079 = vpop.permute.xlu0 %1078
      %1084 = vst.msk [vmem:[#allocation3] sm:$0xf] %vm388, %v1073
      %1085 = vst.msk [vmem:[#allocation3 + $0x4] sm:$0xf] %vm388, %v1075
      %1086 = vst.msk [vmem:[#allocation3 + $0x8] sm:$0xf] %vm388, %v1077
      %1087 = vst.msk [vmem:[#allocation3 + $0xc] sm:$0xf] %vm388, %v1079
      %v1088 = vld [vmem:[#allocation2] sm:$0xf]
      %v1089 = vld [vmem:[#allocation2 + $0x4] sm:$0xf]
      %v1090 = vld [vmem:[#allocation2 + $0x8] sm:$0xf]
      %v1091 = vld [vmem:[#allocation2 + $0xc] sm:$0xf]
      %1096 = vrot.lane.b32.xlu0 %v1088, 125
      %v1097 = vpop.permute.xlu0 %1096
      %1098 = vrot.lane.b32.xlu0 %v1089, 125
      %v1099 = vpop.permute.xlu0 %1098
      %1100 = vrot.lane.b32.xlu0 %v1090, 125
      %v1101 = vpop.permute.xlu0 %1100
      %1102 = vrot.lane.b32.xlu0 %v1091, 125
      %v1103 = vpop.permute.xlu0 %1102
      %1108 = vst.msk [vmem:[#allocation3 + $0x10] sm:$0xf] %vm388, %v1097
      %1109 = vst.msk [vmem:[#allocation3 + $0x14] sm:$0xf] %vm388, %v1099
      %1110 = vst.msk [vmem:[#allocation3 + $0x18] sm:$0xf] %vm388, %v1101
      %1111 = vst.msk [vmem:[#allocation3 + $0x1c] sm:$0xf] %vm388, %v1103
      %v1112 = vld [vmem:[#allocation2] sm:$0xf]
      %v1113 = vld [vmem:[#allocation2 + $0x4] sm:$0xf]
      %v1114 = vld [vmem:[#allocation2 + $0x8] sm:$0xf]
      %v1115 = vld [vmem:[#allocation2 + $0xc] sm:$0xf]
      %1120 = vrot.lane.b32.xlu0 %v1112, 124
      %v1121 = vpop.permute.xlu0 %1120
      %1122 = vrot.lane.b32.xlu0 %v1113, 124
      %v1123 = vpop.permute.xlu0 %1122
      %1124 = vrot.lane.b32.xlu0 %v1114, 124
      %v1125 = vpop.permute.xlu0 %1124
      %1126 = vrot.lane.b32.xlu0 %v1115, 124
      %v1127 = vpop.permute.xlu0 %1126
      %1132 = vst.msk [vmem:[#allocation3 + $0x20] sm:$0xf] %vm388, %v1121
      %1133 = vst.msk [vmem:[#allocation3 + $0x24] sm:$0xf] %vm388, %v1123
      %1134 = vst.msk [vmem:[#allocation3 + $0x28] sm:$0xf] %vm388, %v1125
      %1135 = vst.msk [vmem:[#allocation3 + $0x2c] sm:$0xf] %vm388, %v1127
      %v1136 = vld [vmem:[%s7] sm:$0xf]
      %v1137 = vld [vmem:[%s7 + $0x4] sm:$0xf]
      %v1138 = vld [vmem:[%s7 + $0x8] sm:$0xf]
      %v1139 = vld [vmem:[%s7 + $0xc] sm:$0xf]
      %v1140 = vld [vmem:[#allocation3] sm:$0xf]
      %v1141 = vld [vmem:[#allocation3 + $0x4] sm:$0xf]
      %v1142 = vld [vmem:[#allocation3 + $0x8] sm:$0xf]
      %v1143 = vld [vmem:[#allocation3 + $0xc] sm:$0xf]
      %v1144 = vld [vmem:[#allocation3 + $0x10] sm:$0xf]
      %v1145 = vld [vmem:[#allocation3 + $0x14] sm:$0xf]
      %v1146 = vld [vmem:[#allocation3 + $0x18] sm:$0xf]
      %v1147 = vld [vmem:[#allocation3 + $0x1c] sm:$0xf]
      %v1148 = vld [vmem:[#allocation3 + $0x20] sm:$0xf]
      %v1149 = vld [vmem:[#allocation3 + $0x24] sm:$0xf]
      %v1150 = vld [vmem:[#allocation3 + $0x28] sm:$0xf]
      %v1151 = vld [vmem:[#allocation3 + $0x2c] sm:$0xf]
      %v1152 = vld [vmem:[%s8] sm:$0xff]
      %v1153 = vld [vmem:[%s8 + $0x8] sm:$0xff]
      %v1154 = vld [vmem:[%s8 + $0x10] sm:$0xff]
      %v1155 = vld [vmem:[%s8 + $0x18] sm:$0xff]
      %1157 = vset.pattern.permute.xlu0 0
      %1158 = vperm.xlu0 %1157, %v1152
      %v1159 = vpop.permute.xlu0 %1158
      %1162 = vset.pattern.permute.xlu0 0
      %1163 = vperm.xlu0 %1162, %v1153
      %v1164 = vpop.permute.xlu0 %1163
      %1167 = vset.pattern.permute.xlu0 0
      %1168 = vperm.xlu0 %1167, %v1154
      %v1169 = vpop.permute.xlu0 %1168
      %1172 = vset.pattern.permute.xlu0 0
      %1173 = vperm.xlu0 %1172, %v1155
      %v1174 = vpop.permute.xlu0 %1173
      %v1180 = vunpack.c.l.b16 %v1136
      %v1181 = vunpack.c.l.b16 %v1137
      %v1182 = vunpack.c.l.b16 %v1138
      %v1183 = vunpack.c.l.b16 %v1139
      %v1184 = vpack.c.b16 %v1181, %v1180
      %v1185 = vpack.c.b16 %v1183, %v1182
      %v1198 = vunpack.c.l.b16 %v1140
      %v1199 = vunpack.c.l.b16 %v1141
      %v1200 = vunpack.c.l.b16 %v1142
      %v1201 = vunpack.c.l.b16 %v1143
      %v1202 = vunpack.c.l.b16 %v1144
      %v1203 = vunpack.c.l.b16 %v1145
      %v1204 = vunpack.c.l.b16 %v1146
      %v1205 = vunpack.c.l.b16 %v1147
      %v1206 = vunpack.c.l.b16 %v1148
      %v1207 = vunpack.c.l.b16 %v1149
      %v1208 = vunpack.c.l.b16 %v1150
      %v1209 = vunpack.c.l.b16 %v1151
      %v1210 = vpack.c.b16 %v1199, %v1198
      %v1211 = vpack.c.b16 %v1201, %v1200
      %v1212 = vpack.c.b16 %v1203, %v1202
      %v1213 = vpack.c.b16 %v1205, %v1204
      %v1214 = vpack.c.b16 %v1207, %v1206
      %v1215 = vpack.c.b16 %v1209, %v1208
      %v1223 = vsel %vm575, %v1184, 0
      %v1226 = vsel %vm575, %v1185, 0
      %1228 = vmatpush.bf16.msra.mxu0 0
      %1229 = vmatpush.bf16.msra.mxu0 0
      %1230 = vmatpush.bf16.msra.mxu0 %v1215
      %1231 = vmatpush.bf16.msra.mxu0 %v1214
      %1232 = vmatpush.bf16.msra.mxu0 %v1213
      %1233 = vmatpush.bf16.msra.mxu0 %v1212
      %1234 = vmatpush.bf16.msra.mxu0 %v1211
      %1235 = vmatpush.bf16.msra.mxu0 %v1210
      %1236 = vmatmul.bf16.gmra.mxu0 %v1223
      %v1237 = vpop.f32.mrf.mxu0
      %v1238 = vadd.f32 %v1159, %v1237
      %v1239 = vpop.f32.mrf.mxu0
      %v1240 = vadd.f32 %v1164, %v1239
      %1241 = vmatmul.bf16.gmra.mxu0 %v1226
      %v1242 = vpop.f32.mrf.mxu0
      %v1243 = vadd.f32 %v1169, %v1242
      %v1244 = vpop.f32.mrf.mxu0
      %v1245 = vadd.f32 %v1174, %v1244
      %1246 = vdwg.mxu0
      %1251 = vrot.lane.b32.xlu0 %v1238, 3
      %v1252 = vpop.permute.xlu0 %1251
      %1253 = vrot.lane.b32.xlu0 %v1240, 3
      %v1254 = vpop.permute.xlu0 %1253
      %1255 = vrot.lane.b32.xlu0 %v1243, 3
      %v1256 = vpop.permute.xlu0 %1255
      %1257 = vrot.lane.b32.xlu0 %v1245, 3
      %v1258 = vpop.permute.xlu0 %1257
      %v1263 = vadd.f32 %v837, %v1252
      %v1264 = vadd.f32 %v838, %v1254
      %v1265 = vadd.f32 %v839, %v1256
      %v1266 = vadd.f32 %v840, %v1258
      %v1267 = vadd.f32 %v1263, 0.0
      %v1268 = vadd.f32 %v1264, 0.0
      %v1269 = vadd.f32 %v1265, 0.0
      %v1270 = vadd.f32 %v1266, 0.0
      %vm1271 = vcmask 3072
      %1272 = vst.msk [vmem:[%s332] sm:$0xf] %vm1271, 0
      %1273 = vst.msk [vmem:[%s332 + $0x4] sm:$0xf] %vm1271, 0
      %1274 = vst.msk [vmem:[%s332 + $0x8] sm:$0xf] %vm1271, 0
      %1275 = vst.msk [vmem:[%s332 + $0xc] sm:$0xf] %vm1271, 0
      %vm1276 = vcmask 273672
      %1277 = vst.msk [vmem:[%s332] sm:$0xf] %vm1276, 0
      %1278 = vst.msk [vmem:[%s332 + $0x4] sm:$0xf] %vm1276, 0
      %1279 = vst.msk [vmem:[%s332 + $0x8] sm:$0xf] %vm1276, 0
      %1280 = vst.msk [vmem:[%s332 + $0xc] sm:$0xf] %vm1276, 0
      %v1281 = vpack.c.bf16 %v1267, %v1267
      %v1282 = vpack.c.bf16 %v1268, %v1268
      %v1283 = vpack.c.bf16 %v1269, %v1269
      %v1284 = vpack.c.bf16 %v1270, %v1270
      %1289 = vrot.lane.b32.xlu0 %v1281, 126
      %v1290 = vpop.permute.xlu0 %1289
      %1291 = vrot.lane.b32.xlu0 %v1282, 126
      %v1292 = vpop.permute.xlu0 %1291
      %1293 = vrot.lane.b32.xlu0 %v1283, 126
      %v1294 = vpop.permute.xlu0 %1293
      %1295 = vrot.lane.b32.xlu0 %v1284, 126
      %v1296 = vpop.permute.xlu0 %1295
      %vm1301 = vcmask 265224
      %1302 = vst.msk [vmem:[%s332] sm:$0xf] %vm1301, %v1290
      %1303 = vst.msk [vmem:[%s332 + $0x4] sm:$0xf] %vm1301, %v1292
      %1304 = vst.msk [vmem:[%s332 + $0x8] sm:$0xf] %vm1301, %v1294
      %1305 = vst.msk [vmem:[%s332 + $0xc] sm:$0xf] %vm1301, %v1296
      %p1306 = scmp.lt.s32.totalorder %s20, 1
      %s1307 = scalar_select %p1306, %s20, 1
      %s1308 = smul.addr %s1307, 4
      %s1309 = smul.addr %s1308, 4
      %s1310 = scalar_lea.vmem %s9, %s1309
      // Predicated region
      $region57: #{a_call__.7} parent=55 // pred_check
        %p1311 = pneg %p232
      $region58: #{a_call__.7} parent=55 // pred_check_branch
        %1313 = sbr.rel (%p1311) target = $region60
      $region59: #{a_call__.7} parent=55 // pred_region
        _
      $region60: #{a_call__.7} parent=55 // pred_fallthru
        _
    $region56: #{a_call__.7} parent=5 // pred_fallthru
      _
    %p1314 = scmp.le.s32.totalorder 2, %s15
    // Predicated region
    $region61: #{a_call__.7} parent=5 // pred_check
      %p1315 = pneg %p1314
    $region62: #{a_call__.7} parent=5 // pred_check_branch
      %1317 = sbr.rel (%p1315) target = $region64
    $region63: #{a_call__.7} parent=5 // pred_region
      %s1318 = ssub.s32 %s15, 2
      // Predicated region
      $region65: #{a_call__.7} parent=63 // pred_check
        %p1319 = pneg %p238
      $region66: #{a_call__.7} parent=63 // pred_check_branch
        %1321 = sbr.rel (%p1319) target = $region68
      $region67: #{a_call__.7} parent=63 // pred_region
        %p1322 = scmp.lt.s32.totalorder %s21, 1
        %s1323 = scalar_select %p1322, %s21, 1
        %s1324 = smul.addr %s1323, 4
        %s1325 = smul.addr %s1324, 4
        %s1326 = scalar_lea.vmem %s9, %s1325
      $region68: #{a_call__.7} parent=63 // pred_fallthru
        _
    $region64: #{a_call__.7} parent=5 // pred_fallthru
      _
  $region6: #{a_call__.7} parent=0 // loop_footer
    %s19 = sadd.s32 1, %s15
  $region7: #{a_call__.7} parent=0 // loop_footer_branch
    %14 = sbr.rel target = $region3
  $region8: #{a_call__.7} parent=0 // loop_exit
    _

// kernel: a_call__.6
$region0: #{a_call__.6}
  #allocation0 [shape = 'u32[]', space=smem, size = 0x4, offset = 0x4, fixed_abs, tag = 'smem constant byte address 0x4 - core index']
  #allocation1 [shape = 'u32[72,128]{1,0:T(1,128)}', space=vmem, size = 0x9000, scoped, tag = 'internal scratch']
  #allocation2 [shape = 'bf16[128,8]{1,0:T(8,128)(2,1)}', space=vmem, size = 0x8000, scoped, tag = 'scratch operand']
  %s0 = inlined_call_operand.vmem [shape: bf16[2,64,10], index: 0, kind: input, shape index: {}]
  %s1 = inlined_call_operand.vmem [shape: bf16[4,32,128], index: 1, kind: input, shape index: {}]
  %s2 = inlined_call_operand.hbm [shape: f32[32,1], index: 2, kind: input, shape index: {}]
  %s3 = inlined_call_operand.vmem [shape: bf16[2,4,32,8], index: 3, kind: output, shape index: {}]
  %s4 = sld [smem:[#allocation0]]
  $region49: #{a_call__.6} parent=0
    _
  %s6 = ssub.s32 1, %s4
  %s7 = scalar_select 0, %s6, %s4
  $region1: #{a_call__.6} parent=0
    #allocation3 [shape = 'u8[16384]{0}', space=vmem, size = 0x4000, scoped, tag = 'input window, operand 2, single buffered']
    #allocation4 [shape = 's32[2]{0}', space=sflag, size = 0x8, scoped, tag = 'scoped memory for a_call__.6']
    %8 = vsyncpa [#allocation4], 0
    loop: start=0, step=1, limit=4
    $region2: #{a_call__.6} parent=1 // loop_pre_header
      _
    $region3: #{a_call__.6} parent=1 // loop_header
      %s10 = sphi 0, %s14
      %p11 = scmp.ge.s32.totalorder %s10, 4
      %s20 = sphi 0, %s22
      %s23 = sphi 0, %s20
      %s24 = sphi 0, %s23
      %s40 = sphi 0, %s24
      %s44 = sphi 0, %s44
      %s46 = sphi 0, %s44
      %s47 = sphi 0, %s46
      %s61 = sphi 0, %s47
      %s65 = sphi 0, %s65
      %s67 = sphi 0, %s65
      %s68 = sphi 0, %s67
      %s82 = sphi 0, %s68
      %s88 = sphi 0, %s90
      %s91 = sphi 0, %s88
      %s92 = sphi 0, %s91
      %s108 = sphi 0, %s92
    $region4: #{a_call__.6} parent=1 // loop_header_branch
      %13 = sbr.rel (%p11) target = $region8
    $region5: #{a_call__.6} parent=1 // loop_body
      %s15 = ssub.s32 %s10, 1
      %s16 = ssub.s32 %s10, 2
      %s17 = sadd.s32 %s10, 1
      %s18 = ssub.s32 %s10, %s17
      %p19 = scmp.eq.s32.totalorder %s18, 0
      %s21 = sadd.s32 %s20, 1
      %s22 = scalar_select %p19, %s20, %s21
      %p25 = pneg %p19
      %p26 = scmp.eq.s32.totalorder %s10, 1
      %p27 = por %p25, %p26
      %p28 = scmp.ne.s32.totalorder %s20, %s23
      %p29 = scmp.eq.s32.totalorder %s10, 0
      %p30 = por %p28, %p29
      %p31 = scmp.ne.s32.totalorder %s20, %s23
      %p32 = scmp.eq.s32.totalorder %s15, 1
      %p33 = por %p31, %p32
      %p34 = scmp.ne.s32.totalorder %s23, %s24
      %p35 = scmp.eq.s32.totalorder %s15, 0
      %p36 = por %p34, %p35
      %p37 = scmp.ne.s32.totalorder %s23, %s24
      %p38 = scmp.eq.s32.totalorder %s16, 1
      %p39 = por %p37, %p38
      %p41 = scmp.ne.s32.totalorder %s24, %s40
      %p42 = scmp.eq.s32.totalorder %s16, 0
      %p43 = por %p41, %p42
      %s45 = sadd.s32 %s44, 1
      %p48 = scmp.eq.s32.totalorder %s10, 1
      %p49 = scmp.ne.s32.totalorder %s44, %s46
      %p50 = scmp.eq.s32.totalorder %s10, 0
      %p51 = por %p49, %p50
      %p52 = scmp.ne.s32.totalorder %s44, %s46
      %p53 = scmp.eq.s32.totalorder %s15, 1
      %p54 = por %p52, %p53
      %p55 = scmp.ne.s32.totalorder %s46, %s47
      %p56 = scmp.eq.s32.totalorder %s15, 0
      %p57 = por %p55, %p56
      %p58 = scmp.ne.s32.totalorder %s46, %s47
      %p59 = scmp.eq.s32.totalorder %s16, 1
      %p60 = por %p58, %p59
      %p62 = scmp.ne.s32.totalorder %s47, %s61
      %p63 = scmp.eq.s32.totalorder %s16, 0
      %p64 = por %p62, %p63
      %s66 = sadd.s32 %s65, 1
      %p69 = scmp.eq.s32.totalorder %s10, 1
      %p70 = scmp.ne.s32.totalorder %s65, %s67
      %p71 = scmp.eq.s32.totalorder %s10, 0
      %p72 = por %p70, %p71
      %p73 = scmp.ne.s32.totalorder %s65, %s67
      %p74 = scmp.eq.s32.totalorder %s15, 1
      %p75 = por %p73, %p74
      %p76 = scmp.ne.s32.totalorder %s67, %s68
      %p77 = scmp.eq.s32.totalorder %s15, 0
      %p78 = por %p76, %p77
      %p79 = scmp.ne.s32.totalorder %s67, %s68
      %p80 = scmp.eq.s32.totalorder %s16, 1
      %p81 = por %p79, %p80
      %p83 = scmp.ne.s32.totalorder %s68, %s82
      %p84 = scmp.eq.s32.totalorder %s16, 0
      %p85 = por %p83, %p84
      %s86 = ssub.s32 %s10, %s17
      %p87 = scmp.eq.s32.totalorder %s86, 0
      %s89 = sadd.s32 %s88, 1
      %s90 = scalar_select %p87, %s88, %s89
      %p93 = pneg %p87
      %p94 = scmp.eq.s32.totalorder %s10, 1
      %p95 = por %p93, %p94
      %p96 = scmp.ne.s32.totalorder %s88, %s91
      %p97 = scmp.eq.s32.totalorder %s10, 0
      %p98 = por %p96, %p97
      %p99 = scmp.ne.s32.totalorder %s88, %s91
      %p100 = scmp.eq.s32.totalorder %s15, 1
      %p101 = por %p99, %p100
      %p102 = scmp.ne.s32.totalorder %s91, %s92
      %p103 = scmp.eq.s32.totalorder %s15, 0
      %p104 = por %p102, %p103
      %p105 = scmp.ne.s32.totalorder %s91, %s92
      %p106 = scmp.eq.s32.totalorder %s16, 1
      %p107 = por %p105, %p106
      %p109 = scmp.ne.s32.totalorder %s92, %s108
      %p110 = scmp.eq.s32.totalorder %s16, 0
      %p111 = por %p109, %p110
      %p112 = scmp.le.s32.totalorder 1, %s10
      %p113 = scmp.lt.s32.totalorder %s10, 3
      %p114 = pnand %p112, %p113
      %p115 = pneg %p114
      // Predicated region
      $region9: #{a_call__.6} parent=5 // pred_check
        _
      $region10: #{a_call__.6} parent=5 // pred_check_branch
        %117 = sbr.rel (%p114) target = $region12
      $region11: #{a_call__.6} parent=5 // pred_region
        %s118 = ssub.s32 %s10, 1
        // Predicated region
        $region13: #{a_call__.6} parent=11 // pred_check
          %p119 = pneg %p57
        $region14: #{a_call__.6} parent=11 // pred_check_branch
          %121 = sbr.rel (%p119) target = $region16
        $region15: #{a_call__.6} parent=11 // pred_region
          _
        $region16: #{a_call__.6} parent=11 // pred_fallthru
          _
        // Predicated region
        $region17: #{a_call__.6} parent=11 // pred_check
          %p122 = pneg %p78
        $region18: #{a_call__.6} parent=11 // pred_check_branch
          %124 = sbr.rel (%p122) target = $region20
        $region19: #{a_call__.6} parent=11 // pred_region
          %126 = vsyncadd [#allocation4], 0
          %s127 = sshll.u32 %s2, 4
          %s128 = int_to_ptr.hbm [resolvable:$true] %s127
          %s129 = sshll.u32 [#allocation3], 4
          %s130 = int_to_ptr.vmem [resolvable:$true] %s129
          %135 = dma.hbm_to_vmem [thread:$0]  %s128, 512, %s130, [#allocation4], 128, 128, 8
        $region20: #{a_call__.6} parent=11 // pred_fallthru
          _
      $region12: #{a_call__.6} parent=5 // pred_fallthru
        _
      %p136 = scmp.lt.s32.totalorder %s10, 2
      // Predicated region
      $region21: #{a_call__.6} parent=5 // pred_check
        %p137 = pneg %p136
      $region22: #{a_call__.6} parent=5 // pred_check_branch
        %139 = sbr.rel (%p137) target = $region24
      $region23: #{a_call__.6} parent=5 // pred_region
        // Predicated region
        $region25: #{a_call__.6} parent=23 // pred_check
          %p140 = pneg %p30
        $region26: #{a_call__.6} parent=23 // pred_check_branch
          %142 = sbr.rel (%p140) target = $region28
        $region27: #{a_call__.6} parent=23 // pred_region
          %p143 = scmp.lt.s32.totalorder %s10, 1
          %s144 = scalar_select %p143, %s10, 1
          %s145 = smul.addr %s144, 8
          %s146 = smul.addr %s145, 4
          %s147 = scalar_lea.vmem %s0, %s146
        $region28: #{a_call__.6} parent=23 // pred_fallthru
          _
      $region24: #{a_call__.6} parent=5 // pred_fallthru
        _
      %p148 = scmp.le.s32.totalorder 1, %s10
      %p149 = scmp.lt.s32.totalorder %s10, 3
      %p150 = pnand %p148, %p149
      %p151 = pneg %p150
      // Predicated region
      $region29: #{a_call__.6} parent=5 // pred_check
        _
      $region30: #{a_call__.6} parent=5 // pred_check_branch
        %153 = sbr.rel (%p150) target = $region32
      $region31: #{a_call__.6} parent=5 // pred_region
        %s154 = ssub.s32 %s10, 1
        // Predicated region
        $region33: #{a_call__.6} parent=31 // pred_check
          %p155 = pneg %p78
        $region34: #{a_call__.6} parent=31 // pred_check_branch
          %157 = sbr.rel (%p155) target = $region36
        $region35: #{a_call__.6} parent=31 // pred_region
          %159 = dma.done [#allocation4], 512
        $region36: #{a_call__.6} parent=31 // pred_fallthru
          _
        %p160 = scmp.lt.s32.totalorder %s15, 1
        %s161 = scalar_select %p160, %s15, 1
        %s162 = smul.addr %s161, 8
        %s163 = smul.addr %s162, 4
        %s164 = scalar_lea.vmem %s0, %s163
        %p165 = pneg %p36
        %p166 = pneg %p33
        %p167 = pneg %p57
        %p168 = pneg %p54
        %p169 = pneg %p78
        %p170 = pneg %p75
        %p171 = pneg %p104
        %p172 = pneg %p101
        %p173 = scmp.lt.s32.totalorder %s15, 1
        %s174 = scalar_select %p173, %s15, 1
        %s175 = smul.addr %s174, 16
        %s176 = smul.addr %s175, 4
        %s177 = scalar_lea.vmem %s3, %s176
        %p178 = scmp.lt.s32.totalorder %s15, 1
        %s179 = scalar_select %p178, %s15, 1
        %s180 = smul.addr %s179, 8
        %s181 = smul.addr %s180, 4
        %s182 = scalar_lea.vmem %s0, %s181
        %p183 = scmp.lt.s32.totalorder %s15, 1
        %s184 = scalar_select %p183, %s15, 1
        %s185 = smul.addr %s184, 16
        %s186 = smul.addr %s185, 4
        %s187 = scalar_lea.vmem %s3, %s186
        %v188 = vld [vmem:[#allocation3] sm:$0xff]
        %v189 = vld [vmem:[#allocation3 + $0x8] sm:$0xff]
        %v190 = vld [vmem:[#allocation3 + $0x10] sm:$0xff]
        %v191 = vld [vmem:[#allocation3 + $0x18] sm:$0xff]
        %v192 = vld [vmem:[%s182] sm:$0xf]
        %v193 = vld [vmem:[%s182 + $0x4] sm:$0xf]
        %v194 = vld [vmem:[%s182 + $0x8] sm:$0xf]
        %v195 = vld [vmem:[%s182 + $0xc] sm:$0xf]
        %v196 = vld [vmem:[%s182 + $0x10] sm:$0xf]
        %v197 = vld [vmem:[%s182 + $0x14] sm:$0xf]
        %v198 = vld [vmem:[%s182 + $0x18] sm:$0xf]
        %v199 = vld [vmem:[%s182 + $0x1c] sm:$0xf]
        %v200 = vunpack.c.l.bf16 %v192
        %v201 = vunpack.c.l.bf16 %v193
        %v202 = vunpack.c.l.bf16 %v194
        %v203 = vunpack.c.l.bf16 %v195
        %v204 = vunpack.c.l.bf16 %v196
        %v205 = vunpack.c.l.bf16 %v197
        %v206 = vunpack.c.l.bf16 %v198
        %v207 = vunpack.c.l.bf16 %v199
        %vm208 = vcmp.gt.f32.partialorder %v200, 0.0
        %vm209 = vcmp.gt.f32.partialorder %v201, 0.0
        %vm210 = vcmp.gt.f32.partialorder %v202, 0.0
        %vm211 = vcmp.gt.f32.partialorder %v203, 0.0
        %vm212 = vcmp.gt.f32.partialorder %v204, 0.0
        %vm213 = vcmp.gt.f32.partialorder %v205, 0.0
        %vm214 = vcmp.gt.f32.partialorder %v206, 0.0
        %vm215 = vcmp.gt.f32.partialorder %v207, 0.0
        %v216 = vmul.f32 %v200, 0.100097656
        %v217 = vmul.f32 %v201, 0.100097656
        %v218 = vmul.f32 %v202, 0.100097656
        %v219 = vmul.f32 %v203, 0.100097656
        %v220 = vmul.f32 %v204, 0.100097656
        %v221 = vmul.f32 %v205, 0.100097656
        %v222 = vmul.f32 %v206, 0.100097656
        %v223 = vmul.f32 %v207, 0.100097656
        %v224 = vpack.c.bf16 %v216, %v216
        %v225 = vpack.c.bf16 %v217, %v217
        %v226 = vpack.c.bf16 %v218, %v218
        %v227 = vpack.c.bf16 %v219, %v219
        %v228 = vpack.c.bf16 %v220, %v220
        %v229 = vpack.c.bf16 %v221, %v221
        %v230 = vpack.c.bf16 %v222, %v222
        %v231 = vpack.c.bf16 %v223, %v223
        %vm232 = vmpackc.low %vm208, %vm208
        %vm233 = vmpackc.low %vm209, %vm209
        %vm234 = vmpackc.low %vm210, %vm210
        %vm235 = vmpackc.low %vm211, %vm211
        %vm236 = vmpackc.low %vm212, %vm212
        %vm237 = vmpackc.low %vm213, %vm213
        %vm238 = vmpackc.low %vm214, %vm214
        %vm239 = vmpackc.low %vm215, %vm215
        %v240 = vsel %vm232, %v192, %v224
        %v241 = vsel %vm233, %v193, %v225
        %v242 = vsel %vm234, %v194, %v226
        %v243 = vsel %vm235, %v195, %v227
        %v244 = vsel %vm236, %v196, %v228
        %v245 = vsel %vm237, %v197, %v229
        %v246 = vsel %vm238, %v198, %v230
        %v247 = vsel %vm239, %v199, %v231
        %vm248 = vcmask 60416
        %249 = vst.msk [vmem:[#allocation2] sm:$0xf] %vm248, %v240
        %250 = vst.msk [vmem:[#allocation2 + $0x4] sm:$0xf] %vm248, %v241
        %251 = vst.msk [vmem:[#allocation2 + $0x8] sm:$0xf] %vm248, %v242
        %252 = vst.msk [vmem:[#allocation2 + $0xc] sm:$0xf] %vm248, %v243
        %253 = vst.msk [vmem:[#allocation2 + $0x10] sm:$0xf] %vm248, %v244
        %254 = vst.msk [vmem:[#allocation2 + $0x14] sm:$0xf] %vm248, %v245
        %255 = vst.msk [vmem:[#allocation2 + $0x18] sm:$0xf] %vm248, %v246
        %256 = vst.msk [vmem:[#allocation2 + $0x1c] sm:$0xf] %vm248, %v247
        %v257 = vld [vmem:[%s182] sm:$0xf]
        %v258 = vld [vmem:[%s182 + $0x4] sm:$0xf]
        %v259 = vld [vmem:[%s182 + $0x8] sm:$0xf]
        %v260 = vld [vmem:[%s182 + $0xc] sm:$0xf]
        %v261 = vld [vmem:[%s182 + $0x10] sm:$0xf]
        %v262 = vld [vmem:[%s182 + $0x14] sm:$0xf]
        %v263 = vld [vmem:[%s182 + $0x18] sm:$0xf]
        %v264 = vld [vmem:[%s182 + $0x1c] sm:$0xf]
        %v265 = vunpack.c.l.bf16 %v257
        %v266 = vunpack.c.l.bf16 %v258
        %v267 = vunpack.c.l.bf16 %v259
        %v268 = vunpack.c.l.bf16 %v260
        %v269 = vunpack.c.l.bf16 %v261
        %v270 = vunpack.c.l.bf16 %v262
        %v271 = vunpack.c.l.bf16 %v263
        %v272 = vunpack.c.l.bf16 %v264
        %vm273 = vcmp.gt.f32.partialorder %v265, 0.0
        %vm274 = vcmp.gt.f32.partialorder %v266, 0.0
        %vm275 = vcmp.gt.f32.partialorder %v267, 0.0
        %vm276 = vcmp.gt.f32.partialorder %v268, 0.0
        %vm277 = vcmp.gt.f32.partialorder %v269, 0.0
        %vm278 = vcmp.gt.f32.partialorder %v270, 0.0
        %vm279 = vcmp.gt.f32.partialorder %v271, 0.0
        %vm280 = vcmp.gt.f32.partialorder %v272, 0.0
        %v281 = vmul.f32 %v265, 0.100097656
        %v282 = vmul.f32 %v266, 0.100097656
        %v283 = vmul.f32 %v267, 0.100097656
        %v284 = vmul.f32 %v268, 0.100097656
        %v285 = vmul.f32 %v269, 0.100097656
        %v286 = vmul.f32 %v270, 0.100097656
        %v287 = vmul.f32 %v271, 0.100097656
        %v288 = vmul.f32 %v272, 0.100097656
        %v289 = vpack.c.bf16 %v281, %v281
        %v290 = vpack.c.bf16 %v282, %v282
        %v291 = vpack.c.bf16 %v283, %v283
        %v292 = vpack.c.bf16 %v284, %v284
        %v293 = vpack.c.bf16 %v285, %v285
        %v294 = vpack.c.bf16 %v286, %v286
        %v295 = vpack.c.bf16 %v287, %v287
        %v296 = vpack.c.bf16 %v288, %v288
        %vm297 = vmpackc.low %vm273, %vm273
        %vm298 = vmpackc.low %vm274, %vm274
        %vm299 = vmpackc.low %vm275, %vm275
        %vm300 = vmpackc.low %vm276, %vm276
        %vm301 = vmpackc.low %vm277, %vm277
        %vm302 = vmpackc.low %vm278, %vm278
        %vm303 = vmpackc.low %vm279, %vm279
        %vm304 = vmpackc.low %vm280, %vm280
        %v305 = vsel %vm297, %v257, %v289
        %v306 = vsel %vm298, %v258, %v290
        %v307 = vsel %vm299, %v259, %v291
        %v308 = vsel %vm300, %v260, %v292
        %v309 = vsel %vm301, %v261, %v293
        %v310 = vsel %vm302, %v262, %v294
        %v311 = vsel %vm303, %v263, %v295
        %v312 = vsel %vm304, %v264, %v296
        %321 = vrot.lane.b32.xlu0 %v305, 127
        %v322 = vpop.permute.xlu0 %321
        %323 = vrot.lane.b32.xlu0 %v306, 127
        %v324 = vpop.permute.xlu0 %323
        %325 = vrot.lane.b32.xlu0 %v307, 127
        %v326 = vpop.permute.xlu0 %325
        %327 = vrot.lane.b32.xlu0 %v308, 127
        %v328 = vpop.permute.xlu0 %327
        %329 = vrot.lane.b32.xlu0 %v309, 127
        %v330 = vpop.permute.xlu0 %329
        %331 = vrot.lane.b32.xlu0 %v310, 127
        %v332 = vpop.permute.xlu0 %331
        %333 = vrot.lane.b32.xlu0 %v311, 127
        %v334 = vpop.permute.xlu0 %333
        %335 = vrot.lane.b32.xlu0 %v312, 127
        %v336 = vpop.permute.xlu0 %335
        %345 = vst.msk [vmem:[#allocation2 + $0x20] sm:$0xf] %vm248, %v322
        %346 = vst.msk [vmem:[#allocation2 + $0x24] sm:$0xf] %vm248, %v324
        %347 = vst.msk [vmem:[#allocation2 + $0x28] sm:$0xf] %vm248, %v326
        %348 = vst.msk [vmem:[#allocation2 + $0x2c] sm:$0xf] %vm248, %v328
        %349 = vst.msk [vmem:[#allocation2 + $0x30] sm:$0xf] %vm248, %v330
        %350 = vst.msk [vmem:[#allocation2 + $0x34] sm:$0xf] %vm248, %v332
        %351 = vst.msk [vmem:[#allocation2 + $0x38] sm:$0xf] %vm248, %v334
        %352 = vst.msk [vmem:[#allocation2 + $0x3c] sm:$0xf] %vm248, %v336
        %v353 = vld [vmem:[%s1] sm:$0xf]
        %v354 = vld [vmem:[%s1 + $0x4] sm:$0xf]
        %v355 = vld [vmem:[%s1 + $0x8] sm:$0xf]
        %v356 = vld [vmem:[%s1 + $0xc] sm:$0xf]
        %v357 = vld [vmem:[#allocation2] sm:$0xf]
        %v358 = vld [vmem:[#allocation2 + $0x4] sm:$0xf]
        %v359 = vld [vmem:[#allocation2 + $0x8] sm:$0xf]
        %v360 = vld [vmem:[#allocation2 + $0xc] sm:$0xf]
        %v361 = vld [vmem:[#allocation2 + $0x10] sm:$0xf]
        %v362 = vld [vmem:[#allocation2 + $0x14] sm:$0xf]
        %v363 = vld [vmem:[#allocation2 + $0x18] sm:$0xf]
        %v364 = vld [vmem:[#allocation2 + $0x1c] sm:$0xf]
        %v365 = vld [vmem:[#allocation2 + $0x20] sm:$0xf]
        %v366 = vld [vmem:[#allocation2 + $0x24] sm:$0xf]
        %v367 = vld [vmem:[#allocation2 + $0x28] sm:$0xf]
        %v368 = vld [vmem:[#allocation2 + $0x2c] sm:$0xf]
        %v369 = vld [vmem:[#allocation2 + $0x30] sm:$0xf]
        %v370 = vld [vmem:[#allocation2 + $0x34] sm:$0xf]
        %v371 = vld [vmem:[#allocation2 + $0x38] sm:$0xf]
        %v372 = vld [vmem:[#allocation2 + $0x3c] sm:$0xf]
        %374 = vset.pattern.permute.xlu0 0
        %375 = vperm.xlu0 %374, %v188
        %v376 = vpop.permute.xlu0 %375
        %379 = vset.pattern.permute.xlu0 0
        %380 = vperm.xlu0 %379, %v189
        %v381 = vpop.permute.xlu0 %380
        %384 = vset.pattern.permute.xlu0 0
        %385 = vperm.xlu0 %384, %v190
        %v386 = vpop.permute.xlu0 %385
        %389 = vset.pattern.permute.xlu0 0
        %390 = vperm.xlu0 %389, %v191
        %v391 = vpop.permute.xlu0 %390
        %v397 = vunpack.c.l.b16 %v353
        %v398 = vunpack.c.l.b16 %v354
        %v399 = vunpack.c.l.b16 %v355
        %v400 = vunpack.c.l.b16 %v356
        %v401 = vpack.c.b16 %v398, %v397
        %v402 = vpack.c.b16 %v400, %v399
        %v421 = vunpack.c.l.b16 %v357
        %v422 = vunpack.c.l.b16 %v358
        %v423 = vunpack.c.l.b16 %v359
        %v424 = vunpack.c.l.b16 %v360
        %v425 = vunpack.c.l.b16 %v361
        %v426 = vunpack.c.l.b16 %v362
        %v427 = vunpack.c.l.b16 %v363
        %v428 = vunpack.c.l.b16 %v364
        %v429 = vunpack.c.l.b16 %v365
        %v430 = vunpack.c.l.b16 %v366
        %v431 = vunpack.c.l.b16 %v367
        %v432 = vunpack.c.l.b16 %v368
        %v433 = vunpack.c.l.b16 %v369
        %v434 = vunpack.c.l.b16 %v370
        %v435 = vunpack.c.l.b16 %v371
        %v436 = vunpack.c.l.b16 %v372
        %v437 = vpack.c.b16 %v422, %v421
        %v438 = vpack.c.b16 %v424, %v423
        %v439 = vpack.c.b16 %v426, %v425
        %v440 = vpack.c.b16 %v428, %v427
        %v441 = vpack.c.b16 %v430, %v429
        %v442 = vpack.c.b16 %v432, %v431
        %v443 = vpack.c.b16 %v434, %v433
        %v444 = vpack.c.b16 %v436, %v435
        %453 = vmatpush.bf16.msra.mxu0 %v444
        %454 = vmatpush.bf16.msra.mxu0 %v443
        %455 = vmatpush.bf16.msra.mxu0 %v442
        %456 = vmatpush.bf16.msra.mxu0 %v441
        %457 = vmatpush.bf16.msra.mxu0 %v440
        %458 = vmatpush.bf16.msra.mxu0 %v439
        %459 = vmatpush.bf16.msra.mxu0 %v438
        %460 = vmatpush.bf16.msra.mxu0 %v437
        %461 = vmatmul.bf16.gmra.mxu0 %v401
        %v462 = vpop.f32.mrf.mxu0
        %v463 = vadd.f32 %v376, %v462
        %v464 = vpop.f32.mrf.mxu0
        %v465 = vadd.f32 %v381, %v464
        %466 = vmatmul.bf16.gmra.mxu0 %v402
        %v467 = vpop.f32.mrf.mxu0
        %v468 = vadd.f32 %v386, %v467
        %v469 = vpop.f32.mrf.mxu0
        %v470 = vadd.f32 %v391, %v469
        %471 = vdwg.mxu0
        %v472 = vpack.c.bf16 %v463, %v463
        %v473 = vpack.c.bf16 %v465, %v465
        %v474 = vpack.c.bf16 %v468, %v468
        %v475 = vpack.c.bf16 %v470, %v470
        %476 = vst.msk [vmem:[%s187] sm:$0xf] %vm248, %v472
        %477 = vst.msk [vmem:[%s187 + $0x4] sm:$0xf] %vm248, %v473
        %478 = vst.msk [vmem:[%s187 + $0x8] sm:$0xf] %vm248, %v474
        %479 = vst.msk [vmem:[%s187 + $0xc] sm:$0xf] %vm248, %v475
        %v480 = vld [vmem:[%s182] sm:$0xf]
        %v481 = vld [vmem:[%s182 + $0x4] sm:$0xf]
        %v482 = vld [vmem:[%s182 + $0x8] sm:$0xf]
        %v483 = vld [vmem:[%s182 + $0xc] sm:$0xf]
        %v484 = vld [vmem:[%s182 + $0x10] sm:$0xf]
        %v485 = vld [vmem:[%s182 + $0x14] sm:$0xf]
        %v486 = vld [vmem:[%s182 + $0x18] sm:$0xf]
        %v487 = vld [vmem:[%s182 + $0x1c] sm:$0xf]
        %v488 = vunpack.c.l.bf16 %v480
        %v489 = vunpack.c.l.bf16 %v481
        %v490 = vunpack.c.l.bf16 %v482
        %v491 = vunpack.c.l.bf16 %v483
        %v492 = vunpack.c.l.bf16 %v484
        %v493 = vunpack.c.l.bf16 %v485
        %v494 = vunpack.c.l.bf16 %v486
        %v495 = vunpack.c.l.bf16 %v487
        %vm496 = vcmp.gt.f32.partialorder %v488, 0.0
        %vm497 = vcmp.gt.f32.partialorder %v489, 0.0
        %vm498 = vcmp.gt.f32.partialorder %v490, 0.0
        %vm499 = vcmp.gt.f32.partialorder %v491, 0.0
        %vm500 = vcmp.gt.f32.partialorder %v492, 0.0
        %vm501 = vcmp.gt.f32.partialorder %v493, 0.0
        %vm502 = vcmp.gt.f32.partialorder %v494, 0.0
        %vm503 = vcmp.gt.f32.partialorder %v495, 0.0
        %v504 = vmul.f32 %v488, 0.100097656
        %v505 = vmul.f32 %v489, 0.100097656
        %v506 = vmul.f32 %v490, 0.100097656
        %v507 = vmul.f32 %v491, 0.100097656
        %v508 = vmul.f32 %v492, 0.100097656
        %v509 = vmul.f32 %v493, 0.100097656
        %v510 = vmul.f32 %v494, 0.100097656
        %v511 = vmul.f32 %v495, 0.100097656
        %v512 = vpack.c.bf16 %v504, %v504
        %v513 = vpack.c.bf16 %v505, %v505
        %v514 = vpack.c.bf16 %v506, %v506
        %v515 = vpack.c.bf16 %v507, %v507
        %v516 = vpack.c.bf16 %v508, %v508
        %v517 = vpack.c.bf16 %v509, %v509
        %v518 = vpack.c.bf16 %v510, %v510
        %v519 = vpack.c.bf16 %v511, %v511
        %vm520 = vmpackc.low %vm496, %vm496
        %vm521 = vmpackc.low %vm497, %vm497
        %vm522 = vmpackc.low %vm498, %vm498
        %vm523 = vmpackc.low %vm499, %vm499
        %vm524 = vmpackc.low %vm500, %vm500
        %vm525 = vmpackc.low %vm501, %vm501
        %vm526 = vmpackc.low %vm502, %vm502
        %vm527 = vmpackc.low %vm503, %vm503
        %v528 = vsel %vm520, %v480, %v512
        %v529 = vsel %vm521, %v481, %v513
        %v530 = vsel %vm522, %v482, %v514
        %v531 = vsel %vm523, %v483, %v515
        %v532 = vsel %vm524, %v484, %v516
        %v533 = vsel %vm525, %v485, %v517
        %v534 = vsel %vm526, %v486, %v518
        %v535 = vsel %vm527, %v487, %v519
        %536 = vst.msk [vmem:[#allocation2] sm:$0xf] %vm248, %v528
        %537 = vst.msk [vmem:[#allocation2 + $0x4] sm:$0xf] %vm248, %v529
        %538 = vst.msk [vmem:[#allocation2 + $0x8] sm:$0xf] %vm248, %v530
        %539 = vst.msk [vmem:[#allocation2 + $0xc] sm:$0xf] %vm248, %v531
        %540 = vst.msk [vmem:[#allocation2 + $0x10] sm:$0xf] %vm248, %v532
        %541 = vst.msk [vmem:[#allocation2 + $0x14] sm:$0xf] %vm248, %v533
        %542 = vst.msk [vmem:[#allocation2 + $0x18] sm:$0xf] %vm248, %v534
        %543 = vst.msk [vmem:[#allocation2 + $0x1c] sm:$0xf] %vm248, %v535
        %v544 = vld [vmem:[%s182] sm:$0xf]
        %v545 = vld [vmem:[%s182 + $0x4] sm:$0xf]
        %v546 = vld [vmem:[%s182 + $0x8] sm:$0xf]
        %v547 = vld [vmem:[%s182 + $0xc] sm:$0xf]
        %v548 = vld [vmem:[%s182 + $0x10] sm:$0xf]
        %v549 = vld [vmem:[%s182 + $0x14] sm:$0xf]
        %v550 = vld [vmem:[%s182 + $0x18] sm:$0xf]
        %v551 = vld [vmem:[%s182 + $0x1c] sm:$0xf]
        %v552 = vunpack.c.l.bf16 %v544
        %v553 = vunpack.c.l.bf16 %v545
        %v554 = vunpack.c.l.bf16 %v546
        %v555 = vunpack.c.l.bf16 %v547
        %v556 = vunpack.c.l.bf16 %v548
        %v557 = vunpack.c.l.bf16 %v549
        %v558 = vunpack.c.l.bf16 %v550
        %v559 = vunpack.c.l.bf16 %v551
        %vm560 = vcmp.gt.f32.partialorder %v552, 0.0
        %vm561 = vcmp.gt.f32.partialorder %v553, 0.0
        %vm562 = vcmp.gt.f32.partialorder %v554, 0.0
        %vm563 = vcmp.gt.f32.partialorder %v555, 0.0
        %vm564 = vcmp.gt.f32.partialorder %v556, 0.0
        %vm565 = vcmp.gt.f32.partialorder %v557, 0.0
        %vm566 = vcmp.gt.f32.partialorder %v558, 0.0
        %vm567 = vcmp.gt.f32.partialorder %v559, 0.0
        %v568 = vmul.f32 %v552, 0.100097656
        %v569 = vmul.f32 %v553, 0.100097656
        %v570 = vmul.f32 %v554, 0.100097656
        %v571 = vmul.f32 %v555, 0.100097656
        %v572 = vmul.f32 %v556, 0.100097656
        %v573 = vmul.f32 %v557, 0.100097656
        %v574 = vmul.f32 %v558, 0.100097656
        %v575 = vmul.f32 %v559, 0.100097656
        %v576 = vpack.c.bf16 %v568, %v568
        %v577 = vpack.c.bf16 %v569, %v569
        %v578 = vpack.c.bf16 %v570, %v570
        %v579 = vpack.c.bf16 %v571, %v571
        %v580 = vpack.c.bf16 %v572, %v572
        %v581 = vpack.c.bf16 %v573, %v573
        %v582 = vpack.c.bf16 %v574, %v574
        %v583 = vpack.c.bf16 %v575, %v575
        %vm584 = vmpackc.low %vm560, %vm560
        %vm585 = vmpackc.low %vm561, %vm561
        %vm586 = vmpackc.low %vm562, %vm562
        %vm587 = vmpackc.low %vm563, %vm563
        %vm588 = vmpackc.low %vm564, %vm564
        %vm589 = vmpackc.low %vm565, %vm565
        %vm590 = vmpackc.low %vm566, %vm566
        %vm591 = vmpackc.low %vm567, %vm567
        %v592 = vsel %vm584, %v544, %v576
        %v593 = vsel %vm585, %v545, %v577
        %v594 = vsel %vm586, %v546, %v578
        %v595 = vsel %vm587, %v547, %v579
        %v596 = vsel %vm588, %v548, %v580
        %v597 = vsel %vm589, %v549, %v581
        %v598 = vsel %vm590, %v550, %v582
        %v599 = vsel %vm591, %v551, %v583
        %608 = vrot.lane.b32.xlu0 %v592, 127
        %v609 = vpop.permute.xlu0 %608
        %610 = vrot.lane.b32.xlu0 %v593, 127
        %v611 = vpop.permute.xlu0 %610
        %612 = vrot.lane.b32.xlu0 %v594, 127
        %v613 = vpop.permute.xlu0 %612
        %614 = vrot.lane.b32.xlu0 %v595, 127
        %v615 = vpop.permute.xlu0 %614
        %616 = vrot.lane.b32.xlu0 %v596, 127
        %v617 = vpop.permute.xlu0 %616
        %618 = vrot.lane.b32.xlu0 %v597, 127
        %v619 = vpop.permute.xlu0 %618
        %620 = vrot.lane.b32.xlu0 %v598, 127
        %v621 = vpop.permute.xlu0 %620
        %622 = vrot.lane.b32.xlu0 %v599, 127
        %v623 = vpop.permute.xlu0 %622
        %632 = vst.msk [vmem:[#allocation2 + $0x20] sm:$0xf] %vm248, %v609
        %633 = vst.msk [vmem:[#allocation2 + $0x24] sm:$0xf] %vm248, %v611
        %634 = vst.msk [vmem:[#allocation2 + $0x28] sm:$0xf] %vm248, %v613
        %635 = vst.msk [vmem:[#allocation2 + $0x2c] sm:$0xf] %vm248, %v615
        %636 = vst.msk [vmem:[#allocation2 + $0x30] sm:$0xf] %vm248, %v617
        %637 = vst.msk [vmem:[#allocation2 + $0x34] sm:$0xf] %vm248, %v619
        %638 = vst.msk [vmem:[#allocation2 + $0x38] sm:$0xf] %vm248, %v621
        %639 = vst.msk [vmem:[#allocation2 + $0x3c] sm:$0xf] %vm248, %v623
        %s640 = scalar_lea.vmem %s1, 16
        %v641 = vld [vmem:[%s640] sm:$0xf]
        %v642 = vld [vmem:[%s640 + $0x4] sm:$0xf]
        %v643 = vld [vmem:[%s640 + $0x8] sm:$0xf]
        %v644 = vld [vmem:[%s640 + $0xc] sm:$0xf]
        %v645 = vld [vmem:[#allocation2] sm:$0xf]
        %v646 = vld [vmem:[#allocation2 + $0x4] sm:$0xf]
        %v647 = vld [vmem:[#allocation2 + $0x8] sm:$0xf]
        %v648 = vld [vmem:[#allocation2 + $0xc] sm:$0xf]
        %v649 = vld [vmem:[#allocation2 + $0x10] sm:$0xf]
        %v650 = vld [vmem:[#allocation2 + $0x14] sm:$0xf]
        %v651 = vld [vmem:[#allocation2 + $0x18] sm:$0xf]
        %v652 = vld [vmem:[#allocation2 + $0x1c] sm:$0xf]
        %v653 = vld [vmem:[#allocation2 + $0x20] sm:$0xf]
        %v654 = vld [vmem:[#allocation2 + $0x24] sm:$0xf]
        %v655 = vld [vmem:[#allocation2 + $0x28] sm:$0xf]
        %v656 = vld [vmem:[#allocation2 + $0x2c] sm:$0xf]
        %v657 = vld [vmem:[#allocation2 + $0x30] sm:$0xf]
        %v658 = vld [vmem:[#allocation2 + $0x34] sm:$0xf]
        %v659 = vld [vmem:[#allocation2 + $0x38] sm:$0xf]
        %v660 = vld [vmem:[#allocation2 + $0x3c] sm:$0xf]
        %v665 = vunpack.c.l.b16 %v641
        %v666 = vunpack.c.l.b16 %v642
        %v667 = vunpack.c.l.b16 %v643
        %v668 = vunpack.c.l.b16 %v644
        %v669 = vpack.c.b16 %v666, %v665
        %v670 = vpack.c.b16 %v668, %v667
        %v689 = vunpack.c.l.b16 %v645
        %v690 = vunpack.c.l.b16 %v646
        %v691 = vunpack.c.l.b16 %v647
        %v692 = vunpack.c.l.b16 %v648
        %v693 = vunpack.c.l.b16 %v649
        %v694 = vunpack.c.l.b16 %v650
        %v695 = vunpack.c.l.b16 %v651
        %v696 = vunpack.c.l.b16 %v652
        %v697 = vunpack.c.l.b16 %v653
        %v698 = vunpack.c.l.b16 %v654
        %v699 = vunpack.c.l.b16 %v655
        %v700 = vunpack.c.l.b16 %v656
        %v701 = vunpack.c.l.b16 %v657
        %v702 = vunpack.c.l.b16 %v658
        %v703 = vunpack.c.l.b16 %v659
        %v704 = vunpack.c.l.b16 %v660
        %v705 = vpack.c.b16 %v690, %v689
        %v706 = vpack.c.b16 %v692, %v691
        %v707 = vpack.c.b16 %v694, %v693
        %v708 = vpack.c.b16 %v696, %v695
        %v709 = vpack.c.b16 %v698, %v697
        %v710 = vpack.c.b16 %v700, %v699
        %v711 = vpack.c.b16 %v702, %v701
        %v712 = vpack.c.b16 %v704, %v703
        %721 = vmatpush.bf16.msra.mxu0 %v712
        %722 = vmatpush.bf16.msra.mxu0 %v711
        %723 = vmatpush.bf16.msra.mxu0 %v710
        %724 = vmatpush.bf16.msra.mxu0 %v709
        %725 = vmatpush.bf16.msra.mxu0 %v708
        %726 = vmatpush.bf16.msra.mxu0 %v707
        %727 = vmatpush.bf16.msra.mxu0 %v706
        %728 = vmatpush.bf16.msra.mxu0 %v705
        %729 = vmatmul.bf16.gmra.mxu0 %v669
        %v730 = vpop.f32.mrf.mxu0
        %v731 = vadd.f32 %v376, %v730
        %v732 = vpop.f32.mrf.mxu0
        %v733 = vadd.f32 %v381, %v732
        %734 = vmatmul.bf16.gmra.mxu0 %v670
        %v735 = vpop.f32.mrf.mxu0
        %v736 = vadd.f32 %v386, %v735
        %v737 = vpop.f32.mrf.mxu0
        %v738 = vadd.f32 %v391, %v737
        %739 = vdwg.mxu0
        %v740 = vpack.c.bf16 %v731, %v731
        %v741 = vpack.c.bf16 %v733, %v733
        %v742 = vpack.c.bf16 %v736, %v736
        %v743 = vpack.c.bf16 %v738, %v738
        %s744 = scalar_lea.vmem %s187, 16
        %745 = vst.msk [vmem:[%s744] sm:$0xf] %vm248, %v740
        %746 = vst.msk [vmem:[%s744 + $0x4] sm:$0xf] %vm248, %v741
        %747 = vst.msk [vmem:[%s744 + $0x8] sm:$0xf] %vm248, %v742
        %748 = vst.msk [vmem:[%s744 + $0xc] sm:$0xf] %vm248, %v743
        %v749 = vld [vmem:[%s182] sm:$0xf]
        %v750 = vld [vmem:[%s182 + $0x4] sm:$0xf]
        %v751 = vld [vmem:[%s182 + $0x8] sm:$0xf]
        %v752 = vld [vmem:[%s182 + $0xc] sm:$0xf]
        %v753 = vld [vmem:[%s182 + $0x10] sm:$0xf]
        %v754 = vld [vmem:[%s182 + $0x14] sm:$0xf]
        %v755 = vld [vmem:[%s182 + $0x18] sm:$0xf]
        %v756 = vld [vmem:[%s182 + $0x1c] sm:$0xf]
        %v757 = vunpack.c.l.bf16 %v749
        %v758 = vunpack.c.l.bf16 %v750
        %v759 = vunpack.c.l.bf16 %v751
        %v760 = vunpack.c.l.bf16 %v752
        %v761 = vunpack.c.l.bf16 %v753
        %v762 = vunpack.c.l.bf16 %v754
        %v763 = vunpack.c.l.bf16 %v755
        %v764 = vunpack.c.l.bf16 %v756
        %vm765 = vcmp.gt.f32.partialorder %v757, 0.0
        %vm766 = vcmp.gt.f32.partialorder %v758, 0.0
        %vm767 = vcmp.gt.f32.partialorder %v759, 0.0
        %vm768 = vcmp.gt.f32.partialorder %v760, 0.0
        %vm769 = vcmp.gt.f32.partialorder %v761, 0.0
        %vm770 = vcmp.gt.f32.partialorder %v762, 0.0
        %vm771 = vcmp.gt.f32.partialorder %v763, 0.0
        %vm772 = vcmp.gt.f32.partialorder %v764, 0.0
        %v773 = vmul.f32 %v757, 0.100097656
        %v774 = vmul.f32 %v758, 0.100097656
        %v775 = vmul.f32 %v759, 0.100097656
        %v776 = vmul.f32 %v760, 0.100097656
        %v777 = vmul.f32 %v761, 0.100097656
        %v778 = vmul.f32 %v762, 0.100097656
        %v779 = vmul.f32 %v763, 0.100097656
        %v780 = vmul.f32 %v764, 0.100097656
        %v781 = vpack.c.bf16 %v773, %v773
        %v782 = vpack.c.bf16 %v774, %v774
        %v783 = vpack.c.bf16 %v775, %v775
        %v784 = vpack.c.bf16 %v776, %v776
        %v785 = vpack.c.bf16 %v777, %v777
        %v786 = vpack.c.bf16 %v778, %v778
        %v787 = vpack.c.bf16 %v779, %v779
        %v788 = vpack.c.bf16 %v780, %v780
        %vm789 = vmpackc.low %vm765, %vm765
        %vm790 = vmpackc.low %vm766, %vm766
        %vm791 = vmpackc.low %vm767, %vm767
        %vm792 = vmpackc.low %vm768, %vm768
        %vm793 = vmpackc.low %vm769, %vm769
        %vm794 = vmpackc.low %vm770, %vm770
        %vm795 = vmpackc.low %vm771, %vm771
        %vm796 = vmpackc.low %vm772, %vm772
        %v797 = vsel %vm789, %v749, %v781
        %v798 = vsel %vm790, %v750, %v782
        %v799 = vsel %vm791, %v751, %v783
        %v800 = vsel %vm792, %v752, %v784
        %v801 = vsel %vm793, %v753, %v785
        %v802 = vsel %vm794, %v754, %v786
        %v803 = vsel %vm795, %v755, %v787
        %v804 = vsel %vm796, %v756, %v788
        %813 = vrot.lane.b32.xlu0 %v797, 127
        %v814 = vpop.permute.xlu0 %813
        %815 = vrot.lane.b32.xlu0 %v798, 127
        %v816 = vpop.permute.xlu0 %815
        %817 = vrot.lane.b32.xlu0 %v799, 127
        %v818 = vpop.permute.xlu0 %817
        %819 = vrot.lane.b32.xlu0 %v800, 127
        %v820 = vpop.permute.xlu0 %819
        %821 = vrot.lane.b32.xlu0 %v801, 127
        %v822 = vpop.permute.xlu0 %821
        %823 = vrot.lane.b32.xlu0 %v802, 127
        %v824 = vpop.permute.xlu0 %823
        %825 = vrot.lane.b32.xlu0 %v803, 127
        %v826 = vpop.permute.xlu0 %825
        %827 = vrot.lane.b32.xlu0 %v804, 127
        %v828 = vpop.permute.xlu0 %827
        %837 = vst.msk [vmem:[#allocation2] sm:$0xf] %vm248, %v814
        %838 = vst.msk [vmem:[#allocation2 + $0x4] sm:$0xf] %vm248, %v816
        %839 = vst.msk [vmem:[#allocation2 + $0x8] sm:$0xf] %vm248, %v818
        %840 = vst.msk [vmem:[#allocation2 + $0xc] sm:$0xf] %vm248, %v820
        %841 = vst.msk [vmem:[#allocation2 + $0x10] sm:$0xf] %vm248, %v822
        %842 = vst.msk [vmem:[#allocation2 + $0x14] sm:$0xf] %vm248, %v824
        %843 = vst.msk [vmem:[#allocation2 + $0x18] sm:$0xf] %vm248, %v826
        %844 = vst.msk [vmem:[#allocation2 + $0x1c] sm:$0xf] %vm248, %v828
        %v845 = vld [vmem:[%s182] sm:$0xf]
        %v846 = vld [vmem:[%s182 + $0x4] sm:$0xf]
        %v847 = vld [vmem:[%s182 + $0x8] sm:$0xf]
        %v848 = vld [vmem:[%s182 + $0xc] sm:$0xf]
        %v849 = vld [vmem:[%s182 + $0x10] sm:$0xf]
        %v850 = vld [vmem:[%s182 + $0x14] sm:$0xf]
        %v851 = vld [vmem:[%s182 + $0x18] sm:$0xf]
        %v852 = vld [vmem:[%s182 + $0x1c] sm:$0xf]
        %v853 = vunpack.c.l.bf16 %v845
        %v854 = vunpack.c.l.bf16 %v846
        %v855 = vunpack.c.l.bf16 %v847
        %v856 = vunpack.c.l.bf16 %v848
        %v857 = vunpack.c.l.bf16 %v849
        %v858 = vunpack.c.l.bf16 %v850
        %v859 = vunpack.c.l.bf16 %v851
        %v860 = vunpack.c.l.bf16 %v852
        %vm861 = vcmp.gt.f32.partialorder %v853, 0.0
        %vm862 = vcmp.gt.f32.partialorder %v854, 0.0
        %vm863 = vcmp.gt.f32.partialorder %v855, 0.0
        %vm864 = vcmp.gt.f32.partialorder %v856, 0.0
        %vm865 = vcmp.gt.f32.partialorder %v857, 0.0
        %vm866 = vcmp.gt.f32.partialorder %v858, 0.0
        %vm867 = vcmp.gt.f32.partialorder %v859, 0.0
        %vm868 = vcmp.gt.f32.partialorder %v860, 0.0
        %v869 = vmul.f32 %v853, 0.100097656
        %v870 = vmul.f32 %v854, 0.100097656
        %v871 = vmul.f32 %v855, 0.100097656
        %v872 = vmul.f32 %v856, 0.100097656
        %v873 = vmul.f32 %v857, 0.100097656
        %v874 = vmul.f32 %v858, 0.100097656
        %v875 = vmul.f32 %v859, 0.100097656
        %v876 = vmul.f32 %v860, 0.100097656
        %v877 = vpack.c.bf16 %v869, %v869
        %v878 = vpack.c.bf16 %v870, %v870
        %v879 = vpack.c.bf16 %v871, %v871
        %v880 = vpack.c.bf16 %v872, %v872
        %v881 = vpack.c.bf16 %v873, %v873
        %v882 = vpack.c.bf16 %v874, %v874
        %v883 = vpack.c.bf16 %v875, %v875
        %v884 = vpack.c.bf16 %v876, %v876
        %vm885 = vmpackc.low %vm861, %vm861
        %vm886 = vmpackc.low %vm862, %vm862
        %vm887 = vmpackc.low %vm863, %vm863
        %vm888 = vmpackc.low %vm864, %vm864
        %vm889 = vmpackc.low %vm865, %vm865
        %vm890 = vmpackc.low %vm866, %vm866
        %vm891 = vmpackc.low %vm867, %vm867
        %vm892 = vmpackc.low %vm868, %vm868
        %v893 = vsel %vm885, %v845, %v877
        %v894 = vsel %vm886, %v846, %v878
        %v895 = vsel %vm887, %v847, %v879
        %v896 = vsel %vm888, %v848, %v880
        %v897 = vsel %vm889, %v849, %v881
        %v898 = vsel %vm890, %v850, %v882
        %v899 = vsel %vm891, %v851, %v883
        %v900 = vsel %vm892, %v852, %v884
        %909 = vrot.lane.b32.xlu0 %v893, 126
        %v910 = vpop.permute.xlu0 %909
        %911 = vrot.lane.b32.xlu0 %v894, 126
        %v912 = vpop.permute.xlu0 %911
        %913 = vrot.lane.b32.xlu0 %v895, 126
        %v914 = vpop.permute.xlu0 %913
        %915 = vrot.lane.b32.xlu0 %v896, 126
        %v916 = vpop.permute.xlu0 %915
        %917 = vrot.lane.b32.xlu0 %v897, 126
        %v918 = vpop.permute.xlu0 %917
        %919 = vrot.lane.b32.xlu0 %v898, 126
        %v920 = vpop.permute.xlu0 %919
        %921 = vrot.lane.b32.xlu0 %v899, 126
        %v922 = vpop.permute.xlu0 %921
        %923 = vrot.lane.b32.xlu0 %v900, 126
        %v924 = vpop.permute.xlu0 %923
        %933 = vst.msk [vmem:[#allocation2 + $0x20] sm:$0xf] %vm248, %v910
        %934 = vst.msk [vmem:[#allocation2 + $0x24] sm:$0xf] %vm248, %v912
        %935 = vst.msk [vmem:[#allocation2 + $0x28] sm:$0xf] %vm248, %v914
        %936 = vst.msk [vmem:[#allocation2 + $0x2c] sm:$0xf] %vm248, %v916
        %937 = vst.msk [vmem:[#allocation2 + $0x30] sm:$0xf] %vm248, %v918
        %938 = vst.msk [vmem:[#allocation2 + $0x34] sm:$0xf] %vm248, %v920
        %939 = vst.msk [vmem:[#allocation2 + $0x38] sm:$0xf] %vm248, %v922
        %940 = vst.msk [vmem:[#allocation2 + $0x3c] sm:$0xf] %vm248, %v924
        %s941 = scalar_lea.vmem %s1, 32
        %v942 = vld [vmem:[%s941] sm:$0xf]
        %v943 = vld [vmem:[%s941 + $0x4] sm:$0xf]
        %v944 = vld [vmem:[%s941 + $0x8] sm:$0xf]
        %v945 = vld [vmem:[%s941 + $0xc] sm:$0xf]
        %v946 = vld [vmem:[#allocation2] sm:$0xf]
        %v947 = vld [vmem:[#allocation2 + $0x4] sm:$0xf]
        %v948 = vld [vmem:[#allocation2 + $0x8] sm:$0xf]
        %v949 = vld [vmem:[#allocation2 + $0xc] sm:$0xf]
        %v950 = vld [vmem:[#allocation2 + $0x10] sm:$0xf]
        %v951 = vld [vmem:[#allocation2 + $0x14] sm:$0xf]
        %v952 = vld [vmem:[#allocation2 + $0x18] sm:$0xf]
        %v953 = vld [vmem:[#allocation2 + $0x1c] sm:$0xf]
        %v954 = vld [vmem:[#allocation2 + $0x20] sm:$0xf]
        %v955 = vld [vmem:[#allocation2 + $0x24] sm:$0xf]
        %v956 = vld [vmem:[#allocation2 + $0x28] sm:$0xf]
        %v957 = vld [vmem:[#allocation2 + $0x2c] sm:$0xf]
        %v958 = vld [vmem:[#allocation2 + $0x30] sm:$0xf]
        %v959 = vld [vmem:[#allocation2 + $0x34] sm:$0xf]
        %v960 = vld [vmem:[#allocation2 + $0x38] sm:$0xf]
        %v961 = vld [vmem:[#allocation2 + $0x3c] sm:$0xf]
        %v966 = vunpack.c.l.b16 %v942
        %v967 = vunpack.c.l.b16 %v943
        %v968 = vunpack.c.l.b16 %v944
        %v969 = vunpack.c.l.b16 %v945
        %v970 = vpack.c.b16 %v967, %v966
        %v971 = vpack.c.b16 %v969, %v968
        %v990 = vunpack.c.l.b16 %v946
        %v991 = vunpack.c.l.b16 %v947
        %v992 = vunpack.c.l.b16 %v948
        %v993 = vunpack.c.l.b16 %v949
        %v994 = vunpack.c.l.b16 %v950
        %v995 = vunpack.c.l.b16 %v951
        %v996 = vunpack.c.l.b16 %v952
        %v997 = vunpack.c.l.b16 %v953
        %v998 = vunpack.c.l.b16 %v954
        %v999 = vunpack.c.l.b16 %v955
        %v1000 = vunpack.c.l.b16 %v956
        %v1001 = vunpack.c.l.b16 %v957
        %v1002 = vunpack.c.l.b16 %v958
        %v1003 = vunpack.c.l.b16 %v959
        %v1004 = vunpack.c.l.b16 %v960
        %v1005 = vunpack.c.l.b16 %v961
        %v1006 = vpack.c.b16 %v991, %v990
        %v1007 = vpack.c.b16 %v993, %v992
        %v1008 = vpack.c.b16 %v995, %v994
        %v1009 = vpack.c.b16 %v997, %v996
        %v1010 = vpack.c.b16 %v999, %v998
        %v1011 = vpack.c.b16 %v1001, %v1000
        %v1012 = vpack.c.b16 %v1003, %v1002
        %v1013 = vpack.c.b16 %v1005, %v1004
        %1022 = vmatpush.bf16.msra.mxu0 %v1013
        %1023 = vmatpush.bf16.msra.mxu0 %v1012
        %1024 = vmatpush.bf16.msra.mxu0 %v1011
        %1025 = vmatpush.bf16.msra.mxu0 %v1010
        %1026 = vmatpush.bf16.msra.mxu0 %v1009
        %1027 = vmatpush.bf16.msra.mxu0 %v1008
        %1028 = vmatpush.bf16.msra.mxu0 %v1007
        %1029 = vmatpush.bf16.msra.mxu0 %v1006
        %1030 = vmatmul.bf16.gmra.mxu0 %v970
        %v1031 = vpop.f32.mrf.mxu0
        %v1032 = vadd.f32 %v376, %v1031
        %v1033 = vpop.f32.mrf.mxu0
        %v1034 = vadd.f32 %v381, %v1033
        %1035 = vmatmul.bf16.gmra.mxu0 %v971
        %v1036 = vpop.f32.mrf.mxu0
        %v1037 = vadd.f32 %v386, %v1036
        %v1038 = vpop.f32.mrf.mxu0
        %v1039 = vadd.f32 %v391, %v1038
        %1040 = vdwg.mxu0
        %v1041 = vpack.c.bf16 %v1032, %v1032
        %v1042 = vpack.c.bf16 %v1034, %v1034
        %v1043 = vpack.c.bf16 %v1037, %v1037
        %v1044 = vpack.c.bf16 %v1039, %v1039
        %s1045 = scalar_lea.vmem %s187, 32
        %1046 = vst.msk [vmem:[%s1045] sm:$0xf] %vm248, %v1041
        %1047 = vst.msk [vmem:[%s1045 + $0x4] sm:$0xf] %vm248, %v1042
        %1048 = vst.msk [vmem:[%s1045 + $0x8] sm:$0xf] %vm248, %v1043
        %1049 = vst.msk [vmem:[%s1045 + $0xc] sm:$0xf] %vm248, %v1044
        %v1050 = vld [vmem:[%s182] sm:$0xf]
        %v1051 = vld [vmem:[%s182 + $0x4] sm:$0xf]
        %v1052 = vld [vmem:[%s182 + $0x8] sm:$0xf]
        %v1053 = vld [vmem:[%s182 + $0xc] sm:$0xf]
        %v1054 = vld [vmem:[%s182 + $0x10] sm:$0xf]
        %v1055 = vld [vmem:[%s182 + $0x14] sm:$0xf]
        %v1056 = vld [vmem:[%s182 + $0x18] sm:$0xf]
        %v1057 = vld [vmem:[%s182 + $0x1c] sm:$0xf]
        %v1058 = vunpack.c.l.bf16 %v1050
        %v1059 = vunpack.c.l.bf16 %v1051
        %v1060 = vunpack.c.l.bf16 %v1052
        %v1061 = vunpack.c.l.bf16 %v1053
        %v1062 = vunpack.c.l.bf16 %v1054
        %v1063 = vunpack.c.l.bf16 %v1055
        %v1064 = vunpack.c.l.bf16 %v1056
        %v1065 = vunpack.c.l.bf16 %v1057
        %vm1066 = vcmp.gt.f32.partialorder %v1058, 0.0
        %vm1067 = vcmp.gt.f32.partialorder %v1059, 0.0
        %vm1068 = vcmp.gt.f32.partialorder %v1060, 0.0
        %vm1069 = vcmp.gt.f32.partialorder %v1061, 0.0
        %vm1070 = vcmp.gt.f32.partialorder %v1062, 0.0
        %vm1071 = vcmp.gt.f32.partialorder %v1063, 0.0
        %vm1072 = vcmp.gt.f32.partialorder %v1064, 0.0
        %vm1073 = vcmp.gt.f32.partialorder %v1065, 0.0
        %v1074 = vmul.f32 %v1058, 0.100097656
        %v1075 = vmul.f32 %v1059, 0.100097656
        %v1076 = vmul.f32 %v1060, 0.100097656
        %v1077 = vmul.f32 %v1061, 0.100097656
        %v1078 = vmul.f32 %v1062, 0.100097656
        %v1079 = vmul.f32 %v1063, 0.100097656
        %v1080 = vmul.f32 %v1064, 0.100097656
        %v1081 = vmul.f32 %v1065, 0.100097656
        %v1082 = vpack.c.bf16 %v1074, %v1074
        %v1083 = vpack.c.bf16 %v1075, %v1075
        %v1084 = vpack.c.bf16 %v1076, %v1076
        %v1085 = vpack.c.bf16 %v1077, %v1077
        %v1086 = vpack.c.bf16 %v1078, %v1078
        %v1087 = vpack.c.bf16 %v1079, %v1079
        %v1088 = vpack.c.bf16 %v1080, %v1080
        %v1089 = vpack.c.bf16 %v1081, %v1081
        %vm1090 = vmpackc.low %vm1066, %vm1066
        %vm1091 = vmpackc.low %vm1067, %vm1067
        %vm1092 = vmpackc.low %vm1068, %vm1068
        %vm1093 = vmpackc.low %vm1069, %vm1069
        %vm1094 = vmpackc.low %vm1070, %vm1070
        %vm1095 = vmpackc.low %vm1071, %vm1071
        %vm1096 = vmpackc.low %vm1072, %vm1072
        %vm1097 = vmpackc.low %vm1073, %vm1073
        %v1098 = vsel %vm1090, %v1050, %v1082
        %v1099 = vsel %vm1091, %v1051, %v1083
        %v1100 = vsel %vm1092, %v1052, %v1084
        %v1101 = vsel %vm1093, %v1053, %v1085
        %v1102 = vsel %vm1094, %v1054, %v1086
        %v1103 = vsel %vm1095, %v1055, %v1087
        %v1104 = vsel %vm1096, %v1056, %v1088
        %v1105 = vsel %vm1097, %v1057, %v1089
        %1114 = vrot.lane.b32.xlu0 %v1098, 127
        %v1115 = vpop.permute.xlu0 %1114
        %1116 = vrot.lane.b32.xlu0 %v1099, 127
        %v1117 = vpop.permute.xlu0 %1116
        %1118 = vrot.lane.b32.xlu0 %v1100, 127
        %v1119 = vpop.permute.xlu0 %1118
        %1120 = vrot.lane.b32.xlu0 %v1101, 127
        %v1121 = vpop.permute.xlu0 %1120
        %1122 = vrot.lane.b32.xlu0 %v1102, 127
        %v1123 = vpop.permute.xlu0 %1122
        %1124 = vrot.lane.b32.xlu0 %v1103, 127
        %v1125 = vpop.permute.xlu0 %1124
        %1126 = vrot.lane.b32.xlu0 %v1104, 127
        %v1127 = vpop.permute.xlu0 %1126
        %1128 = vrot.lane.b32.xlu0 %v1105, 127
        %v1129 = vpop.permute.xlu0 %1128
        %1138 = vst.msk [vmem:[#allocation2] sm:$0xf] %vm248, %v1115
        %1139 = vst.msk [vmem:[#allocation2 + $0x4] sm:$0xf] %vm248, %v1117
        %1140 = vst.msk [vmem:[#allocation2 + $0x8] sm:$0xf] %vm248, %v1119
        %1141 = vst.msk [vmem:[#allocation2 + $0xc] sm:$0xf] %vm248, %v1121
        %1142 = vst.msk [vmem:[#allocation2 + $0x10] sm:$0xf] %vm248, %v1123
        %1143 = vst.msk [vmem:[#allocation2 + $0x14] sm:$0xf] %vm248, %v1125
        %1144 = vst.msk [vmem:[#allocation2 + $0x18] sm:$0xf] %vm248, %v1127
        %1145 = vst.msk [vmem:[#allocation2 + $0x1c] sm:$0xf] %vm248, %v1129
        %v1146 = vld [vmem:[%s182] sm:$0xf]
        %v1147 = vld [vmem:[%s182 + $0x4] sm:$0xf]
        %v1148 = vld [vmem:[%s182 + $0x8] sm:$0xf]
        %v1149 = vld [vmem:[%s182 + $0xc] sm:$0xf]
        %v1150 = vld [vmem:[%s182 + $0x10] sm:$0xf]
        %v1151 = vld [vmem:[%s182 + $0x14] sm:$0xf]
        %v1152 = vld [vmem:[%s182 + $0x18] sm:$0xf]
        %v1153 = vld [vmem:[%s182 + $0x1c] sm:$0xf]
        %v1154 = vunpack.c.l.bf16 %v1146
        %v1155 = vunpack.c.l.bf16 %v1147
        %v1156 = vunpack.c.l.bf16 %v1148
        %v1157 = vunpack.c.l.bf16 %v1149
        %v1158 = vunpack.c.l.bf16 %v1150
        %v1159 = vunpack.c.l.bf16 %v1151
        %v1160 = vunpack.c.l.bf16 %v1152
        %v1161 = vunpack.c.l.bf16 %v1153
        %vm1162 = vcmp.gt.f32.partialorder %v1154, 0.0
        %vm1163 = vcmp.gt.f32.partialorder %v1155, 0.0
        %vm1164 = vcmp.gt.f32.partialorder %v1156, 0.0
        %vm1165 = vcmp.gt.f32.partialorder %v1157, 0.0
        %vm1166 = vcmp.gt.f32.partialorder %v1158, 0.0
        %vm1167 = vcmp.gt.f32.partialorder %v1159, 0.0
        %vm1168 = vcmp.gt.f32.partialorder %v1160, 0.0
        %vm1169 = vcmp.gt.f32.partialorder %v1161, 0.0
        %v1170 = vmul.f32 %v1154, 0.100097656
        %v1171 = vmul.f32 %v1155, 0.100097656
        %v1172 = vmul.f32 %v1156, 0.100097656
        %v1173 = vmul.f32 %v1157, 0.100097656
        %v1174 = vmul.f32 %v1158, 0.100097656
        %v1175 = vmul.f32 %v1159, 0.100097656
        %v1176 = vmul.f32 %v1160, 0.100097656
        %v1177 = vmul.f32 %v1161, 0.100097656
        %v1178 = vpack.c.bf16 %v1170, %v1170
        %v1179 = vpack.c.bf16 %v1171, %v1171
        %v1180 = vpack.c.bf16 %v1172, %v1172
        %v1181 = vpack.c.bf16 %v1173, %v1173
        %v1182 = vpack.c.bf16 %v1174, %v1174
        %v1183 = vpack.c.bf16 %v1175, %v1175
        %v1184 = vpack.c.bf16 %v1176, %v1176
        %v1185 = vpack.c.bf16 %v1177, %v1177
        %vm1186 = vmpackc.low %vm1162, %vm1162
        %vm1187 = vmpackc.low %vm1163, %vm1163
        %vm1188 = vmpackc.low %vm1164, %vm1164
        %vm1189 = vmpackc.low %vm1165, %vm1165
        %vm1190 = vmpackc.low %vm1166, %vm1166
        %vm1191 = vmpackc.low %vm1167, %vm1167
        %vm1192 = vmpackc.low %vm1168, %vm1168
        %vm1193 = vmpackc.low %vm1169, %vm1169
        %v1194 = vsel %vm1186, %v1146, %v1178
        %v1195 = vsel %vm1187, %v1147, %v1179
        %v1196 = vsel %vm1188, %v1148, %v1180
        %v1197 = vsel %vm1189, %v1149, %v1181
        %v1198 = vsel %vm1190, %v1150, %v1182
        %v1199 = vsel %vm1191, %v1151, %v1183
        %v1200 = vsel %vm1192, %v1152, %v1184
        %v1201 = vsel %vm1193, %v1153, %v1185
        %1210 = vrot.lane.b32.xlu0 %v1194, 126
        %v1211 = vpop.permute.xlu0 %1210
        %1212 = vrot.lane.b32.xlu0 %v1195, 126
        %v1213 = vpop.permute.xlu0 %1212
        %1214 = vrot.lane.b32.xlu0 %v1196, 126
        %v1215 = vpop.permute.xlu0 %1214
        %1216 = vrot.lane.b32.xlu0 %v1197, 126
        %v1217 = vpop.permute.xlu0 %1216
        %1218 = vrot.lane.b32.xlu0 %v1198, 126
        %v1219 = vpop.permute.xlu0 %1218
        %1220 = vrot.lane.b32.xlu0 %v1199, 126
        %v1221 = vpop.permute.xlu0 %1220
        %1222 = vrot.lane.b32.xlu0 %v1200, 126
        %v1223 = vpop.permute.xlu0 %1222
        %1224 = vrot.lane.b32.xlu0 %v1201, 126
        %v1225 = vpop.permute.xlu0 %1224
        %1234 = vst.msk [vmem:[#allocation2 + $0x20] sm:$0xf] %vm248, %v1211
        %1235 = vst.msk [vmem:[#allocation2 + $0x24] sm:$0xf] %vm248, %v1213
        %1236 = vst.msk [vmem:[#allocation2 + $0x28] sm:$0xf] %vm248, %v1215
        %1237 = vst.msk [vmem:[#allocation2 + $0x2c] sm:$0xf] %vm248, %v1217
        %1238 = vst.msk [vmem:[#allocation2 + $0x30] sm:$0xf] %vm248, %v1219
        %1239 = vst.msk [vmem:[#allocation2 + $0x34] sm:$0xf] %vm248, %v1221
        %1240 = vst.msk [vmem:[#allocation2 + $0x38] sm:$0xf] %vm248, %v1223
        %1241 = vst.msk [vmem:[#allocation2 + $0x3c] sm:$0xf] %vm248, %v1225
        %s1242 = scalar_lea.vmem %s1, 48
        %v1243 = vld [vmem:[%s1242] sm:$0xf]
        %v1244 = vld [vmem:[%s1242 + $0x4] sm:$0xf]
        %v1245 = vld [vmem:[%s1242 + $0x8] sm:$0xf]
        %v1246 = vld [vmem:[%s1242 + $0xc] sm:$0xf]
        %v1247 = vld [vmem:[#allocation2] sm:$0xf]
        %v1248 = vld [vmem:[#allocation2 + $0x4] sm:$0xf]
        %v1249 = vld [vmem:[#allocation2 + $0x8] sm:$0xf]
        %v1250 = vld [vmem:[#allocation2 + $0xc] sm:$0xf]
        %v1251 = vld [vmem:[#allocation2 + $0x10] sm:$0xf]
        %v1252 = vld [vmem:[#allocation2 + $0x14] sm:$0xf]
        %v1253 = vld [vmem:[#allocation2 + $0x18] sm:$0xf]
        %v1254 = vld [vmem:[#allocation2 + $0x1c] sm:$0xf]
        %v1255 = vld [vmem:[#allocation2 + $0x20] sm:$0xf]
        %v1256 = vld [vmem:[#allocation2 + $0x24] sm:$0xf]
        %v1257 = vld [vmem:[#allocation2 + $0x28] sm:$0xf]
        %v1258 = vld [vmem:[#allocation2 + $0x2c] sm:$0xf]
        %v1259 = vld [vmem:[#allocation2 + $0x30] sm:$0xf]
        %v1260 = vld [vmem:[#allocation2 + $0x34] sm:$0xf]
        %v1261 = vld [vmem:[#allocation2 + $0x38] sm:$0xf]
        %v1262 = vld [vmem:[#allocation2 + $0x3c] sm:$0xf]
        %v1267 = vunpack.c.l.b16 %v1243
        %v1268 = vunpack.c.l.b16 %v1244
        %v1269 = vunpack.c.l.b16 %v1245
        %v1270 = vunpack.c.l.b16 %v1246
        %v1271 = vpack.c.b16 %v1268, %v1267
        %v1272 = vpack.c.b16 %v1270, %v1269
        %v1291 = vunpack.c.l.b16 %v1247
        %v1292 = vunpack.c.l.b16 %v1248
        %v1293 = vunpack.c.l.b16 %v1249
        %v1294 = vunpack.c.l.b16 %v1250
        %v1295 = vunpack.c.l.b16 %v1251
        %v1296 = vunpack.c.l.b16 %v1252
        %v1297 = vunpack.c.l.b16 %v1253
        %v1298 = vunpack.c.l.b16 %v1254
        %v1299 = vunpack.c.l.b16 %v1255
        %v1300 = vunpack.c.l.b16 %v1256
        %v1301 = vunpack.c.l.b16 %v1257
        %v1302 = vunpack.c.l.b16 %v1258
        %v1303 = vunpack.c.l.b16 %v1259
        %v1304 = vunpack.c.l.b16 %v1260
        %v1305 = vunpack.c.l.b16 %v1261
        %v1306 = vunpack.c.l.b16 %v1262
        %v1307 = vpack.c.b16 %v1292, %v1291
        %v1308 = vpack.c.b16 %v1294, %v1293
        %v1309 = vpack.c.b16 %v1296, %v1295
        %v1310 = vpack.c.b16 %v1298, %v1297
        %v1311 = vpack.c.b16 %v1300, %v1299
        %v1312 = vpack.c.b16 %v1302, %v1301
        %v1313 = vpack.c.b16 %v1304, %v1303
        %v1314 = vpack.c.b16 %v1306, %v1305
        %1323 = vmatpush.bf16.msra.mxu0 %v1314
        %1324 = vmatpush.bf16.msra.mxu0 %v1313
        %1325 = vmatpush.bf16.msra.mxu0 %v1312
        %1326 = vmatpush.bf16.msra.mxu0 %v1311
        %1327 = vmatpush.bf16.msra.mxu0 %v1310
        %1328 = vmatpush.bf16.msra.mxu0 %v1309
        %1329 = vmatpush.bf16.msra.mxu0 %v1308
        %1330 = vmatpush.bf16.msra.mxu0 %v1307
        %1331 = vmatmul.bf16.gmra.mxu0 %v1271
        %v1332 = vpop.f32.mrf.mxu0
        %v1333 = vadd.f32 %v376, %v1332
        %v1334 = vpop.f32.mrf.mxu0
        %v1335 = vadd.f32 %v381, %v1334
        %1336 = vmatmul.bf16.gmra.mxu0 %v1272
        %v1337 = vpop.f32.mrf.mxu0
        %v1338 = vadd.f32 %v386, %v1337
        %v1339 = vpop.f32.mrf.mxu0
        %v1340 = vadd.f32 %v391, %v1339
        %1341 = vdwg.mxu0
        %v1342 = vpack.c.bf16 %v1333, %v1333
        %v1343 = vpack.c.bf16 %v1335, %v1335
        %v1344 = vpack.c.bf16 %v1338, %v1338
        %v1345 = vpack.c.bf16 %v1340, %v1340
        %s1346 = scalar_lea.vmem %s187, 48
        %1347 = vst.msk [vmem:[%s1346] sm:$0xf] %vm248, %v1342
        %1348 = vst.msk [vmem:[%s1346 + $0x4] sm:$0xf] %vm248, %v1343
        %1349 = vst.msk [vmem:[%s1346 + $0x8] sm:$0xf] %vm248, %v1344
        %1350 = vst.msk [vmem:[%s1346 + $0xc] sm:$0xf] %vm248, %v1345
        %p1351 = scmp.lt.s32.totalorder %s15, 1
        %s1352 = scalar_select %p1351, %s15, 1
        %s1353 = smul.addr %s1352, 16
        %s1354 = smul.addr %s1353, 4
        %s1355 = scalar_lea.vmem %s3, %s1354
        // Predicated region
        $region37: #{a_call__.6} parent=31 // pred_check
          %p1356 = pneg %p101
        $region38: #{a_call__.6} parent=31 // pred_check_branch
          %1358 = sbr.rel (%p1356) target = $region40
        $region39: #{a_call__.6} parent=31 // pred_region
          _
        $region40: #{a_call__.6} parent=31 // pred_fallthru
          _
      $region32: #{a_call__.6} parent=5 // pred_fallthru
        _
      %p1359 = scmp.le.s32.totalorder 2, %s10
      // Predicated region
      $region41: #{a_call__.6} parent=5 // pred_check
        %p1360 = pneg %p1359
      $region42: #{a_call__.6} parent=5 // pred_check_branch
        %1362 = sbr.rel (%p1360) target = $region44
      $region43: #{a_call__.6} parent=5 // pred_region
        %s1363 = ssub.s32 %s10, 2
        // Predicated region
        $region45: #{a_call__.6} parent=43 // pred_check
          %p1364 = pneg %p107
        $region46: #{a_call__.6} parent=43 // pred_check_branch
          %1366 = sbr.rel (%p1364) target = $region48
        $region47: #{a_call__.6} parent=43 // pred_region
          %p1367 = scmp.lt.s32.totalorder %s16, 1
          %s1368 = scalar_select %p1367, %s16, 1
          %s1369 = smul.addr %s1368, 16
          %s1370 = smul.addr %s1369, 4
          %s1371 = scalar_lea.vmem %s3, %s1370
        $region48: #{a_call__.6} parent=43 // pred_fallthru
          _
      $region44: #{a_call__.6} parent=5 // pred_fallthru
        _
    $region6: #{a_call__.6} parent=1 // loop_footer
      %s14 = sadd.s32 1, %s10
    $region7: #{a_call__.6} parent=1 // loop_footer_branch
      %9 = sbr.rel target = $region3
    $region8: #{a_call__.6} parent=1 // loop_exit
      _
    %1372 = vsyncpa [#allocation4], 1
    %s1373 = scalar_lea.sflag [#allocation4], 1
    %1374 = vsyncpa %s1373, 1

// kernel: a_call__.9
$region0: #{a_call__.9}
  #allocation0 [shape = 'u32[]', space=smem, size = 0x4, offset = 0x4, fixed_abs, tag = 'smem constant byte address 0x4 - core index']
  #allocation1 [shape = 'u32[72,128]{1,0:T(1,128)}', space=vmem, size = 0x9000, scoped, tag = 'internal scratch']
  #allocation2 [shape = 'bf16[16,134]{1,0:T(8,128)(2,1)}', space=vmem, size = 0x2000, scoped, tag = 'scratch operand']
  #allocation3 [shape = 'bf16[48,128]{1,0:T(8,128)(2,1)}', space=vmem, size = 0x3000, scoped, tag = 'scratch operand']
  #allocation4 [shape = 'f32[1,1]{1,0:T(1,128)S(1)}', space=vmem, size = 0x200, scoped, tag = 'scoped memory for a_call__.9']
  %s0 = inlined_call_operand.vmem [shape: bf16[2,16,134], index: 0, kind: input, shape index: {}]
  %s1 = inlined_call_operand.vmem [shape: bf16[16,48], index: 1, kind: input, shape index: {}]
  %s2 = inlined_call_operand.vmem [shape: f32[16,1], index: 2, kind: input, shape index: {}]
  %s3 = inlined_call_operand.vmem [shape: bf16[16,48], index: 3, kind: input, shape index: {}]
  %s4 = inlined_call_operand.vmem [shape: f32[16,1], index: 4, kind: input, shape index: {}]
  %s5 = inlined_call_operand.vmem [shape: bf16[16,48], index: 5, kind: input, shape index: {}]
  %s6 = inlined_call_operand.vmem [shape: f32[16,1], index: 6, kind: input, shape index: {}]
  %s7 = inlined_call_operand.vmem [shape: bf16[16,48], index: 7, kind: input, shape index: {}]
  %s8 = inlined_call_operand.vmem [shape: f32[16,1], index: 8, kind: input, shape index: {}]
  %s9 = inlined_call_operand.vmem [shape: f32[16,7], index: 9, kind: input, shape index: {}]
  %s10 = inlined_call_operand.<no memory space> [shape: f32[1,1], index: 10, kind: input, shape index: {}]
  %s11 = inlined_call_operand.hbm [shape: f32[2,1,128], index: 11, kind: output, shape index: {}]
  %s12 = sld [smem:[#allocation0]]
  $region77: #{a_call__.9} parent=0
    _
  %s14 = ssub.s32 1, %s12
  %s15 = scalar_select 0, %s14, %s12
  %v16 = vstv %s10
  %17 = vst [vmem:[#allocation4] sm:$0x1] %v16
  $region1: #{a_call__.9} parent=0
    #allocation5 [shape = 'u8[1024]{0}', space=vmem, size = 0x400, scoped, tag = 'output window, operand 0']
    #allocation6 [shape = 's32[2]{0}', space=sflag, size = 0x8, scoped, tag = 'scoped memory for a_call__.9']
    %18 = vsyncpa [#allocation6], 0
    %s19 = scalar_lea.sflag [#allocation6], 1
    %20 = vsyncpa %s19, 0
    loop: start=0, step=1, limit=4
    $region2: #{a_call__.9} parent=1 // loop_pre_header
      _
    $region3: #{a_call__.9} parent=1 // loop_header
      %s22 = sphi 0, %s26
      %p23 = scmp.ge.s32.totalorder %s22, 4
      %s32 = sphi 0, %s34
      %s35 = sphi 0, %s32
      %s36 = sphi 0, %s35
      %s52 = sphi 0, %s36
      %s56 = sphi 0, %s56
      %s58 = sphi 0, %s56
      %s59 = sphi 0, %s58
      %s73 = sphi 0, %s59
      %s77 = sphi 0, %s77
      %s79 = sphi 0, %s77
      %s80 = sphi 0, %s79
      %s94 = sphi 0, %s80
      %s98 = sphi 0, %s98
      %s100 = sphi 0, %s98
      %s101 = sphi 0, %s100
      %s115 = sphi 0, %s101
      %s119 = sphi 0, %s119
      %s121 = sphi 0, %s119
      %s122 = sphi 0, %s121
      %s136 = sphi 0, %s122
      %s140 = sphi 0, %s140
      %s142 = sphi 0, %s140
      %s143 = sphi 0, %s142
      %s157 = sphi 0, %s143
      %s161 = sphi 0, %s161
      %s163 = sphi 0, %s161
      %s164 = sphi 0, %s163
      %s178 = sphi 0, %s164
      %s182 = sphi 0, %s182
      %s184 = sphi 0, %s182
      %s185 = sphi 0, %s184
      %s199 = sphi 0, %s185
      %s203 = sphi 0, %s203
      %s205 = sphi 0, %s203
      %s206 = sphi 0, %s205
      %s220 = sphi 0, %s206
      %s224 = sphi 0, %s224
      %s226 = sphi 0, %s224
      %s227 = sphi 0, %s226
      %s241 = sphi 0, %s227
      %s245 = sphi 0, %s245
      %s247 = sphi 0, %s245
      %s248 = sphi 0, %s247
      %s262 = sphi 0, %s248
      %s268 = sphi 0, %s270
      %s271 = sphi 0, %s268
      %s272 = sphi 0, %s271
      %s288 = sphi 0, %s272
    $region4: #{a_call__.9} parent=1 // loop_header_branch
      %25 = sbr.rel (%p23) target = $region8
    $region5: #{a_call__.9} parent=1 // loop_body
      %s27 = ssub.s32 %s22, 1
      %s28 = ssub.s32 %s22, 2
      %s29 = sadd.s32 %s22, 1
      %s30 = ssub.s32 %s22, %s29
      %p31 = scmp.eq.s32.totalorder %s30, 0
      %s33 = sadd.s32 %s32, 1
      %s34 = scalar_select %p31, %s32, %s33
      %p37 = pneg %p31
      %p38 = scmp.eq.s32.totalorder %s22, 1
      %p39 = por %p37, %p38
      %p40 = scmp.ne.s32.totalorder %s32, %s35
      %p41 = scmp.eq.s32.totalorder %s22, 0
      %p42 = por %p40, %p41
      %p43 = scmp.ne.s32.totalorder %s32, %s35
      %p44 = scmp.eq.s32.totalorder %s27, 1
      %p45 = por %p43, %p44
      %p46 = scmp.ne.s32.totalorder %s35, %s36
      %p47 = scmp.eq.s32.totalorder %s27, 0
      %p48 = por %p46, %p47
      %p49 = scmp.ne.s32.totalorder %s35, %s36
      %p50 = scmp.eq.s32.totalorder %s28, 1
      %p51 = por %p49, %p50
      %p53 = scmp.ne.s32.totalorder %s36, %s52
      %p54 = scmp.eq.s32.totalorder %s28, 0
      %p55 = por %p53, %p54
      %s57 = sadd.s32 %s56, 1
      %p60 = scmp.eq.s32.totalorder %s22, 1
      %p61 = scmp.ne.s32.totalorder %s56, %s58
      %p62 = scmp.eq.s32.totalorder %s22, 0
      %p63 = por %p61, %p62
      %p64 = scmp.ne.s32.totalorder %s56, %s58
      %p65 = scmp.eq.s32.totalorder %s27, 1
      %p66 = por %p64, %p65
      %p67 = scmp.ne.s32.totalorder %s58, %s59
      %p68 = scmp.eq.s32.totalorder %s27, 0
      %p69 = por %p67, %p68
      %p70 = scmp.ne.s32.totalorder %s58, %s59
      %p71 = scmp.eq.s32.totalorder %s28, 1
      %p72 = por %p70, %p71
      %p74 = scmp.ne.s32.totalorder %s59, %s73
      %p75 = scmp.eq.s32.totalorder %s28, 0
      %p76 = por %p74, %p75
      %s78 = sadd.s32 %s77, 1
      %p81 = scmp.eq.s32.totalorder %s22, 1
      %p82 = scmp.ne.s32.totalorder %s77, %s79
      %p83 = scmp.eq.s32.totalorder %s22, 0
      %p84 = por %p82, %p83
      %p85 = scmp.ne.s32.totalorder %s77, %s79
      %p86 = scmp.eq.s32.totalorder %s27, 1
      %p87 = por %p85, %p86
      %p88 = scmp.ne.s32.totalorder %s79, %s80
      %p89 = scmp.eq.s32.totalorder %s27, 0
      %p90 = por %p88, %p89
      %p91 = scmp.ne.s32.totalorder %s79, %s80
      %p92 = scmp.eq.s32.totalorder %s28, 1
      %p93 = por %p91, %p92
      %p95 = scmp.ne.s32.totalorder %s80, %s94
      %p96 = scmp.eq.s32.totalorder %s28, 0
      %p97 = por %p95, %p96
      %s99 = sadd.s32 %s98, 1
      %p102 = scmp.eq.s32.totalorder %s22, 1
      %p103 = scmp.ne.s32.totalorder %s98, %s100
      %p104 = scmp.eq.s32.totalorder %s22, 0
      %p105 = por %p103, %p104
      %p106 = scmp.ne.s32.totalorder %s98, %s100
      %p107 = scmp.eq.s32.totalorder %s27, 1
      %p108 = por %p106, %p107
      %p109 = scmp.ne.s32.totalorder %s100, %s101
      %p110 = scmp.eq.s32.totalorder %s27, 0
      %p111 = por %p109, %p110
      %p112 = scmp.ne.s32.totalorder %s100, %s101
      %p113 = scmp.eq.s32.totalorder %s28, 1
      %p114 = por %p112, %p113
      %p116 = scmp.ne.s32.totalorder %s101, %s115
      %p117 = scmp.eq.s32.totalorder %s28, 0
      %p118 = por %p116, %p117
      %s120 = sadd.s32 %s119, 1
      %p123 = scmp.eq.s32.totalorder %s22, 1
      %p124 = scmp.ne.s32.totalorder %s119, %s121
      %p125 = scmp.eq.s32.totalorder %s22, 0
      %p126 = por %p124, %p125
      %p127 = scmp.ne.s32.totalorder %s119, %s121
      %p128 = scmp.eq.s32.totalorder %s27, 1
      %p129 = por %p127, %p128
      %p130 = scmp.ne.s32.totalorder %s121, %s122
      %p131 = scmp.eq.s32.totalorder %s27, 0
      %p132 = por %p130, %p131
      %p133 = scmp.ne.s32.totalorder %s121, %s122
      %p134 = scmp.eq.s32.totalorder %s28, 1
      %p135 = por %p133, %p134
      %p137 = scmp.ne.s32.totalorder %s122, %s136
      %p138 = scmp.eq.s32.totalorder %s28, 0
      %p139 = por %p137, %p138
      %s141 = sadd.s32 %s140, 1
      %p144 = scmp.eq.s32.totalorder %s22, 1
      %p145 = scmp.ne.s32.totalorder %s140, %s142
      %p146 = scmp.eq.s32.totalorder %s22, 0
      %p147 = por %p145, %p146
      %p148 = scmp.ne.s32.totalorder %s140, %s142
      %p149 = scmp.eq.s32.totalorder %s27, 1
      %p150 = por %p148, %p149
      %p151 = scmp.ne.s32.totalorder %s142, %s143
      %p152 = scmp.eq.s32.totalorder %s27, 0
      %p153 = por %p151, %p152
      %p154 = scmp.ne.s32.totalorder %s142, %s143
      %p155 = scmp.eq.s32.totalorder %s28, 1
      %p156 = por %p154, %p155
      %p158 = scmp.ne.s32.totalorder %s143, %s157
      %p159 = scmp.eq.s32.totalorder %s28, 0
      %p160 = por %p158, %p159
      %s162 = sadd.s32 %s161, 1
      %p165 = scmp.eq.s32.totalorder %s22, 1
      %p166 = scmp.ne.s32.totalorder %s161, %s163
      %p167 = scmp.eq.s32.totalorder %s22, 0
      %p168 = por %p166, %p167
      %p169 = scmp.ne.s32.totalorder %s161, %s163
      %p170 = scmp.eq.s32.totalorder %s27, 1
      %p171 = por %p169, %p170
      %p172 = scmp.ne.s32.totalorder %s163, %s164
      %p173 = scmp.eq.s32.totalorder %s27, 0
      %p174 = por %p172, %p173
      %p175 = scmp.ne.s32.totalorder %s163, %s164
      %p176 = scmp.eq.s32.totalorder %s28, 1
      %p177 = por %p175, %p176
      %p179 = scmp.ne.s32.totalorder %s164, %s178
      %p180 = scmp.eq.s32.totalorder %s28, 0
      %p181 = por %p179, %p180
      %s183 = sadd.s32 %s182, 1
      %p186 = scmp.eq.s32.totalorder %s22, 1
      %p187 = scmp.ne.s32.totalorder %s182, %s184
      %p188 = scmp.eq.s32.totalorder %s22, 0
      %p189 = por %p187, %p188
      %p190 = scmp.ne.s32.totalorder %s182, %s184
      %p191 = scmp.eq.s32.totalorder %s27, 1
      %p192 = por %p190, %p191
      %p193 = scmp.ne.s32.totalorder %s184, %s185
      %p194 = scmp.eq.s32.totalorder %s27, 0
      %p195 = por %p193, %p194
      %p196 = scmp.ne.s32.totalorder %s184, %s185
      %p197 = scmp.eq.s32.totalorder %s28, 1
      %p198 = por %p196, %p197
      %p200 = scmp.ne.s32.totalorder %s185, %s199
      %p201 = scmp.eq.s32.totalorder %s28, 0
      %p202 = por %p200, %p201
      %s204 = sadd.s32 %s203, 1
      %p207 = scmp.eq.s32.totalorder %s22, 1
      %p208 = scmp.ne.s32.totalorder %s203, %s205
      %p209 = scmp.eq.s32.totalorder %s22, 0
      %p210 = por %p208, %p209
      %p211 = scmp.ne.s32.totalorder %s203, %s205
      %p212 = scmp.eq.s32.totalorder %s27, 1
      %p213 = por %p211, %p212
      %p214 = scmp.ne.s32.totalorder %s205, %s206
      %p215 = scmp.eq.s32.totalorder %s27, 0
      %p216 = por %p214, %p215
      %p217 = scmp.ne.s32.totalorder %s205, %s206
      %p218 = scmp.eq.s32.totalorder %s28, 1
      %p219 = por %p217, %p218
      %p221 = scmp.ne.s32.totalorder %s206, %s220
      %p222 = scmp.eq.s32.totalorder %s28, 0
      %p223 = por %p221, %p222
      %s225 = sadd.s32 %s224, 1
      %p228 = scmp.eq.s32.totalorder %s22, 1
      %p229 = scmp.ne.s32.totalorder %s224, %s226
      %p230 = scmp.eq.s32.totalorder %s22, 0
      %p231 = por %p229, %p230
      %p232 = scmp.ne.s32.totalorder %s224, %s226
      %p233 = scmp.eq.s32.totalorder %s27, 1
      %p234 = por %p232, %p233
      %p235 = scmp.ne.s32.totalorder %s226, %s227
      %p236 = scmp.eq.s32.totalorder %s27, 0
      %p237 = por %p235, %p236
      %p238 = scmp.ne.s32.totalorder %s226, %s227
      %p239 = scmp.eq.s32.totalorder %s28, 1
      %p240 = por %p238, %p239
      %p242 = scmp.ne.s32.totalorder %s227, %s241
      %p243 = scmp.eq.s32.totalorder %s28, 0
      %p244 = por %p242, %p243
      %s246 = sadd.s32 %s245, 1
      %p249 = scmp.eq.s32.totalorder %s22, 1
      %p250 = scmp.ne.s32.totalorder %s245, %s247
      %p251 = scmp.eq.s32.totalorder %s22, 0
      %p252 = por %p250, %p251
      %p253 = scmp.ne.s32.totalorder %s245, %s247
      %p254 = scmp.eq.s32.totalorder %s27, 1
      %p255 = por %p253, %p254
      %p256 = scmp.ne.s32.totalorder %s247, %s248
      %p257 = scmp.eq.s32.totalorder %s27, 0
      %p258 = por %p256, %p257
      %p259 = scmp.ne.s32.totalorder %s247, %s248
      %p260 = scmp.eq.s32.totalorder %s28, 1
      %p261 = por %p259, %p260
      %p263 = scmp.ne.s32.totalorder %s248, %s262
      %p264 = scmp.eq.s32.totalorder %s28, 0
      %p265 = por %p263, %p264
      %s266 = ssub.s32 %s22, %s29
      %p267 = scmp.eq.s32.totalorder %s266, 0
      %s269 = sadd.s32 %s268, 1
      %s270 = scalar_select %p267, %s268, %s269
      %p273 = pneg %p267
      %p274 = scmp.eq.s32.totalorder %s22, 1
      %p275 = por %p273, %p274
      %p276 = scmp.ne.s32.totalorder %s268, %s271
      %p277 = scmp.eq.s32.totalorder %s22, 0
      %p278 = por %p276, %p277
      %p279 = scmp.ne.s32.totalorder %s268, %s271
      %p280 = scmp.eq.s32.totalorder %s27, 1
      %p281 = por %p279, %p280
      %p282 = scmp.ne.s32.totalorder %s271, %s272
      %p283 = scmp.eq.s32.totalorder %s27, 0
      %p284 = por %p282, %p283
      %p285 = scmp.ne.s32.totalorder %s271, %s272
      %p286 = scmp.eq.s32.totalorder %s28, 1
      %p287 = por %p285, %p286
      %p289 = scmp.ne.s32.totalorder %s272, %s288
      %p290 = scmp.eq.s32.totalorder %s28, 0
      %p291 = por %p289, %p290
      %p292 = scmp.le.s32.totalorder 1, %s22
      %p293 = scmp.lt.s32.totalorder %s22, 3
      %p294 = pnand %p292, %p293
      %p295 = pneg %p294
      // Predicated region
      $region9: #{a_call__.9} parent=5 // pred_check
        _
      $region10: #{a_call__.9} parent=5 // pred_check_branch
        %297 = sbr.rel (%p294) target = $region12
      $region11: #{a_call__.9} parent=5 // pred_region
        %s298 = ssub.s32 %s22, 1
        // Predicated region
        $region13: #{a_call__.9} parent=11 // pred_check
          %p299 = pneg %p69
        $region14: #{a_call__.9} parent=11 // pred_check_branch
          %301 = sbr.rel (%p299) target = $region16
        $region15: #{a_call__.9} parent=11 // pred_region
          _
        $region16: #{a_call__.9} parent=11 // pred_fallthru
          _
        // Predicated region
        $region17: #{a_call__.9} parent=11 // pred_check
          %p302 = pneg %p90
        $region18: #{a_call__.9} parent=11 // pred_check_branch
          %304 = sbr.rel (%p302) target = $region20
        $region19: #{a_call__.9} parent=11 // pred_region
          _
        $region20: #{a_call__.9} parent=11 // pred_fallthru
          _
        // Predicated region
        $region21: #{a_call__.9} parent=11 // pred_check
          %p305 = pneg %p111
        $region22: #{a_call__.9} parent=11 // pred_check_branch
          %307 = sbr.rel (%p305) target = $region24
        $region23: #{a_call__.9} parent=11 // pred_region
          _
        $region24: #{a_call__.9} parent=11 // pred_fallthru
          _
        // Predicated region
        $region25: #{a_call__.9} parent=11 // pred_check
          %p308 = pneg %p132
        $region26: #{a_call__.9} parent=11 // pred_check_branch
          %310 = sbr.rel (%p308) target = $region28
        $region27: #{a_call__.9} parent=11 // pred_region
          _
        $region28: #{a_call__.9} parent=11 // pred_fallthru
          _
        // Predicated region
        $region29: #{a_call__.9} parent=11 // pred_check
          %p311 = pneg %p153
        $region30: #{a_call__.9} parent=11 // pred_check_branch
          %313 = sbr.rel (%p311) target = $region32
        $region31: #{a_call__.9} parent=11 // pred_region
          _
        $region32: #{a_call__.9} parent=11 // pred_fallthru
          _
        // Predicated region
        $region33: #{a_call__.9} parent=11 // pred_check
          %p314 = pneg %p174
        $region34: #{a_call__.9} parent=11 // pred_check_branch
          %316 = sbr.rel (%p314) target = $region36
        $region35: #{a_call__.9} parent=11 // pred_region
          _
        $region36: #{a_call__.9} parent=11 // pred_fallthru
          _
        // Predicated region
        $region37: #{a_call__.9} parent=11 // pred_check
          %p317 = pneg %p195
        $region38: #{a_call__.9} parent=11 // pred_check_branch
          %319 = sbr.rel (%p317) target = $region40
        $region39: #{a_call__.9} parent=11 // pred_region
          _
        $region40: #{a_call__.9} parent=11 // pred_fallthru
          _
        // Predicated region
        $region41: #{a_call__.9} parent=11 // pred_check
          %p320 = pneg %p216
        $region42: #{a_call__.9} parent=11 // pred_check_branch
          %322 = sbr.rel (%p320) target = $region44
        $region43: #{a_call__.9} parent=11 // pred_region
          _
        $region44: #{a_call__.9} parent=11 // pred_fallthru
          _
        // Predicated region
        $region45: #{a_call__.9} parent=11 // pred_check
          %p323 = pneg %p237
        $region46: #{a_call__.9} parent=11 // pred_check_branch
          %325 = sbr.rel (%p323) target = $region48
        $region47: #{a_call__.9} parent=11 // pred_region
          _
        $region48: #{a_call__.9} parent=11 // pred_fallthru
          _
        // Predicated region
        $region49: #{a_call__.9} parent=11 // pred_check
          %p326 = pneg %p258
        $region50: #{a_call__.9} parent=11 // pred_check_branch
          %328 = sbr.rel (%p326) target = $region52
        $region51: #{a_call__.9} parent=11 // pred_region
          _
        $region52: #{a_call__.9} parent=11 // pred_fallthru
          _
      $region12: #{a_call__.9} parent=5 // pred_fallthru
        _
      %p329 = scmp.lt.s32.totalorder %s22, 2
      // Predicated region
      $region53: #{a_call__.9} parent=5 // pred_check
        %p330 = pneg %p329
      $region54: #{a_call__.9} parent=5 // pred_check_branch
        %332 = sbr.rel (%p330) target = $region56
      $region55: #{a_call__.9} parent=5 // pred_region
        // Predicated region
        $region57: #{a_call__.9} parent=55 // pred_check
          %p333 = pneg %p42
        $region58: #{a_call__.9} parent=55 // pred_check_branch
          %335 = sbr.rel (%p333) target = $region60
        $region59: #{a_call__.9} parent=55 // pred_region
          %p336 = scmp.lt.s32.totalorder %s22, 1
          %s337 = scalar_select %p336, %s22, 1
          %s338 = smul.addr %s337, 4
          %s339 = smul.addr %s338, 4
          %s340 = scalar_lea.vmem %s0, %s339
        $region60: #{a_call__.9} parent=55 // pred_fallthru
          _
      $region56: #{a_call__.9} parent=5 // pred_fallthru
        _
      %p341 = scmp.le.s32.totalorder 1, %s22
      %p342 = scmp.lt.s32.totalorder %s22, 3
      %p343 = pnand %p341, %p342
      %p344 = pneg %p343
      // Predicated region
      $region61: #{a_call__.9} parent=5 // pred_check
        _
      $region62: #{a_call__.9} parent=5 // pred_check_branch
        %346 = sbr.rel (%p343) target = $region64
      $region63: #{a_call__.9} parent=5 // pred_region
        %s347 = ssub.s32 %s22, 1
        %p348 = scmp.lt.s32.totalorder %s27, 1
        %s349 = scalar_select %p348, %s27, 1
        %s350 = smul.addr %s349, 4
        %s351 = smul.addr %s350, 4
        %s352 = scalar_lea.vmem %s0, %s351
        %p353 = pneg %p48
        %p354 = pneg %p45
        %p355 = pneg %p69
        %p356 = pneg %p66
        %p357 = pneg %p90
        %p358 = pneg %p87
        %p359 = pneg %p111
        %p360 = pneg %p108
        %p361 = pneg %p132
        %p362 = pneg %p129
        %p363 = pneg %p153
        %p364 = pneg %p150
        %p365 = pneg %p174
        %p366 = pneg %p171
        %p367 = pneg %p195
        %p368 = pneg %p192
        %p369 = pneg %p216
        %p370 = pneg %p213
        %p371 = pneg %p237
        %p372 = pneg %p234
        %p373 = pneg %p258
        %p374 = pneg %p255
        %p375 = pneg %p284
        %p376 = pneg %p281
        %s377 = sand.u32 %s271, 1
        %s378 = scalar_lea.sflag [#allocation6], %s377
        %s379 = sand.u32 %s271, 1
        %s380 = scalar_lea.vmem [#allocation5], %s379
        %p381 = scmp.lt.s32.totalorder %s27, 1
        %s382 = scalar_select %p381, %s27, 1
        %s383 = smul.addr %s382, 4
        %s384 = smul.addr %s383, 4
        %s385 = scalar_lea.vmem %s0, %s384
        %vm387 = vcmask 19456
        %388 = vst.msk [vmem:[#allocation2] sm:$0xf] %vm387, 0
        %389 = vst.msk [vmem:[#allocation2 + $0x8] sm:$0xf] %vm387, 0
        %vm390 = vcmask 44056
        %391 = vst.msk [vmem:[#allocation2 + $0x4] sm:$0xf] %vm390, 0
        %392 = vst.msk [vmem:[#allocation2 + $0xc] sm:$0xf] %vm390, 0
        %v393 = vld [vmem:[%s385] sm:$0xff]
        %v394 = vld [vmem:[%s385 + $0x8] sm:$0xff]
        %v395 = vunpack.c.l.bf16 %v393
        %v396 = vunpack.c.h.bf16 %v393
        %v397 = vunpack.c.l.bf16 %v394
        %v398 = vunpack.c.h.bf16 %v394
        %vm399 = vcmp.gt.f32.partialorder %v395, 0.0
        %vm400 = vcmp.gt.f32.partialorder %v396, 0.0
        %vm401 = vcmp.gt.f32.partialorder %v397, 0.0
        %vm402 = vcmp.gt.f32.partialorder %v398, 0.0
        %v403 = vmul.f32 %v395, 0.100097656
        %v404 = vmul.f32 %v396, 0.100097656
        %v405 = vmul.f32 %v397, 0.100097656
        %v406 = vmul.f32 %v398, 0.100097656
        %v407 = vpack.c.bf16 %v404, %v403
        %v408 = vpack.c.bf16 %v406, %v405
        %vm409 = vmpackc.low %vm400, %vm399
        %vm410 = vmpackc.low %vm402, %vm401
        %v411 = vsel %vm409, %v393, %v407
        %v412 = vsel %vm410, %v394, %v408
        %415 = vrot.lane.b32.xlu0 %v411, 126
        %v416 = vpop.permute.xlu0 %415
        %417 = vrot.lane.b32.xlu0 %v412, 126
        %v418 = vpop.permute.xlu0 %417
        %v419 = vrot.slane %v416, 4
        %v420 = vrot.slane %v418, 4
        %vm421 = vcmask 1031168
        %v422 = vsel %vm421, %v416, %v419
        %v423 = vsel %vm421, %v418, %v420
        %426 = vst [vmem:[#allocation3] sm:$0xf] %v422
        %427 = vst [vmem:[#allocation3 + $0x4] sm:$0xf] %v423
        %v428 = vld [vmem:[%s385] sm:$0xff]
        %v429 = vld [vmem:[%s385 + $0x8] sm:$0xff]
        %v430 = vunpack.c.l.bf16 %v428
        %v431 = vunpack.c.h.bf16 %v428
        %v432 = vunpack.c.l.bf16 %v429
        %v433 = vunpack.c.h.bf16 %v429
        %vm434 = vcmp.gt.f32.partialorder %v430, 0.0
        %vm435 = vcmp.gt.f32.partialorder %v431, 0.0
        %vm436 = vcmp.gt.f32.partialorder %v432, 0.0
        %vm437 = vcmp.gt.f32.partialorder %v433, 0.0
        %v438 = vmul.f32 %v430, 0.100097656
        %v439 = vmul.f32 %v431, 0.100097656
        %v440 = vmul.f32 %v432, 0.100097656
        %v441 = vmul.f32 %v433, 0.100097656
        %v442 = vpack.c.bf16 %v439, %v438
        %v443 = vpack.c.bf16 %v441, %v440
        %vm444 = vmpackc.low %vm435, %vm434
        %vm445 = vmpackc.low %vm437, %vm436
        %v446 = vsel %vm444, %v428, %v442
        %v447 = vsel %vm445, %v429, %v443
        %450 = vrot.lane.b32.xlu0 %v446, 125
        %v451 = vpop.permute.xlu0 %450
        %452 = vrot.lane.b32.xlu0 %v447, 125
        %v453 = vpop.permute.xlu0 %452
        %v454 = vrot.slane %v451, 4
        %v455 = vrot.slane %v453, 4
        %vm456 = vcmask 1022976
        %v457 = vsel %vm456, %v451, %v454
        %v458 = vsel %vm456, %v453, %v455
        %461 = vst [vmem:[#allocation3 + $0x8] sm:$0xf] %v457
        %462 = vst [vmem:[#allocation3 + $0xc] sm:$0xf] %v458
        %v463 = vld [vmem:[%s385] sm:$0xff]
        %v464 = vld [vmem:[%s385 + $0x8] sm:$0xff]
        %v465 = vunpack.c.l.bf16 %v463
        %v466 = vunpack.c.h.bf16 %v463
        %v467 = vunpack.c.l.bf16 %v464
        %v468 = vunpack.c.h.bf16 %v464
        %vm469 = vcmp.gt.f32.partialorder %v465, 0.0
        %vm470 = vcmp.gt.f32.partialorder %v466, 0.0
        %vm471 = vcmp.gt.f32.partialorder %v467, 0.0
        %vm472 = vcmp.gt.f32.partialorder %v468, 0.0
        %v473 = vmul.f32 %v465, 0.100097656
        %v474 = vmul.f32 %v466, 0.100097656
        %v475 = vmul.f32 %v467, 0.100097656
        %v476 = vmul.f32 %v468, 0.100097656
        %v477 = vpack.c.bf16 %v474, %v473
        %v478 = vpack.c.bf16 %v476, %v475
        %vm479 = vmpackc.low %vm470, %vm469
        %vm480 = vmpackc.low %vm472, %vm471
        %v481 = vsel %vm479, %v463, %v477
        %v482 = vsel %vm480, %v464, %v478
        %485 = vrot.lane.b32.xlu0 %v481, 124
        %v486 = vpop.permute.xlu0 %485
        %487 = vrot.lane.b32.xlu0 %v482, 124
        %v488 = vpop.permute.xlu0 %487
        %v489 = vrot.slane %v486, 4
        %v490 = vrot.slane %v488, 4
        %vm491 = vcmask 1014784
        %v492 = vsel %vm491, %v486, %v489
        %v493 = vsel %vm491, %v488, %v490
        %496 = vst [vmem:[#allocation3 + $0x10] sm:$0xf] %v492
        %497 = vst [vmem:[#allocation3 + $0x14] sm:$0xf] %v493
        %v498 = vld [vmem:[%s1] sm:$0xf]
        %v499 = vld [vmem:[%s1 + $0x4] sm:$0xf]
        %v500 = vld [vmem:[#allocation3] sm:$0xf]
        %v501 = vld [vmem:[#allocation3 + $0x4] sm:$0xf]
        %v502 = vld [vmem:[#allocation3 + $0x8] sm:$0xf]
        %v503 = vld [vmem:[#allocation3 + $0xc] sm:$0xf]
        %v504 = vld [vmem:[#allocation3 + $0x10] sm:$0xf]
        %v505 = vld [vmem:[#allocation3 + $0x14] sm:$0xf]
        %v506 = vld [vmem:[%s2] sm:$0xff]
        %v507 = vld [vmem:[%s2 + $0x8] sm:$0xff]
        %509 = vset.pattern.permute.xlu0 0
        %510 = vperm.xlu0 %509, %v506
        %v511 = vpop.permute.xlu0 %510
        %514 = vset.pattern.permute.xlu0 0
        %515 = vperm.xlu0 %514, %v507
        %v516 = vpop.permute.xlu0 %515
        %v520 = vunpack.c.l.b16 %v498
        %v521 = vunpack.c.l.b16 %v499
        %v522 = vpack.c.b16 %v521, %v520
        %v529 = vunpack.c.l.b16 %v500
        %v530 = vunpack.c.l.b16 %v501
        %v531 = vunpack.c.l.b16 %v502
        %v532 = vunpack.c.l.b16 %v503
        %v533 = vunpack.c.l.b16 %v504
        %v534 = vunpack.c.l.b16 %v505
        %v535 = vpack.c.b16 %v530, %v529
        %v536 = vpack.c.b16 %v532, %v531
        %v537 = vpack.c.b16 %v534, %v533
        %vm541 = vcmask 392192
        %v543 = vsel %vm541, %v522, 0
        %545 = vmatpush.bf16.msra.mxu0 0
        %546 = vmatpush.bf16.msra.mxu0 0
        %547 = vmatpush.bf16.msra.mxu0 0
        %548 = vmatpush.bf16.msra.mxu0 0
        %549 = vmatpush.bf16.msra.mxu0 0
        %550 = vmatpush.bf16.msra.mxu0 %v537
        %551 = vmatpush.bf16.msra.mxu0 %v536
        %552 = vmatpush.bf16.msra.mxu0 %v535
        %553 = vmatmul.bf16.gmra.mxu0 %v543
        %v554 = vpop.f32.mrf.mxu0
        %v555 = vadd.f32 %v511, %v554
        %v556 = vpop.f32.mrf.mxu0
        %v557 = vadd.f32 %v516, %v556
        %558 = vdwg.mxu0
        %vm559 = vcmp.gt.f32.partialorder %v555, 0.0
        %vm560 = vcmp.gt.f32.partialorder %v557, 0.0
        %v561 = vmul.f32 %v555, 0.1
        %v562 = vmul.f32 %v557, 0.1
        %v563 = vsel %vm559, %v555, %v561
        %v564 = vsel %vm560, %v557, %v562
        %v565 = vpack.c.bf16 %v563, %v563
        %v566 = vpack.c.bf16 %v564, %v564
        %569 = vrot.lane.b32.xlu0 %v565, 3
        %v570 = vpop.permute.xlu0 %569
        %571 = vrot.lane.b32.xlu0 %v566, 3
        %v572 = vpop.permute.xlu0 %571
        %v573 = vrot.slane %v570, 4
        %v574 = vrot.slane %v572, 4
        %vm575 = vcmask 23552
        %v576 = vsel %vm575, %v573, %v570
        %v577 = vsel %vm575, %v574, %v572
        %vm580 = vcmask 1043480
        %vm581 = vcmask 23556
        %vm582 = vmor %vm581, %vm580
        %583 = vst.msk [vmem:[#allocation2] sm:$0xff] %vm582, %v576
        %584 = vst.msk [vmem:[#allocation2 + $0x8] sm:$0xff] %vm582, %v577
        %v585 = vld [vmem:[#allocation2] sm:$0xff]
        %v586 = vld [vmem:[#allocation2 + $0x8] sm:$0xff]
        %589 = vrot.lane.b32.xlu0 %v585, 126
        %v590 = vpop.permute.xlu0 %589
        %591 = vrot.lane.b32.xlu0 %v586, 126
        %v592 = vpop.permute.xlu0 %591
        %v593 = vrot.slane %v590, 4
        %v594 = vrot.slane %v592, 4
        %v595 = vsel %vm421, %v590, %v593
        %v596 = vsel %vm421, %v592, %v594
        %599 = vst [vmem:[#allocation3] sm:$0xf] %v595
        %600 = vst [vmem:[#allocation3 + $0x4] sm:$0xf] %v596
        %v601 = vld [vmem:[#allocation2] sm:$0xff]
        %v602 = vld [vmem:[#allocation2 + $0x8] sm:$0xff]
        %605 = vrot.lane.b32.xlu0 %v601, 125
        %v606 = vpop.permute.xlu0 %605
        %607 = vrot.lane.b32.xlu0 %v602, 125
        %v608 = vpop.permute.xlu0 %607
        %v609 = vrot.slane %v606, 4
        %v610 = vrot.slane %v608, 4
        %v611 = vsel %vm456, %v606, %v609
        %v612 = vsel %vm456, %v608, %v610
        %615 = vst [vmem:[#allocation3 + $0x8] sm:$0xf] %v611
        %616 = vst [vmem:[#allocation3 + $0xc] sm:$0xf] %v612
        %v617 = vld [vmem:[#allocation2] sm:$0xff]
        %v618 = vld [vmem:[#allocation2 + $0x8] sm:$0xff]
        %621 = vrot.lane.b32.xlu0 %v617, 124
        %v622 = vpop.permute.xlu0 %621
        %623 = vrot.lane.b32.xlu0 %v618, 124
        %v624 = vpop.permute.xlu0 %623
        %v625 = vrot.slane %v622, 4
        %v626 = vrot.slane %v624, 4
        %v627 = vsel %vm491, %v622, %v625
        %v628 = vsel %vm491, %v624, %v626
        %631 = vst [vmem:[#allocation3 + $0x10] sm:$0xf] %v627
        %632 = vst [vmem:[#allocation3 + $0x14] sm:$0xf] %v628
        %v633 = vld [vmem:[%s3] sm:$0xf]
        %v634 = vld [vmem:[%s3 + $0x4] sm:$0xf]
        %v635 = vld [vmem:[#allocation3] sm:$0xf]
        %v636 = vld [vmem:[#allocation3 + $0x4] sm:$0xf]
        %v637 = vld [vmem:[#allocation3 + $0x8] sm:$0xf]
        %v638 = vld [vmem:[#allocation3 + $0xc] sm:$0xf]
        %v639 = vld [vmem:[#allocation3 + $0x10] sm:$0xf]
        %v640 = vld [vmem:[#allocation3 + $0x14] sm:$0xf]
        %v641 = vld [vmem:[%s4] sm:$0xff]
        %v642 = vld [vmem:[%s4 + $0x8] sm:$0xff]
        %644 = vset.pattern.permute.xlu0 0
        %645 = vperm.xlu0 %644, %v641
        %v646 = vpop.permute.xlu0 %645
        %649 = vset.pattern.permute.xlu0 0
        %650 = vperm.xlu0 %649, %v642
        %v651 = vpop.permute.xlu0 %650
        %v655 = vunpack.c.l.b16 %v633
        %v656 = vunpack.c.l.b16 %v634
        %v657 = vpack.c.b16 %v656, %v655
        %v664 = vunpack.c.l.b16 %v635
        %v665 = vunpack.c.l.b16 %v636
        %v666 = vunpack.c.l.b16 %v637
        %v667 = vunpack.c.l.b16 %v638
        %v668 = vunpack.c.l.b16 %v639
        %v669 = vunpack.c.l.b16 %v640
        %v670 = vpack.c.b16 %v665, %v664
        %v671 = vpack.c.b16 %v667, %v666
        %v672 = vpack.c.b16 %v669, %v668
        %v677 = vsel %vm541, %v657, 0
        %679 = vmatpush.bf16.msra.mxu0 0
        %680 = vmatpush.bf16.msra.mxu0 0
        %681 = vmatpush.bf16.msra.mxu0 0
        %682 = vmatpush.bf16.msra.mxu0 0
        %683 = vmatpush.bf16.msra.mxu0 0
        %684 = vmatpush.bf16.msra.mxu0 %v672
        %685 = vmatpush.bf16.msra.mxu0 %v671
        %686 = vmatpush.bf16.msra.mxu0 %v670
        %687 = vmatmul.bf16.gmra.mxu0 %v677
        %v688 = vpop.f32.mrf.mxu0
        %v689 = vadd.f32 %v646, %v688
        %v690 = vpop.f32.mrf.mxu0
        %v691 = vadd.f32 %v651, %v690
        %692 = vdwg.mxu0
        %695 = vrot.lane.b32.xlu0 %v689, 3
        %v696 = vpop.permute.xlu0 %695
        %697 = vrot.lane.b32.xlu0 %v691, 3
        %v698 = vpop.permute.xlu0 %697
        %v701 = vadd.f32 %v395, %v696
        %v702 = vadd.f32 %v396, %v696
        %v703 = vadd.f32 %v397, %v698
        %v704 = vadd.f32 %v398, %v698
        %vm705 = vcmp.gt.f32.partialorder %v701, 0.0
        %vm706 = vcmp.gt.f32.partialorder %v702, 0.0
        %vm707 = vcmp.gt.f32.partialorder %v703, 0.0
        %vm708 = vcmp.gt.f32.partialorder %v704, 0.0
        %v709 = vmul.f32 %v701, 0.1
        %v710 = vmul.f32 %v702, 0.1
        %v711 = vmul.f32 %v703, 0.1
        %v712 = vmul.f32 %v704, 0.1
        %v713 = vsel %vm705, %v701, %v709
        %v714 = vsel %vm706, %v702, %v710
        %v715 = vsel %vm707, %v703, %v711
        %v716 = vsel %vm708, %v704, %v712
        %v717 = vpack.c.bf16 %v714, %v713
        %v718 = vpack.c.bf16 %v716, %v715
        %719 = vst.msk [vmem:[#allocation2] sm:$0xff] %vm582, %v717
        %720 = vst.msk [vmem:[#allocation2 + $0x8] sm:$0xff] %vm582, %v718
        %v721 = vld [vmem:[#allocation2] sm:$0xf]
        %v722 = vld [vmem:[#allocation2 + $0x8] sm:$0xf]
        %723 = vst [vmem:[#allocation3] sm:$0xf] %v721
        %724 = vst [vmem:[#allocation3 + $0x4] sm:$0xf] %v722
        %v725 = vld [vmem:[#allocation2] sm:$0xff]
        %v726 = vld [vmem:[#allocation2 + $0x8] sm:$0xff]
        %729 = vrot.lane.b32.xlu0 %v725, 125
        %v730 = vpop.permute.xlu0 %729
        %731 = vrot.lane.b32.xlu0 %v726, 125
        %v732 = vpop.permute.xlu0 %731
        %v733 = vrot.slane %v730, 4
        %v734 = vrot.slane %v732, 4
        %v735 = vsel %vm456, %v730, %v733
        %v736 = vsel %vm456, %v732, %v734
        %739 = vst [vmem:[#allocation3 + $0x8] sm:$0xf] %v735
        %740 = vst [vmem:[#allocation3 + $0xc] sm:$0xf] %v736
        %v741 = vld [vmem:[#allocation2] sm:$0xff]
        %v742 = vld [vmem:[#allocation2 + $0x8] sm:$0xff]
        %745 = vrot.lane.b32.xlu0 %v741, 122
        %v746 = vpop.permute.xlu0 %745
        %747 = vrot.lane.b32.xlu0 %v742, 122
        %v748 = vpop.permute.xlu0 %747
        %v749 = vrot.slane %v746, 4
        %v750 = vrot.slane %v748, 4
        %vm751 = vcmask 998400
        %v752 = vsel %vm751, %v746, %v749
        %v753 = vsel %vm751, %v748, %v750
        %756 = vst [vmem:[#allocation3 + $0x10] sm:$0xf] %v752
        %757 = vst [vmem:[#allocation3 + $0x14] sm:$0xf] %v753
        %v758 = vld [vmem:[%s5] sm:$0xf]
        %v759 = vld [vmem:[%s5 + $0x4] sm:$0xf]
        %v760 = vld [vmem:[#allocation3] sm:$0xf]
        %v761 = vld [vmem:[#allocation3 + $0x4] sm:$0xf]
        %v762 = vld [vmem:[#allocation3 + $0x8] sm:$0xf]
        %v763 = vld [vmem:[#allocation3 + $0xc] sm:$0xf]
        %v764 = vld [vmem:[#allocation3 + $0x10] sm:$0xf]
        %v765 = vld [vmem:[#allocation3 + $0x14] sm:$0xf]
        %v766 = vld [vmem:[%s6] sm:$0xff]
        %v767 = vld [vmem:[%s6 + $0x8] sm:$0xff]
        %769 = vset.pattern.permute.xlu0 0
        %770 = vperm.xlu0 %769, %v766
        %v771 = vpop.permute.xlu0 %770
        %774 = vset.pattern.permute.xlu0 0
        %775 = vperm.xlu0 %774, %v767
        %v776 = vpop.permute.xlu0 %775
        %v780 = vunpack.c.l.b16 %v758
        %v781 = vunpack.c.l.b16 %v759
        %v782 = vpack.c.b16 %v781, %v780
        %v789 = vunpack.c.l.b16 %v760
        %v790 = vunpack.c.l.b16 %v761
        %v791 = vunpack.c.l.b16 %v762
        %v792 = vunpack.c.l.b16 %v763
        %v793 = vunpack.c.l.b16 %v764
        %v794 = vunpack.c.l.b16 %v765
        %v795 = vpack.c.b16 %v790, %v789
        %v796 = vpack.c.b16 %v792, %v791
        %v797 = vpack.c.b16 %v794, %v793
        %v802 = vsel %vm541, %v782, 0
        %804 = vmatpush.bf16.msra.mxu0 0
        %805 = vmatpush.bf16.msra.mxu0 0
        %806 = vmatpush.bf16.msra.mxu0 0
        %807 = vmatpush.bf16.msra.mxu0 0
        %808 = vmatpush.bf16.msra.mxu0 0
        %809 = vmatpush.bf16.msra.mxu0 %v797
        %810 = vmatpush.bf16.msra.mxu0 %v796
        %811 = vmatpush.bf16.msra.mxu0 %v795
        %812 = vmatmul.bf16.gmra.mxu0 %v802
        %v813 = vpop.f32.mrf.mxu0
        %v814 = vadd.f32 %v771, %v813
        %v815 = vpop.f32.mrf.mxu0
        %v816 = vadd.f32 %v776, %v815
        %817 = vdwg.mxu0
        %vm818 = vcmp.gt.f32.partialorder %v814, 0.0
        %vm819 = vcmp.gt.f32.partialorder %v816, 0.0
        %v820 = vmul.f32 %v814, 0.1
        %v821 = vmul.f32 %v816, 0.1
        %v822 = vsel %vm818, %v814, %v820
        %v823 = vsel %vm819, %v816, %v821
        %v824 = vpack.c.bf16 %v822, %v822
        %v825 = vpack.c.bf16 %v823, %v823
        %828 = vrot.lane.b32.xlu0 %v824, 3
        %v829 = vpop.permute.xlu0 %828
        %830 = vrot.lane.b32.xlu0 %v825, 3
        %v831 = vpop.permute.xlu0 %830
        %v832 = vrot.slane %v829, 4
        %v833 = vrot.slane %v831, 4
        %v834 = vsel %vm575, %v832, %v829
        %v835 = vsel %vm575, %v833, %v831
        %838 = vst.msk [vmem:[#allocation2] sm:$0xff] %vm582, %v834
        %839 = vst.msk [vmem:[#allocation2 + $0x8] sm:$0xff] %vm582, %v835
        %v840 = vld [vmem:[#allocation2] sm:$0xff]
        %v841 = vld [vmem:[#allocation2 + $0x8] sm:$0xff]
        %844 = vrot.lane.b32.xlu0 %v840, 126
        %v845 = vpop.permute.xlu0 %844
        %846 = vrot.lane.b32.xlu0 %v841, 126
        %v847 = vpop.permute.xlu0 %846
        %v848 = vrot.slane %v845, 4
        %v849 = vrot.slane %v847, 4
        %v850 = vsel %vm421, %v845, %v848
        %v851 = vsel %vm421, %v847, %v849
        %854 = vst [vmem:[#allocation3] sm:$0xf] %v850
        %855 = vst [vmem:[#allocation3 + $0x4] sm:$0xf] %v851
        %v856 = vld [vmem:[#allocation2] sm:$0xff]
        %v857 = vld [vmem:[#allocation2 + $0x8] sm:$0xff]
        %860 = vrot.lane.b32.xlu0 %v856, 125
        %v861 = vpop.permute.xlu0 %860
        %862 = vrot.lane.b32.xlu0 %v857, 125
        %v863 = vpop.permute.xlu0 %862
        %v864 = vrot.slane %v861, 4
        %v865 = vrot.slane %v863, 4
        %v866 = vsel %vm456, %v861, %v864
        %v867 = vsel %vm456, %v863, %v865
        %870 = vst [vmem:[#allocation3 + $0x8] sm:$0xf] %v866
        %871 = vst [vmem:[#allocation3 + $0xc] sm:$0xf] %v867
        %v872 = vld [vmem:[#allocation2] sm:$0xff]
        %v873 = vld [vmem:[#allocation2 + $0x8] sm:$0xff]
        %876 = vrot.lane.b32.xlu0 %v872, 124
        %v877 = vpop.permute.xlu0 %876
        %878 = vrot.lane.b32.xlu0 %v873, 124
        %v879 = vpop.permute.xlu0 %878
        %v880 = vrot.slane %v877, 4
        %v881 = vrot.slane %v879, 4
        %v882 = vsel %vm491, %v877, %v880
        %v883 = vsel %vm491, %v879, %v881
        %886 = vst [vmem:[#allocation3 + $0x10] sm:$0xf] %v882
        %887 = vst [vmem:[#allocation3 + $0x14] sm:$0xf] %v883
        %v888 = vld [vmem:[%s7] sm:$0xf]
        %v889 = vld [vmem:[%s7 + $0x4] sm:$0xf]
        %v890 = vld [vmem:[#allocation3] sm:$0xf]
        %v891 = vld [vmem:[#allocation3 + $0x4] sm:$0xf]
        %v892 = vld [vmem:[#allocation3 + $0x8] sm:$0xf]
        %v893 = vld [vmem:[#allocation3 + $0xc] sm:$0xf]
        %v894 = vld [vmem:[#allocation3 + $0x10] sm:$0xf]
        %v895 = vld [vmem:[#allocation3 + $0x14] sm:$0xf]
        %v896 = vld [vmem:[%s8] sm:$0xff]
        %v897 = vld [vmem:[%s8 + $0x8] sm:$0xff]
        %899 = vset.pattern.permute.xlu0 0
        %900 = vperm.xlu0 %899, %v896
        %v901 = vpop.permute.xlu0 %900
        %904 = vset.pattern.permute.xlu0 0
        %905 = vperm.xlu0 %904, %v897
        %v906 = vpop.permute.xlu0 %905
        %v910 = vunpack.c.l.b16 %v888
        %v911 = vunpack.c.l.b16 %v889
        %v912 = vpack.c.b16 %v911, %v910
        %v919 = vunpack.c.l.b16 %v890
        %v920 = vunpack.c.l.b16 %v891
        %v921 = vunpack.c.l.b16 %v892
        %v922 = vunpack.c.l.b16 %v893
        %v923 = vunpack.c.l.b16 %v894
        %v924 = vunpack.c.l.b16 %v895
        %v925 = vpack.c.b16 %v920, %v919
        %v926 = vpack.c.b16 %v922, %v921
        %v927 = vpack.c.b16 %v924, %v923
        %v932 = vsel %vm541, %v912, 0
        %934 = vmatpush.bf16.msra.mxu0 0
        %935 = vmatpush.bf16.msra.mxu0 0
        %936 = vmatpush.bf16.msra.mxu0 0
        %937 = vmatpush.bf16.msra.mxu0 0
        %938 = vmatpush.bf16.msra.mxu0 0
        %939 = vmatpush.bf16.msra.mxu0 %v927
        %940 = vmatpush.bf16.msra.mxu0 %v926
        %941 = vmatpush.bf16.msra.mxu0 %v925
        %942 = vmatmul.bf16.gmra.mxu0 %v932
        %v943 = vpop.f32.mrf.mxu0
        %v944 = vadd.f32 %v901, %v943
        %v945 = vpop.f32.mrf.mxu0
        %v946 = vadd.f32 %v906, %v945
        %947 = vdwg.mxu0
        %950 = vrot.lane.b32.xlu0 %v944, 3
        %v951 = vpop.permute.xlu0 %950
        %952 = vrot.lane.b32.xlu0 %v946, 3
        %v953 = vpop.permute.xlu0 %952
        %v956 = vadd.f32 %v701, %v951
        %v957 = vadd.f32 %v702, %v951
        %v958 = vadd.f32 %v703, %v953
        %v959 = vadd.f32 %v704, %v953
        %v960 = vadd.f32 %v956, 0.0
        %v961 = vadd.f32 %v957, 0.0
        %v962 = vadd.f32 %v958, 0.0
        %v963 = vadd.f32 %v959, 0.0
        %vm964 = vcmp.gt.f32.partialorder %v960, 0.0
        %vm965 = vcmp.gt.f32.partialorder %v961, 0.0
        %vm966 = vcmp.gt.f32.partialorder %v962, 0.0
        %vm967 = vcmp.gt.f32.partialorder %v963, 0.0
        %v968 = vmul.f32 %v960, 0.1
        %v969 = vmul.f32 %v961, 0.1
        %v970 = vmul.f32 %v962, 0.1
        %v971 = vmul.f32 %v963, 0.1
        %v972 = vsel %vm964, %v960, %v968
        %v973 = vsel %vm965, %v961, %v969
        %v974 = vsel %vm966, %v962, %v970
        %v975 = vsel %vm967, %v963, %v971
        %v976 = vpack.c.bf16 %v973, %v972
        %v977 = vpack.c.bf16 %v975, %v974
        %978 = vst.msk [vmem:[#allocation2] sm:$0xff] %vm582, %v976
        %979 = vst.msk [vmem:[#allocation2 + $0x8] sm:$0xff] %vm582, %v977
        %v980 = vld [vmem:[%s9] sm:$0xff]
        %v981 = vld [vmem:[%s9 + $0x8] sm:$0xff]
        %v982 = vld [vmem:[#allocation4] sm:$0x1]
        %v983 = vld [vmem:[#allocation2] sm:$0xf]
        %v984 = vld [vmem:[#allocation2 + $0x8] sm:$0xf]
        %v985 = vunpack.c.l.bf16 %v983
        %v986 = vunpack.c.l.bf16 %v984
        %988 = vset.pattern.permute.xlu0 0
        %989 = vperm.xlu0 %988, %v980
        %v990 = vpop.permute.xlu0 %989
        %993 = vset.pattern.permute.xlu0 0
        %994 = vperm.xlu0 %993, %v981
        %v995 = vpop.permute.xlu0 %994
        %v997 = vmul.f32 %v985, %v990
        %v998 = vmul.f32 %v986, %v995
        %v999 = vadd.f32 %v997, 0.0
        %v1000 = vadd.f32 %v998, 0.0
        %v1001 = vld [vmem:[#allocation2] sm:$0xff]
        %v1002 = vld [vmem:[#allocation2 + $0x8] sm:$0xff]
        %v1003 = vunpack.c.l.bf16 %v1001
        %v1004 = vunpack.c.h.bf16 %v1001
        %v1005 = vunpack.c.l.bf16 %v1002
        %v1006 = vunpack.c.h.bf16 %v1002
        %1007 = vset.pattern.permute.xlu0 1
        %1008 = vperm.xlu0 %1007, %v980
        %v1009 = vpop.permute.xlu0 %1008
        %1011 = vset.pattern.permute.xlu0 1
        %1012 = vperm.xlu0 %1011, %v981
        %v1013 = vpop.permute.xlu0 %1012
        %v1015 = vmul.f32 %v1003, %v1009
        %v1016 = vmul.f32 %v1004, %v1009
        %v1017 = vmul.f32 %v1005, %v1013
        %v1018 = vmul.f32 %v1006, %v1013
        %1023 = vrot.lane.b32.xlu0 %v1015, 127
        %v1024 = vpop.permute.xlu0 %1023
        %1025 = vrot.lane.b32.xlu0 %v1016, 127
        %v1026 = vpop.permute.xlu0 %1025
        %1027 = vrot.lane.b32.xlu0 %v1017, 127
        %v1028 = vpop.permute.xlu0 %1027
        %1029 = vrot.lane.b32.xlu0 %v1018, 127
        %v1030 = vpop.permute.xlu0 %1029
        %vm1031 = vcmask 1039360
        %v1032 = vsel %vm1031, %v1024, %v1026
        %v1033 = vsel %vm1031, %v1028, %v1030
        %v1036 = vadd.f32 %v999, %v1032
        %v1037 = vadd.f32 %v1000, %v1033
        %1038 = vset.pattern.permute.xlu0 2
        %1039 = vperm.xlu0 %1038, %v980
        %v1040 = vpop.permute.xlu0 %1039
        %1042 = vset.pattern.permute.xlu0 2
        %1043 = vperm.xlu0 %1042, %v981
        %v1044 = vpop.permute.xlu0 %1043
        %v1046 = vmul.f32 %v1003, %v1040
        %v1047 = vmul.f32 %v1004, %v1040
        %v1048 = vmul.f32 %v1005, %v1044
        %v1049 = vmul.f32 %v1006, %v1044
        %1054 = vrot.lane.b32.xlu0 %v1046, 126
        %v1055 = vpop.permute.xlu0 %1054
        %1056 = vrot.lane.b32.xlu0 %v1047, 126
        %v1057 = vpop.permute.xlu0 %1056
        %1058 = vrot.lane.b32.xlu0 %v1048, 126
        %v1059 = vpop.permute.xlu0 %1058
        %1060 = vrot.lane.b32.xlu0 %v1049, 126
        %v1061 = vpop.permute.xlu0 %1060
        %vm1062 = vcmask 1031168
        %v1063 = vsel %vm1062, %v1055, %v1057
        %v1064 = vsel %vm1062, %v1059, %v1061
        %v1067 = vadd.f32 %v1036, %v1063
        %v1068 = vadd.f32 %v1037, %v1064
        %1069 = vset.pattern.permute.xlu0 3
        %1070 = vperm.xlu0 %1069, %v980
        %v1071 = vpop.permute.xlu0 %1070
        %1073 = vset.pattern.permute.xlu0 3
        %1074 = vperm.xlu0 %1073, %v981
        %v1075 = vpop.permute.xlu0 %1074
        %v1077 = vmul.f32 %v1003, %v1071
        %v1078 = vmul.f32 %v1004, %v1071
        %v1079 = vmul.f32 %v1005, %v1075
        %v1080 = vmul.f32 %v1006, %v1075
        %1085 = vrot.lane.b32.xlu0 %v1077, 125
        %v1086 = vpop.permute.xlu0 %1085
        %1087 = vrot.lane.b32.xlu0 %v1078, 125
        %v1088 = vpop.permute.xlu0 %1087
        %1089 = vrot.lane.b32.xlu0 %v1079, 125
        %v1090 = vpop.permute.xlu0 %1089
        %1091 = vrot.lane.b32.xlu0 %v1080, 125
        %v1092 = vpop.permute.xlu0 %1091
        %vm1093 = vcmask 1022976
        %v1094 = vsel %vm1093, %v1086, %v1088
        %v1095 = vsel %vm1093, %v1090, %v1092
        %v1098 = vadd.f32 %v1067, %v1094
        %v1099 = vadd.f32 %v1068, %v1095
        %1100 = vset.pattern.permute.xlu0 4
        %1101 = vperm.xlu0 %1100, %v980
        %v1102 = vpop.permute.xlu0 %1101
        %1104 = vset.pattern.permute.xlu0 4
        %1105 = vperm.xlu0 %1104, %v981
        %v1106 = vpop.permute.xlu0 %1105
        %v1108 = vmul.f32 %v1003, %v1102
        %v1109 = vmul.f32 %v1004, %v1102
        %v1110 = vmul.f32 %v1005, %v1106
        %v1111 = vmul.f32 %v1006, %v1106
        %1116 = vrot.lane.b32.xlu0 %v1108, 124
        %v1117 = vpop.permute.xlu0 %1116
        %1118 = vrot.lane.b32.xlu0 %v1109, 124
        %v1119 = vpop.permute.xlu0 %1118
        %1120 = vrot.lane.b32.xlu0 %v1110, 124
        %v1121 = vpop.permute.xlu0 %1120
        %1122 = vrot.lane.b32.xlu0 %v1111, 124
        %v1123 = vpop.permute.xlu0 %1122
        %vm1124 = vcmask 1014784
        %v1125 = vsel %vm1124, %v1117, %v1119
        %v1126 = vsel %vm1124, %v1121, %v1123
        %v1129 = vadd.f32 %v1098, %v1125
        %v1130 = vadd.f32 %v1099, %v1126
        %1131 = vset.pattern.permute.xlu0 5
        %1132 = vperm.xlu0 %1131, %v980
        %v1133 = vpop.permute.xlu0 %1132
        %1135 = vset.pattern.permute.xlu0 5
        %1136 = vperm.xlu0 %1135, %v981
        %v1137 = vpop.permute.xlu0 %1136
        %v1139 = vmul.f32 %v1003, %v1133
        %v1140 = vmul.f32 %v1004, %v1133
        %v1141 = vmul.f32 %v1005, %v1137
        %v1142 = vmul.f32 %v1006, %v1137
        %1147 = vrot.lane.b32.xlu0 %v1139, 123
        %v1148 = vpop.permute.xlu0 %1147
        %1149 = vrot.lane.b32.xlu0 %v1140, 123
        %v1150 = vpop.permute.xlu0 %1149
        %1151 = vrot.lane.b32.xlu0 %v1141, 123
        %v1152 = vpop.permute.xlu0 %1151
        %1153 = vrot.lane.b32.xlu0 %v1142, 123
        %v1154 = vpop.permute.xlu0 %1153
        %vm1155 = vcmask 1006592
        %v1156 = vsel %vm1155, %v1148, %v1150
        %v1157 = vsel %vm1155, %v1152, %v1154
        %v1160 = vadd.f32 %v1129, %v1156
        %v1161 = vadd.f32 %v1130, %v1157
        %1162 = vset.pattern.permute.xlu0 6
        %1163 = vperm.xlu0 %1162, %v980
        %v1164 = vpop.permute.xlu0 %1163
        %1166 = vset.pattern.permute.xlu0 6
        %1167 = vperm.xlu0 %1166, %v981
        %v1168 = vpop.permute.xlu0 %1167
        %v1170 = vmul.f32 %v1003, %v1164
        %v1171 = vmul.f32 %v1004, %v1164
        %v1172 = vmul.f32 %v1005, %v1168
        %v1173 = vmul.f32 %v1006, %v1168
        %1178 = vrot.lane.b32.xlu0 %v1170, 122
        %v1179 = vpop.permute.xlu0 %1178
        %1180 = vrot.lane.b32.xlu0 %v1171, 122
        %v1181 = vpop.permute.xlu0 %1180
        %1182 = vrot.lane.b32.xlu0 %v1172, 122
        %v1183 = vpop.permute.xlu0 %1182
        %1184 = vrot.lane.b32.xlu0 %v1173, 122
        %v1185 = vpop.permute.xlu0 %1184
        %vm1186 = vcmask 998400
        %v1187 = vsel %vm1186, %v1179, %v1181
        %v1188 = vsel %vm1186, %v1183, %v1185
        %v1191 = vadd.f32 %v1160, %v1187
        %v1192 = vadd.f32 %v1161, %v1188
        %v1193 = vadd.f32 %v1191, %v1192
        %v1194 = vrot.slane %v1193, 4
        %v1195 = vadd.f32 %v1193, %v1194
        %v1196 = vrot.slane %v1195, 2
        %v1197 = vadd.f32 %v1195, %v1196
        %v1198 = vrot.slane %v1197, 1
        %v1199 = vadd.f32 %v1197, %v1198
        %1201 = vset.pattern.permute.xlu0 0
        %1202 = vperm.xlu0 %1201, %v982
        %v1203 = vpop.permute.xlu0 %1202
        %v1205 = vperm.slane %v1203, 0
        %v1206 = vadd.f32 %v1199, %v1205
        %v1207 = vtanh.pop %v1206
        %1208 = vst [vmem:[%s380] sm:$0x1] %v1207
        %s1209 = sand.u32 %s271, 1
        %s1210 = scalar_lea.sflag [#allocation6], %s1209
        %s1211 = sand.u32 %s271, 1
        %s1212 = scalar_lea.vmem [#allocation5], %s1211
        // Predicated region
        $region65: #{a_call__.9} parent=63 // pred_check
          %p1213 = pneg %p281
        $region66: #{a_call__.9} parent=63 // pred_check_branch
          %1215 = sbr.rel (%p1213) target = $region68
        $region67: #{a_call__.9} parent=63 // pred_region
          %1217 = vsyncadd %s1210, 0
          %s1218 = scalar_lea.hbm %s11, %s27
          %s1220 = sshll.u32 %s1212, 4
          %s1221 = int_to_ptr.vmem [resolvable:$true] %s1220
          %s1222 = sshll.u32 %s1218, 4
          %s1223 = int_to_ptr.hbm [resolvable:$true] %s1222
          %1225 = dma.vmem_to_hbm [thread:$0]  %s1221, 16, %s1223, %s1210
        $region68: #{a_call__.9} parent=63 // pred_fallthru
          _
      $region64: #{a_call__.9} parent=5 // pred_fallthru
        _
      %p1226 = scmp.le.s32.totalorder 2, %s22
      // Predicated region
      $region69: #{a_call__.9} parent=5 // pred_check
        %p1227 = pneg %p1226
      $region70: #{a_call__.9} parent=5 // pred_check_branch
        %1229 = sbr.rel (%p1227) target = $region72
      $region71: #{a_call__.9} parent=5 // pred_region
        %s1230 = ssub.s32 %s22, 2
        // Predicated region
        $region73: #{a_call__.9} parent=71 // pred_check
          %p1231 = pneg %p287
        $region74: #{a_call__.9} parent=71 // pred_check_branch
          %1233 = sbr.rel (%p1231) target = $region76
        $region75: #{a_call__.9} parent=71 // pred_region
          %s1234 = sand.u32 %s272, 1
          %s1235 = scalar_lea.sflag [#allocation6], %s1234
          %s1236 = sand.u32 %s272, 1
          %s1237 = scalar_lea.vmem [#allocation5], %s1236
          %1239 = dma.done %s1235, 16
        $region76: #{a_call__.9} parent=71 // pred_fallthru
          _
      $region72: #{a_call__.9} parent=5 // pred_fallthru
        _
    $region6: #{a_call__.9} parent=1 // loop_footer
      %s26 = sadd.s32 1, %s22
    $region7: #{a_call__.9} parent=1 // loop_footer_branch
      %21 = sbr.rel target = $region3
    $region8: #{a_call__.9} parent=1 // loop_exit
      _
    %1240 = vsyncpa [#allocation6], 1
    %s1241 = scalar_lea.sflag [#allocation6], 1
    %1242 = vsyncpa %s1241, 1

</llo_original>
